<compile_context>
chip_gen: v6e
topology: v6e:2x2x1
jax: 0.10.0
libtpu: 0.0.40
codegen_flags: <defaults>
</compile_context>

<pallas_src>
import numpy as np

import jax
import jax.numpy as jnp
from jax import lax
from jax.experimental import pallas as pl
from jax.experimental.pallas import tpu as pltpu   # noqa: F401  (TPU backend)

# ---- scaled hyperparameters (original values in comments) ----
B = 2            # batch
C = 64           # UNet channels            (orig 1024)
L = 32           # UNet sequence length     (orig 128)
P = 256          # proj / "4096" dim        (orig 4096)
E = 64           # event-embedding dim      (orig 256)
CTX = 16         # context_dim              (orig 16)
N_EVENTS = 4     # n_events                 (orig 16)
BN_EPS = 1e-5
NEG_SLOPE = 0.2
NH = 3 * CTX + E         # fused head width: [mean | std | dense | ce] = 112
NHP = 128                # heads padded to a full vreg lane width
R = B * L                # batch folded onto the sublane axis
N_DOWN = 5
N_UP = 5


# ---------------------------------------------------------------------------
# The single fused kernel
# ---------------------------------------------------------------------------
def _fused_forward_kernel(x_ref, dw_ref, dbss_ref, tdn_ref,
                          uw_ref, ubss_ref, aup_ref,
                          pw_ref, pb_ref, bsum_ref,
                          hw_ref, hb_ref, noise_ref, oh_ref, aw_ref, ab_ref,
                          enc_ref, ns_ref, dense_ref, emb_ref, amp_ref):
    f32 = jnp.float32
    bf16 = jnp.bfloat16

    def epilogue(acc, bss):                      # bias -> LeakyReLU -> eval BN
        acc = acc + bss[0:1, :]
        acc = jnp.where(acc > 0, acc, NEG_SLOPE * acc)
        return acc * bss[1:2, :] + bss[2:3, :]

    h = x_ref[...]                               # (B*L, C) f32, batch-stacked rows
    skips = {}
    lc = L

    # ----- encoder: 5 x (Conv1d k3 s2 p1 -> LeakyReLU -> BN) -----------------
    for i in range(N_DOWN):
        lout = lc // 2
        # channel mix: one (64, 64) x (64, 192) bf16 dot = all 3 taps at once
        g = jnp.dot(h.astype(bf16), dw_ref[i],
                    preferred_element_type=f32).astype(bf16)          # (R, 3C)
        # position mix: per-tap 0/1 block-diag selection (zero-pad + stride 2)
        acc = jnp.dot(tdn_ref[3 * i + 0], g[:, 0 * C:1 * C], preferred_element_type=f32)
        acc += jnp.dot(tdn_ref[3 * i + 1], g[:, 1 * C:2 * C], preferred_element_type=f32)
        acc += jnp.dot(tdn_ref[3 * i + 2], g[:, 2 * C:3 * C], preferred_element_type=f32)
        h = epilogue(acc, dbss_ref[i])                                 # (R, C)
        lc = lout
        skips[lc] = h

    # ----- decoder: 5 x (ConvTranspose1d k4 s2 p1 -> LeakyReLU -> BN) + skips -
    for i in range(N_UP):
        g = jnp.dot(h.astype(bf16), uw_ref[i],
                    preferred_element_type=f32).astype(bf16)           # (R, 4C)
        acc = jnp.dot(aup_ref[4 * i + 0], g[:, 0 * C:1 * C], preferred_element_type=f32)
        acc += jnp.dot(aup_ref[4 * i + 1], g[:, 1 * C:2 * C], preferred_element_type=f32)
        acc += jnp.dot(aup_ref[4 * i + 2], g[:, 2 * C:3 * C], preferred_element_type=f32)
        acc += jnp.dot(aup_ref[4 * i + 3], g[:, 3 * C:4 * C], preferred_element_type=f32)
        h = epilogue(acc, ubss_ref[i])
        lc = 2 * lc
        if lc in skips:                          # fused skip connection
            h = h + skips[lc]

    # ----- 1x1 proj (Conv1d C->P) + per-batch position sum -------------------
    enc = jnp.dot(h.astype(bf16), pw_ref[...],
                  preferred_element_type=f32) + pb_ref[...]            # (R, P)
    for b in range(B):                           # lane-dense (L, 256) stores
        enc_ref[b] = enc[b * L:(b + 1) * L, :]
    enc_sum = jnp.dot(bsum_ref[...], enc, preferred_element_type=f32)  # (B, P)

    # ----- fused heads: [ctx_mean | ctx_std | memory_ctx | embed_ctx | pad] --
    heads = jnp.dot(enc_sum.astype(bf16), hw_ref[...],
                    preferred_element_type=f32) + hb_ref[...]          # (B, 128)
    mean = heads[:, 0:CTX]
    std = heads[:, CTX:2 * CTX]
    dense = heads[:, 2 * CTX:3 * CTX]
    ce = heads[:, 3 * CTX:3 * CTX + E]
    ns_ref[...] = mean + noise_ref[...] * std
    dense_ref[...] = dense
    emb = ce[:, None, :] + oh_ref[...]                                 # (B, n_events, E)
    emb_ref[...] = emb
    amp_ref[...] = jnp.sum(emb * aw_ref[...], axis=-1, keepdims=True) + ab_ref[...]


def fused_forward(prep, x_rows, noise, oh):
    out_shape = (
        jax.ShapeDtypeStruct((B, L, P), jnp.float32),        # encoded (channels-last)
        jax.ShapeDtypeStruct((B, CTX), jnp.float32),          # non_sparse
        jax.ShapeDtypeStruct((B, CTX), jnp.float32),          # dense
        jax.ShapeDtypeStruct((B, N_EVENTS, E), jnp.float32),  # embeddings
        jax.ShapeDtypeStruct((B, N_EVENTS, 1), jnp.float32),  # amps
    )
    # Single invocation, no grid: every operand is a full-array VMEM block
    # (total weights + activations << 1 MiB at these sizes, fits all gens).
    return pl.pallas_call(_fused_forward_kernel, out_shape=out_shape)(
        x_rows, prep["dw"], prep["dbss"], prep["tdn"],
        prep["uw"], prep["ubss"], prep["aup"],
        prep["proj_w"], prep["proj_b"], prep["bsum"],
        prep["heads_w"], prep["heads_b"], noise, oh,
        prep["amp_w"], prep["amp_b"])


# ---------------------------------------------------------------------------
# Model forward (well-defined subset)
# ---------------------------------------------------------------------------
def model_forward(prep, x, event_idx, noise_key):
    # TODO(synk): stft(x, 2048, 256) front-end and the refractory fft_convolve
    # (make_refractory_filter / fft_convolve are undefined externals) are omitted;
    # the encoder consumes spectrogram-like (B, C, L) features directly.
    # Dropout layers are identity (eval mode).
    h = jnp.transpose(x, (0, 2, 1)).reshape(B * L, C)   # one NCW->NLC transpose, batch on rows
    noise = jax.random.normal(noise_key, (B, CTX), jnp.float32)
    # TODO(synk): sparsify2 (top-k event extraction + packed impulse train) is an
    # undefined external; event_idx is a deterministic stand-in, and
    # embed_one_hot(one_hot) is a row gather of its weight matrix.
    oh = jnp.take(prep["emb_oh_w"], event_idx, axis=0) + prep["emb_oh_b"]
    encoded, non_sparse, dense, embeddings, amps = fused_forward(prep, h, noise, oh)
    # `encoded` is returned channels-last (B, L, P): the lane-dense view of the
    # original (B, P, L), avoiding an extra HBM transpose pass.
    # TODO(synk): self.to_events (MicroEvent / WavetableSynth / GenerateImpulse),
    # fft_frequency_decompose/recompose and ReverbGenerator depend on undefined
    # externals; event synthesis / reverb are omitted.
    return encoded, non_sparse, embeddings, amps, dense


# ---------------------------------------------------------------------------
# Parameters: raw (PyTorch-like) init + one-time kernel-ready repacking
# ---------------------------------------------------------------------------
def init_raw_params(key):
    raw = {}
    keys = iter(jax.random.split(key, 80))

    def nrm(shape, s=0.1):
        return jax.random.normal(next(keys), shape, jnp.float32) * s

    for i in range(N_DOWN):
        raw[f"down{i}_w"] = nrm((C, C, 3))                   # Conv1d (Cout, Cin, K)
        raw[f"down{i}_b"] = nrm((C,), 0.05)
        raw[f"down{i}_g"] = 1.0 + nrm((C,), 0.05)
        raw[f"down{i}_be"] = nrm((C,), 0.05)
        raw[f"up{i}_w"] = nrm((C, C, 4))                     # ConvTranspose1d (Cin, Cout, K)
        raw[f"up{i}_b"] = nrm((C,), 0.05)
        raw[f"up{i}_g"] = 1.0 + nrm((C,), 0.05)
        raw[f"up{i}_be"] = nrm((C,), 0.05)
    raw["proj_w"] = nrm((C, P)); raw["proj_b"] = nrm((P,), 0.05)
    raw["emb_ctx_w"] = nrm((P, E)); raw["emb_ctx_b"] = nrm((E,), 0.05)
    raw["emb_oh_w"] = nrm((P, E)); raw["emb_oh_b"] = nrm((E,), 0.05)
    raw["amp_w"] = nrm((E, 1)); raw["amp_b"] = nrm((1,), 0.05)
    raw["ctx_mean_w"] = nrm((P, CTX)); raw["ctx_mean_b"] = nrm((CTX,), 0.05)
    raw["ctx_std_w"] = nrm((P, CTX)); raw["ctx_std_b"] = nrm((CTX,), 0.05)
    raw["mem_ctx_w"] = nrm((P, CTX)); raw["mem_ctx_b"] = nrm((CTX,), 0.05)
    return raw


def _make_position_mats():
    """Constant 0/1 block-diagonal position-mixing matrices (built once, host side).

    Down layer i, tap k (k=0..2):  T[j, t] = 1  iff  t == 2j + k - 1  (and j, t valid)
       -> implements zero-padding + stride-2 subsampling of Conv1d(k=3, s=2, p=1).
    Up layer i, tap k (k=0..3):    A[t, m] = 1  iff  t == 2m + k - 1  (and t, m valid)
       -> implements the cropped, stride-2 interleave of ConvTranspose1d(k=4, s=2, p=1).
    Each (32, 32) per-batch block is kron'ed with eye(B) so the batch-stacked
    (B*32, C) activation slab never mixes across batches.
    """
    row = np.arange(L)[:, None]
    col = np.arange(L)[None, :]
    eye_b = np.eye(B, dtype=np.float32)

    tdn = []
    lc = L
    for _ in range(N_DOWN):
        lout = lc // 2
        for k in range(3):
            m = ((col == 2 * row + k - 1) & (row < lout) & (col < lc)).astype(np.float32)
            tdn.append(np.kron(eye_b, m))
        lc = lout

    aup = []
    lc = 1
    for _ in range(N_UP):
        for k in range(4):
            m = ((row == 2 * col + k - 1) & (row < 2 * lc) & (col < lc)).astype(np.float32)
            aup.append(np.kron(eye_b, m))
        lc = 2 * lc

    return (jnp.asarray(np.stack(tdn), dtype=jnp.bfloat16),    # (15, B*L, B*L)
            jnp.asarray(np.stack(aup), dtype=jnp.bfloat16))    # (20, B*L, B*L)


def prepare_params(raw):
    """Fold eval-BN (running_mean=0, running_var=1), pack all conv taps into one
    lane-concatenated channel-mix weight per layer, build the position-mix
    selection matrices, and fuse + pad the four heads.  Done once, outside jit."""
    prep = {}
    dw, dbss, uw, ubss = [], [], [], []
    for i in range(N_DOWN):
        w = raw[f"down{i}_w"]                                 # (Cout, Cin, 3)
        dw.append(jnp.concatenate([w[:, :, k].T for k in range(3)], axis=1))   # (Cin, 3C)
        scale = raw[f"down{i}_g"] / jnp.sqrt(1.0 + BN_EPS)
        dbss.append(jnp.stack([raw[f"down{i}_b"], scale, raw[f"down{i}_be"]]))
    for i in range(N_UP):
        wu = raw[f"up{i}_w"]                                  # (Cin, Cout, 4)
        uw.append(jnp.concatenate([wu[:, :, k] for k in range(4)], axis=1))    # (Cin, 4C)
        scale = raw[f"up{i}_g"] / jnp.sqrt(1.0 + BN_EPS)
        ubss.append(jnp.stack([raw[f"up{i}_b"], scale, raw[f"up{i}_be"]]))
    prep["dw"] = jnp.stack(dw).astype(jnp.bfloat16)           # (5, C, 3C)
    prep["dbss"] = jnp.stack(dbss).astype(jnp.float32)        # (5, 3, C)
    prep["uw"] = jnp.stack(uw).astype(jnp.bfloat16)           # (5, C, 4C)
    prep["ubss"] = jnp.stack(ubss).astype(jnp.float32)        # (5, 3, C)
    prep["tdn"], prep["aup"] = _make_position_mats()

    prep["proj_w"] = raw["proj_w"].astype(jnp.bfloat16)
    prep["proj_b"] = raw["proj_b"].reshape(1, P).astype(jnp.float32)

    # fused heads (torch.mean's 1/L folded into the first two blocks), padded to 128 lanes
    hw = jnp.concatenate([raw["ctx_mean_w"] / L, raw["ctx_std_w"] / L,
                          raw["mem_ctx_w"], raw["emb_ctx_w"],
                          jnp.zeros((P, NHP - NH), jnp.float32)], axis=1)
    hb = jnp.concatenate([raw["ctx_mean_b"], raw["ctx_std_b"], raw["mem_ctx_b"],
                          raw["emb_ctx_b"], jnp.zeros((NHP - NH,), jnp.float32)])
    prep["heads_w"] = hw.astype(jnp.bfloat16)                 # (P, 128)
    prep["heads_b"] = hb.reshape(1, NHP).astype(jnp.float32)

    # per-batch position-sum matrix: torch.sum(encoded, dim=-1)
    prep["bsum"] = jnp.asarray(
        np.kron(np.eye(B, dtype=np.float32), np.ones((1, L), np.float32)))     # (B, B*L)

    prep["emb_oh_w"] = raw["emb_oh_w"].astype(jnp.float32)
    prep["emb_oh_b"] = raw["emb_oh_b"].astype(jnp.float32)
    prep["amp_w"] = raw["amp_w"].reshape(1, 1, E).astype(jnp.float32)
    prep["amp_b"] = raw["amp_b"].reshape(1, 1, 1).astype(jnp.float32)
    return prep


# ---------------------------------------------------------------------------
# Pure-JAX reference (f32, lax convs) for the correctness check
# ---------------------------------------------------------------------------
def ref_forward(raw, x, event_idx, noise_key):
    def leaky(v):
        return jnp.where(v > 0, v, NEG_SLOPE * v)

    def bn(v, g, be):
        s = g / jnp.sqrt(1.0 + BN_EPS)
        return v * s[None, :, None] + be[None, :, None]

    h = x
    ctx = {}
    for i in range(N_DOWN):
        y = lax.conv_general_dilated(h, raw[f"down{i}_w"], (2,), [(1, 1)],
                                     dimension_numbers=("NCH", "OIH", "NCH"))
        y = y + raw[f"down{i}_b"][None, :, None]
        h = bn(leaky(y), raw[f"down{i}_g"], raw[f"down{i}_be"])
        ctx[h.shape[-1]] = h
    for i in range(N_UP):
        w_eff = jnp.transpose(jnp.flip(raw[f"up{i}_w"], -1), (1, 0, 2))
        y = lax.conv_general_dilated(h, w_eff, (1,), [(2, 2)], lhs_dilation=(2,),
                                     dimension_numbers=("NCH", "OIH", "NCH"))
        y = y + raw[f"up{i}_b"][None, :, None]
        h = bn(leaky(y), raw[f"up{i}_g"], raw[f"up{i}_be"])
        if h.shape[-1] in ctx:
            h = h + ctx[h.shape[-1]]
    enc = jnp.einsum("bcl,cp->blp", h, raw["proj_w"]) + raw["proj_b"][None, None, :]
    enc_sum = jnp.sum(enc, axis=1)
    enc_mean = jnp.mean(enc, axis=1)
    noise = jax.random.normal(noise_key, (B, CTX), jnp.float32)
    ns = (enc_mean @ raw["ctx_mean_w"] + raw["ctx_mean_b"]) + \
         noise * (enc_mean @ raw["ctx_std_w"] + raw["ctx_std_b"])
    dense = enc_sum @ raw["mem_ctx_w"] + raw["mem_ctx_b"]
    ce = enc_sum @ raw["emb_ctx_w"] + raw["emb_ctx_b"]
    oh = raw["emb_oh_w"][event_idx] + raw["emb_oh_b"]
    emb = ce[:, None, :] + oh
    amps = emb @ raw["amp_w"] + raw["amp_b"]
    return enc, ns, emb, amps, dense


if __name__ == "__main__":
    key = jax.random.PRNGKey(0)
    k_param, k_x, k_idx, k_noise = jax.random.split(key, 4)

    raw = init_raw_params(k_param)
    prep = prepare_params(raw)
    x = jax.random.normal(k_x, (B, C, L), jnp.float32)
    event_idx = jax.random.randint(k_idx, (B, N_EVENTS), 0, P)   # stand-in for sparsify2

    outs = jax.jit(model_forward)(prep, x, event_idx, k_noise)
    jax.block_until_ready(outs)

    refs = ref_forward(raw, x, event_idx, k_noise)
    # bf16 MXU operands across 11 chained matmul stages -> compare at a few-%
    # (relative to each output's max magnitude) tolerance.
    names = ["encoded", "non_sparse", "embeddings", "amps", "dense"]
    for name, a, b in zip(names, outs, refs):
        a = jnp.asarray(a, jnp.float32)
        b = jnp.asarray(b, jnp.float32)
        assert a.shape == b.shape, (name, a.shape, b.shape)
        err = float(jnp.max(jnp.abs(a - b)))
        tol = 4e-2 + 4e-2 * float(jnp.max(jnp.abs(b)))
        assert err <= tol, (name, err, tol)

    print("KERNEL_OK")
</pallas_src>

<mosaic_0001>
module attributes {stable_mosaic.version = 11 : i64} {
  func.func @_fused_forward_kernel(%arg0: memref<64x64xf32, #tpu.memory_space<vmem>>, %arg1: memref<5x64x192xbf16, #tpu.memory_space<vmem>>, %arg2: memref<5x3x64xf32, #tpu.memory_space<vmem>>, %arg3: memref<15x64x64xbf16, #tpu.memory_space<vmem>>, %arg4: memref<5x64x256xbf16, #tpu.memory_space<vmem>>, %arg5: memref<5x3x64xf32, #tpu.memory_space<vmem>>, %arg6: memref<20x64x64xbf16, #tpu.memory_space<vmem>>, %arg7: memref<64x256xbf16, #tpu.memory_space<vmem>>, %arg8: memref<1x256xf32, #tpu.memory_space<vmem>>, %arg9: memref<2x64xf32, #tpu.memory_space<vmem>>, %arg10: memref<256x128xbf16, #tpu.memory_space<vmem>>, %arg11: memref<1x128xf32, #tpu.memory_space<vmem>>, %arg12: memref<2x16xf32, #tpu.memory_space<vmem>>, %arg13: memref<2x4x64xf32, #tpu.memory_space<vmem>>, %arg14: memref<1x1x64xf32, #tpu.memory_space<vmem>>, %arg15: memref<1x1x1xf32, #tpu.memory_space<vmem>>, %arg16: memref<2x32x256xf32, #tpu.memory_space<vmem>>, %arg17: memref<2x16xf32, #tpu.memory_space<vmem>>, %arg18: memref<2x16xf32, #tpu.memory_space<vmem>>, %arg19: memref<2x4x64xf32, #tpu.memory_space<vmem>>, %arg20: memref<2x4x1xf32, #tpu.memory_space<vmem>>) attributes {dimension_semantics = [], scalar_prefetch = 0 : i64, scratch_operands = 0 : i64, tpu.core_type = #tpu.core_type<tc>} {
    %c0 = arith.constant 0 : index
    %c0_0 = arith.constant 0 : index
    %0 = vector.load %arg0[%c0, %c0_0] : memref<64x64xf32, #tpu.memory_space<vmem>>, vector<64x64xf32>
    %1 = arith.truncf %0 : vector<64x64xf32> to vector<64x64xbf16>
    %c0_1 = arith.constant 0 : index
    %c0_2 = arith.constant 0 : index
    %c0_3 = arith.constant 0 : index
    %2 = vector.load %arg1[%c0_1, %c0_2, %c0_3] : memref<5x64x192xbf16, #tpu.memory_space<vmem>>, vector<1x64x192xbf16>
    %3 = vector.shape_cast %2 : vector<1x64x192xbf16> to vector<64x192xbf16>
    %cst = arith.constant dense<0.000000e+00> : vector<64x192xf32>
    %4 = tpu.matmul %1, %3, %cst {dimension_numbers = #tpu.dot_dimension_numbers<[1], [0], [0], [1], [0, 0, 1, 1], [], []>} : vector<64x64xbf16>, vector<64x192xbf16>, vector<64x192xf32> -> vector<64x192xf32>
    %5 = arith.truncf %4 : vector<64x192xf32> to vector<64x192xbf16>
    %c0_4 = arith.constant 0 : index
    %c0_5 = arith.constant 0 : index
    %c0_6 = arith.constant 0 : index
    %6 = vector.load %arg3[%c0_4, %c0_5, %c0_6] : memref<15x64x64xbf16, #tpu.memory_space<vmem>>, vector<1x64x64xbf16>
    %7 = vector.shape_cast %6 : vector<1x64x64xbf16> to vector<64x64xbf16>
    %8 = vector.extract_strided_slice %5 {offsets = [0, 0], sizes = [64, 64], strides = [1, 1]} : vector<64x192xbf16> to vector<64x64xbf16>
    %cst_7 = arith.constant dense<0.000000e+00> : vector<64x64xf32>
    %9 = tpu.matmul %7, %8, %cst_7 {dimension_numbers = #tpu.dot_dimension_numbers<[1], [0], [0], [1], [0, 0, 1, 1], [], []>} : vector<64x64xbf16>, vector<64x64xbf16>, vector<64x64xf32> -> vector<64x64xf32>
    %c1 = arith.constant 1 : index
    %c0_8 = arith.constant 0 : index
    %c0_9 = arith.constant 0 : index
    %10 = vector.load %arg3[%c1, %c0_8, %c0_9] : memref<15x64x64xbf16, #tpu.memory_space<vmem>>, vector<1x64x64xbf16>
    %11 = vector.shape_cast %10 : vector<1x64x64xbf16> to vector<64x64xbf16>
    %12 = vector.extract_strided_slice %5 {offsets = [0, 64], sizes = [64, 64], strides = [1, 1]} : vector<64x192xbf16> to vector<64x64xbf16>
    %cst_10 = arith.constant dense<0.000000e+00> : vector<64x64xf32>
    %13 = tpu.matmul %11, %12, %cst_10 {dimension_numbers = #tpu.dot_dimension_numbers<[1], [0], [0], [1], [0, 0, 1, 1], [], []>} : vector<64x64xbf16>, vector<64x64xbf16>, vector<64x64xf32> -> vector<64x64xf32>
    %14 = arith.addf %9, %13 : vector<64x64xf32>
    %c2 = arith.constant 2 : index
    %c0_11 = arith.constant 0 : index
    %c0_12 = arith.constant 0 : index
    %15 = vector.load %arg3[%c2, %c0_11, %c0_12] : memref<15x64x64xbf16, #tpu.memory_space<vmem>>, vector<1x64x64xbf16>
    %16 = vector.shape_cast %15 : vector<1x64x64xbf16> to vector<64x64xbf16>
    %17 = vector.extract_strided_slice %5 {offsets = [0, 128], sizes = [64, 64], strides = [1, 1]} : vector<64x192xbf16> to vector<64x64xbf16>
    %cst_13 = arith.constant dense<0.000000e+00> : vector<64x64xf32>
    %18 = tpu.matmul %16, %17, %cst_13 {dimension_numbers = #tpu.dot_dimension_numbers<[1], [0], [0], [1], [0, 0, 1, 1], [], []>} : vector<64x64xbf16>, vector<64x64xbf16>, vector<64x64xf32> -> vector<64x64xf32>
    %19 = arith.addf %14, %18 : vector<64x64xf32>
    %c0_14 = arith.constant 0 : index
    %c0_15 = arith.constant 0 : index
    %c0_16 = arith.constant 0 : index
    %20 = vector.load %arg2[%c0_14, %c0_15, %c0_16] : memref<5x3x64xf32, #tpu.memory_space<vmem>>, vector<1x3x64xf32>
    %21 = vector.shape_cast %20 : vector<1x3x64xf32> to vector<3x64xf32>
    %22 = vector.extract_strided_slice %21 {offsets = [0, 0], sizes = [1, 64], strides = [1, 1]} : vector<3x64xf32> to vector<1x64xf32>
    %23 = vector.broadcast %22 : vector<1x64xf32> to vector<64x64xf32>
    %24 = arith.addf %19, %23 : vector<64x64xf32>
    %cst_17 = arith.constant 0.000000e+00 : f32
    %25 = vector.broadcast %cst_17 : f32 to vector<64x64xf32>
    %26 = arith.cmpf ogt, %24, %25 : vector<64x64xf32>
    %cst_18 = arith.constant 2.000000e-01 : f32
    %27 = vector.broadcast %cst_18 : f32 to vector<64x64xf32>
    %28 = arith.mulf %27, %24 : vector<64x64xf32>
    %29 = arith.select %26, %24, %28 : vector<64x64xi1>, vector<64x64xf32>
    %30 = vector.extract_strided_slice %21 {offsets = [1, 0], sizes = [1, 64], strides = [1, 1]} : vector<3x64xf32> to vector<1x64xf32>
    %31 = vector.broadcast %30 : vector<1x64xf32> to vector<64x64xf32>
    %32 = arith.mulf %29, %31 : vector<64x64xf32>
    %33 = vector.extract_strided_slice %21 {offsets = [2, 0], sizes = [1, 64], strides = [1, 1]} : vector<3x64xf32> to vector<1x64xf32>
    %34 = vector.broadcast %33 : vector<1x64xf32> to vector<64x64xf32>
    %35 = arith.addf %32, %34 : vector<64x64xf32>
    %36 = arith.truncf %35 : vector<64x64xf32> to vector<64x64xbf16>
    %c1_19 = arith.constant 1 : index
    %c0_20 = arith.constant 0 : index
    %c0_21 = arith.constant 0 : index
    %37 = vector.load %arg1[%c1_19, %c0_20, %c0_21] : memref<5x64x192xbf16, #tpu.memory_space<vmem>>, vector<1x64x192xbf16>
    %38 = vector.shape_cast %37 : vector<1x64x192xbf16> to vector<64x192xbf16>
    %cst_22 = arith.constant dense<0.000000e+00> : vector<64x192xf32>
    %39 = tpu.matmul %36, %38, %cst_22 {dimension_numbers = #tpu.dot_dimension_numbers<[1], [0], [0], [1], [0, 0, 1, 1], [], []>} : vector<64x64xbf16>, vector<64x192xbf16>, vector<64x192xf32> -> vector<64x192xf32>
    %40 = arith.truncf %39 : vector<64x192xf32> to vector<64x192xbf16>
    %c3 = arith.constant 3 : index
    %c0_23 = arith.constant 0 : index
    %c0_24 = arith.constant 0 : index
    %41 = vector.load %arg3[%c3, %c0_23, %c0_24] : memref<15x64x64xbf16, #tpu.memory_space<vmem>>, vector<1x64x64xbf16>
    %42 = vector.shape_cast %41 : vector<1x64x64xbf16> to vector<64x64xbf16>
    %43 = vector.extract_strided_slice %40 {offsets = [0, 0], sizes = [64, 64], strides = [1, 1]} : vector<64x192xbf16> to vector<64x64xbf16>
    %cst_25 = arith.constant dense<0.000000e+00> : vector<64x64xf32>
    %44 = tpu.matmul %42, %43, %cst_25 {dimension_numbers = #tpu.dot_dimension_numbers<[1], [0], [0], [1], [0, 0, 1, 1], [], []>} : vector<64x64xbf16>, vector<64x64xbf16>, vector<64x64xf32> -> vector<64x64xf32>
    %c4 = arith.constant 4 : index
    %c0_26 = arith.constant 0 : index
    %c0_27 = arith.constant 0 : index
    %45 = vector.load %arg3[%c4, %c0_26, %c0_27] : memref<15x64x64xbf16, #tpu.memory_space<vmem>>, vector<1x64x64xbf16>
    %46 = vector.shape_cast %45 : vector<1x64x64xbf16> to vector<64x64xbf16>
    %47 = vector.extract_strided_slice %40 {offsets = [0, 64], sizes = [64, 64], strides = [1, 1]} : vector<64x192xbf16> to vector<64x64xbf16>
    %cst_28 = arith.constant dense<0.000000e+00> : vector<64x64xf32>
    %48 = tpu.matmul %46, %47, %cst_28 {dimension_numbers = #tpu.dot_dimension_numbers<[1], [0], [0], [1], [0, 0, 1, 1], [], []>} : vector<64x64xbf16>, vector<64x64xbf16>, vector<64x64xf32> -> vector<64x64xf32>
    %49 = arith.addf %44, %48 : vector<64x64xf32>
    %c5 = arith.constant 5 : index
    %c0_29 = arith.constant 0 : index
    %c0_30 = arith.constant 0 : index
    %50 = vector.load %arg3[%c5, %c0_29, %c0_30] : memref<15x64x64xbf16, #tpu.memory_space<vmem>>, vector<1x64x64xbf16>
    %51 = vector.shape_cast %50 : vector<1x64x64xbf16> to vector<64x64xbf16>
    %52 = vector.extract_strided_slice %40 {offsets = [0, 128], sizes = [64, 64], strides = [1, 1]} : vector<64x192xbf16> to vector<64x64xbf16>
    %cst_31 = arith.constant dense<0.000000e+00> : vector<64x64xf32>
    %53 = tpu.matmul %51, %52, %cst_31 {dimension_numbers = #tpu.dot_dimension_numbers<[1], [0], [0], [1], [0, 0, 1, 1], [], []>} : vector<64x64xbf16>, vector<64x64xbf16>, vector<64x64xf32> -> vector<64x64xf32>
    %54 = arith.addf %49, %53 : vector<64x64xf32>
    %c1_32 = arith.constant 1 : index
    %c0_33 = arith.constant 0 : index
    %c0_34 = arith.constant 0 : index
    %55 = vector.load %arg2[%c1_32, %c0_33, %c0_34] : memref<5x3x64xf32, #tpu.memory_space<vmem>>, vector<1x3x64xf32>
    %56 = vector.shape_cast %55 : vector<1x3x64xf32> to vector<3x64xf32>
    %57 = vector.extract_strided_slice %56 {offsets = [0, 0], sizes = [1, 64], strides = [1, 1]} : vector<3x64xf32> to vector<1x64xf32>
    %58 = vector.broadcast %57 : vector<1x64xf32> to vector<64x64xf32>
    %59 = arith.addf %54, %58 : vector<64x64xf32>
    %cst_35 = arith.constant 0.000000e+00 : f32
    %60 = vector.broadcast %cst_35 : f32 to vector<64x64xf32>
    %61 = arith.cmpf ogt, %59, %60 : vector<64x64xf32>
    %cst_36 = arith.constant 2.000000e-01 : f32
    %62 = vector.broadcast %cst_36 : f32 to vector<64x64xf32>
    %63 = arith.mulf %62, %59 : vector<64x64xf32>
    %64 = arith.select %61, %59, %63 : vector<64x64xi1>, vector<64x64xf32>
    %65 = vector.extract_strided_slice %56 {offsets = [1, 0], sizes = [1, 64], strides = [1, 1]} : vector<3x64xf32> to vector<1x64xf32>
    %66 = vector.broadcast %65 : vector<1x64xf32> to vector<64x64xf32>
    %67 = arith.mulf %64, %66 : vector<64x64xf32>
    %68 = vector.extract_strided_slice %56 {offsets = [2, 0], sizes = [1, 64], strides = [1, 1]} : vector<3x64xf32> to vector<1x64xf32>
    %69 = vector.broadcast %68 : vector<1x64xf32> to vector<64x64xf32>
    %70 = arith.addf %67, %69 : vector<64x64xf32>
    %71 = arith.truncf %70 : vector<64x64xf32> to vector<64x64xbf16>
    %c2_37 = arith.constant 2 : index
    %c0_38 = arith.constant 0 : index
    %c0_39 = arith.constant 0 : index
    %72 = vector.load %arg1[%c2_37, %c0_38, %c0_39] : memref<5x64x192xbf16, #tpu.memory_space<vmem>>, vector<1x64x192xbf16>
    %73 = vector.shape_cast %72 : vector<1x64x192xbf16> to vector<64x192xbf16>
    %cst_40 = arith.constant dense<0.000000e+00> : vector<64x192xf32>
    %74 = tpu.matmul %71, %73, %cst_40 {dimension_numbers = #tpu.dot_dimension_numbers<[1], [0], [0], [1], [0, 0, 1, 1], [], []>} : vector<64x64xbf16>, vector<64x192xbf16>, vector<64x192xf32> -> vector<64x192xf32>
    %75 = arith.truncf %74 : vector<64x192xf32> to vector<64x192xbf16>
    %c6 = arith.constant 6 : index
    %c0_41 = arith.constant 0 : index
    %c0_42 = arith.constant 0 : index
    %76 = vector.load %arg3[%c6, %c0_41, %c0_42] : memref<15x64x64xbf16, #tpu.memory_space<vmem>>, vector<1x64x64xbf16>
    %77 = vector.shape_cast %76 : vector<1x64x64xbf16> to vector<64x64xbf16>
    %78 = vector.extract_strided_slice %75 {offsets = [0, 0], sizes = [64, 64], strides = [1, 1]} : vector<64x192xbf16> to vector<64x64xbf16>
    %cst_43 = arith.constant dense<0.000000e+00> : vector<64x64xf32>
    %79 = tpu.matmul %77, %78, %cst_43 {dimension_numbers = #tpu.dot_dimension_numbers<[1], [0], [0], [1], [0, 0, 1, 1], [], []>} : vector<64x64xbf16>, vector<64x64xbf16>, vector<64x64xf32> -> vector<64x64xf32>
    %c7 = arith.constant 7 : index
    %c0_44 = arith.constant 0 : index
    %c0_45 = arith.constant 0 : index
    %80 = vector.load %arg3[%c7, %c0_44, %c0_45] : memref<15x64x64xbf16, #tpu.memory_space<vmem>>, vector<1x64x64xbf16>
    %81 = vector.shape_cast %80 : vector<1x64x64xbf16> to vector<64x64xbf16>
    %82 = vector.extract_strided_slice %75 {offsets = [0, 64], sizes = [64, 64], strides = [1, 1]} : vector<64x192xbf16> to vector<64x64xbf16>
    %cst_46 = arith.constant dense<0.000000e+00> : vector<64x64xf32>
    %83 = tpu.matmul %81, %82, %cst_46 {dimension_numbers = #tpu.dot_dimension_numbers<[1], [0], [0], [1], [0, 0, 1, 1], [], []>} : vector<64x64xbf16>, vector<64x64xbf16>, vector<64x64xf32> -> vector<64x64xf32>
    %84 = arith.addf %79, %83 : vector<64x64xf32>
    %c8 = arith.constant 8 : index
    %c0_47 = arith.constant 0 : index
    %c0_48 = arith.constant 0 : index
    %85 = vector.load %arg3[%c8, %c0_47, %c0_48] : memref<15x64x64xbf16, #tpu.memory_space<vmem>>, vector<1x64x64xbf16>
    %86 = vector.shape_cast %85 : vector<1x64x64xbf16> to vector<64x64xbf16>
    %87 = vector.extract_strided_slice %75 {offsets = [0, 128], sizes = [64, 64], strides = [1, 1]} : vector<64x192xbf16> to vector<64x64xbf16>
    %cst_49 = arith.constant dense<0.000000e+00> : vector<64x64xf32>
    %88 = tpu.matmul %86, %87, %cst_49 {dimension_numbers = #tpu.dot_dimension_numbers<[1], [0], [0], [1], [0, 0, 1, 1], [], []>} : vector<64x64xbf16>, vector<64x64xbf16>, vector<64x64xf32> -> vector<64x64xf32>
    %89 = arith.addf %84, %88 : vector<64x64xf32>
    %c2_50 = arith.constant 2 : index
    %c0_51 = arith.constant 0 : index
    %c0_52 = arith.constant 0 : index
    %90 = vector.load %arg2[%c2_50, %c0_51, %c0_52] : memref<5x3x64xf32, #tpu.memory_space<vmem>>, vector<1x3x64xf32>
    %91 = vector.shape_cast %90 : vector<1x3x64xf32> to vector<3x64xf32>
    %92 = vector.extract_strided_slice %91 {offsets = [0, 0], sizes = [1, 64], strides = [1, 1]} : vector<3x64xf32> to vector<1x64xf32>
    %93 = vector.broadcast %92 : vector<1x64xf32> to vector<64x64xf32>
    %94 = arith.addf %89, %93 : vector<64x64xf32>
    %cst_53 = arith.constant 0.000000e+00 : f32
    %95 = vector.broadcast %cst_53 : f32 to vector<64x64xf32>
    %96 = arith.cmpf ogt, %94, %95 : vector<64x64xf32>
    %cst_54 = arith.constant 2.000000e-01 : f32
    %97 = vector.broadcast %cst_54 : f32 to vector<64x64xf32>
    %98 = arith.mulf %97, %94 : vector<64x64xf32>
    %99 = arith.select %96, %94, %98 : vector<64x64xi1>, vector<64x64xf32>
    %100 = vector.extract_strided_slice %91 {offsets = [1, 0], sizes = [1, 64], strides = [1, 1]} : vector<3x64xf32> to vector<1x64xf32>
    %101 = vector.broadcast %100 : vector<1x64xf32> to vector<64x64xf32>
    %102 = arith.mulf %99, %101 : vector<64x64xf32>
    %103 = vector.extract_strided_slice %91 {offsets = [2, 0], sizes = [1, 64], strides = [1, 1]} : vector<3x64xf32> to vector<1x64xf32>
    %104 = vector.broadcast %103 : vector<1x64xf32> to vector<64x64xf32>
    %105 = arith.addf %102, %104 : vector<64x64xf32>
    %106 = arith.truncf %105 : vector<64x64xf32> to vector<64x64xbf16>
    %c3_55 = arith.constant 3 : index
    %c0_56 = arith.constant 0 : index
    %c0_57 = arith.constant 0 : index
    %107 = vector.load %arg1[%c3_55, %c0_56, %c0_57] : memref<5x64x192xbf16, #tpu.memory_space<vmem>>, vector<1x64x192xbf16>
    %108 = vector.shape_cast %107 : vector<1x64x192xbf16> to vector<64x192xbf16>
    %cst_58 = arith.constant dense<0.000000e+00> : vector<64x192xf32>
    %109 = tpu.matmul %106, %108, %cst_58 {dimension_numbers = #tpu.dot_dimension_numbers<[1], [0], [0], [1], [0, 0, 1, 1], [], []>} : vector<64x64xbf16>, vector<64x192xbf16>, vector<64x192xf32> -> vector<64x192xf32>
    %110 = arith.truncf %109 : vector<64x192xf32> to vector<64x192xbf16>
    %c9 = arith.constant 9 : index
    %c0_59 = arith.constant 0 : index
    %c0_60 = arith.constant 0 : index
    %111 = vector.load %arg3[%c9, %c0_59, %c0_60] : memref<15x64x64xbf16, #tpu.memory_space<vmem>>, vector<1x64x64xbf16>
    %112 = vector.shape_cast %111 : vector<1x64x64xbf16> to vector<64x64xbf16>
    %113 = vector.extract_strided_slice %110 {offsets = [0, 0], sizes = [64, 64], strides = [1, 1]} : vector<64x192xbf16> to vector<64x64xbf16>
    %cst_61 = arith.constant dense<0.000000e+00> : vector<64x64xf32>
    %114 = tpu.matmul %112, %113, %cst_61 {dimension_numbers = #tpu.dot_dimension_numbers<[1], [0], [0], [1], [0, 0, 1, 1], [], []>} : vector<64x64xbf16>, vector<64x64xbf16>, vector<64x64xf32> -> vector<64x64xf32>
    %c10 = arith.constant 10 : index
    %c0_62 = arith.constant 0 : index
    %c0_63 = arith.constant 0 : index
    %115 = vector.load %arg3[%c10, %c0_62, %c0_63] : memref<15x64x64xbf16, #tpu.memory_space<vmem>>, vector<1x64x64xbf16>
    %116 = vector.shape_cast %115 : vector<1x64x64xbf16> to vector<64x64xbf16>
    %117 = vector.extract_strided_slice %110 {offsets = [0, 64], sizes = [64, 64], strides = [1, 1]} : vector<64x192xbf16> to vector<64x64xbf16>
    %cst_64 = arith.constant dense<0.000000e+00> : vector<64x64xf32>
    %118 = tpu.matmul %116, %117, %cst_64 {dimension_numbers = #tpu.dot_dimension_numbers<[1], [0], [0], [1], [0, 0, 1, 1], [], []>} : vector<64x64xbf16>, vector<64x64xbf16>, vector<64x64xf32> -> vector<64x64xf32>
    %119 = arith.addf %114, %118 : vector<64x64xf32>
    %c11 = arith.constant 11 : index
    %c0_65 = arith.constant 0 : index
    %c0_66 = arith.constant 0 : index
    %120 = vector.load %arg3[%c11, %c0_65, %c0_66] : memref<15x64x64xbf16, #tpu.memory_space<vmem>>, vector<1x64x64xbf16>
    %121 = vector.shape_cast %120 : vector<1x64x64xbf16> to vector<64x64xbf16>
    %122 = vector.extract_strided_slice %110 {offsets = [0, 128], sizes = [64, 64], strides = [1, 1]} : vector<64x192xbf16> to vector<64x64xbf16>
    %cst_67 = arith.constant dense<0.000000e+00> : vector<64x64xf32>
    %123 = tpu.matmul %121, %122, %cst_67 {dimension_numbers = #tpu.dot_dimension_numbers<[1], [0], [0], [1], [0, 0, 1, 1], [], []>} : vector<64x64xbf16>, vector<64x64xbf16>, vector<64x64xf32> -> vector<64x64xf32>
    %124 = arith.addf %119, %123 : vector<64x64xf32>
    %c3_68 = arith.constant 3 : index
    %c0_69 = arith.constant 0 : index
    %c0_70 = arith.constant 0 : index
    %125 = vector.load %arg2[%c3_68, %c0_69, %c0_70] : memref<5x3x64xf32, #tpu.memory_space<vmem>>, vector<1x3x64xf32>
    %126 = vector.shape_cast %125 : vector<1x3x64xf32> to vector<3x64xf32>
    %127 = vector.extract_strided_slice %126 {offsets = [0, 0], sizes = [1, 64], strides = [1, 1]} : vector<3x64xf32> to vector<1x64xf32>
    %128 = vector.broadcast %127 : vector<1x64xf32> to vector<64x64xf32>
    %129 = arith.addf %124, %128 : vector<64x64xf32>
    %cst_71 = arith.constant 0.000000e+00 : f32
    %130 = vector.broadcast %cst_71 : f32 to vector<64x64xf32>
    %131 = arith.cmpf ogt, %129, %130 : vector<64x64xf32>
    %cst_72 = arith.constant 2.000000e-01 : f32
    %132 = vector.broadcast %cst_72 : f32 to vector<64x64xf32>
    %133 = arith.mulf %132, %129 : vector<64x64xf32>
    %134 = arith.select %131, %129, %133 : vector<64x64xi1>, vector<64x64xf32>
    %135 = vector.extract_strided_slice %126 {offsets = [1, 0], sizes = [1, 64], strides = [1, 1]} : vector<3x64xf32> to vector<1x64xf32>
    %136 = vector.broadcast %135 : vector<1x64xf32> to vector<64x64xf32>
    %137 = arith.mulf %134, %136 : vector<64x64xf32>
    %138 = vector.extract_strided_slice %126 {offsets = [2, 0], sizes = [1, 64], strides = [1, 1]} : vector<3x64xf32> to vector<1x64xf32>
    %139 = vector.broadcast %138 : vector<1x64xf32> to vector<64x64xf32>
    %140 = arith.addf %137, %139 : vector<64x64xf32>
    %141 = arith.truncf %140 : vector<64x64xf32> to vector<64x64xbf16>
    %c4_73 = arith.constant 4 : index
    %c0_74 = arith.constant 0 : index
    %c0_75 = arith.constant 0 : index
    %142 = vector.load %arg1[%c4_73, %c0_74, %c0_75] : memref<5x64x192xbf16, #tpu.memory_space<vmem>>, vector<1x64x192xbf16>
    %143 = vector.shape_cast %142 : vector<1x64x192xbf16> to vector<64x192xbf16>
    %cst_76 = arith.constant dense<0.000000e+00> : vector<64x192xf32>
    %144 = tpu.matmul %141, %143, %cst_76 {dimension_numbers = #tpu.dot_dimension_numbers<[1], [0], [0], [1], [0, 0, 1, 1], [], []>} : vector<64x64xbf16>, vector<64x192xbf16>, vector<64x192xf32> -> vector<64x192xf32>
    %145 = arith.truncf %144 : vector<64x192xf32> to vector<64x192xbf16>
    %c12 = arith.constant 12 : index
    %c0_77 = arith.constant 0 : index
    %c0_78 = arith.constant 0 : index
    %146 = vector.load %arg3[%c12, %c0_77, %c0_78] : memref<15x64x64xbf16, #tpu.memory_space<vmem>>, vector<1x64x64xbf16>
    %147 = vector.shape_cast %146 : vector<1x64x64xbf16> to vector<64x64xbf16>
    %148 = vector.extract_strided_slice %145 {offsets = [0, 0], sizes = [64, 64], strides = [1, 1]} : vector<64x192xbf16> to vector<64x64xbf16>
    %cst_79 = arith.constant dense<0.000000e+00> : vector<64x64xf32>
    %149 = tpu.matmul %147, %148, %cst_79 {dimension_numbers = #tpu.dot_dimension_numbers<[1], [0], [0], [1], [0, 0, 1, 1], [], []>} : vector<64x64xbf16>, vector<64x64xbf16>, vector<64x64xf32> -> vector<64x64xf32>
    %c13 = arith.constant 13 : index
    %c0_80 = arith.constant 0 : index
    %c0_81 = arith.constant 0 : index
    %150 = vector.load %arg3[%c13, %c0_80, %c0_81] : memref<15x64x64xbf16, #tpu.memory_space<vmem>>, vector<1x64x64xbf16>
    %151 = vector.shape_cast %150 : vector<1x64x64xbf16> to vector<64x64xbf16>
    %152 = vector.extract_strided_slice %145 {offsets = [0, 64], sizes = [64, 64], strides = [1, 1]} : vector<64x192xbf16> to vector<64x64xbf16>
    %cst_82 = arith.constant dense<0.000000e+00> : vector<64x64xf32>
    %153 = tpu.matmul %151, %152, %cst_82 {dimension_numbers = #tpu.dot_dimension_numbers<[1], [0], [0], [1], [0, 0, 1, 1], [], []>} : vector<64x64xbf16>, vector<64x64xbf16>, vector<64x64xf32> -> vector<64x64xf32>
    %154 = arith.addf %149, %153 : vector<64x64xf32>
    %c14 = arith.constant 14 : index
    %c0_83 = arith.constant 0 : index
    %c0_84 = arith.constant 0 : index
    %155 = vector.load %arg3[%c14, %c0_83, %c0_84] : memref<15x64x64xbf16, #tpu.memory_space<vmem>>, vector<1x64x64xbf16>
    %156 = vector.shape_cast %155 : vector<1x64x64xbf16> to vector<64x64xbf16>
    %157 = vector.extract_strided_slice %145 {offsets = [0, 128], sizes = [64, 64], strides = [1, 1]} : vector<64x192xbf16> to vector<64x64xbf16>
    %cst_85 = arith.constant dense<0.000000e+00> : vector<64x64xf32>
    %158 = tpu.matmul %156, %157, %cst_85 {dimension_numbers = #tpu.dot_dimension_numbers<[1], [0], [0], [1], [0, 0, 1, 1], [], []>} : vector<64x64xbf16>, vector<64x64xbf16>, vector<64x64xf32> -> vector<64x64xf32>
    %159 = arith.addf %154, %158 : vector<64x64xf32>
    %c4_86 = arith.constant 4 : index
    %c0_87 = arith.constant 0 : index
    %c0_88 = arith.constant 0 : index
    %160 = vector.load %arg2[%c4_86, %c0_87, %c0_88] : memref<5x3x64xf32, #tpu.memory_space<vmem>>, vector<1x3x64xf32>
    %161 = vector.shape_cast %160 : vector<1x3x64xf32> to vector<3x64xf32>
    %162 = vector.extract_strided_slice %161 {offsets = [0, 0], sizes = [1, 64], strides = [1, 1]} : vector<3x64xf32> to vector<1x64xf32>
    %163 = vector.broadcast %162 : vector<1x64xf32> to vector<64x64xf32>
    %164 = arith.addf %159, %163 : vector<64x64xf32>
    %cst_89 = arith.constant 0.000000e+00 : f32
    %165 = vector.broadcast %cst_89 : f32 to vector<64x64xf32>
    %166 = arith.cmpf ogt, %164, %165 : vector<64x64xf32>
    %cst_90 = arith.constant 2.000000e-01 : f32
    %167 = vector.broadcast %cst_90 : f32 to vector<64x64xf32>
    %168 = arith.mulf %167, %164 : vector<64x64xf32>
    %169 = arith.select %166, %164, %168 : vector<64x64xi1>, vector<64x64xf32>
    %170 = vector.extract_strided_slice %161 {offsets = [1, 0], sizes = [1, 64], strides = [1, 1]} : vector<3x64xf32> to vector<1x64xf32>
    %171 = vector.broadcast %170 : vector<1x64xf32> to vector<64x64xf32>
    %172 = arith.mulf %169, %171 : vector<64x64xf32>
    %173 = vector.extract_strided_slice %161 {offsets = [2, 0], sizes = [1, 64], strides = [1, 1]} : vector<3x64xf32> to vector<1x64xf32>
    %174 = vector.broadcast %173 : vector<1x64xf32> to vector<64x64xf32>
    %175 = arith.addf %172, %174 : vector<64x64xf32>
    %176 = arith.truncf %175 : vector<64x64xf32> to vector<64x64xbf16>
    %c0_91 = arith.constant 0 : index
    %c0_92 = arith.constant 0 : index
    %c0_93 = arith.constant 0 : index
    %177 = vector.load %arg4[%c0_91, %c0_92, %c0_93] : memref<5x64x256xbf16, #tpu.memory_space<vmem>>, vector<1x64x256xbf16>
    %178 = vector.shape_cast %177 : vector<1x64x256xbf16> to vector<64x256xbf16>
    %cst_94 = arith.constant dense<0.000000e+00> : vector<64x256xf32>
    %179 = tpu.matmul %176, %178, %cst_94 {dimension_numbers = #tpu.dot_dimension_numbers<[1], [0], [0], [1], [0, 0, 1, 1], [], []>} : vector<64x64xbf16>, vector<64x256xbf16>, vector<64x256xf32> -> vector<64x256xf32>
    %180 = arith.truncf %179 : vector<64x256xf32> to vector<64x256xbf16>
    %c0_95 = arith.constant 0 : index
    %c0_96 = arith.constant 0 : index
    %c0_97 = arith.constant 0 : index
    %181 = vector.load %arg6[%c0_95, %c0_96, %c0_97] : memref<20x64x64xbf16, #tpu.memory_space<vmem>>, vector<1x64x64xbf16>
    %182 = vector.shape_cast %181 : vector<1x64x64xbf16> to vector<64x64xbf16>
    %183 = vector.extract_strided_slice %180 {offsets = [0, 0], sizes = [64, 64], strides = [1, 1]} : vector<64x256xbf16> to vector<64x64xbf16>
    %cst_98 = arith.constant dense<0.000000e+00> : vector<64x64xf32>
    %184 = tpu.matmul %182, %183, %cst_98 {dimension_numbers = #tpu.dot_dimension_numbers<[1], [0], [0], [1], [0, 0, 1, 1], [], []>} : vector<64x64xbf16>, vector<64x64xbf16>, vector<64x64xf32> -> vector<64x64xf32>
    %c1_99 = arith.constant 1 : index
    %c0_100 = arith.constant 0 : index
    %c0_101 = arith.constant 0 : index
    %185 = vector.load %arg6[%c1_99, %c0_100, %c0_101] : memref<20x64x64xbf16, #tpu.memory_space<vmem>>, vector<1x64x64xbf16>
    %186 = vector.shape_cast %185 : vector<1x64x64xbf16> to vector<64x64xbf16>
    %187 = vector.extract_strided_slice %180 {offsets = [0, 64], sizes = [64, 64], strides = [1, 1]} : vector<64x256xbf16> to vector<64x64xbf16>
    %cst_102 = arith.constant dense<0.000000e+00> : vector<64x64xf32>
    %188 = tpu.matmul %186, %187, %cst_102 {dimension_numbers = #tpu.dot_dimension_numbers<[1], [0], [0], [1], [0, 0, 1, 1], [], []>} : vector<64x64xbf16>, vector<64x64xbf16>, vector<64x64xf32> -> vector<64x64xf32>
    %189 = arith.addf %184, %188 : vector<64x64xf32>
    %c2_103 = arith.constant 2 : index
    %c0_104 = arith.constant 0 : index
    %c0_105 = arith.constant 0 : index
    %190 = vector.load %arg6[%c2_103, %c0_104, %c0_105] : memref<20x64x64xbf16, #tpu.memory_space<vmem>>, vector<1x64x64xbf16>
    %191 = vector.shape_cast %190 : vector<1x64x64xbf16> to vector<64x64xbf16>
    %192 = vector.extract_strided_slice %180 {offsets = [0, 128], sizes = [64, 64], strides = [1, 1]} : vector<64x256xbf16> to vector<64x64xbf16>
    %cst_106 = arith.constant dense<0.000000e+00> : vector<64x64xf32>
    %193 = tpu.matmul %191, %192, %cst_106 {dimension_numbers = #tpu.dot_dimension_numbers<[1], [0], [0], [1], [0, 0, 1, 1], [], []>} : vector<64x64xbf16>, vector<64x64xbf16>, vector<64x64xf32> -> vector<64x64xf32>
    %194 = arith.addf %189, %193 : vector<64x64xf32>
    %c3_107 = arith.constant 3 : index
    %c0_108 = arith.constant 0 : index
    %c0_109 = arith.constant 0 : index
    %195 = vector.load %arg6[%c3_107, %c0_108, %c0_109] : memref<20x64x64xbf16, #tpu.memory_space<vmem>>, vector<1x64x64xbf16>
    %196 = vector.shape_cast %195 : vector<1x64x64xbf16> to vector<64x64xbf16>
    %197 = vector.extract_strided_slice %180 {offsets = [0, 192], sizes = [64, 64], strides = [1, 1]} : vector<64x256xbf16> to vector<64x64xbf16>
    %cst_110 = arith.constant dense<0.000000e+00> : vector<64x64xf32>
    %198 = tpu.matmul %196, %197, %cst_110 {dimension_numbers = #tpu.dot_dimension_numbers<[1], [0], [0], [1], [0, 0, 1, 1], [], []>} : vector<64x64xbf16>, vector<64x64xbf16>, vector<64x64xf32> -> vector<64x64xf32>
    %199 = arith.addf %194, %198 : vector<64x64xf32>
    %c0_111 = arith.constant 0 : index
    %c0_112 = arith.constant 0 : index
    %c0_113 = arith.constant 0 : index
    %200 = vector.load %arg5[%c0_111, %c0_112, %c0_113] : memref<5x3x64xf32, #tpu.memory_space<vmem>>, vector<1x3x64xf32>
    %201 = vector.shape_cast %200 : vector<1x3x64xf32> to vector<3x64xf32>
    %202 = vector.extract_strided_slice %201 {offsets = [0, 0], sizes = [1, 64], strides = [1, 1]} : vector<3x64xf32> to vector<1x64xf32>
    %203 = vector.broadcast %202 : vector<1x64xf32> to vector<64x64xf32>
    %204 = arith.addf %199, %203 : vector<64x64xf32>
    %cst_114 = arith.constant 0.000000e+00 : f32
    %205 = vector.broadcast %cst_114 : f32 to vector<64x64xf32>
    %206 = arith.cmpf ogt, %204, %205 : vector<64x64xf32>
    %cst_115 = arith.constant 2.000000e-01 : f32
    %207 = vector.broadcast %cst_115 : f32 to vector<64x64xf32>
    %208 = arith.mulf %207, %204 : vector<64x64xf32>
    %209 = arith.select %206, %204, %208 : vector<64x64xi1>, vector<64x64xf32>
    %210 = vector.extract_strided_slice %201 {offsets = [1, 0], sizes = [1, 64], strides = [1, 1]} : vector<3x64xf32> to vector<1x64xf32>
    %211 = vector.broadcast %210 : vector<1x64xf32> to vector<64x64xf32>
    %212 = arith.mulf %209, %211 : vector<64x64xf32>
    %213 = vector.extract_strided_slice %201 {offsets = [2, 0], sizes = [1, 64], strides = [1, 1]} : vector<3x64xf32> to vector<1x64xf32>
    %214 = vector.broadcast %213 : vector<1x64xf32> to vector<64x64xf32>
    %215 = arith.addf %212, %214 : vector<64x64xf32>
    %216 = arith.addf %215, %140 : vector<64x64xf32>
    %217 = arith.truncf %216 : vector<64x64xf32> to vector<64x64xbf16>
    %c1_116 = arith.constant 1 : index
    %c0_117 = arith.constant 0 : index
    %c0_118 = arith.constant 0 : index
    %218 = vector.load %arg4[%c1_116, %c0_117, %c0_118] : memref<5x64x256xbf16, #tpu.memory_space<vmem>>, vector<1x64x256xbf16>
    %219 = vector.shape_cast %218 : vector<1x64x256xbf16> to vector<64x256xbf16>
    %cst_119 = arith.constant dense<0.000000e+00> : vector<64x256xf32>
    %220 = tpu.matmul %217, %219, %cst_119 {dimension_numbers = #tpu.dot_dimension_numbers<[1], [0], [0], [1], [0, 0, 1, 1], [], []>} : vector<64x64xbf16>, vector<64x256xbf16>, vector<64x256xf32> -> vector<64x256xf32>
    %221 = arith.truncf %220 : vector<64x256xf32> to vector<64x256xbf16>
    %c4_120 = arith.constant 4 : index
    %c0_121 = arith.constant 0 : index
    %c0_122 = arith.constant 0 : index
    %222 = vector.load %arg6[%c4_120, %c0_121, %c0_122] : memref<20x64x64xbf16, #tpu.memory_space<vmem>>, vector<1x64x64xbf16>
    %223 = vector.shape_cast %222 : vector<1x64x64xbf16> to vector<64x64xbf16>
    %224 = vector.extract_strided_slice %221 {offsets = [0, 0], sizes = [64, 64], strides = [1, 1]} : vector<64x256xbf16> to vector<64x64xbf16>
    %cst_123 = arith.constant dense<0.000000e+00> : vector<64x64xf32>
    %225 = tpu.matmul %223, %224, %cst_123 {dimension_numbers = #tpu.dot_dimension_numbers<[1], [0], [0], [1], [0, 0, 1, 1], [], []>} : vector<64x64xbf16>, vector<64x64xbf16>, vector<64x64xf32> -> vector<64x64xf32>
    %c5_124 = arith.constant 5 : index
    %c0_125 = arith.constant 0 : index
    %c0_126 = arith.constant 0 : index
    %226 = vector.load %arg6[%c5_124, %c0_125, %c0_126] : memref<20x64x64xbf16, #tpu.memory_space<vmem>>, vector<1x64x64xbf16>
    %227 = vector.shape_cast %226 : vector<1x64x64xbf16> to vector<64x64xbf16>
    %228 = vector.extract_strided_slice %221 {offsets = [0, 64], sizes = [64, 64], strides = [1, 1]} : vector<64x256xbf16> to vector<64x64xbf16>
    %cst_127 = arith.constant dense<0.000000e+00> : vector<64x64xf32>
    %229 = tpu.matmul %227, %228, %cst_127 {dimension_numbers = #tpu.dot_dimension_numbers<[1], [0], [0], [1], [0, 0, 1, 1], [], []>} : vector<64x64xbf16>, vector<64x64xbf16>, vector<64x64xf32> -> vector<64x64xf32>
    %230 = arith.addf %225, %229 : vector<64x64xf32>
    %c6_128 = arith.constant 6 : index
    %c0_129 = arith.constant 0 : index
    %c0_130 = arith.constant 0 : index
    %231 = vector.load %arg6[%c6_128, %c0_129, %c0_130] : memref<20x64x64xbf16, #tpu.memory_space<vmem>>, vector<1x64x64xbf16>
    %232 = vector.shape_cast %231 : vector<1x64x64xbf16> to vector<64x64xbf16>
    %233 = vector.extract_strided_slice %221 {offsets = [0, 128], sizes = [64, 64], strides = [1, 1]} : vector<64x256xbf16> to vector<64x64xbf16>
    %cst_131 = arith.constant dense<0.000000e+00> : vector<64x64xf32>
    %234 = tpu.matmul %232, %233, %cst_131 {dimension_numbers = #tpu.dot_dimension_numbers<[1], [0], [0], [1], [0, 0, 1, 1], [], []>} : vector<64x64xbf16>, vector<64x64xbf16>, vector<64x64xf32> -> vector<64x64xf32>
    %235 = arith.addf %230, %234 : vector<64x64xf32>
    %c7_132 = arith.constant 7 : index
    %c0_133 = arith.constant 0 : index
    %c0_134 = arith.constant 0 : index
    %236 = vector.load %arg6[%c7_132, %c0_133, %c0_134] : memref<20x64x64xbf16, #tpu.memory_space<vmem>>, vector<1x64x64xbf16>
    %237 = vector.shape_cast %236 : vector<1x64x64xbf16> to vector<64x64xbf16>
    %238 = vector.extract_strided_slice %221 {offsets = [0, 192], sizes = [64, 64], strides = [1, 1]} : vector<64x256xbf16> to vector<64x64xbf16>
    %cst_135 = arith.constant dense<0.000000e+00> : vector<64x64xf32>
    %239 = tpu.matmul %237, %238, %cst_135 {dimension_numbers = #tpu.dot_dimension_numbers<[1], [0], [0], [1], [0, 0, 1, 1], [], []>} : vector<64x64xbf16>, vector<64x64xbf16>, vector<64x64xf32> -> vector<64x64xf32>
    %240 = arith.addf %235, %239 : vector<64x64xf32>
    %c1_136 = arith.constant 1 : index
    %c0_137 = arith.constant 0 : index
    %c0_138 = arith.constant 0 : index
    %241 = vector.load %arg5[%c1_136, %c0_137, %c0_138] : memref<5x3x64xf32, #tpu.memory_space<vmem>>, vector<1x3x64xf32>
    %242 = vector.shape_cast %241 : vector<1x3x64xf32> to vector<3x64xf32>
    %243 = vector.extract_strided_slice %242 {offsets = [0, 0], sizes = [1, 64], strides = [1, 1]} : vector<3x64xf32> to vector<1x64xf32>
    %244 = vector.broadcast %243 : vector<1x64xf32> to vector<64x64xf32>
    %245 = arith.addf %240, %244 : vector<64x64xf32>
    %cst_139 = arith.constant 0.000000e+00 : f32
    %246 = vector.broadcast %cst_139 : f32 to vector<64x64xf32>
    %247 = arith.cmpf ogt, %245, %246 : vector<64x64xf32>
    %cst_140 = arith.constant 2.000000e-01 : f32
    %248 = vector.broadcast %cst_140 : f32 to vector<64x64xf32>
    %249 = arith.mulf %248, %245 : vector<64x64xf32>
    %250 = arith.select %247, %245, %249 : vector<64x64xi1>, vector<64x64xf32>
    %251 = vector.extract_strided_slice %242 {offsets = [1, 0], sizes = [1, 64], strides = [1, 1]} : vector<3x64xf32> to vector<1x64xf32>
    %252 = vector.broadcast %251 : vector<1x64xf32> to vector<64x64xf32>
    %253 = arith.mulf %250, %252 : vector<64x64xf32>
    %254 = vector.extract_strided_slice %242 {offsets = [2, 0], sizes = [1, 64], strides = [1, 1]} : vector<3x64xf32> to vector<1x64xf32>
    %255 = vector.broadcast %254 : vector<1x64xf32> to vector<64x64xf32>
    %256 = arith.addf %253, %255 : vector<64x64xf32>
    %257 = arith.addf %256, %105 : vector<64x64xf32>
    %258 = arith.truncf %257 : vector<64x64xf32> to vector<64x64xbf16>
    %c2_141 = arith.constant 2 : index
    %c0_142 = arith.constant 0 : index
    %c0_143 = arith.constant 0 : index
    %259 = vector.load %arg4[%c2_141, %c0_142, %c0_143] : memref<5x64x256xbf16, #tpu.memory_space<vmem>>, vector<1x64x256xbf16>
    %260 = vector.shape_cast %259 : vector<1x64x256xbf16> to vector<64x256xbf16>
    %cst_144 = arith.constant dense<0.000000e+00> : vector<64x256xf32>
    %261 = tpu.matmul %258, %260, %cst_144 {dimension_numbers = #tpu.dot_dimension_numbers<[1], [0], [0], [1], [0, 0, 1, 1], [], []>} : vector<64x64xbf16>, vector<64x256xbf16>, vector<64x256xf32> -> vector<64x256xf32>
    %262 = arith.truncf %261 : vector<64x256xf32> to vector<64x256xbf16>
    %c8_145 = arith.constant 8 : index
    %c0_146 = arith.constant 0 : index
    %c0_147 = arith.constant 0 : index
    %263 = vector.load %arg6[%c8_145, %c0_146, %c0_147] : memref<20x64x64xbf16, #tpu.memory_space<vmem>>, vector<1x64x64xbf16>
    %264 = vector.shape_cast %263 : vector<1x64x64xbf16> to vector<64x64xbf16>
    %265 = vector.extract_strided_slice %262 {offsets = [0, 0], sizes = [64, 64], strides = [1, 1]} : vector<64x256xbf16> to vector<64x64xbf16>
    %cst_148 = arith.constant dense<0.000000e+00> : vector<64x64xf32>
    %266 = tpu.matmul %264, %265, %cst_148 {dimension_numbers = #tpu.dot_dimension_numbers<[1], [0], [0], [1], [0, 0, 1, 1], [], []>} : vector<64x64xbf16>, vector<64x64xbf16>, vector<64x64xf32> -> vector<64x64xf32>
    %c9_149 = arith.constant 9 : index
    %c0_150 = arith.constant 0 : index
    %c0_151 = arith.constant 0 : index
    %267 = vector.load %arg6[%c9_149, %c0_150, %c0_151] : memref<20x64x64xbf16, #tpu.memory_space<vmem>>, vector<1x64x64xbf16>
    %268 = vector.shape_cast %267 : vector<1x64x64xbf16> to vector<64x64xbf16>
    %269 = vector.extract_strided_slice %262 {offsets = [0, 64], sizes = [64, 64], strides = [1, 1]} : vector<64x256xbf16> to vector<64x64xbf16>
    %cst_152 = arith.constant dense<0.000000e+00> : vector<64x64xf32>
    %270 = tpu.matmul %268, %269, %cst_152 {dimension_numbers = #tpu.dot_dimension_numbers<[1], [0], [0], [1], [0, 0, 1, 1], [], []>} : vector<64x64xbf16>, vector<64x64xbf16>, vector<64x64xf32> -> vector<64x64xf32>
    %271 = arith.addf %266, %270 : vector<64x64xf32>
    %c10_153 = arith.constant 10 : index
    %c0_154 = arith.constant 0 : index
    %c0_155 = arith.constant 0 : index
    %272 = vector.load %arg6[%c10_153, %c0_154, %c0_155] : memref<20x64x64xbf16, #tpu.memory_space<vmem>>, vector<1x64x64xbf16>
    %273 = vector.shape_cast %272 : vector<1x64x64xbf16> to vector<64x64xbf16>
    %274 = vector.extract_strided_slice %262 {offsets = [0, 128], sizes = [64, 64], strides = [1, 1]} : vector<64x256xbf16> to vector<64x64xbf16>
    %cst_156 = arith.constant dense<0.000000e+00> : vector<64x64xf32>
    %275 = tpu.matmul %273, %274, %cst_156 {dimension_numbers = #tpu.dot_dimension_numbers<[1], [0], [0], [1], [0, 0, 1, 1], [], []>} : vector<64x64xbf16>, vector<64x64xbf16>, vector<64x64xf32> -> vector<64x64xf32>
    %276 = arith.addf %271, %275 : vector<64x64xf32>
    %c11_157 = arith.constant 11 : index
    %c0_158 = arith.constant 0 : index
    %c0_159 = arith.constant 0 : index
    %277 = vector.load %arg6[%c11_157, %c0_158, %c0_159] : memref<20x64x64xbf16, #tpu.memory_space<vmem>>, vector<1x64x64xbf16>
    %278 = vector.shape_cast %277 : vector<1x64x64xbf16> to vector<64x64xbf16>
    %279 = vector.extract_strided_slice %262 {offsets = [0, 192], sizes = [64, 64], strides = [1, 1]} : vector<64x256xbf16> to vector<64x64xbf16>
    %cst_160 = arith.constant dense<0.000000e+00> : vector<64x64xf32>
    %280 = tpu.matmul %278, %279, %cst_160 {dimension_numbers = #tpu.dot_dimension_numbers<[1], [0], [0], [1], [0, 0, 1, 1], [], []>} : vector<64x64xbf16>, vector<64x64xbf16>, vector<64x64xf32> -> vector<64x64xf32>
    %281 = arith.addf %276, %280 : vector<64x64xf32>
    %c2_161 = arith.constant 2 : index
    %c0_162 = arith.constant 0 : index
    %c0_163 = arith.constant 0 : index
    %282 = vector.load %arg5[%c2_161, %c0_162, %c0_163] : memref<5x3x64xf32, #tpu.memory_space<vmem>>, vector<1x3x64xf32>
    %283 = vector.shape_cast %282 : vector<1x3x64xf32> to vector<3x64xf32>
    %284 = vector.extract_strided_slice %283 {offsets = [0, 0], sizes = [1, 64], strides = [1, 1]} : vector<3x64xf32> to vector<1x64xf32>
    %285 = vector.broadcast %284 : vector<1x64xf32> to vector<64x64xf32>
    %286 = arith.addf %281, %285 : vector<64x64xf32>
    %cst_164 = arith.constant 0.000000e+00 : f32
    %287 = vector.broadcast %cst_164 : f32 to vector<64x64xf32>
    %288 = arith.cmpf ogt, %286, %287 : vector<64x64xf32>
    %cst_165 = arith.constant 2.000000e-01 : f32
    %289 = vector.broadcast %cst_165 : f32 to vector<64x64xf32>
    %290 = arith.mulf %289, %286 : vector<64x64xf32>
    %291 = arith.select %288, %286, %290 : vector<64x64xi1>, vector<64x64xf32>
    %292 = vector.extract_strided_slice %283 {offsets = [1, 0], sizes = [1, 64], strides = [1, 1]} : vector<3x64xf32> to vector<1x64xf32>
    %293 = vector.broadcast %292 : vector<1x64xf32> to vector<64x64xf32>
    %294 = arith.mulf %291, %293 : vector<64x64xf32>
    %295 = vector.extract_strided_slice %283 {offsets = [2, 0], sizes = [1, 64], strides = [1, 1]} : vector<3x64xf32> to vector<1x64xf32>
    %296 = vector.broadcast %295 : vector<1x64xf32> to vector<64x64xf32>
    %297 = arith.addf %294, %296 : vector<64x64xf32>
    %298 = arith.addf %297, %70 : vector<64x64xf32>
    %299 = arith.truncf %298 : vector<64x64xf32> to vector<64x64xbf16>
    %c3_166 = arith.constant 3 : index
    %c0_167 = arith.constant 0 : index
    %c0_168 = arith.constant 0 : index
    %300 = vector.load %arg4[%c3_166, %c0_167, %c0_168] : memref<5x64x256xbf16, #tpu.memory_space<vmem>>, vector<1x64x256xbf16>
    %301 = vector.shape_cast %300 : vector<1x64x256xbf16> to vector<64x256xbf16>
    %cst_169 = arith.constant dense<0.000000e+00> : vector<64x256xf32>
    %302 = tpu.matmul %299, %301, %cst_169 {dimension_numbers = #tpu.dot_dimension_numbers<[1], [0], [0], [1], [0, 0, 1, 1], [], []>} : vector<64x64xbf16>, vector<64x256xbf16>, vector<64x256xf32> -> vector<64x256xf32>
    %303 = arith.truncf %302 : vector<64x256xf32> to vector<64x256xbf16>
    %c12_170 = arith.constant 12 : index
    %c0_171 = arith.constant 0 : index
    %c0_172 = arith.constant 0 : index
    %304 = vector.load %arg6[%c12_170, %c0_171, %c0_172] : memref<20x64x64xbf16, #tpu.memory_space<vmem>>, vector<1x64x64xbf16>
    %305 = vector.shape_cast %304 : vector<1x64x64xbf16> to vector<64x64xbf16>
    %306 = vector.extract_strided_slice %303 {offsets = [0, 0], sizes = [64, 64], strides = [1, 1]} : vector<64x256xbf16> to vector<64x64xbf16>
    %cst_173 = arith.constant dense<0.000000e+00> : vector<64x64xf32>
    %307 = tpu.matmul %305, %306, %cst_173 {dimension_numbers = #tpu.dot_dimension_numbers<[1], [0], [0], [1], [0, 0, 1, 1], [], []>} : vector<64x64xbf16>, vector<64x64xbf16>, vector<64x64xf32> -> vector<64x64xf32>
    %c13_174 = arith.constant 13 : index
    %c0_175 = arith.constant 0 : index
    %c0_176 = arith.constant 0 : index
    %308 = vector.load %arg6[%c13_174, %c0_175, %c0_176] : memref<20x64x64xbf16, #tpu.memory_space<vmem>>, vector<1x64x64xbf16>
    %309 = vector.shape_cast %308 : vector<1x64x64xbf16> to vector<64x64xbf16>
    %310 = vector.extract_strided_slice %303 {offsets = [0, 64], sizes = [64, 64], strides = [1, 1]} : vector<64x256xbf16> to vector<64x64xbf16>
    %cst_177 = arith.constant dense<0.000000e+00> : vector<64x64xf32>
    %311 = tpu.matmul %309, %310, %cst_177 {dimension_numbers = #tpu.dot_dimension_numbers<[1], [0], [0], [1], [0, 0, 1, 1], [], []>} : vector<64x64xbf16>, vector<64x64xbf16>, vector<64x64xf32> -> vector<64x64xf32>
    %312 = arith.addf %307, %311 : vector<64x64xf32>
    %c14_178 = arith.constant 14 : index
    %c0_179 = arith.constant 0 : index
    %c0_180 = arith.constant 0 : index
    %313 = vector.load %arg6[%c14_178, %c0_179, %c0_180] : memref<20x64x64xbf16, #tpu.memory_space<vmem>>, vector<1x64x64xbf16>
    %314 = vector.shape_cast %313 : vector<1x64x64xbf16> to vector<64x64xbf16>
    %315 = vector.extract_strided_slice %303 {offsets = [0, 128], sizes = [64, 64], strides = [1, 1]} : vector<64x256xbf16> to vector<64x64xbf16>
    %cst_181 = arith.constant dense<0.000000e+00> : vector<64x64xf32>
    %316 = tpu.matmul %314, %315, %cst_181 {dimension_numbers = #tpu.dot_dimension_numbers<[1], [0], [0], [1], [0, 0, 1, 1], [], []>} : vector<64x64xbf16>, vector<64x64xbf16>, vector<64x64xf32> -> vector<64x64xf32>
    %317 = arith.addf %312, %316 : vector<64x64xf32>
    %c15 = arith.constant 15 : index
    %c0_182 = arith.constant 0 : index
    %c0_183 = arith.constant 0 : index
    %318 = vector.load %arg6[%c15, %c0_182, %c0_183] : memref<20x64x64xbf16, #tpu.memory_space<vmem>>, vector<1x64x64xbf16>
    %319 = vector.shape_cast %318 : vector<1x64x64xbf16> to vector<64x64xbf16>
    %320 = vector.extract_strided_slice %303 {offsets = [0, 192], sizes = [64, 64], strides = [1, 1]} : vector<64x256xbf16> to vector<64x64xbf16>
    %cst_184 = arith.constant dense<0.000000e+00> : vector<64x64xf32>
    %321 = tpu.matmul %319, %320, %cst_184 {dimension_numbers = #tpu.dot_dimension_numbers<[1], [0], [0], [1], [0, 0, 1, 1], [], []>} : vector<64x64xbf16>, vector<64x64xbf16>, vector<64x64xf32> -> vector<64x64xf32>
    %322 = arith.addf %317, %321 : vector<64x64xf32>
    %c3_185 = arith.constant 3 : index
    %c0_186 = arith.constant 0 : index
    %c0_187 = arith.constant 0 : index
    %323 = vector.load %arg5[%c3_185, %c0_186, %c0_187] : memref<5x3x64xf32, #tpu.memory_space<vmem>>, vector<1x3x64xf32>
    %324 = vector.shape_cast %323 : vector<1x3x64xf32> to vector<3x64xf32>
    %325 = vector.extract_strided_slice %324 {offsets = [0, 0], sizes = [1, 64], strides = [1, 1]} : vector<3x64xf32> to vector<1x64xf32>
    %326 = vector.broadcast %325 : vector<1x64xf32> to vector<64x64xf32>
    %327 = arith.addf %322, %326 : vector<64x64xf32>
    %cst_188 = arith.constant 0.000000e+00 : f32
    %328 = vector.broadcast %cst_188 : f32 to vector<64x64xf32>
    %329 = arith.cmpf ogt, %327, %328 : vector<64x64xf32>
    %cst_189 = arith.constant 2.000000e-01 : f32
    %330 = vector.broadcast %cst_189 : f32 to vector<64x64xf32>
    %331 = arith.mulf %330, %327 : vector<64x64xf32>
    %332 = arith.select %329, %327, %331 : vector<64x64xi1>, vector<64x64xf32>
    %333 = vector.extract_strided_slice %324 {offsets = [1, 0], sizes = [1, 64], strides = [1, 1]} : vector<3x64xf32> to vector<1x64xf32>
    %334 = vector.broadcast %333 : vector<1x64xf32> to vector<64x64xf32>
    %335 = arith.mulf %332, %334 : vector<64x64xf32>
    %336 = vector.extract_strided_slice %324 {offsets = [2, 0], sizes = [1, 64], strides = [1, 1]} : vector<3x64xf32> to vector<1x64xf32>
    %337 = vector.broadcast %336 : vector<1x64xf32> to vector<64x64xf32>
    %338 = arith.addf %335, %337 : vector<64x64xf32>
    %339 = arith.addf %338, %35 : vector<64x64xf32>
    %340 = arith.truncf %339 : vector<64x64xf32> to vector<64x64xbf16>
    %c4_190 = arith.constant 4 : index
    %c0_191 = arith.constant 0 : index
    %c0_192 = arith.constant 0 : index
    %341 = vector.load %arg4[%c4_190, %c0_191, %c0_192] : memref<5x64x256xbf16, #tpu.memory_space<vmem>>, vector<1x64x256xbf16>
    %342 = vector.shape_cast %341 : vector<1x64x256xbf16> to vector<64x256xbf16>
    %cst_193 = arith.constant dense<0.000000e+00> : vector<64x256xf32>
    %343 = tpu.matmul %340, %342, %cst_193 {dimension_numbers = #tpu.dot_dimension_numbers<[1], [0], [0], [1], [0, 0, 1, 1], [], []>} : vector<64x64xbf16>, vector<64x256xbf16>, vector<64x256xf32> -> vector<64x256xf32>
    %344 = arith.truncf %343 : vector<64x256xf32> to vector<64x256xbf16>
    %c16 = arith.constant 16 : index
    %c0_194 = arith.constant 0 : index
    %c0_195 = arith.constant 0 : index
    %345 = vector.load %arg6[%c16, %c0_194, %c0_195] : memref<20x64x64xbf16, #tpu.memory_space<vmem>>, vector<1x64x64xbf16>
    %346 = vector.shape_cast %345 : vector<1x64x64xbf16> to vector<64x64xbf16>
    %347 = vector.extract_strided_slice %344 {offsets = [0, 0], sizes = [64, 64], strides = [1, 1]} : vector<64x256xbf16> to vector<64x64xbf16>
    %cst_196 = arith.constant dense<0.000000e+00> : vector<64x64xf32>
    %348 = tpu.matmul %346, %347, %cst_196 {dimension_numbers = #tpu.dot_dimension_numbers<[1], [0], [0], [1], [0, 0, 1, 1], [], []>} : vector<64x64xbf16>, vector<64x64xbf16>, vector<64x64xf32> -> vector<64x64xf32>
    %c17 = arith.constant 17 : index
    %c0_197 = arith.constant 0 : index
    %c0_198 = arith.constant 0 : index
    %349 = vector.load %arg6[%c17, %c0_197, %c0_198] : memref<20x64x64xbf16, #tpu.memory_space<vmem>>, vector<1x64x64xbf16>
    %350 = vector.shape_cast %349 : vector<1x64x64xbf16> to vector<64x64xbf16>
    %351 = vector.extract_strided_slice %344 {offsets = [0, 64], sizes = [64, 64], strides = [1, 1]} : vector<64x256xbf16> to vector<64x64xbf16>
    %cst_199 = arith.constant dense<0.000000e+00> : vector<64x64xf32>
    %352 = tpu.matmul %350, %351, %cst_199 {dimension_numbers = #tpu.dot_dimension_numbers<[1], [0], [0], [1], [0, 0, 1, 1], [], []>} : vector<64x64xbf16>, vector<64x64xbf16>, vector<64x64xf32> -> vector<64x64xf32>
    %353 = arith.addf %348, %352 : vector<64x64xf32>
    %c18 = arith.constant 18 : index
    %c0_200 = arith.constant 0 : index
    %c0_201 = arith.constant 0 : index
    %354 = vector.load %arg6[%c18, %c0_200, %c0_201] : memref<20x64x64xbf16, #tpu.memory_space<vmem>>, vector<1x64x64xbf16>
    %355 = vector.shape_cast %354 : vector<1x64x64xbf16> to vector<64x64xbf16>
    %356 = vector.extract_strided_slice %344 {offsets = [0, 128], sizes = [64, 64], strides = [1, 1]} : vector<64x256xbf16> to vector<64x64xbf16>
    %cst_202 = arith.constant dense<0.000000e+00> : vector<64x64xf32>
    %357 = tpu.matmul %355, %356, %cst_202 {dimension_numbers = #tpu.dot_dimension_numbers<[1], [0], [0], [1], [0, 0, 1, 1], [], []>} : vector<64x64xbf16>, vector<64x64xbf16>, vector<64x64xf32> -> vector<64x64xf32>
    %358 = arith.addf %353, %357 : vector<64x64xf32>
    %c19 = arith.constant 19 : index
    %c0_203 = arith.constant 0 : index
    %c0_204 = arith.constant 0 : index
    %359 = vector.load %arg6[%c19, %c0_203, %c0_204] : memref<20x64x64xbf16, #tpu.memory_space<vmem>>, vector<1x64x64xbf16>
    %360 = vector.shape_cast %359 : vector<1x64x64xbf16> to vector<64x64xbf16>
    %361 = vector.extract_strided_slice %344 {offsets = [0, 192], sizes = [64, 64], strides = [1, 1]} : vector<64x256xbf16> to vector<64x64xbf16>
    %cst_205 = arith.constant dense<0.000000e+00> : vector<64x64xf32>
    %362 = tpu.matmul %360, %361, %cst_205 {dimension_numbers = #tpu.dot_dimension_numbers<[1], [0], [0], [1], [0, 0, 1, 1], [], []>} : vector<64x64xbf16>, vector<64x64xbf16>, vector<64x64xf32> -> vector<64x64xf32>
    %363 = arith.addf %358, %362 : vector<64x64xf32>
    %c4_206 = arith.constant 4 : index
    %c0_207 = arith.constant 0 : index
    %c0_208 = arith.constant 0 : index
    %364 = vector.load %arg5[%c4_206, %c0_207, %c0_208] : memref<5x3x64xf32, #tpu.memory_space<vmem>>, vector<1x3x64xf32>
    %365 = vector.shape_cast %364 : vector<1x3x64xf32> to vector<3x64xf32>
    %366 = vector.extract_strided_slice %365 {offsets = [0, 0], sizes = [1, 64], strides = [1, 1]} : vector<3x64xf32> to vector<1x64xf32>
    %367 = vector.broadcast %366 : vector<1x64xf32> to vector<64x64xf32>
    %368 = arith.addf %363, %367 : vector<64x64xf32>
    %cst_209 = arith.constant 0.000000e+00 : f32
    %369 = vector.broadcast %cst_209 : f32 to vector<64x64xf32>
    %370 = arith.cmpf ogt, %368, %369 : vector<64x64xf32>
    %cst_210 = arith.constant 2.000000e-01 : f32
    %371 = vector.broadcast %cst_210 : f32 to vector<64x64xf32>
    %372 = arith.mulf %371, %368 : vector<64x64xf32>
    %373 = arith.select %370, %368, %372 : vector<64x64xi1>, vector<64x64xf32>
    %374 = vector.extract_strided_slice %365 {offsets = [1, 0], sizes = [1, 64], strides = [1, 1]} : vector<3x64xf32> to vector<1x64xf32>
    %375 = vector.broadcast %374 : vector<1x64xf32> to vector<64x64xf32>
    %376 = arith.mulf %373, %375 : vector<64x64xf32>
    %377 = vector.extract_strided_slice %365 {offsets = [2, 0], sizes = [1, 64], strides = [1, 1]} : vector<3x64xf32> to vector<1x64xf32>
    %378 = vector.broadcast %377 : vector<1x64xf32> to vector<64x64xf32>
    %379 = arith.addf %376, %378 : vector<64x64xf32>
    %380 = arith.truncf %379 : vector<64x64xf32> to vector<64x64xbf16>
    %c0_211 = arith.constant 0 : index
    %c0_212 = arith.constant 0 : index
    %381 = vector.load %arg7[%c0_211, %c0_212] : memref<64x256xbf16, #tpu.memory_space<vmem>>, vector<64x256xbf16>
    %cst_213 = arith.constant dense<0.000000e+00> : vector<64x256xf32>
    %382 = tpu.matmul %380, %381, %cst_213 {dimension_numbers = #tpu.dot_dimension_numbers<[1], [0], [0], [1], [0, 0, 1, 1], [], []>} : vector<64x64xbf16>, vector<64x256xbf16>, vector<64x256xf32> -> vector<64x256xf32>
    %c0_214 = arith.constant 0 : index
    %c0_215 = arith.constant 0 : index
    %383 = vector.load %arg8[%c0_214, %c0_215] : memref<1x256xf32, #tpu.memory_space<vmem>>, vector<1x256xf32>
    %384 = vector.broadcast %383 : vector<1x256xf32> to vector<64x256xf32>
    %385 = arith.addf %382, %384 : vector<64x256xf32>
    %386 = vector.extract_strided_slice %385 {offsets = [0, 0], sizes = [32, 256], strides = [1, 1]} : vector<64x256xf32> to vector<32x256xf32>
    %c0_216 = arith.constant 0 : index
    %c0_217 = arith.constant 0 : index
    %c0_218 = arith.constant 0 : index
    %387 = vector.load %arg16[%c0_216, %c0_217, %c0_218] : memref<2x32x256xf32, #tpu.memory_space<vmem>>, vector<1x32x256xf32>
    %388 = vector.shape_cast %387 : vector<1x32x256xf32> to vector<32x256xf32>
    %389 = vector.shape_cast %386 : vector<32x256xf32> to vector<1x32x256xf32>
    tpu.vector_store %arg16[%c0_216, %c0_217, %c0_218], %389 {strides = array<i32>} : memref<2x32x256xf32, #tpu.memory_space<vmem>>, vector<1x32x256xf32>,
    %390 = vector.extract_strided_slice %385 {offsets = [32, 0], sizes = [32, 256], strides = [1, 1]} : vector<64x256xf32> to vector<32x256xf32>
    %c1_219 = arith.constant 1 : index
    %c0_220 = arith.constant 0 : index
    %c0_221 = arith.constant 0 : index
    %391 = vector.load %arg16[%c1_219, %c0_220, %c0_221] : memref<2x32x256xf32, #tpu.memory_space<vmem>>, vector<1x32x256xf32>
    %392 = vector.shape_cast %391 : vector<1x32x256xf32> to vector<32x256xf32>
    %393 = vector.shape_cast %390 : vector<32x256xf32> to vector<1x32x256xf32>
    tpu.vector_store %arg16[%c1_219, %c0_220, %c0_221], %393 {strides = array<i32>} : memref<2x32x256xf32, #tpu.memory_space<vmem>>, vector<1x32x256xf32>,
    %c0_222 = arith.constant 0 : index
    %c0_223 = arith.constant 0 : index
    %394 = vector.load %arg9[%c0_222, %c0_223] : memref<2x64xf32, #tpu.memory_space<vmem>>, vector<2x64xf32>
    %cst_224 = arith.constant dense<0.000000e+00> : vector<2x256xf32>
    %395 = tpu.matmul %394, %385, %cst_224 {dimension_numbers = #tpu.dot_dimension_numbers<[1], [0], [0], [1], [0, 0, 1, 1], [], []>} : vector<2x64xf32>, vector<64x256xf32>, vector<2x256xf32> -> vector<2x256xf32>
    %396 = arith.truncf %395 : vector<2x256xf32> to vector<2x256xbf16>
    %c0_225 = arith.constant 0 : index
    %c0_226 = arith.constant 0 : index
    %397 = vector.load %arg10[%c0_225, %c0_226] : memref<256x128xbf16, #tpu.memory_space<vmem>>, vector<256x128xbf16>
    %cst_227 = arith.constant dense<0.000000e+00> : vector<2x128xf32>
    %398 = tpu.matmul %396, %397, %cst_227 {dimension_numbers = #tpu.dot_dimension_numbers<[1], [0], [0], [1], [0, 0, 1, 1], [], []>} : vector<2x256xbf16>, vector<256x128xbf16>, vector<2x128xf32> -> vector<2x128xf32>
    %c0_228 = arith.constant 0 : index
    %c0_229 = arith.constant 0 : index
    %399 = vector.load %arg11[%c0_228, %c0_229] : memref<1x128xf32, #tpu.memory_space<vmem>>, vector<1x128xf32>
    %400 = vector.broadcast %399 : vector<1x128xf32> to vector<2x128xf32>
    %401 = arith.addf %398, %400 : vector<2x128xf32>
    %402 = vector.extract_strided_slice %401 {offsets = [0, 0], sizes = [2, 16], strides = [1, 1]} : vector<2x128xf32> to vector<2x16xf32>
    %403 = vector.extract_strided_slice %401 {offsets = [0, 16], sizes = [2, 16], strides = [1, 1]} : vector<2x128xf32> to vector<2x16xf32>
    %404 = vector.extract_strided_slice %401 {offsets = [0, 32], sizes = [2, 16], strides = [1, 1]} : vector<2x128xf32> to vector<2x16xf32>
    %405 = vector.extract_strided_slice %401 {offsets = [0, 48], sizes = [2, 64], strides = [1, 1]} : vector<2x128xf32> to vector<2x64xf32>
    %c0_230 = arith.constant 0 : index
    %c0_231 = arith.constant 0 : index
    %406 = vector.load %arg12[%c0_230, %c0_231] : memref<2x16xf32, #tpu.memory_space<vmem>>, vector<2x16xf32>
    %407 = arith.mulf %406, %403 : vector<2x16xf32>
    %408 = arith.addf %402, %407 : vector<2x16xf32>
    %c0_232 = arith.constant 0 : index
    %c0_233 = arith.constant 0 : index
    %409 = vector.load %arg17[%c0_232, %c0_233] : memref<2x16xf32, #tpu.memory_space<vmem>>, vector<2x16xf32>
    tpu.vector_store %arg17[%c0_232, %c0_233], %408 {strides = array<i32>} : memref<2x16xf32, #tpu.memory_space<vmem>>, vector<2x16xf32>,
    %c0_234 = arith.constant 0 : index
    %c0_235 = arith.constant 0 : index
    %410 = vector.load %arg18[%c0_234, %c0_235] : memref<2x16xf32, #tpu.memory_space<vmem>>, vector<2x16xf32>
    tpu.vector_store %arg18[%c0_234, %c0_235], %404 {strides = array<i32>} : memref<2x16xf32, #tpu.memory_space<vmem>>, vector<2x16xf32>,
    %411 = vector.shape_cast %405 : vector<2x64xf32> to vector<2x1x64xf32>
    %c0_236 = arith.constant 0 : index
    %c0_237 = arith.constant 0 : index
    %c0_238 = arith.constant 0 : index
    %412 = vector.load %arg13[%c0_236, %c0_237, %c0_238] : memref<2x4x64xf32, #tpu.memory_space<vmem>>, vector<2x4x64xf32>
    %413 = vector.broadcast %411 : vector<2x1x64xf32> to vector<2x4x64xf32>
    %414 = arith.addf %413, %412 : vector<2x4x64xf32>
    %c0_239 = arith.constant 0 : index
    %c0_240 = arith.constant 0 : index
    %c0_241 = arith.constant 0 : index
    %415 = vector.load %arg19[%c0_239, %c0_240, %c0_241] : memref<2x4x64xf32, #tpu.memory_space<vmem>>, vector<2x4x64xf32>
    tpu.vector_store %arg19[%c0_239, %c0_240, %c0_241], %414 {strides = array<i32>} : memref<2x4x64xf32, #tpu.memory_space<vmem>>, vector<2x4x64xf32>,
    %c0_242 = arith.constant 0 : index
    %c0_243 = arith.constant 0 : index
    %c0_244 = arith.constant 0 : index
    %416 = vector.load %arg14[%c0_242, %c0_243, %c0_244] : memref<1x1x64xf32, #tpu.memory_space<vmem>>, vector<1x1x64xf32>
    %417 = vector.broadcast %416 : vector<1x1x64xf32> to vector<2x4x64xf32>
    %418 = arith.mulf %414, %417 : vector<2x4x64xf32>
    %cst_245 = arith.constant dense<0.000000e+00> : vector<2x4xf32>
    %419 = vector.multi_reduction <add>, %418, %cst_245 [2] : vector<2x4x64xf32> to vector<2x4xf32>
    %420 = vector.shape_cast %419 : vector<2x4xf32> to vector<2x4x1xf32>
    %c0_246 = arith.constant 0 : index
    %c0_247 = arith.constant 0 : index
    %c0_248 = arith.constant 0 : index
    %421 = vector.load %arg15[%c0_246, %c0_247, %c0_248] : memref<1x1x1xf32, #tpu.memory_space<vmem>>, vector<1x1x1xf32>
    %422 = vector.broadcast %421 : vector<1x1x1xf32> to vector<2x4x1xf32>
    %423 = arith.addf %420, %422 : vector<2x4x1xf32>
    %c0_249 = arith.constant 0 : index
    %c0_250 = arith.constant 0 : index
    %c0_251 = arith.constant 0 : index
    %424 = vector.load %arg20[%c0_249, %c0_250, %c0_251] : memref<2x4x1xf32, #tpu.memory_space<vmem>>, vector<2x4x1xf32>
    tpu.vector_store %arg20[%c0_249, %c0_250, %c0_251], %423 {strides = array<i32>} : memref<2x4x1xf32, #tpu.memory_space<vmem>>, vector<2x4x1xf32>,
    return
  }
}

</mosaic_0001>

<llo_original>
// kernel: model_forward.1
$region0: #{model_forward.1}
  #allocation0 [shape = 'u32[]', space=smem, size = 0x4, offset = 0x4, fixed_abs, tag = 'smem constant byte address 0x4 - core index']
  #allocation1 [shape = 'u32[144,128]{1,0:T(1,128)}', space=vmem, size = 0x12000, scoped, tag = 'internal scratch']
  #allocation2 [shape = 'f32[1,1,1]{2,1,0:T(1,128)S(1)}', space=vmem, size = 0x200, scoped, tag = 'scoped memory for model_forward.1']
  %s0 = inlined_call_operand.vmem [shape: f32[64,64], index: 0, kind: input, shape index: {}]
  %s1 = inlined_call_operand.hbm [shape: bf16[5,64,192], index: 1, kind: input, shape index: {}]
  %s2 = inlined_call_operand.hbm [shape: f32[5,3,64], index: 2, kind: input, shape index: {}]
  %s3 = inlined_call_operand.vmem [shape: bf16[15,64,64], index: 3, kind: input, shape index: {}]
  %s4 = inlined_call_operand.hbm [shape: bf16[5,64,256], index: 4, kind: input, shape index: {}]
  %s5 = inlined_call_operand.hbm [shape: f32[5,3,64], index: 5, kind: input, shape index: {}]
  %s6 = inlined_call_operand.hbm [shape: bf16[20,64,64], index: 6, kind: input, shape index: {}]
  %s7 = inlined_call_operand.hbm [shape: bf16[64,256], index: 7, kind: input, shape index: {}]
  %s8 = inlined_call_operand.vmem [shape: f32[1,256], index: 8, kind: input, shape index: {}]
  %s9 = inlined_call_operand.hbm [shape: f32[2,64], index: 9, kind: input, shape index: {}]
  %s10 = inlined_call_operand.hbm [shape: bf16[256,128], index: 10, kind: input, shape index: {}]
  %s11 = inlined_call_operand.vmem [shape: f32[1,128], index: 11, kind: input, shape index: {}]
  %s12 = inlined_call_operand.vmem [shape: f32[2,16], index: 12, kind: input, shape index: {}]
  %s13 = inlined_call_operand.vmem [shape: f32[2,4,64], index: 13, kind: input, shape index: {}]
  %s14 = inlined_call_operand.hbm [shape: f32[1,1,64], index: 14, kind: input, shape index: {}]
  %s15 = inlined_call_operand.<no memory space> [shape: f32[1,1,1], index: 15, kind: input, shape index: {}]
  %s16 = inlined_call_operand.hbm [shape: f32[2,32,256], index: 16, kind: output, shape index: {0}]
  %s17 = inlined_call_operand.hbm [shape: f32[2,16], index: 17, kind: output, shape index: {1}]
  %s18 = inlined_call_operand.hbm [shape: f32[2,16], index: 18, kind: output, shape index: {2}]
  %s19 = inlined_call_operand.hbm [shape: f32[2,4,64], index: 19, kind: output, shape index: {3}]
  %s20 = inlined_call_operand.vmem [shape: f32[2,4,1], index: 20, kind: output, shape index: {4}]
  %21 = xla_tuple %s16, %s17, %s18, %s19, %s20
  %s22 = sld [smem:[#allocation0]]
  $region142: #{model_forward.1} parent=0
    _
  %s24 = ssub.s32 1, %s22
  %s25 = scalar_select 0, %s24, %s22
  %v26 = vstv %s15
  %27 = vst [vmem:[#allocation2] sm:$0x1] %v26
  $region1: #{model_forward.1} parent=0
    #allocation3 [shape = 'u8[163840]{0}', space=vmem, size = 0x28000, scoped, tag = 'input window, operand 1, single buffered']
    #allocation4 [shape = 's32[1]{0}', space=sflag, size = 0x4, scoped, tag = 'scoped memory for model_forward.1']
    #allocation5 [shape = 's32[1]{0}', space=sflag, size = 0x4, scoped, tag = 'scoped memory for model_forward.1']
    #allocation6 [shape = 'u8[10240]{0}', space=vmem, size = 0x2800, scoped, tag = 'input window, operand 2, single buffered']
    #allocation7 [shape = 's32[1]{0}', space=sflag, size = 0x4, scoped, tag = 'scoped memory for model_forward.1']
    #allocation8 [shape = 'u8[163840]{0}', space=vmem, size = 0x28000, scoped, tag = 'input window, operand 4, single buffered']
    #allocation9 [shape = 'u8[10240]{0}', space=vmem, size = 0x2800, scoped, tag = 'input window, operand 5, single buffered']
    #allocation10 [shape = 's32[1]{0}', space=sflag, size = 0x4, scoped, tag = 'scoped memory for model_forward.1']
    #allocation11 [shape = 'u8[327680]{0}', space=vmem, size = 0x50000, scoped, tag = 'input window, operand 6, single buffered']
    #allocation12 [shape = 'u8[32768]{0}', space=vmem, size = 0x8000, scoped, tag = 'input window, operand 7, single buffered']
    #allocation13 [shape = 's32[1]{0}', space=sflag, size = 0x4, scoped, tag = 'scoped memory for model_forward.1']
    #allocation14 [shape = 'u8[1024]{0}', space=vmem, size = 0x400, scoped, tag = 'input window, operand 9, single buffered']
    #allocation15 [shape = 'u8[65536]{0}', space=vmem, size = 0x10000, scoped, tag = 'input window, operand 10, single buffered']
    #allocation16 [shape = 's32[1]{0}', space=sflag, size = 0x4, scoped, tag = 'scoped memory for model_forward.1']
    #allocation17 [shape = 'u8[512]{0}', space=vmem, size = 0x400, scoped, tag = 'input window, operand 14, single buffered']
    #allocation18 [shape = 'u8[65536]{0}', space=vmem, size = 0x10000, scoped, tag = 'output window, operand 0, single buffered']
    #allocation19 [shape = 'u8[1024]{0}', space=vmem, size = 0x400, scoped, tag = 'output window, operand 1, single buffered']
    #allocation20 [shape = 's32[1]{0}', space=sflag, size = 0x4, scoped, tag = 'scoped memory for model_forward.1']
    #allocation21 [shape = 'u8[1024]{0}', space=vmem, size = 0x400, scoped, tag = 'output window, operand 2, single buffered']
    #allocation22 [shape = 'u8[4096]{0}', space=vmem, size = 0x1000, scoped, tag = 'output window, operand 3, single buffered']
    #allocation23 [shape = 's32[1]{0}', space=sflag, size = 0x4, scoped, tag = 'scoped memory for model_forward.1']
    %28 = vsyncpa [#allocation4], 0
    %29 = vsyncpa [#allocation7], 0
    %30 = vsyncpa [#allocation10], 0
    %31 = vsyncpa [#allocation13], 0
    %32 = vsyncpa [#allocation16], 0
    %33 = vsyncpa [#allocation5], 0
    %34 = vsyncpa [#allocation20], 0
    %35 = vsyncpa [#allocation23], 0
    // Predicated region
    $region2: #{model_forward.1} parent=1 // pred_check
      _
    $region3: #{model_forward.1} parent=1 // pred_check_branch
      %37 = sbr.rel (0) target = $region5
    $region4: #{model_forward.1} parent=1 // pred_region
      _
    $region5: #{model_forward.1} parent=1 // pred_fallthru
      _
    // Predicated region
    $region6: #{model_forward.1} parent=1 // pred_check
      _
    $region7: #{model_forward.1} parent=1 // pred_check_branch
      %39 = sbr.rel (0) target = $region9
    $region8: #{model_forward.1} parent=1 // pred_region
      %s41 = ssub.s32 5120, 5120
      %42 = vsyncadd [#allocation4], %s41
      %s43 = sshll.u32 [#allocation3], 4
      %s44 = int_to_ptr.vmem [resolvable:$true] %s43
      %49 = dma.hbm_to_vmem [thread:$0]  %s1, 5120, %s44, [#allocation4], 128, 128, 8
    $region9: #{model_forward.1} parent=1 // pred_fallthru
      _
    // Predicated region
    $region10: #{model_forward.1} parent=1 // pred_check
      _
    $region11: #{model_forward.1} parent=1 // pred_check_branch
      %51 = sbr.rel (0) target = $region13
    $region12: #{model_forward.1} parent=1 // pred_region
      %s53 = ssub.s32 320, 320
      %54 = vsyncadd [#allocation7], %s53
      %s55 = sshll.u32 [#allocation6], 4
      %s56 = int_to_ptr.vmem [resolvable:$true] %s55
      %61 = dma.hbm_to_vmem [thread:$0]  %s2, 320, %s56, [#allocation7], 64, 64, 4
    $region13: #{model_forward.1} parent=1 // pred_fallthru
      _
    // Predicated region
    $region14: #{model_forward.1} parent=1 // pred_check
      _
    $region15: #{model_forward.1} parent=1 // pred_check_branch
      %63 = sbr.rel (0) target = $region17
    $region16: #{model_forward.1} parent=1 // pred_region
      _
    $region17: #{model_forward.1} parent=1 // pred_fallthru
      _
    // Predicated region
    $region18: #{model_forward.1} parent=1 // pred_check
      _
    $region19: #{model_forward.1} parent=1 // pred_check_branch
      %65 = sbr.rel (0) target = $region21
    $region20: #{model_forward.1} parent=1 // pred_region
      %s67 = ssub.s32 5120, 5120
      %68 = vsyncadd [#allocation7], %s67
      %s69 = sshll.u32 [#allocation8], 4
      %s70 = int_to_ptr.vmem [resolvable:$true] %s69
      %75 = dma.hbm_to_vmem [thread:$0]  %s4, 5120, %s70, [#allocation7], 128, 128, 8
    $region21: #{model_forward.1} parent=1 // pred_fallthru
      _
    // Predicated region
    $region22: #{model_forward.1} parent=1 // pred_check
      _
    $region23: #{model_forward.1} parent=1 // pred_check_branch
      %77 = sbr.rel (0) target = $region25
    $region24: #{model_forward.1} parent=1 // pred_region
      %s79 = ssub.s32 320, 320
      %80 = vsyncadd [#allocation10], %s79
      %s81 = sshll.u32 [#allocation9], 4
      %s82 = int_to_ptr.vmem [resolvable:$true] %s81
      %87 = dma.hbm_to_vmem [thread:$0]  %s5, 320, %s82, [#allocation10], 64, 64, 4
    $region25: #{model_forward.1} parent=1 // pred_fallthru
      _
    // Predicated region
    $region26: #{model_forward.1} parent=1 // pred_check
      _
    $region27: #{model_forward.1} parent=1 // pred_check_branch
      %89 = sbr.rel (0) target = $region29
    $region28: #{model_forward.1} parent=1 // pred_region
      %s91 = ssub.s32 10240, 10240
      %92 = vsyncadd [#allocation10], %s91
      %s93 = sshll.u32 [#allocation11], 4
      %s94 = int_to_ptr.vmem [resolvable:$true] %s93
      %99 = dma.hbm_to_vmem [thread:$0]  %s6, 10240, %s94, [#allocation10], 64, 64, 4
    $region29: #{model_forward.1} parent=1 // pred_fallthru
      _
    // Predicated region
    $region30: #{model_forward.1} parent=1 // pred_check
      _
    $region31: #{model_forward.1} parent=1 // pred_check_branch
      %101 = sbr.rel (0) target = $region33
    $region32: #{model_forward.1} parent=1 // pred_region
      %s103 = ssub.s32 1024, 1024
      %104 = vsyncadd [#allocation13], %s103
      %s105 = sshll.u32 [#allocation12], 4
      %s106 = int_to_ptr.vmem [resolvable:$true] %s105
      %111 = dma.hbm_to_vmem [thread:$0]  %s7, 1024, %s106, [#allocation13], 128, 128, 8
    $region33: #{model_forward.1} parent=1 // pred_fallthru
      _
    // Predicated region
    $region34: #{model_forward.1} parent=1 // pred_check
      _
    $region35: #{model_forward.1} parent=1 // pred_check_branch
      %113 = sbr.rel (0) target = $region37
    $region36: #{model_forward.1} parent=1 // pred_region
      _
    $region37: #{model_forward.1} parent=1 // pred_fallthru
      _
    // Predicated region
    $region38: #{model_forward.1} parent=1 // pred_check
      _
    $region39: #{model_forward.1} parent=1 // pred_check_branch
      %115 = sbr.rel (0) target = $region41
    $region40: #{model_forward.1} parent=1 // pred_region
      %s117 = ssub.s32 32, 32
      %118 = vsyncadd [#allocation13], %s117
      %s120 = sshll.u32 [#allocation14], 4
      %s121 = int_to_ptr.vmem [resolvable:$true] %s120
      %123 = dma.hbm_to_vmem [thread:$0]  %s9, 32, %s121, [#allocation13]
    $region41: #{model_forward.1} parent=1 // pred_fallthru
      _
    // Predicated region
    $region42: #{model_forward.1} parent=1 // pred_check
      _
    $region43: #{model_forward.1} parent=1 // pred_check_branch
      %125 = sbr.rel (0) target = $region45
    $region44: #{model_forward.1} parent=1 // pred_region
      %s127 = ssub.s32 2048, 2048
      %128 = vsyncadd [#allocation16], %s127
      %s129 = sshll.u32 [#allocation15], 4
      %s130 = int_to_ptr.vmem [resolvable:$true] %s129
      %135 = dma.hbm_to_vmem [thread:$0]  %s10, 2048, %s130, [#allocation16], 64, 64, 4
    $region45: #{model_forward.1} parent=1 // pred_fallthru
      _
    // Predicated region
    $region46: #{model_forward.1} parent=1 // pred_check
      _
    $region47: #{model_forward.1} parent=1 // pred_check_branch
      %137 = sbr.rel (0) target = $region49
    $region48: #{model_forward.1} parent=1 // pred_region
      _
    $region49: #{model_forward.1} parent=1 // pred_fallthru
      _
    // Predicated region
    $region50: #{model_forward.1} parent=1 // pred_check
      _
    $region51: #{model_forward.1} parent=1 // pred_check_branch
      %139 = sbr.rel (0) target = $region53
    $region52: #{model_forward.1} parent=1 // pred_region
      _
    $region53: #{model_forward.1} parent=1 // pred_fallthru
      _
    // Predicated region
    $region54: #{model_forward.1} parent=1 // pred_check
      _
    $region55: #{model_forward.1} parent=1 // pred_check_branch
      %141 = sbr.rel (0) target = $region57
    $region56: #{model_forward.1} parent=1 // pred_region
      _
    $region57: #{model_forward.1} parent=1 // pred_fallthru
      _
    // Predicated region
    $region58: #{model_forward.1} parent=1 // pred_check
      _
    $region59: #{model_forward.1} parent=1 // pred_check_branch
      %143 = sbr.rel (0) target = $region61
    $region60: #{model_forward.1} parent=1 // pred_region
      %s145 = ssub.s32 16, 16
      %146 = vsyncadd [#allocation16], %s145
      %s148 = sshll.u32 [#allocation17], 4
      %s149 = int_to_ptr.vmem [resolvable:$true] %s148
      %151 = dma.hbm_to_vmem [thread:$0]  %s14, 16, %s149, [#allocation16]
    $region61: #{model_forward.1} parent=1 // pred_fallthru
      _
    // Predicated region
    $region62: #{model_forward.1} parent=1 // pred_check
      _
    $region63: #{model_forward.1} parent=1 // pred_check_branch
      %153 = sbr.rel (0) target = $region65
    $region64: #{model_forward.1} parent=1 // pred_region
      _
    $region65: #{model_forward.1} parent=1 // pred_fallthru
      _
    // Predicated region
    $region66: #{model_forward.1} parent=1 // pred_check
      _
    $region67: #{model_forward.1} parent=1 // pred_check_branch
      %155 = sbr.rel (0) target = $region69
    $region68: #{model_forward.1} parent=1 // pred_region
      %156 = dma.done [#allocation4], 5120
    $region69: #{model_forward.1} parent=1 // pred_fallthru
      _
    // Predicated region
    $region70: #{model_forward.1} parent=1 // pred_check
      _
    $region71: #{model_forward.1} parent=1 // pred_check_branch
      %158 = sbr.rel (0) target = $region73
    $region72: #{model_forward.1} parent=1 // pred_region
      %159 = dma.done [#allocation7], 320
    $region73: #{model_forward.1} parent=1 // pred_fallthru
      _
    // Predicated region
    $region74: #{model_forward.1} parent=1 // pred_check
      _
    $region75: #{model_forward.1} parent=1 // pred_check_branch
      %161 = sbr.rel (0) target = $region77
    $region76: #{model_forward.1} parent=1 // pred_region
      %162 = dma.done [#allocation7], 5120
    $region77: #{model_forward.1} parent=1 // pred_fallthru
      _
    // Predicated region
    $region78: #{model_forward.1} parent=1 // pred_check
      _
    $region79: #{model_forward.1} parent=1 // pred_check_branch
      %164 = sbr.rel (0) target = $region81
    $region80: #{model_forward.1} parent=1 // pred_region
      %165 = dma.done [#allocation10], 320
    $region81: #{model_forward.1} parent=1 // pred_fallthru
      _
    // Predicated region
    $region82: #{model_forward.1} parent=1 // pred_check
      _
    $region83: #{model_forward.1} parent=1 // pred_check_branch
      %167 = sbr.rel (0) target = $region85
    $region84: #{model_forward.1} parent=1 // pred_region
      %168 = dma.done [#allocation10], 10240
    $region85: #{model_forward.1} parent=1 // pred_fallthru
      _
    // Predicated region
    $region86: #{model_forward.1} parent=1 // pred_check
      _
    $region87: #{model_forward.1} parent=1 // pred_check_branch
      %170 = sbr.rel (0) target = $region89
    $region88: #{model_forward.1} parent=1 // pred_region
      %171 = dma.done [#allocation13], 1024
    $region89: #{model_forward.1} parent=1 // pred_fallthru
      _
    // Predicated region
    $region90: #{model_forward.1} parent=1 // pred_check
      _
    $region91: #{model_forward.1} parent=1 // pred_check_branch
      %173 = sbr.rel (0) target = $region93
    $region92: #{model_forward.1} parent=1 // pred_region
      %174 = dma.done [#allocation13], 32
    $region93: #{model_forward.1} parent=1 // pred_fallthru
      _
    // Predicated region
    $region94: #{model_forward.1} parent=1 // pred_check
      _
    $region95: #{model_forward.1} parent=1 // pred_check_branch
      %176 = sbr.rel (0) target = $region97
    $region96: #{model_forward.1} parent=1 // pred_region
      %177 = dma.done [#allocation16], 2048
    $region97: #{model_forward.1} parent=1 // pred_fallthru
      _
    // Predicated region
    $region98: #{model_forward.1} parent=1 // pred_check
      _
    $region99: #{model_forward.1} parent=1 // pred_check_branch
      %179 = sbr.rel (0) target = $region101
    $region100: #{model_forward.1} parent=1 // pred_region
      %180 = dma.done [#allocation16], 16
    $region101: #{model_forward.1} parent=1 // pred_fallthru
      _
    %v182 = vld [vmem:[%s0] sm:$0xff]
    %v183 = vld [vmem:[%s0 + $0x8] sm:$0xff]
    %v184 = vld [vmem:[%s0 + $0x10] sm:$0xff]
    %v185 = vld [vmem:[%s0 + $0x18] sm:$0xff]
    %v186 = vld [vmem:[%s0 + $0x20] sm:$0xff]
    %v187 = vld [vmem:[%s0 + $0x28] sm:$0xff]
    %v188 = vld [vmem:[%s0 + $0x30] sm:$0xff]
    %v189 = vld [vmem:[%s0 + $0x38] sm:$0xff]
    %v190 = vpack.c.bf16 %v183, %v182
    %v191 = vpack.c.bf16 %v185, %v184
    %v192 = vpack.c.bf16 %v187, %v186
    %v193 = vpack.c.bf16 %v189, %v188
    %v194 = vld [vmem:[#allocation3] sm:$0xff]
    %v195 = vld [vmem:[#allocation3 + $0x8] sm:$0xff]
    %v196 = vld [vmem:[#allocation3 + $0x10] sm:$0xff]
    %v197 = vld [vmem:[#allocation3 + $0x18] sm:$0xff]
    %v198 = vld [vmem:[#allocation3 + $0x20] sm:$0xff]
    %v199 = vld [vmem:[#allocation3 + $0x28] sm:$0xff]
    %v200 = vld [vmem:[#allocation3 + $0x30] sm:$0xff]
    %v201 = vld [vmem:[#allocation3 + $0x38] sm:$0xff]
    %v210 = vunpack.c.l.b16 %v194
    %v211 = vunpack.c.h.b16 %v194
    %v212 = vunpack.c.l.b16 %v195
    %v213 = vunpack.c.h.b16 %v195
    %v214 = vunpack.c.l.b16 %v196
    %v215 = vunpack.c.h.b16 %v196
    %v216 = vunpack.c.l.b16 %v197
    %v217 = vunpack.c.h.b16 %v197
    %v218 = vunpack.c.l.b16 %v198
    %v219 = vunpack.c.h.b16 %v198
    %v220 = vunpack.c.l.b16 %v199
    %v221 = vunpack.c.h.b16 %v199
    %v222 = vunpack.c.l.b16 %v200
    %v223 = vunpack.c.h.b16 %v200
    %v224 = vunpack.c.l.b16 %v201
    %v225 = vunpack.c.h.b16 %v201
    %v226 = vpack.c.b16 %v212, %v210
    %v227 = vpack.c.b16 %v213, %v211
    %v228 = vpack.c.b16 %v216, %v214
    %v229 = vpack.c.b16 %v217, %v215
    %v230 = vpack.c.b16 %v220, %v218
    %v231 = vpack.c.b16 %v221, %v219
    %v232 = vpack.c.b16 %v224, %v222
    %v233 = vpack.c.b16 %v225, %v223
    %vm242 = vcmask 523264
    %v244 = vsel %vm242, %v190, 0
    %v247 = vsel %vm242, %v191, 0
    %v250 = vsel %vm242, %v192, 0
    %v253 = vsel %vm242, %v193, 0
    %255 = vmatprep.subr.bf16.mxu0 0
    %256 = vmatpush1.bf16.msra.mxu0 0
    %257 = vmatprep.subr.bf16.mxu0 0
    %258 = vmatpush1.bf16.msra.mxu0 0
    %259 = vmatprep.subr.bf16.mxu0 0
    %260 = vmatpush1.bf16.msra.mxu0 0
    %261 = vmatprep.subr.bf16.mxu0 0
    %262 = vmatpush1.bf16.msra.mxu0 0
    %263 = vmatprep.subr.bf16.mxu0 %v233
    %264 = vmatpush1.bf16.msra.mxu0 %v232
    %265 = vmatprep.subr.bf16.mxu0 %v231
    %266 = vmatpush1.bf16.msra.mxu0 %v230
    %267 = vmatprep.subr.bf16.mxu0 %v229
    %268 = vmatpush1.bf16.msra.mxu0 %v228
    %269 = vmatprep.subr.bf16.mxu0 %v227
    %270 = vmatpush1.bf16.msra.mxu0 %v226
    %271 = vmatprep.subr.bf16.mxu0 0
    %272 = vmatpush2.bf16.msra.mxu0 0
    %273 = vmatprep.subr.bf16.mxu0 0
    %274 = vmatpush2.bf16.msra.mxu0 0
    %275 = vmatprep.subr.bf16.mxu0 0
    %276 = vmatpush2.bf16.msra.mxu0 0
    %277 = vmatprep.subr.bf16.mxu0 0
    %278 = vmatpush2.bf16.msra.mxu0 0
    %279 = vmatprep.subr.bf16.mxu0 0
    %280 = vmatpush2.bf16.msra.mxu0 0
    %281 = vmatprep.subr.bf16.mxu0 0
    %282 = vmatpush2.bf16.msra.mxu0 0
    %283 = vmatprep.subr.bf16.mxu0 0
    %284 = vmatpush2.bf16.msra.mxu0 0
    %285 = vmatprep.subr.bf16.mxu0 0
    %286 = vmatpush2.bf16.msra.mxu0 0
    %287 = vmatprep.mubr.bf16.mxu0 0
    %288 = vmatmul.mubr.bf16.gmra.mxu0 %v244
    %v289 = vpop.f32.mrf.mxu0
    %v290 = vadd.f32 0.0, %v289
    %v291 = vpop.f32.mrf.mxu0
    %v292 = vadd.f32 0.0, %v291
    %v293 = vpop.f32.mrf.mxu0
    %v294 = vadd.f32 0.0, %v293
    %v295 = vpop.f32.mrf.mxu0
    %v296 = vadd.f32 0.0, %v295
    %297 = vmatprep.mubr.bf16.mxu0 0
    %298 = vmatmul.mubr.bf16.gmra.mxu0 %v247
    %v299 = vpop.f32.mrf.mxu0
    %v300 = vadd.f32 0.0, %v299
    %v301 = vpop.f32.mrf.mxu0
    %v302 = vadd.f32 0.0, %v301
    %v303 = vpop.f32.mrf.mxu0
    %v304 = vadd.f32 0.0, %v303
    %v305 = vpop.f32.mrf.mxu0
    %v306 = vadd.f32 0.0, %v305
    %307 = vmatprep.mubr.bf16.mxu0 0
    %308 = vmatmul.mubr.bf16.gmra.mxu0 %v250
    %v309 = vpop.f32.mrf.mxu0
    %v310 = vadd.f32 0.0, %v309
    %v311 = vpop.f32.mrf.mxu0
    %v312 = vadd.f32 0.0, %v311
    %v313 = vpop.f32.mrf.mxu0
    %v314 = vadd.f32 0.0, %v313
    %v315 = vpop.f32.mrf.mxu0
    %v316 = vadd.f32 0.0, %v315
    %317 = vmatprep.mubr.bf16.mxu0 0
    %318 = vmatmul.mubr.bf16.gmra.mxu0 %v253
    %v319 = vpop.f32.mrf.mxu0
    %v320 = vadd.f32 0.0, %v319
    %v321 = vpop.f32.mrf.mxu0
    %v322 = vadd.f32 0.0, %v321
    %v323 = vpop.f32.mrf.mxu0
    %v324 = vadd.f32 0.0, %v323
    %v325 = vpop.f32.mrf.mxu0
    %v326 = vadd.f32 0.0, %v325
    %327 = vdwg.mxu0
    %v328 = vpack.c.bf16 %v294, %v290
    %v329 = vpack.c.bf16 %v296, %v292
    %v330 = vpack.c.bf16 %v304, %v300
    %v331 = vpack.c.bf16 %v306, %v302
    %v332 = vpack.c.bf16 %v314, %v310
    %v333 = vpack.c.bf16 %v316, %v312
    %v334 = vpack.c.bf16 %v324, %v320
    %v335 = vpack.c.bf16 %v326, %v322
    %v336 = vld [vmem:[%s3] sm:$0xf]
    %v337 = vld [vmem:[%s3 + $0x4] sm:$0xf]
    %v338 = vld [vmem:[%s3 + $0x8] sm:$0xf]
    %v339 = vld [vmem:[%s3 + $0xc] sm:$0xf]
    %v340 = vld [vmem:[%s3 + $0x10] sm:$0xf]
    %v341 = vld [vmem:[%s3 + $0x14] sm:$0xf]
    %v342 = vld [vmem:[%s3 + $0x18] sm:$0xf]
    %v343 = vld [vmem:[%s3 + $0x1c] sm:$0xf]
    %s344 = scalar_lea.vmem %s3, 32
    %v345 = vld [vmem:[%s344] sm:$0xf]
    %v346 = vld [vmem:[%s344 + $0x4] sm:$0xf]
    %v347 = vld [vmem:[%s344 + $0x8] sm:$0xf]
    %v348 = vld [vmem:[%s344 + $0xc] sm:$0xf]
    %v349 = vld [vmem:[%s344 + $0x10] sm:$0xf]
    %v350 = vld [vmem:[%s344 + $0x14] sm:$0xf]
    %v351 = vld [vmem:[%s344 + $0x18] sm:$0xf]
    %v352 = vld [vmem:[%s344 + $0x1c] sm:$0xf]
    %v361 = vunpack.c.l.b16 %v345
    %v362 = vunpack.c.l.b16 %v346
    %v363 = vunpack.c.l.b16 %v347
    %v364 = vunpack.c.l.b16 %v348
    %v365 = vunpack.c.l.b16 %v349
    %v366 = vunpack.c.l.b16 %v350
    %v367 = vunpack.c.l.b16 %v351
    %v368 = vunpack.c.l.b16 %v352
    %v369 = vpack.c.b16 %v362, %v361
    %v370 = vpack.c.b16 %v364, %v363
    %v371 = vpack.c.b16 %v366, %v365
    %v372 = vpack.c.b16 %v368, %v367
    %377 = vrot.lane.b32.xlu0 %v328, 64
    %v378 = vpop.permute.xlu0 %377
    %379 = vrot.lane.b32.xlu0 %v330, 64
    %v380 = vpop.permute.xlu0 %379
    %381 = vrot.lane.b32.xlu0 %v332, 64
    %v382 = vpop.permute.xlu0 %381
    %383 = vrot.lane.b32.xlu0 %v334, 64
    %v384 = vpop.permute.xlu0 %383
    %v390 = vsel %vm242, %v369, 0
    %v393 = vsel %vm242, %v370, 0
    %v396 = vsel %vm242, %v371, 0
    %v399 = vsel %vm242, %v372, 0
    %401 = vmatprep.subr.bf16.mxu0 0
    %402 = vmatpush1.bf16.msra.mxu0 0
    %403 = vmatprep.subr.bf16.mxu0 0
    %404 = vmatpush1.bf16.msra.mxu0 0
    %405 = vmatprep.subr.bf16.mxu0 0
    %406 = vmatpush1.bf16.msra.mxu0 0
    %407 = vmatprep.subr.bf16.mxu0 0
    %408 = vmatpush1.bf16.msra.mxu0 0
    %409 = vmatprep.subr.bf16.mxu0 0
    %410 = vmatpush1.bf16.msra.mxu0 %v384
    %411 = vmatprep.subr.bf16.mxu0 0
    %412 = vmatpush1.bf16.msra.mxu0 %v382
    %413 = vmatprep.subr.bf16.mxu0 0
    %414 = vmatpush1.bf16.msra.mxu0 %v380
    %415 = vmatprep.subr.bf16.mxu0 0
    %416 = vmatpush1.bf16.msra.mxu0 %v378
    %417 = vmatprep.subr.bf16.mxu0 0
    %418 = vmatpush2.bf16.msra.mxu0 0
    %419 = vmatprep.subr.bf16.mxu0 0
    %420 = vmatpush2.bf16.msra.mxu0 0
    %421 = vmatprep.subr.bf16.mxu0 0
    %422 = vmatpush2.bf16.msra.mxu0 0
    %423 = vmatprep.subr.bf16.mxu0 0
    %424 = vmatpush2.bf16.msra.mxu0 0
    %425 = vmatprep.subr.bf16.mxu0 0
    %426 = vmatpush2.bf16.msra.mxu0 0
    %427 = vmatprep.subr.bf16.mxu0 0
    %428 = vmatpush2.bf16.msra.mxu0 0
    %429 = vmatprep.subr.bf16.mxu0 0
    %430 = vmatpush2.bf16.msra.mxu0 0
    %431 = vmatprep.subr.bf16.mxu0 0
    %432 = vmatpush2.bf16.msra.mxu0 0
    %433 = vmatprep.mubr.bf16.mxu0 0
    %434 = vmatmul.mubr.bf16.gmra.mxu0 %v390
    %v435 = vpop.f32.mrf.mxu0
    %v436 = vadd.f32 0.0, %v435
    %v437 = vpop.f32.mrf.mxu0
    %v438 = vpop.f32.mrf.mxu0
    %v439 = vadd.f32 0.0, %v438
    %v440 = vpop.f32.mrf.mxu0
    %441 = vmatprep.mubr.bf16.mxu0 0
    %442 = vmatmul.mubr.bf16.gmra.mxu0 %v393
    %v443 = vpop.f32.mrf.mxu0
    %v444 = vadd.f32 0.0, %v443
    %v445 = vpop.f32.mrf.mxu0
    %v446 = vpop.f32.mrf.mxu0
    %v447 = vadd.f32 0.0, %v446
    %v448 = vpop.f32.mrf.mxu0
    %449 = vmatprep.mubr.bf16.mxu0 0
    %450 = vmatmul.mubr.bf16.gmra.mxu0 %v396
    %v451 = vpop.f32.mrf.mxu0
    %v452 = vadd.f32 0.0, %v451
    %v453 = vpop.f32.mrf.mxu0
    %v454 = vpop.f32.mrf.mxu0
    %v455 = vadd.f32 0.0, %v454
    %v456 = vpop.f32.mrf.mxu0
    %457 = vmatprep.mubr.bf16.mxu0 0
    %458 = vmatmul.mubr.bf16.gmra.mxu0 %v399
    %v459 = vpop.f32.mrf.mxu0
    %v460 = vadd.f32 0.0, %v459
    %v461 = vpop.f32.mrf.mxu0
    %v462 = vpop.f32.mrf.mxu0
    %v463 = vadd.f32 0.0, %v462
    %v464 = vpop.f32.mrf.mxu0
    %465 = vdwg.mxu0
    %v474 = vunpack.c.l.b16 %v336
    %v475 = vunpack.c.l.b16 %v337
    %v476 = vunpack.c.l.b16 %v338
    %v477 = vunpack.c.l.b16 %v339
    %v478 = vunpack.c.l.b16 %v340
    %v479 = vunpack.c.l.b16 %v341
    %v480 = vunpack.c.l.b16 %v342
    %v481 = vunpack.c.l.b16 %v343
    %v482 = vpack.c.b16 %v475, %v474
    %v483 = vpack.c.b16 %v477, %v476
    %v484 = vpack.c.b16 %v479, %v478
    %v485 = vpack.c.b16 %v481, %v480
    %v487 = vsel %vm242, %v482, 0
    %v490 = vsel %vm242, %v483, 0
    %v493 = vsel %vm242, %v484, 0
    %v496 = vsel %vm242, %v485, 0
    %498 = vmatprep.subr.bf16.mxu0 0
    %499 = vmatpush1.bf16.msra.mxu0 0
    %500 = vmatprep.subr.bf16.mxu0 0
    %501 = vmatpush1.bf16.msra.mxu0 0
    %502 = vmatprep.subr.bf16.mxu0 0
    %503 = vmatpush1.bf16.msra.mxu0 0
    %504 = vmatprep.subr.bf16.mxu0 0
    %505 = vmatpush1.bf16.msra.mxu0 0
    %506 = vmatprep.subr.bf16.mxu0 0
    %507 = vmatpush1.bf16.msra.mxu0 %v334
    %508 = vmatprep.subr.bf16.mxu0 0
    %509 = vmatpush1.bf16.msra.mxu0 %v332
    %510 = vmatprep.subr.bf16.mxu0 0
    %511 = vmatpush1.bf16.msra.mxu0 %v330
    %512 = vmatprep.subr.bf16.mxu0 0
    %513 = vmatpush1.bf16.msra.mxu0 %v328
    %514 = vmatprep.subr.bf16.mxu0 0
    %515 = vmatpush2.bf16.msra.mxu0 0
    %516 = vmatprep.subr.bf16.mxu0 0
    %517 = vmatpush2.bf16.msra.mxu0 0
    %518 = vmatprep.subr.bf16.mxu0 0
    %519 = vmatpush2.bf16.msra.mxu0 0
    %520 = vmatprep.subr.bf16.mxu0 0
    %521 = vmatpush2.bf16.msra.mxu0 0
    %522 = vmatprep.subr.bf16.mxu0 0
    %523 = vmatpush2.bf16.msra.mxu0 0
    %524 = vmatprep.subr.bf16.mxu0 0
    %525 = vmatpush2.bf16.msra.mxu0 0
    %526 = vmatprep.subr.bf16.mxu0 0
    %527 = vmatpush2.bf16.msra.mxu0 0
    %528 = vmatprep.subr.bf16.mxu0 0
    %529 = vmatpush2.bf16.msra.mxu0 0
    %530 = vmatprep.mubr.bf16.mxu0 0
    %531 = vmatmul.mubr.bf16.gmra.mxu0 %v487
    %v532 = vpop.f32.mrf.mxu0
    %v533 = vadd.f32 %v436, %v532
    %v534 = vpop.f32.mrf.mxu0
    %v535 = vpop.f32.mrf.mxu0
    %v536 = vadd.f32 %v439, %v535
    %v537 = vpop.f32.mrf.mxu0
    %538 = vmatprep.mubr.bf16.mxu0 0
    %539 = vmatmul.mubr.bf16.gmra.mxu0 %v490
    %v540 = vpop.f32.mrf.mxu0
    %v541 = vadd.f32 %v444, %v540
    %v542 = vpop.f32.mrf.mxu0
    %v543 = vpop.f32.mrf.mxu0
    %v544 = vadd.f32 %v447, %v543
    %v545 = vpop.f32.mrf.mxu0
    %546 = vmatprep.mubr.bf16.mxu0 0
    %547 = vmatmul.mubr.bf16.gmra.mxu0 %v493
    %v548 = vpop.f32.mrf.mxu0
    %v549 = vadd.f32 %v452, %v548
    %v550 = vpop.f32.mrf.mxu0
    %v551 = vpop.f32.mrf.mxu0
    %v552 = vadd.f32 %v455, %v551
    %v553 = vpop.f32.mrf.mxu0
    %554 = vmatprep.mubr.bf16.mxu0 0
    %555 = vmatmul.mubr.bf16.gmra.mxu0 %v496
    %v556 = vpop.f32.mrf.mxu0
    %v557 = vadd.f32 %v460, %v556
    %v558 = vpop.f32.mrf.mxu0
    %v559 = vpop.f32.mrf.mxu0
    %v560 = vadd.f32 %v463, %v559
    %v561 = vpop.f32.mrf.mxu0
    %562 = vdwg.mxu0
    %s563 = scalar_lea.vmem %s3, 64
    %v564 = vld [vmem:[%s563] sm:$0xf]
    %v565 = vld [vmem:[%s563 + $0x4] sm:$0xf]
    %v566 = vld [vmem:[%s563 + $0x8] sm:$0xf]
    %v567 = vld [vmem:[%s563 + $0xc] sm:$0xf]
    %v568 = vld [vmem:[%s563 + $0x10] sm:$0xf]
    %v569 = vld [vmem:[%s563 + $0x14] sm:$0xf]
    %v570 = vld [vmem:[%s563 + $0x18] sm:$0xf]
    %v571 = vld [vmem:[%s563 + $0x1c] sm:$0xf]
    %v580 = vunpack.c.l.b16 %v564
    %v581 = vunpack.c.l.b16 %v565
    %v582 = vunpack.c.l.b16 %v566
    %v583 = vunpack.c.l.b16 %v567
    %v584 = vunpack.c.l.b16 %v568
    %v585 = vunpack.c.l.b16 %v569
    %v586 = vunpack.c.l.b16 %v570
    %v587 = vunpack.c.l.b16 %v571
    %v588 = vpack.c.b16 %v581, %v580
    %v589 = vpack.c.b16 %v583, %v582
    %v590 = vpack.c.b16 %v585, %v584
    %v591 = vpack.c.b16 %v587, %v586
    %v593 = vsel %vm242, %v588, 0
    %v596 = vsel %vm242, %v589, 0
    %v599 = vsel %vm242, %v590, 0
    %v602 = vsel %vm242, %v591, 0
    %604 = vmatprep.subr.bf16.mxu0 0
    %605 = vmatpush1.bf16.msra.mxu0 0
    %606 = vmatprep.subr.bf16.mxu0 0
    %607 = vmatpush1.bf16.msra.mxu0 0
    %608 = vmatprep.subr.bf16.mxu0 0
    %609 = vmatpush1.bf16.msra.mxu0 0
    %610 = vmatprep.subr.bf16.mxu0 0
    %611 = vmatpush1.bf16.msra.mxu0 0
    %612 = vmatprep.subr.bf16.mxu0 0
    %613 = vmatpush1.bf16.msra.mxu0 %v335
    %614 = vmatprep.subr.bf16.mxu0 0
    %615 = vmatpush1.bf16.msra.mxu0 %v333
    %616 = vmatprep.subr.bf16.mxu0 0
    %617 = vmatpush1.bf16.msra.mxu0 %v331
    %618 = vmatprep.subr.bf16.mxu0 0
    %619 = vmatpush1.bf16.msra.mxu0 %v329
    %620 = vmatprep.subr.bf16.mxu0 0
    %621 = vmatpush2.bf16.msra.mxu0 0
    %622 = vmatprep.subr.bf16.mxu0 0
    %623 = vmatpush2.bf16.msra.mxu0 0
    %624 = vmatprep.subr.bf16.mxu0 0
    %625 = vmatpush2.bf16.msra.mxu0 0
    %626 = vmatprep.subr.bf16.mxu0 0
    %627 = vmatpush2.bf16.msra.mxu0 0
    %628 = vmatprep.subr.bf16.mxu0 0
    %629 = vmatpush2.bf16.msra.mxu0 0
    %630 = vmatprep.subr.bf16.mxu0 0
    %631 = vmatpush2.bf16.msra.mxu0 0
    %632 = vmatprep.subr.bf16.mxu0 0
    %633 = vmatpush2.bf16.msra.mxu0 0
    %634 = vmatprep.subr.bf16.mxu0 0
    %635 = vmatpush2.bf16.msra.mxu0 0
    %636 = vmatprep.mubr.bf16.mxu0 0
    %637 = vmatmul.mubr.bf16.gmra.mxu0 %v593
    %v638 = vpop.f32.mrf.mxu0
    %v639 = vadd.f32 0.0, %v638
    %v640 = vpop.f32.mrf.mxu0
    %v641 = vpop.f32.mrf.mxu0
    %v642 = vadd.f32 0.0, %v641
    %v643 = vpop.f32.mrf.mxu0
    %644 = vmatprep.mubr.bf16.mxu0 0
    %645 = vmatmul.mubr.bf16.gmra.mxu0 %v596
    %v646 = vpop.f32.mrf.mxu0
    %v647 = vadd.f32 0.0, %v646
    %v648 = vpop.f32.mrf.mxu0
    %v649 = vpop.f32.mrf.mxu0
    %v650 = vadd.f32 0.0, %v649
    %v651 = vpop.f32.mrf.mxu0
    %652 = vmatprep.mubr.bf16.mxu0 0
    %653 = vmatmul.mubr.bf16.gmra.mxu0 %v599
    %v654 = vpop.f32.mrf.mxu0
    %v655 = vadd.f32 0.0, %v654
    %v656 = vpop.f32.mrf.mxu0
    %v657 = vpop.f32.mrf.mxu0
    %v658 = vadd.f32 0.0, %v657
    %v659 = vpop.f32.mrf.mxu0
    %660 = vmatprep.mubr.bf16.mxu0 0
    %661 = vmatmul.mubr.bf16.gmra.mxu0 %v602
    %v662 = vpop.f32.mrf.mxu0
    %v663 = vadd.f32 0.0, %v662
    %v664 = vpop.f32.mrf.mxu0
    %v665 = vpop.f32.mrf.mxu0
    %v666 = vadd.f32 0.0, %v665
    %v667 = vpop.f32.mrf.mxu0
    %668 = vdwg.mxu0
    %v669 = vadd.f32 %v533, %v639
    %v670 = vadd.f32 %v536, %v642
    %v671 = vadd.f32 %v541, %v647
    %v672 = vadd.f32 %v544, %v650
    %v673 = vadd.f32 %v549, %v655
    %v674 = vadd.f32 %v552, %v658
    %v675 = vadd.f32 %v557, %v663
    %v676 = vadd.f32 %v560, %v666
    %v677 = vld [vmem:[#allocation6] sm:$0x7]
    %v678 = vlaneseq
    %v679 = vshrl.u32 %v678, 7
    %v680 = vsub.s32 0, %v679
    %v681 = vrot.slane %v677, %v680
    %v682 = vadd.f32 %v669, %v681
    %v683 = vadd.f32 %v670, %v681
    %v684 = vadd.f32 %v671, %v681
    %v685 = vadd.f32 %v672, %v681
    %v686 = vadd.f32 %v673, %v681
    %v687 = vadd.f32 %v674, %v681
    %v688 = vadd.f32 %v675, %v681
    %v689 = vadd.f32 %v676, %v681
    %vm690 = vcmp.gt.f32.partialorder %v682, 0.0
    %vm691 = vcmp.gt.f32.partialorder %v683, 0.0
    %vm692 = vcmp.gt.f32.partialorder %v684, 0.0
    %vm693 = vcmp.gt.f32.partialorder %v685, 0.0
    %vm694 = vcmp.gt.f32.partialorder %v686, 0.0
    %vm695 = vcmp.gt.f32.partialorder %v687, 0.0
    %vm696 = vcmp.gt.f32.partialorder %v688, 0.0
    %vm697 = vcmp.gt.f32.partialorder %v689, 0.0
    %v698 = vmul.f32 %v682, 0.2
    %v699 = vmul.f32 %v683, 0.2
    %v700 = vmul.f32 %v684, 0.2
    %v701 = vmul.f32 %v685, 0.2
    %v702 = vmul.f32 %v686, 0.2
    %v703 = vmul.f32 %v687, 0.2
    %v704 = vmul.f32 %v688, 0.2
    %v705 = vmul.f32 %v689, 0.2
    %v706 = vsel %vm690, %v682, %v698
    %v707 = vsel %vm691, %v683, %v699
    %v708 = vsel %vm692, %v684, %v700
    %v709 = vsel %vm693, %v685, %v701
    %v710 = vsel %vm694, %v686, %v702
    %v711 = vsel %vm695, %v687, %v703
    %v712 = vsel %vm696, %v688, %v704
    %v713 = vsel %vm697, %v689, %v705
    %v714 = vlaneseq
    %v715 = vshrl.u32 %v714, 7
    %v716 = vsub.s32 1, %v715
    %v717 = vrot.slane %v677, %v716
    %v718 = vmul.f32 %v706, %v717
    %v719 = vmul.f32 %v707, %v717
    %v720 = vmul.f32 %v708, %v717
    %v721 = vmul.f32 %v709, %v717
    %v722 = vmul.f32 %v710, %v717
    %v723 = vmul.f32 %v711, %v717
    %v724 = vmul.f32 %v712, %v717
    %v725 = vmul.f32 %v713, %v717
    %v726 = vlaneseq
    %v727 = vshrl.u32 %v726, 7
    %v728 = vsub.s32 2, %v727
    %v729 = vrot.slane %v677, %v728
    %v730 = vadd.f32 %v718, %v729
    %v731 = vadd.f32 %v719, %v729
    %v732 = vadd.f32 %v720, %v729
    %v733 = vadd.f32 %v721, %v729
    %v734 = vadd.f32 %v722, %v729
    %v735 = vadd.f32 %v723, %v729
    %v736 = vadd.f32 %v724, %v729
    %v737 = vadd.f32 %v725, %v729
    %v738 = vpack.c.bf16 %v731, %v730
    %v739 = vpack.c.bf16 %v733, %v732
    %v740 = vpack.c.bf16 %v735, %v734
    %v741 = vpack.c.bf16 %v737, %v736
    %s742 = scalar_lea.vmem [#allocation3], 64
    %v743 = vld [vmem:[%s742] sm:$0xff]
    %v744 = vld [vmem:[%s742 + $0x8] sm:$0xff]
    %v745 = vld [vmem:[%s742 + $0x10] sm:$0xff]
    %v746 = vld [vmem:[%s742 + $0x18] sm:$0xff]
    %v747 = vld [vmem:[%s742 + $0x20] sm:$0xff]
    %v748 = vld [vmem:[%s742 + $0x28] sm:$0xff]
    %v749 = vld [vmem:[%s742 + $0x30] sm:$0xff]
    %v750 = vld [vmem:[%s742 + $0x38] sm:$0xff]
    %v759 = vunpack.c.l.b16 %v743
    %v760 = vunpack.c.h.b16 %v743
    %v761 = vunpack.c.l.b16 %v744
    %v762 = vunpack.c.h.b16 %v744
    %v763 = vunpack.c.l.b16 %v745
    %v764 = vunpack.c.h.b16 %v745
    %v765 = vunpack.c.l.b16 %v746
    %v766 = vunpack.c.h.b16 %v746
    %v767 = vunpack.c.l.b16 %v747
    %v768 = vunpack.c.h.b16 %v747
    %v769 = vunpack.c.l.b16 %v748
    %v770 = vunpack.c.h.b16 %v748
    %v771 = vunpack.c.l.b16 %v749
    %v772 = vunpack.c.h.b16 %v749
    %v773 = vunpack.c.l.b16 %v750
    %v774 = vunpack.c.h.b16 %v750
    %v775 = vpack.c.b16 %v761, %v759
    %v776 = vpack.c.b16 %v762, %v760
    %v777 = vpack.c.b16 %v765, %v763
    %v778 = vpack.c.b16 %v766, %v764
    %v779 = vpack.c.b16 %v769, %v767
    %v780 = vpack.c.b16 %v770, %v768
    %v781 = vpack.c.b16 %v773, %v771
    %v782 = vpack.c.b16 %v774, %v772
    %v792 = vsel %vm242, %v738, 0
    %v795 = vsel %vm242, %v739, 0
    %v798 = vsel %vm242, %v740, 0
    %v801 = vsel %vm242, %v741, 0
    %803 = vmatprep.subr.bf16.mxu0 0
    %804 = vmatpush1.bf16.msra.mxu0 0
    %805 = vmatprep.subr.bf16.mxu0 0
    %806 = vmatpush1.bf16.msra.mxu0 0
    %807 = vmatprep.subr.bf16.mxu0 0
    %808 = vmatpush1.bf16.msra.mxu0 0
    %809 = vmatprep.subr.bf16.mxu0 0
    %810 = vmatpush1.bf16.msra.mxu0 0
    %811 = vmatprep.subr.bf16.mxu0 %v782
    %812 = vmatpush1.bf16.msra.mxu0 %v781
    %813 = vmatprep.subr.bf16.mxu0 %v780
    %814 = vmatpush1.bf16.msra.mxu0 %v779
    %815 = vmatprep.subr.bf16.mxu0 %v778
    %816 = vmatpush1.bf16.msra.mxu0 %v777
    %817 = vmatprep.subr.bf16.mxu0 %v776
    %818 = vmatpush1.bf16.msra.mxu0 %v775
    %819 = vmatprep.subr.bf16.mxu0 0
    %820 = vmatpush2.bf16.msra.mxu0 0
    %821 = vmatprep.subr.bf16.mxu0 0
    %822 = vmatpush2.bf16.msra.mxu0 0
    %823 = vmatprep.subr.bf16.mxu0 0
    %824 = vmatpush2.bf16.msra.mxu0 0
    %825 = vmatprep.subr.bf16.mxu0 0
    %826 = vmatpush2.bf16.msra.mxu0 0
    %827 = vmatprep.subr.bf16.mxu0 0
    %828 = vmatpush2.bf16.msra.mxu0 0
    %829 = vmatprep.subr.bf16.mxu0 0
    %830 = vmatpush2.bf16.msra.mxu0 0
    %831 = vmatprep.subr.bf16.mxu0 0
    %832 = vmatpush2.bf16.msra.mxu0 0
    %833 = vmatprep.subr.bf16.mxu0 0
    %834 = vmatpush2.bf16.msra.mxu0 0
    %835 = vmatprep.mubr.bf16.mxu0 0
    %836 = vmatmul.mubr.bf16.gmra.mxu0 %v792
    %v837 = vpop.f32.mrf.mxu0
    %v838 = vadd.f32 0.0, %v837
    %v839 = vpop.f32.mrf.mxu0
    %v840 = vadd.f32 0.0, %v839
    %v841 = vpop.f32.mrf.mxu0
    %v842 = vadd.f32 0.0, %v841
    %v843 = vpop.f32.mrf.mxu0
    %v844 = vadd.f32 0.0, %v843
    %845 = vmatprep.mubr.bf16.mxu0 0
    %846 = vmatmul.mubr.bf16.gmra.mxu0 %v795
    %v847 = vpop.f32.mrf.mxu0
    %v848 = vadd.f32 0.0, %v847
    %v849 = vpop.f32.mrf.mxu0
    %v850 = vadd.f32 0.0, %v849
    %v851 = vpop.f32.mrf.mxu0
    %v852 = vadd.f32 0.0, %v851
    %v853 = vpop.f32.mrf.mxu0
    %v854 = vadd.f32 0.0, %v853
    %855 = vmatprep.mubr.bf16.mxu0 0
    %856 = vmatmul.mubr.bf16.gmra.mxu0 %v798
    %v857 = vpop.f32.mrf.mxu0
    %v858 = vadd.f32 0.0, %v857
    %v859 = vpop.f32.mrf.mxu0
    %v860 = vadd.f32 0.0, %v859
    %v861 = vpop.f32.mrf.mxu0
    %v862 = vadd.f32 0.0, %v861
    %v863 = vpop.f32.mrf.mxu0
    %v864 = vadd.f32 0.0, %v863
    %865 = vmatprep.mubr.bf16.mxu0 0
    %866 = vmatmul.mubr.bf16.gmra.mxu0 %v801
    %v867 = vpop.f32.mrf.mxu0
    %v868 = vadd.f32 0.0, %v867
    %v869 = vpop.f32.mrf.mxu0
    %v870 = vadd.f32 0.0, %v869
    %v871 = vpop.f32.mrf.mxu0
    %v872 = vadd.f32 0.0, %v871
    %v873 = vpop.f32.mrf.mxu0
    %v874 = vadd.f32 0.0, %v873
    %875 = vdwg.mxu0
    %v876 = vpack.c.bf16 %v842, %v838
    %v877 = vpack.c.bf16 %v844, %v840
    %v878 = vpack.c.bf16 %v852, %v848
    %v879 = vpack.c.bf16 %v854, %v850
    %v880 = vpack.c.bf16 %v862, %v858
    %v881 = vpack.c.bf16 %v864, %v860
    %v882 = vpack.c.bf16 %v872, %v868
    %v883 = vpack.c.bf16 %v874, %v870
    %s884 = scalar_lea.vmem %s3, 96
    %v885 = vld [vmem:[%s884] sm:$0xf]
    %v886 = vld [vmem:[%s884 + $0x4] sm:$0xf]
    %v887 = vld [vmem:[%s884 + $0x8] sm:$0xf]
    %v888 = vld [vmem:[%s884 + $0xc] sm:$0xf]
    %v889 = vld [vmem:[%s884 + $0x10] sm:$0xf]
    %v890 = vld [vmem:[%s884 + $0x14] sm:$0xf]
    %v891 = vld [vmem:[%s884 + $0x18] sm:$0xf]
    %v892 = vld [vmem:[%s884 + $0x1c] sm:$0xf]
    %s893 = scalar_lea.vmem %s3, 128
    %v894 = vld [vmem:[%s893] sm:$0xf]
    %v895 = vld [vmem:[%s893 + $0x4] sm:$0xf]
    %v896 = vld [vmem:[%s893 + $0x8] sm:$0xf]
    %v897 = vld [vmem:[%s893 + $0xc] sm:$0xf]
    %v898 = vld [vmem:[%s893 + $0x10] sm:$0xf]
    %v899 = vld [vmem:[%s893 + $0x14] sm:$0xf]
    %v900 = vld [vmem:[%s893 + $0x18] sm:$0xf]
    %v901 = vld [vmem:[%s893 + $0x1c] sm:$0xf]
    %v910 = vunpack.c.l.b16 %v894
    %v911 = vunpack.c.l.b16 %v895
    %v912 = vunpack.c.l.b16 %v896
    %v913 = vunpack.c.l.b16 %v897
    %v914 = vunpack.c.l.b16 %v898
    %v915 = vunpack.c.l.b16 %v899
    %v916 = vunpack.c.l.b16 %v900
    %v917 = vunpack.c.l.b16 %v901
    %v918 = vpack.c.b16 %v911, %v910
    %v919 = vpack.c.b16 %v913, %v912
    %v920 = vpack.c.b16 %v915, %v914
    %v921 = vpack.c.b16 %v917, %v916
    %926 = vrot.lane.b32.xlu0 %v876, 64
    %v927 = vpop.permute.xlu0 %926
    %928 = vrot.lane.b32.xlu0 %v878, 64
    %v929 = vpop.permute.xlu0 %928
    %930 = vrot.lane.b32.xlu0 %v880, 64
    %v931 = vpop.permute.xlu0 %930
    %932 = vrot.lane.b32.xlu0 %v882, 64
    %v933 = vpop.permute.xlu0 %932
    %v939 = vsel %vm242, %v918, 0
    %v942 = vsel %vm242, %v919, 0
    %v945 = vsel %vm242, %v920, 0
    %v948 = vsel %vm242, %v921, 0
    %950 = vmatprep.subr.bf16.mxu0 0
    %951 = vmatpush1.bf16.msra.mxu0 0
    %952 = vmatprep.subr.bf16.mxu0 0
    %953 = vmatpush1.bf16.msra.mxu0 0
    %954 = vmatprep.subr.bf16.mxu0 0
    %955 = vmatpush1.bf16.msra.mxu0 0
    %956 = vmatprep.subr.bf16.mxu0 0
    %957 = vmatpush1.bf16.msra.mxu0 0
    %958 = vmatprep.subr.bf16.mxu0 0
    %959 = vmatpush1.bf16.msra.mxu0 %v933
    %960 = vmatprep.subr.bf16.mxu0 0
    %961 = vmatpush1.bf16.msra.mxu0 %v931
    %962 = vmatprep.subr.bf16.mxu0 0
    %963 = vmatpush1.bf16.msra.mxu0 %v929
    %964 = vmatprep.subr.bf16.mxu0 0
    %965 = vmatpush1.bf16.msra.mxu0 %v927
    %966 = vmatprep.subr.bf16.mxu0 0
    %967 = vmatpush2.bf16.msra.mxu0 0
    %968 = vmatprep.subr.bf16.mxu0 0
    %969 = vmatpush2.bf16.msra.mxu0 0
    %970 = vmatprep.subr.bf16.mxu0 0
    %971 = vmatpush2.bf16.msra.mxu0 0
    %972 = vmatprep.subr.bf16.mxu0 0
    %973 = vmatpush2.bf16.msra.mxu0 0
    %974 = vmatprep.subr.bf16.mxu0 0
    %975 = vmatpush2.bf16.msra.mxu0 0
    %976 = vmatprep.subr.bf16.mxu0 0
    %977 = vmatpush2.bf16.msra.mxu0 0
    %978 = vmatprep.subr.bf16.mxu0 0
    %979 = vmatpush2.bf16.msra.mxu0 0
    %980 = vmatprep.subr.bf16.mxu0 0
    %981 = vmatpush2.bf16.msra.mxu0 0
    %982 = vmatprep.mubr.bf16.mxu0 0
    %983 = vmatmul.mubr.bf16.gmra.mxu0 %v939
    %v984 = vpop.f32.mrf.mxu0
    %v985 = vadd.f32 0.0, %v984
    %v986 = vpop.f32.mrf.mxu0
    %v987 = vpop.f32.mrf.mxu0
    %v988 = vadd.f32 0.0, %v987
    %v989 = vpop.f32.mrf.mxu0
    %990 = vmatprep.mubr.bf16.mxu0 0
    %991 = vmatmul.mubr.bf16.gmra.mxu0 %v942
    %v992 = vpop.f32.mrf.mxu0
    %v993 = vadd.f32 0.0, %v992
    %v994 = vpop.f32.mrf.mxu0
    %v995 = vpop.f32.mrf.mxu0
    %v996 = vadd.f32 0.0, %v995
    %v997 = vpop.f32.mrf.mxu0
    %998 = vmatprep.mubr.bf16.mxu0 0
    %999 = vmatmul.mubr.bf16.gmra.mxu0 %v945
    %v1000 = vpop.f32.mrf.mxu0
    %v1001 = vadd.f32 0.0, %v1000
    %v1002 = vpop.f32.mrf.mxu0
    %v1003 = vpop.f32.mrf.mxu0
    %v1004 = vadd.f32 0.0, %v1003
    %v1005 = vpop.f32.mrf.mxu0
    %1006 = vmatprep.mubr.bf16.mxu0 0
    %1007 = vmatmul.mubr.bf16.gmra.mxu0 %v948
    %v1008 = vpop.f32.mrf.mxu0
    %v1009 = vadd.f32 0.0, %v1008
    %v1010 = vpop.f32.mrf.mxu0
    %v1011 = vpop.f32.mrf.mxu0
    %v1012 = vadd.f32 0.0, %v1011
    %v1013 = vpop.f32.mrf.mxu0
    %1014 = vdwg.mxu0
    %v1023 = vunpack.c.l.b16 %v885
    %v1024 = vunpack.c.l.b16 %v886
    %v1025 = vunpack.c.l.b16 %v887
    %v1026 = vunpack.c.l.b16 %v888
    %v1027 = vunpack.c.l.b16 %v889
    %v1028 = vunpack.c.l.b16 %v890
    %v1029 = vunpack.c.l.b16 %v891
    %v1030 = vunpack.c.l.b16 %v892
    %v1031 = vpack.c.b16 %v1024, %v1023
    %v1032 = vpack.c.b16 %v1026, %v1025
    %v1033 = vpack.c.b16 %v1028, %v1027
    %v1034 = vpack.c.b16 %v1030, %v1029
    %v1036 = vsel %vm242, %v1031, 0
    %v1039 = vsel %vm242, %v1032, 0
    %v1042 = vsel %vm242, %v1033, 0
    %v1045 = vsel %vm242, %v1034, 0
    %1047 = vmatprep.subr.bf16.mxu0 0
    %1048 = vmatpush1.bf16.msra.mxu0 0
    %1049 = vmatprep.subr.bf16.mxu0 0
    %1050 = vmatpush1.bf16.msra.mxu0 0
    %1051 = vmatprep.subr.bf16.mxu0 0
    %1052 = vmatpush1.bf16.msra.mxu0 0
    %1053 = vmatprep.subr.bf16.mxu0 0
    %1054 = vmatpush1.bf16.msra.mxu0 0
    %1055 = vmatprep.subr.bf16.mxu0 0
    %1056 = vmatpush1.bf16.msra.mxu0 %v882
    %1057 = vmatprep.subr.bf16.mxu0 0
    %1058 = vmatpush1.bf16.msra.mxu0 %v880
    %1059 = vmatprep.subr.bf16.mxu0 0
    %1060 = vmatpush1.bf16.msra.mxu0 %v878
    %1061 = vmatprep.subr.bf16.mxu0 0
    %1062 = vmatpush1.bf16.msra.mxu0 %v876
    %1063 = vmatprep.subr.bf16.mxu0 0
    %1064 = vmatpush2.bf16.msra.mxu0 0
    %1065 = vmatprep.subr.bf16.mxu0 0
    %1066 = vmatpush2.bf16.msra.mxu0 0
    %1067 = vmatprep.subr.bf16.mxu0 0
    %1068 = vmatpush2.bf16.msra.mxu0 0
    %1069 = vmatprep.subr.bf16.mxu0 0
    %1070 = vmatpush2.bf16.msra.mxu0 0
    %1071 = vmatprep.subr.bf16.mxu0 0
    %1072 = vmatpush2.bf16.msra.mxu0 0
    %1073 = vmatprep.subr.bf16.mxu0 0
    %1074 = vmatpush2.bf16.msra.mxu0 0
    %1075 = vmatprep.subr.bf16.mxu0 0
    %1076 = vmatpush2.bf16.msra.mxu0 0
    %1077 = vmatprep.subr.bf16.mxu0 0
    %1078 = vmatpush2.bf16.msra.mxu0 0
    %1079 = vmatprep.mubr.bf16.mxu0 0
    %1080 = vmatmul.mubr.bf16.gmra.mxu0 %v1036
    %v1081 = vpop.f32.mrf.mxu0
    %v1082 = vadd.f32 %v985, %v1081
    %v1083 = vpop.f32.mrf.mxu0
    %v1084 = vpop.f32.mrf.mxu0
    %v1085 = vadd.f32 %v988, %v1084
    %v1086 = vpop.f32.mrf.mxu0
    %1087 = vmatprep.mubr.bf16.mxu0 0
    %1088 = vmatmul.mubr.bf16.gmra.mxu0 %v1039
    %v1089 = vpop.f32.mrf.mxu0
    %v1090 = vadd.f32 %v993, %v1089
    %v1091 = vpop.f32.mrf.mxu0
    %v1092 = vpop.f32.mrf.mxu0
    %v1093 = vadd.f32 %v996, %v1092
    %v1094 = vpop.f32.mrf.mxu0
    %1095 = vmatprep.mubr.bf16.mxu0 0
    %1096 = vmatmul.mubr.bf16.gmra.mxu0 %v1042
    %v1097 = vpop.f32.mrf.mxu0
    %v1098 = vadd.f32 %v1001, %v1097
    %v1099 = vpop.f32.mrf.mxu0
    %v1100 = vpop.f32.mrf.mxu0
    %v1101 = vadd.f32 %v1004, %v1100
    %v1102 = vpop.f32.mrf.mxu0
    %1103 = vmatprep.mubr.bf16.mxu0 0
    %1104 = vmatmul.mubr.bf16.gmra.mxu0 %v1045
    %v1105 = vpop.f32.mrf.mxu0
    %v1106 = vadd.f32 %v1009, %v1105
    %v1107 = vpop.f32.mrf.mxu0
    %v1108 = vpop.f32.mrf.mxu0
    %v1109 = vadd.f32 %v1012, %v1108
    %v1110 = vpop.f32.mrf.mxu0
    %1111 = vdwg.mxu0
    %s1112 = scalar_lea.vmem %s3, 160
    %v1113 = vld [vmem:[%s1112] sm:$0xf]
    %v1114 = vld [vmem:[%s1112 + $0x4] sm:$0xf]
    %v1115 = vld [vmem:[%s1112 + $0x8] sm:$0xf]
    %v1116 = vld [vmem:[%s1112 + $0xc] sm:$0xf]
    %v1117 = vld [vmem:[%s1112 + $0x10] sm:$0xf]
    %v1118 = vld [vmem:[%s1112 + $0x14] sm:$0xf]
    %v1119 = vld [vmem:[%s1112 + $0x18] sm:$0xf]
    %v1120 = vld [vmem:[%s1112 + $0x1c] sm:$0xf]
    %v1129 = vunpack.c.l.b16 %v1113
    %v1130 = vunpack.c.l.b16 %v1114
    %v1131 = vunpack.c.l.b16 %v1115
    %v1132 = vunpack.c.l.b16 %v1116
    %v1133 = vunpack.c.l.b16 %v1117
    %v1134 = vunpack.c.l.b16 %v1118
    %v1135 = vunpack.c.l.b16 %v1119
    %v1136 = vunpack.c.l.b16 %v1120
    %v1137 = vpack.c.b16 %v1130, %v1129
    %v1138 = vpack.c.b16 %v1132, %v1131
    %v1139 = vpack.c.b16 %v1134, %v1133
    %v1140 = vpack.c.b16 %v1136, %v1135
    %v1142 = vsel %vm242, %v1137, 0
    %v1145 = vsel %vm242, %v1138, 0
    %v1148 = vsel %vm242, %v1139, 0
    %v1151 = vsel %vm242, %v1140, 0
    %1153 = vmatprep.subr.bf16.mxu0 0
    %1154 = vmatpush1.bf16.msra.mxu0 0
    %1155 = vmatprep.subr.bf16.mxu0 0
    %1156 = vmatpush1.bf16.msra.mxu0 0
    %1157 = vmatprep.subr.bf16.mxu0 0
    %1158 = vmatpush1.bf16.msra.mxu0 0
    %1159 = vmatprep.subr.bf16.mxu0 0
    %1160 = vmatpush1.bf16.msra.mxu0 0
    %1161 = vmatprep.subr.bf16.mxu0 0
    %1162 = vmatpush1.bf16.msra.mxu0 %v883
    %1163 = vmatprep.subr.bf16.mxu0 0
    %1164 = vmatpush1.bf16.msra.mxu0 %v881
    %1165 = vmatprep.subr.bf16.mxu0 0
    %1166 = vmatpush1.bf16.msra.mxu0 %v879
    %1167 = vmatprep.subr.bf16.mxu0 0
    %1168 = vmatpush1.bf16.msra.mxu0 %v877
    %1169 = vmatprep.subr.bf16.mxu0 0
    %1170 = vmatpush2.bf16.msra.mxu0 0
    %1171 = vmatprep.subr.bf16.mxu0 0
    %1172 = vmatpush2.bf16.msra.mxu0 0
    %1173 = vmatprep.subr.bf16.mxu0 0
    %1174 = vmatpush2.bf16.msra.mxu0 0
    %1175 = vmatprep.subr.bf16.mxu0 0
    %1176 = vmatpush2.bf16.msra.mxu0 0
    %1177 = vmatprep.subr.bf16.mxu0 0
    %1178 = vmatpush2.bf16.msra.mxu0 0
    %1179 = vmatprep.subr.bf16.mxu0 0
    %1180 = vmatpush2.bf16.msra.mxu0 0
    %1181 = vmatprep.subr.bf16.mxu0 0
    %1182 = vmatpush2.bf16.msra.mxu0 0
    %1183 = vmatprep.subr.bf16.mxu0 0
    %1184 = vmatpush2.bf16.msra.mxu0 0
    %1185 = vmatprep.mubr.bf16.mxu0 0
    %1186 = vmatmul.mubr.bf16.gmra.mxu0 %v1142
    %v1187 = vpop.f32.mrf.mxu0
    %v1188 = vadd.f32 0.0, %v1187
    %v1189 = vpop.f32.mrf.mxu0
    %v1190 = vpop.f32.mrf.mxu0
    %v1191 = vadd.f32 0.0, %v1190
    %v1192 = vpop.f32.mrf.mxu0
    %1193 = vmatprep.mubr.bf16.mxu0 0
    %1194 = vmatmul.mubr.bf16.gmra.mxu0 %v1145
    %v1195 = vpop.f32.mrf.mxu0
    %v1196 = vadd.f32 0.0, %v1195
    %v1197 = vpop.f32.mrf.mxu0
    %v1198 = vpop.f32.mrf.mxu0
    %v1199 = vadd.f32 0.0, %v1198
    %v1200 = vpop.f32.mrf.mxu0
    %1201 = vmatprep.mubr.bf16.mxu0 0
    %1202 = vmatmul.mubr.bf16.gmra.mxu0 %v1148
    %v1203 = vpop.f32.mrf.mxu0
    %v1204 = vadd.f32 0.0, %v1203
    %v1205 = vpop.f32.mrf.mxu0
    %v1206 = vpop.f32.mrf.mxu0
    %v1207 = vadd.f32 0.0, %v1206
    %v1208 = vpop.f32.mrf.mxu0
    %1209 = vmatprep.mubr.bf16.mxu0 0
    %1210 = vmatmul.mubr.bf16.gmra.mxu0 %v1151
    %v1211 = vpop.f32.mrf.mxu0
    %v1212 = vadd.f32 0.0, %v1211
    %v1213 = vpop.f32.mrf.mxu0
    %v1214 = vpop.f32.mrf.mxu0
    %v1215 = vadd.f32 0.0, %v1214
    %v1216 = vpop.f32.mrf.mxu0
    %1217 = vdwg.mxu0
    %v1218 = vadd.f32 %v1082, %v1188
    %v1219 = vadd.f32 %v1085, %v1191
    %v1220 = vadd.f32 %v1090, %v1196
    %v1221 = vadd.f32 %v1093, %v1199
    %v1222 = vadd.f32 %v1098, %v1204
    %v1223 = vadd.f32 %v1101, %v1207
    %v1224 = vadd.f32 %v1106, %v1212
    %v1225 = vadd.f32 %v1109, %v1215
    %s1226 = scalar_lea.vmem [#allocation6], 4
    %v1227 = vld [vmem:[%s1226] sm:$0x7]
    %v1228 = vlaneseq
    %v1229 = vshrl.u32 %v1228, 7
    %v1230 = vsub.s32 0, %v1229
    %v1231 = vrot.slane %v1227, %v1230
    %v1232 = vadd.f32 %v1218, %v1231
    %v1233 = vadd.f32 %v1219, %v1231
    %v1234 = vadd.f32 %v1220, %v1231
    %v1235 = vadd.f32 %v1221, %v1231
    %v1236 = vadd.f32 %v1222, %v1231
    %v1237 = vadd.f32 %v1223, %v1231
    %v1238 = vadd.f32 %v1224, %v1231
    %v1239 = vadd.f32 %v1225, %v1231
    %vm1240 = vcmp.gt.f32.partialorder %v1232, 0.0
    %vm1241 = vcmp.gt.f32.partialorder %v1233, 0.0
    %vm1242 = vcmp.gt.f32.partialorder %v1234, 0.0
    %vm1243 = vcmp.gt.f32.partialorder %v1235, 0.0
    %vm1244 = vcmp.gt.f32.partialorder %v1236, 0.0
    %vm1245 = vcmp.gt.f32.partialorder %v1237, 0.0
    %vm1246 = vcmp.gt.f32.partialorder %v1238, 0.0
    %vm1247 = vcmp.gt.f32.partialorder %v1239, 0.0
    %v1248 = vmul.f32 %v1232, 0.2
    %v1249 = vmul.f32 %v1233, 0.2
    %v1250 = vmul.f32 %v1234, 0.2
    %v1251 = vmul.f32 %v1235, 0.2
    %v1252 = vmul.f32 %v1236, 0.2
    %v1253 = vmul.f32 %v1237, 0.2
    %v1254 = vmul.f32 %v1238, 0.2
    %v1255 = vmul.f32 %v1239, 0.2
    %v1256 = vsel %vm1240, %v1232, %v1248
    %v1257 = vsel %vm1241, %v1233, %v1249
    %v1258 = vsel %vm1242, %v1234, %v1250
    %v1259 = vsel %vm1243, %v1235, %v1251
    %v1260 = vsel %vm1244, %v1236, %v1252
    %v1261 = vsel %vm1245, %v1237, %v1253
    %v1262 = vsel %vm1246, %v1238, %v1254
    %v1263 = vsel %vm1247, %v1239, %v1255
    %v1264 = vlaneseq
    %v1265 = vshrl.u32 %v1264, 7
    %v1266 = vsub.s32 1, %v1265
    %v1267 = vrot.slane %v1227, %v1266
    %v1268 = vmul.f32 %v1256, %v1267
    %v1269 = vmul.f32 %v1257, %v1267
    %v1270 = vmul.f32 %v1258, %v1267
    %v1271 = vmul.f32 %v1259, %v1267
    %v1272 = vmul.f32 %v1260, %v1267
    %v1273 = vmul.f32 %v1261, %v1267
    %v1274 = vmul.f32 %v1262, %v1267
    %v1275 = vmul.f32 %v1263, %v1267
    %v1276 = vlaneseq
    %v1277 = vshrl.u32 %v1276, 7
    %v1278 = vsub.s32 2, %v1277
    %v1279 = vrot.slane %v1227, %v1278
    %v1280 = vadd.f32 %v1268, %v1279
    %v1281 = vadd.f32 %v1269, %v1279
    %v1282 = vadd.f32 %v1270, %v1279
    %v1283 = vadd.f32 %v1271, %v1279
    %v1284 = vadd.f32 %v1272, %v1279
    %v1285 = vadd.f32 %v1273, %v1279
    %v1286 = vadd.f32 %v1274, %v1279
    %v1287 = vadd.f32 %v1275, %v1279
    %v1288 = vpack.c.bf16 %v1281, %v1280
    %v1289 = vpack.c.bf16 %v1283, %v1282
    %v1290 = vpack.c.bf16 %v1285, %v1284
    %v1291 = vpack.c.bf16 %v1287, %v1286
    %s1292 = scalar_lea.vmem [#allocation3], 128
    %v1293 = vld [vmem:[%s1292] sm:$0xff]
    %v1294 = vld [vmem:[%s1292 + $0x8] sm:$0xff]
    %v1295 = vld [vmem:[%s1292 + $0x10] sm:$0xff]
    %v1296 = vld [vmem:[%s1292 + $0x18] sm:$0xff]
    %v1297 = vld [vmem:[%s1292 + $0x20] sm:$0xff]
    %v1298 = vld [vmem:[%s1292 + $0x28] sm:$0xff]
    %v1299 = vld [vmem:[%s1292 + $0x30] sm:$0xff]
    %v1300 = vld [vmem:[%s1292 + $0x38] sm:$0xff]
    %v1309 = vunpack.c.l.b16 %v1293
    %v1310 = vunpack.c.h.b16 %v1293
    %v1311 = vunpack.c.l.b16 %v1294
    %v1312 = vunpack.c.h.b16 %v1294
    %v1313 = vunpack.c.l.b16 %v1295
    %v1314 = vunpack.c.h.b16 %v1295
    %v1315 = vunpack.c.l.b16 %v1296
    %v1316 = vunpack.c.h.b16 %v1296
    %v1317 = vunpack.c.l.b16 %v1297
    %v1318 = vunpack.c.h.b16 %v1297
    %v1319 = vunpack.c.l.b16 %v1298
    %v1320 = vunpack.c.h.b16 %v1298
    %v1321 = vunpack.c.l.b16 %v1299
    %v1322 = vunpack.c.h.b16 %v1299
    %v1323 = vunpack.c.l.b16 %v1300
    %v1324 = vunpack.c.h.b16 %v1300
    %v1325 = vpack.c.b16 %v1311, %v1309
    %v1326 = vpack.c.b16 %v1312, %v1310
    %v1327 = vpack.c.b16 %v1315, %v1313
    %v1328 = vpack.c.b16 %v1316, %v1314
    %v1329 = vpack.c.b16 %v1319, %v1317
    %v1330 = vpack.c.b16 %v1320, %v1318
    %v1331 = vpack.c.b16 %v1323, %v1321
    %v1332 = vpack.c.b16 %v1324, %v1322
    %v1342 = vsel %vm242, %v1288, 0
    %v1345 = vsel %vm242, %v1289, 0
    %v1348 = vsel %vm242, %v1290, 0
    %v1351 = vsel %vm242, %v1291, 0
    %1353 = vmatprep.subr.bf16.mxu0 0
    %1354 = vmatpush1.bf16.msra.mxu0 0
    %1355 = vmatprep.subr.bf16.mxu0 0
    %1356 = vmatpush1.bf16.msra.mxu0 0
    %1357 = vmatprep.subr.bf16.mxu0 0
    %1358 = vmatpush1.bf16.msra.mxu0 0
    %1359 = vmatprep.subr.bf16.mxu0 0
    %1360 = vmatpush1.bf16.msra.mxu0 0
    %1361 = vmatprep.subr.bf16.mxu0 %v1332
    %1362 = vmatpush1.bf16.msra.mxu0 %v1331
    %1363 = vmatprep.subr.bf16.mxu0 %v1330
    %1364 = vmatpush1.bf16.msra.mxu0 %v1329
    %1365 = vmatprep.subr.bf16.mxu0 %v1328
    %1366 = vmatpush1.bf16.msra.mxu0 %v1327
    %1367 = vmatprep.subr.bf16.mxu0 %v1326
    %1368 = vmatpush1.bf16.msra.mxu0 %v1325
    %1369 = vmatprep.subr.bf16.mxu0 0
    %1370 = vmatpush2.bf16.msra.mxu0 0
    %1371 = vmatprep.subr.bf16.mxu0 0
    %1372 = vmatpush2.bf16.msra.mxu0 0
    %1373 = vmatprep.subr.bf16.mxu0 0
    %1374 = vmatpush2.bf16.msra.mxu0 0
    %1375 = vmatprep.subr.bf16.mxu0 0
    %1376 = vmatpush2.bf16.msra.mxu0 0
    %1377 = vmatprep.subr.bf16.mxu0 0
    %1378 = vmatpush2.bf16.msra.mxu0 0
    %1379 = vmatprep.subr.bf16.mxu0 0
    %1380 = vmatpush2.bf16.msra.mxu0 0
    %1381 = vmatprep.subr.bf16.mxu0 0
    %1382 = vmatpush2.bf16.msra.mxu0 0
    %1383 = vmatprep.subr.bf16.mxu0 0
    %1384 = vmatpush2.bf16.msra.mxu0 0
    %1385 = vmatprep.mubr.bf16.mxu0 0
    %1386 = vmatmul.mubr.bf16.gmra.mxu0 %v1342
    %v1387 = vpop.f32.mrf.mxu0
    %v1388 = vadd.f32 0.0, %v1387
    %v1389 = vpop.f32.mrf.mxu0
    %v1390 = vadd.f32 0.0, %v1389
    %v1391 = vpop.f32.mrf.mxu0
    %v1392 = vadd.f32 0.0, %v1391
    %v1393 = vpop.f32.mrf.mxu0
    %v1394 = vadd.f32 0.0, %v1393
    %1395 = vmatprep.mubr.bf16.mxu0 0
    %1396 = vmatmul.mubr.bf16.gmra.mxu0 %v1345
    %v1397 = vpop.f32.mrf.mxu0
    %v1398 = vadd.f32 0.0, %v1397
    %v1399 = vpop.f32.mrf.mxu0
    %v1400 = vadd.f32 0.0, %v1399
    %v1401 = vpop.f32.mrf.mxu0
    %v1402 = vadd.f32 0.0, %v1401
    %v1403 = vpop.f32.mrf.mxu0
    %v1404 = vadd.f32 0.0, %v1403
    %1405 = vmatprep.mubr.bf16.mxu0 0
    %1406 = vmatmul.mubr.bf16.gmra.mxu0 %v1348
    %v1407 = vpop.f32.mrf.mxu0
    %v1408 = vadd.f32 0.0, %v1407
    %v1409 = vpop.f32.mrf.mxu0
    %v1410 = vadd.f32 0.0, %v1409
    %v1411 = vpop.f32.mrf.mxu0
    %v1412 = vadd.f32 0.0, %v1411
    %v1413 = vpop.f32.mrf.mxu0
    %v1414 = vadd.f32 0.0, %v1413
    %1415 = vmatprep.mubr.bf16.mxu0 0
    %1416 = vmatmul.mubr.bf16.gmra.mxu0 %v1351
    %v1417 = vpop.f32.mrf.mxu0
    %v1418 = vadd.f32 0.0, %v1417
    %v1419 = vpop.f32.mrf.mxu0
    %v1420 = vadd.f32 0.0, %v1419
    %v1421 = vpop.f32.mrf.mxu0
    %v1422 = vadd.f32 0.0, %v1421
    %v1423 = vpop.f32.mrf.mxu0
    %v1424 = vadd.f32 0.0, %v1423
    %1425 = vdwg.mxu0
    %v1426 = vpack.c.bf16 %v1392, %v1388
    %v1427 = vpack.c.bf16 %v1394, %v1390
    %v1428 = vpack.c.bf16 %v1402, %v1398
    %v1429 = vpack.c.bf16 %v1404, %v1400
    %v1430 = vpack.c.bf16 %v1412, %v1408
    %v1431 = vpack.c.bf16 %v1414, %v1410
    %v1432 = vpack.c.bf16 %v1422, %v1418
    %v1433 = vpack.c.bf16 %v1424, %v1420
    %s1434 = scalar_lea.vmem %s3, 192
    %v1435 = vld [vmem:[%s1434] sm:$0xf]
    %v1436 = vld [vmem:[%s1434 + $0x4] sm:$0xf]
    %v1437 = vld [vmem:[%s1434 + $0x8] sm:$0xf]
    %v1438 = vld [vmem:[%s1434 + $0xc] sm:$0xf]
    %v1439 = vld [vmem:[%s1434 + $0x10] sm:$0xf]
    %v1440 = vld [vmem:[%s1434 + $0x14] sm:$0xf]
    %v1441 = vld [vmem:[%s1434 + $0x18] sm:$0xf]
    %v1442 = vld [vmem:[%s1434 + $0x1c] sm:$0xf]
    %s1443 = scalar_lea.vmem %s3, 224
    %v1444 = vld [vmem:[%s1443] sm:$0xf]
    %v1445 = vld [vmem:[%s1443 + $0x4] sm:$0xf]
    %v1446 = vld [vmem:[%s1443 + $0x8] sm:$0xf]
    %v1447 = vld [vmem:[%s1443 + $0xc] sm:$0xf]
    %v1448 = vld [vmem:[%s1443 + $0x10] sm:$0xf]
    %v1449 = vld [vmem:[%s1443 + $0x14] sm:$0xf]
    %v1450 = vld [vmem:[%s1443 + $0x18] sm:$0xf]
    %v1451 = vld [vmem:[%s1443 + $0x1c] sm:$0xf]
    %v1460 = vunpack.c.l.b16 %v1444
    %v1461 = vunpack.c.l.b16 %v1445
    %v1462 = vunpack.c.l.b16 %v1446
    %v1463 = vunpack.c.l.b16 %v1447
    %v1464 = vunpack.c.l.b16 %v1448
    %v1465 = vunpack.c.l.b16 %v1449
    %v1466 = vunpack.c.l.b16 %v1450
    %v1467 = vunpack.c.l.b16 %v1451
    %v1468 = vpack.c.b16 %v1461, %v1460
    %v1469 = vpack.c.b16 %v1463, %v1462
    %v1470 = vpack.c.b16 %v1465, %v1464
    %v1471 = vpack.c.b16 %v1467, %v1466
    %1476 = vrot.lane.b32.xlu0 %v1426, 64
    %v1477 = vpop.permute.xlu0 %1476
    %1478 = vrot.lane.b32.xlu0 %v1428, 64
    %v1479 = vpop.permute.xlu0 %1478
    %1480 = vrot.lane.b32.xlu0 %v1430, 64
    %v1481 = vpop.permute.xlu0 %1480
    %1482 = vrot.lane.b32.xlu0 %v1432, 64
    %v1483 = vpop.permute.xlu0 %1482
    %v1489 = vsel %vm242, %v1468, 0
    %v1492 = vsel %vm242, %v1469, 0
    %v1495 = vsel %vm242, %v1470, 0
    %v1498 = vsel %vm242, %v1471, 0
    %1500 = vmatprep.subr.bf16.mxu0 0
    %1501 = vmatpush1.bf16.msra.mxu0 0
    %1502 = vmatprep.subr.bf16.mxu0 0
    %1503 = vmatpush1.bf16.msra.mxu0 0
    %1504 = vmatprep.subr.bf16.mxu0 0
    %1505 = vmatpush1.bf16.msra.mxu0 0
    %1506 = vmatprep.subr.bf16.mxu0 0
    %1507 = vmatpush1.bf16.msra.mxu0 0
    %1508 = vmatprep.subr.bf16.mxu0 0
    %1509 = vmatpush1.bf16.msra.mxu0 %v1483
    %1510 = vmatprep.subr.bf16.mxu0 0
    %1511 = vmatpush1.bf16.msra.mxu0 %v1481
    %1512 = vmatprep.subr.bf16.mxu0 0
    %1513 = vmatpush1.bf16.msra.mxu0 %v1479
    %1514 = vmatprep.subr.bf16.mxu0 0
    %1515 = vmatpush1.bf16.msra.mxu0 %v1477
    %1516 = vmatprep.subr.bf16.mxu0 0
    %1517 = vmatpush2.bf16.msra.mxu0 0
    %1518 = vmatprep.subr.bf16.mxu0 0
    %1519 = vmatpush2.bf16.msra.mxu0 0
    %1520 = vmatprep.subr.bf16.mxu0 0
    %1521 = vmatpush2.bf16.msra.mxu0 0
    %1522 = vmatprep.subr.bf16.mxu0 0
    %1523 = vmatpush2.bf16.msra.mxu0 0
    %1524 = vmatprep.subr.bf16.mxu0 0
    %1525 = vmatpush2.bf16.msra.mxu0 0
    %1526 = vmatprep.subr.bf16.mxu0 0
    %1527 = vmatpush2.bf16.msra.mxu0 0
    %1528 = vmatprep.subr.bf16.mxu0 0
    %1529 = vmatpush2.bf16.msra.mxu0 0
    %1530 = vmatprep.subr.bf16.mxu0 0
    %1531 = vmatpush2.bf16.msra.mxu0 0
    %1532 = vmatprep.mubr.bf16.mxu0 0
    %1533 = vmatmul.mubr.bf16.gmra.mxu0 %v1489
    %v1534 = vpop.f32.mrf.mxu0
    %v1535 = vadd.f32 0.0, %v1534
    %v1536 = vpop.f32.mrf.mxu0
    %v1537 = vpop.f32.mrf.mxu0
    %v1538 = vadd.f32 0.0, %v1537
    %v1539 = vpop.f32.mrf.mxu0
    %1540 = vmatprep.mubr.bf16.mxu0 0
    %1541 = vmatmul.mubr.bf16.gmra.mxu0 %v1492
    %v1542 = vpop.f32.mrf.mxu0
    %v1543 = vadd.f32 0.0, %v1542
    %v1544 = vpop.f32.mrf.mxu0
    %v1545 = vpop.f32.mrf.mxu0
    %v1546 = vadd.f32 0.0, %v1545
    %v1547 = vpop.f32.mrf.mxu0
    %1548 = vmatprep.mubr.bf16.mxu0 0
    %1549 = vmatmul.mubr.bf16.gmra.mxu0 %v1495
    %v1550 = vpop.f32.mrf.mxu0
    %v1551 = vadd.f32 0.0, %v1550
    %v1552 = vpop.f32.mrf.mxu0
    %v1553 = vpop.f32.mrf.mxu0
    %v1554 = vadd.f32 0.0, %v1553
    %v1555 = vpop.f32.mrf.mxu0
    %1556 = vmatprep.mubr.bf16.mxu0 0
    %1557 = vmatmul.mubr.bf16.gmra.mxu0 %v1498
    %v1558 = vpop.f32.mrf.mxu0
    %v1559 = vadd.f32 0.0, %v1558
    %v1560 = vpop.f32.mrf.mxu0
    %v1561 = vpop.f32.mrf.mxu0
    %v1562 = vadd.f32 0.0, %v1561
    %v1563 = vpop.f32.mrf.mxu0
    %1564 = vdwg.mxu0
    %v1573 = vunpack.c.l.b16 %v1435
    %v1574 = vunpack.c.l.b16 %v1436
    %v1575 = vunpack.c.l.b16 %v1437
    %v1576 = vunpack.c.l.b16 %v1438
    %v1577 = vunpack.c.l.b16 %v1439
    %v1578 = vunpack.c.l.b16 %v1440
    %v1579 = vunpack.c.l.b16 %v1441
    %v1580 = vunpack.c.l.b16 %v1442
    %v1581 = vpack.c.b16 %v1574, %v1573
    %v1582 = vpack.c.b16 %v1576, %v1575
    %v1583 = vpack.c.b16 %v1578, %v1577
    %v1584 = vpack.c.b16 %v1580, %v1579
    %v1586 = vsel %vm242, %v1581, 0
    %v1589 = vsel %vm242, %v1582, 0
    %v1592 = vsel %vm242, %v1583, 0
    %v1595 = vsel %vm242, %v1584, 0
    %1597 = vmatprep.subr.bf16.mxu0 0
    %1598 = vmatpush1.bf16.msra.mxu0 0
    %1599 = vmatprep.subr.bf16.mxu0 0
    %1600 = vmatpush1.bf16.msra.mxu0 0
    %1601 = vmatprep.subr.bf16.mxu0 0
    %1602 = vmatpush1.bf16.msra.mxu0 0
    %1603 = vmatprep.subr.bf16.mxu0 0
    %1604 = vmatpush1.bf16.msra.mxu0 0
    %1605 = vmatprep.subr.bf16.mxu0 0
    %1606 = vmatpush1.bf16.msra.mxu0 %v1432
    %1607 = vmatprep.subr.bf16.mxu0 0
    %1608 = vmatpush1.bf16.msra.mxu0 %v1430
    %1609 = vmatprep.subr.bf16.mxu0 0
    %1610 = vmatpush1.bf16.msra.mxu0 %v1428
    %1611 = vmatprep.subr.bf16.mxu0 0
    %1612 = vmatpush1.bf16.msra.mxu0 %v1426
    %1613 = vmatprep.subr.bf16.mxu0 0
    %1614 = vmatpush2.bf16.msra.mxu0 0
    %1615 = vmatprep.subr.bf16.mxu0 0
    %1616 = vmatpush2.bf16.msra.mxu0 0
    %1617 = vmatprep.subr.bf16.mxu0 0
    %1618 = vmatpush2.bf16.msra.mxu0 0
    %1619 = vmatprep.subr.bf16.mxu0 0
    %1620 = vmatpush2.bf16.msra.mxu0 0
    %1621 = vmatprep.subr.bf16.mxu0 0
    %1622 = vmatpush2.bf16.msra.mxu0 0
    %1623 = vmatprep.subr.bf16.mxu0 0
    %1624 = vmatpush2.bf16.msra.mxu0 0
    %1625 = vmatprep.subr.bf16.mxu0 0
    %1626 = vmatpush2.bf16.msra.mxu0 0
    %1627 = vmatprep.subr.bf16.mxu0 0
    %1628 = vmatpush2.bf16.msra.mxu0 0
    %1629 = vmatprep.mubr.bf16.mxu0 0
    %1630 = vmatmul.mubr.bf16.gmra.mxu0 %v1586
    %v1631 = vpop.f32.mrf.mxu0
    %v1632 = vadd.f32 %v1535, %v1631
    %v1633 = vpop.f32.mrf.mxu0
    %v1634 = vpop.f32.mrf.mxu0
    %v1635 = vadd.f32 %v1538, %v1634
    %v1636 = vpop.f32.mrf.mxu0
    %1637 = vmatprep.mubr.bf16.mxu0 0
    %1638 = vmatmul.mubr.bf16.gmra.mxu0 %v1589
    %v1639 = vpop.f32.mrf.mxu0
    %v1640 = vadd.f32 %v1543, %v1639
    %v1641 = vpop.f32.mrf.mxu0
    %v1642 = vpop.f32.mrf.mxu0
    %v1643 = vadd.f32 %v1546, %v1642
    %v1644 = vpop.f32.mrf.mxu0
    %1645 = vmatprep.mubr.bf16.mxu0 0
    %1646 = vmatmul.mubr.bf16.gmra.mxu0 %v1592
    %v1647 = vpop.f32.mrf.mxu0
    %v1648 = vadd.f32 %v1551, %v1647
    %v1649 = vpop.f32.mrf.mxu0
    %v1650 = vpop.f32.mrf.mxu0
    %v1651 = vadd.f32 %v1554, %v1650
    %v1652 = vpop.f32.mrf.mxu0
    %1653 = vmatprep.mubr.bf16.mxu0 0
    %1654 = vmatmul.mubr.bf16.gmra.mxu0 %v1595
    %v1655 = vpop.f32.mrf.mxu0
    %v1656 = vadd.f32 %v1559, %v1655
    %v1657 = vpop.f32.mrf.mxu0
    %v1658 = vpop.f32.mrf.mxu0
    %v1659 = vadd.f32 %v1562, %v1658
    %v1660 = vpop.f32.mrf.mxu0
    %1661 = vdwg.mxu0
    %s1662 = scalar_lea.vmem %s3, 256
    %v1663 = vld [vmem:[%s1662] sm:$0xf]
    %v1664 = vld [vmem:[%s1662 + $0x4] sm:$0xf]
    %v1665 = vld [vmem:[%s1662 + $0x8] sm:$0xf]
    %v1666 = vld [vmem:[%s1662 + $0xc] sm:$0xf]
    %v1667 = vld [vmem:[%s1662 + $0x10] sm:$0xf]
    %v1668 = vld [vmem:[%s1662 + $0x14] sm:$0xf]
    %v1669 = vld [vmem:[%s1662 + $0x18] sm:$0xf]
    %v1670 = vld [vmem:[%s1662 + $0x1c] sm:$0xf]
    %v1679 = vunpack.c.l.b16 %v1663
    %v1680 = vunpack.c.l.b16 %v1664
    %v1681 = vunpack.c.l.b16 %v1665
    %v1682 = vunpack.c.l.b16 %v1666
    %v1683 = vunpack.c.l.b16 %v1667
    %v1684 = vunpack.c.l.b16 %v1668
    %v1685 = vunpack.c.l.b16 %v1669
    %v1686 = vunpack.c.l.b16 %v1670
    %v1687 = vpack.c.b16 %v1680, %v1679
    %v1688 = vpack.c.b16 %v1682, %v1681
    %v1689 = vpack.c.b16 %v1684, %v1683
    %v1690 = vpack.c.b16 %v1686, %v1685
    %v1692 = vsel %vm242, %v1687, 0
    %v1695 = vsel %vm242, %v1688, 0
    %v1698 = vsel %vm242, %v1689, 0
    %v1701 = vsel %vm242, %v1690, 0
    %1703 = vmatprep.subr.bf16.mxu0 0
    %1704 = vmatpush1.bf16.msra.mxu0 0
    %1705 = vmatprep.subr.bf16.mxu0 0
    %1706 = vmatpush1.bf16.msra.mxu0 0
    %1707 = vmatprep.subr.bf16.mxu0 0
    %1708 = vmatpush1.bf16.msra.mxu0 0
    %1709 = vmatprep.subr.bf16.mxu0 0
    %1710 = vmatpush1.bf16.msra.mxu0 0
    %1711 = vmatprep.subr.bf16.mxu0 0
    %1712 = vmatpush1.bf16.msra.mxu0 %v1433
    %1713 = vmatprep.subr.bf16.mxu0 0
    %1714 = vmatpush1.bf16.msra.mxu0 %v1431
    %1715 = vmatprep.subr.bf16.mxu0 0
    %1716 = vmatpush1.bf16.msra.mxu0 %v1429
    %1717 = vmatprep.subr.bf16.mxu0 0
    %1718 = vmatpush1.bf16.msra.mxu0 %v1427
    %1719 = vmatprep.subr.bf16.mxu0 0
    %1720 = vmatpush2.bf16.msra.mxu0 0
    %1721 = vmatprep.subr.bf16.mxu0 0
    %1722 = vmatpush2.bf16.msra.mxu0 0
    %1723 = vmatprep.subr.bf16.mxu0 0
    %1724 = vmatpush2.bf16.msra.mxu0 0
    %1725 = vmatprep.subr.bf16.mxu0 0
    %1726 = vmatpush2.bf16.msra.mxu0 0
    %1727 = vmatprep.subr.bf16.mxu0 0
    %1728 = vmatpush2.bf16.msra.mxu0 0
    %1729 = vmatprep.subr.bf16.mxu0 0
    %1730 = vmatpush2.bf16.msra.mxu0 0
    %1731 = vmatprep.subr.bf16.mxu0 0
    %1732 = vmatpush2.bf16.msra.mxu0 0
    %1733 = vmatprep.subr.bf16.mxu0 0
    %1734 = vmatpush2.bf16.msra.mxu0 0
    %1735 = vmatprep.mubr.bf16.mxu0 0
    %1736 = vmatmul.mubr.bf16.gmra.mxu0 %v1692
    %v1737 = vpop.f32.mrf.mxu0
    %v1738 = vadd.f32 0.0, %v1737
    %v1739 = vpop.f32.mrf.mxu0
    %v1740 = vpop.f32.mrf.mxu0
    %v1741 = vadd.f32 0.0, %v1740
    %v1742 = vpop.f32.mrf.mxu0
    %1743 = vmatprep.mubr.bf16.mxu0 0
    %1744 = vmatmul.mubr.bf16.gmra.mxu0 %v1695
    %v1745 = vpop.f32.mrf.mxu0
    %v1746 = vadd.f32 0.0, %v1745
    %v1747 = vpop.f32.mrf.mxu0
    %v1748 = vpop.f32.mrf.mxu0
    %v1749 = vadd.f32 0.0, %v1748
    %v1750 = vpop.f32.mrf.mxu0
    %1751 = vmatprep.mubr.bf16.mxu0 0
    %1752 = vmatmul.mubr.bf16.gmra.mxu0 %v1698
    %v1753 = vpop.f32.mrf.mxu0
    %v1754 = vadd.f32 0.0, %v1753
    %v1755 = vpop.f32.mrf.mxu0
    %v1756 = vpop.f32.mrf.mxu0
    %v1757 = vadd.f32 0.0, %v1756
    %v1758 = vpop.f32.mrf.mxu0
    %1759 = vmatprep.mubr.bf16.mxu0 0
    %1760 = vmatmul.mubr.bf16.gmra.mxu0 %v1701
    %v1761 = vpop.f32.mrf.mxu0
    %v1762 = vadd.f32 0.0, %v1761
    %v1763 = vpop.f32.mrf.mxu0
    %v1764 = vpop.f32.mrf.mxu0
    %v1765 = vadd.f32 0.0, %v1764
    %v1766 = vpop.f32.mrf.mxu0
    %1767 = vdwg.mxu0
    %v1768 = vadd.f32 %v1632, %v1738
    %v1769 = vadd.f32 %v1635, %v1741
    %v1770 = vadd.f32 %v1640, %v1746
    %v1771 = vadd.f32 %v1643, %v1749
    %v1772 = vadd.f32 %v1648, %v1754
    %v1773 = vadd.f32 %v1651, %v1757
    %v1774 = vadd.f32 %v1656, %v1762
    %v1775 = vadd.f32 %v1659, %v1765
    %s1776 = scalar_lea.vmem [#allocation6], 8
    %v1777 = vld [vmem:[%s1776] sm:$0x7]
    %v1778 = vlaneseq
    %v1779 = vshrl.u32 %v1778, 7
    %v1780 = vsub.s32 0, %v1779
    %v1781 = vrot.slane %v1777, %v1780
    %v1782 = vadd.f32 %v1768, %v1781
    %v1783 = vadd.f32 %v1769, %v1781
    %v1784 = vadd.f32 %v1770, %v1781
    %v1785 = vadd.f32 %v1771, %v1781
    %v1786 = vadd.f32 %v1772, %v1781
    %v1787 = vadd.f32 %v1773, %v1781
    %v1788 = vadd.f32 %v1774, %v1781
    %v1789 = vadd.f32 %v1775, %v1781
    %vm1790 = vcmp.gt.f32.partialorder %v1782, 0.0
    %vm1791 = vcmp.gt.f32.partialorder %v1783, 0.0
    %vm1792 = vcmp.gt.f32.partialorder %v1784, 0.0
    %vm1793 = vcmp.gt.f32.partialorder %v1785, 0.0
    %vm1794 = vcmp.gt.f32.partialorder %v1786, 0.0
    %vm1795 = vcmp.gt.f32.partialorder %v1787, 0.0
    %vm1796 = vcmp.gt.f32.partialorder %v1788, 0.0
    %vm1797 = vcmp.gt.f32.partialorder %v1789, 0.0
    %v1798 = vmul.f32 %v1782, 0.2
    %v1799 = vmul.f32 %v1783, 0.2
    %v1800 = vmul.f32 %v1784, 0.2
    %v1801 = vmul.f32 %v1785, 0.2
    %v1802 = vmul.f32 %v1786, 0.2
    %v1803 = vmul.f32 %v1787, 0.2
    %v1804 = vmul.f32 %v1788, 0.2
    %v1805 = vmul.f32 %v1789, 0.2
    %v1806 = vsel %vm1790, %v1782, %v1798
    %v1807 = vsel %vm1791, %v1783, %v1799
    %v1808 = vsel %vm1792, %v1784, %v1800
    %v1809 = vsel %vm1793, %v1785, %v1801
    %v1810 = vsel %vm1794, %v1786, %v1802
    %v1811 = vsel %vm1795, %v1787, %v1803
    %v1812 = vsel %vm1796, %v1788, %v1804
    %v1813 = vsel %vm1797, %v1789, %v1805
    %v1814 = vlaneseq
    %v1815 = vshrl.u32 %v1814, 7
    %v1816 = vsub.s32 1, %v1815
    %v1817 = vrot.slane %v1777, %v1816
    %v1818 = vmul.f32 %v1806, %v1817
    %v1819 = vmul.f32 %v1807, %v1817
    %v1820 = vmul.f32 %v1808, %v1817
    %v1821 = vmul.f32 %v1809, %v1817
    %v1822 = vmul.f32 %v1810, %v1817
    %v1823 = vmul.f32 %v1811, %v1817
    %v1824 = vmul.f32 %v1812, %v1817
    %v1825 = vmul.f32 %v1813, %v1817
    %v1826 = vlaneseq
    %v1827 = vshrl.u32 %v1826, 7
    %v1828 = vsub.s32 2, %v1827
    %v1829 = vrot.slane %v1777, %v1828
    %v1830 = vadd.f32 %v1818, %v1829
    %v1831 = vadd.f32 %v1819, %v1829
    %v1832 = vadd.f32 %v1820, %v1829
    %v1833 = vadd.f32 %v1821, %v1829
    %v1834 = vadd.f32 %v1822, %v1829
    %v1835 = vadd.f32 %v1823, %v1829
    %v1836 = vadd.f32 %v1824, %v1829
    %v1837 = vadd.f32 %v1825, %v1829
    %v1838 = vpack.c.bf16 %v1831, %v1830
    %v1839 = vpack.c.bf16 %v1833, %v1832
    %v1840 = vpack.c.bf16 %v1835, %v1834
    %v1841 = vpack.c.bf16 %v1837, %v1836
    %s1842 = scalar_lea.vmem [#allocation3], 192
    %v1843 = vld [vmem:[%s1842] sm:$0xff]
    %v1844 = vld [vmem:[%s1842 + $0x8] sm:$0xff]
    %v1845 = vld [vmem:[%s1842 + $0x10] sm:$0xff]
    %v1846 = vld [vmem:[%s1842 + $0x18] sm:$0xff]
    %v1847 = vld [vmem:[%s1842 + $0x20] sm:$0xff]
    %v1848 = vld [vmem:[%s1842 + $0x28] sm:$0xff]
    %v1849 = vld [vmem:[%s1842 + $0x30] sm:$0xff]
    %v1850 = vld [vmem:[%s1842 + $0x38] sm:$0xff]
    %v1859 = vunpack.c.l.b16 %v1843
    %v1860 = vunpack.c.h.b16 %v1843
    %v1861 = vunpack.c.l.b16 %v1844
    %v1862 = vunpack.c.h.b16 %v1844
    %v1863 = vunpack.c.l.b16 %v1845
    %v1864 = vunpack.c.h.b16 %v1845
    %v1865 = vunpack.c.l.b16 %v1846
    %v1866 = vunpack.c.h.b16 %v1846
    %v1867 = vunpack.c.l.b16 %v1847
    %v1868 = vunpack.c.h.b16 %v1847
    %v1869 = vunpack.c.l.b16 %v1848
    %v1870 = vunpack.c.h.b16 %v1848
    %v1871 = vunpack.c.l.b16 %v1849
    %v1872 = vunpack.c.h.b16 %v1849
    %v1873 = vunpack.c.l.b16 %v1850
    %v1874 = vunpack.c.h.b16 %v1850
    %v1875 = vpack.c.b16 %v1861, %v1859
    %v1876 = vpack.c.b16 %v1862, %v1860
    %v1877 = vpack.c.b16 %v1865, %v1863
    %v1878 = vpack.c.b16 %v1866, %v1864
    %v1879 = vpack.c.b16 %v1869, %v1867
    %v1880 = vpack.c.b16 %v1870, %v1868
    %v1881 = vpack.c.b16 %v1873, %v1871
    %v1882 = vpack.c.b16 %v1874, %v1872
    %v1892 = vsel %vm242, %v1838, 0
    %v1895 = vsel %vm242, %v1839, 0
    %v1898 = vsel %vm242, %v1840, 0
    %v1901 = vsel %vm242, %v1841, 0
    %1903 = vmatprep.subr.bf16.mxu0 0
    %1904 = vmatpush1.bf16.msra.mxu0 0
    %1905 = vmatprep.subr.bf16.mxu0 0
    %1906 = vmatpush1.bf16.msra.mxu0 0
    %1907 = vmatprep.subr.bf16.mxu0 0
    %1908 = vmatpush1.bf16.msra.mxu0 0
    %1909 = vmatprep.subr.bf16.mxu0 0
    %1910 = vmatpush1.bf16.msra.mxu0 0
    %1911 = vmatprep.subr.bf16.mxu0 %v1882
    %1912 = vmatpush1.bf16.msra.mxu0 %v1881
    %1913 = vmatprep.subr.bf16.mxu0 %v1880
    %1914 = vmatpush1.bf16.msra.mxu0 %v1879
    %1915 = vmatprep.subr.bf16.mxu0 %v1878
    %1916 = vmatpush1.bf16.msra.mxu0 %v1877
    %1917 = vmatprep.subr.bf16.mxu0 %v1876
    %1918 = vmatpush1.bf16.msra.mxu0 %v1875
    %1919 = vmatprep.subr.bf16.mxu0 0
    %1920 = vmatpush2.bf16.msra.mxu0 0
    %1921 = vmatprep.subr.bf16.mxu0 0
    %1922 = vmatpush2.bf16.msra.mxu0 0
    %1923 = vmatprep.subr.bf16.mxu0 0
    %1924 = vmatpush2.bf16.msra.mxu0 0
    %1925 = vmatprep.subr.bf16.mxu0 0
    %1926 = vmatpush2.bf16.msra.mxu0 0
    %1927 = vmatprep.subr.bf16.mxu0 0
    %1928 = vmatpush2.bf16.msra.mxu0 0
    %1929 = vmatprep.subr.bf16.mxu0 0
    %1930 = vmatpush2.bf16.msra.mxu0 0
    %1931 = vmatprep.subr.bf16.mxu0 0
    %1932 = vmatpush2.bf16.msra.mxu0 0
    %1933 = vmatprep.subr.bf16.mxu0 0
    %1934 = vmatpush2.bf16.msra.mxu0 0
    %1935 = vmatprep.mubr.bf16.mxu0 0
    %1936 = vmatmul.mubr.bf16.gmra.mxu0 %v1892
    %v1937 = vpop.f32.mrf.mxu0
    %v1938 = vadd.f32 0.0, %v1937
    %v1939 = vpop.f32.mrf.mxu0
    %v1940 = vadd.f32 0.0, %v1939
    %v1941 = vpop.f32.mrf.mxu0
    %v1942 = vadd.f32 0.0, %v1941
    %v1943 = vpop.f32.mrf.mxu0
    %v1944 = vadd.f32 0.0, %v1943
    %1945 = vmatprep.mubr.bf16.mxu0 0
    %1946 = vmatmul.mubr.bf16.gmra.mxu0 %v1895
    %v1947 = vpop.f32.mrf.mxu0
    %v1948 = vadd.f32 0.0, %v1947
    %v1949 = vpop.f32.mrf.mxu0
    %v1950 = vadd.f32 0.0, %v1949
    %v1951 = vpop.f32.mrf.mxu0
    %v1952 = vadd.f32 0.0, %v1951
    %v1953 = vpop.f32.mrf.mxu0
    %v1954 = vadd.f32 0.0, %v1953
    %1955 = vmatprep.mubr.bf16.mxu0 0
    %1956 = vmatmul.mubr.bf16.gmra.mxu0 %v1898
    %v1957 = vpop.f32.mrf.mxu0
    %v1958 = vadd.f32 0.0, %v1957
    %v1959 = vpop.f32.mrf.mxu0
    %v1960 = vadd.f32 0.0, %v1959
    %v1961 = vpop.f32.mrf.mxu0
    %v1962 = vadd.f32 0.0, %v1961
    %v1963 = vpop.f32.mrf.mxu0
    %v1964 = vadd.f32 0.0, %v1963
    %1965 = vmatprep.mubr.bf16.mxu0 0
    %1966 = vmatmul.mubr.bf16.gmra.mxu0 %v1901
    %v1967 = vpop.f32.mrf.mxu0
    %v1968 = vadd.f32 0.0, %v1967
    %v1969 = vpop.f32.mrf.mxu0
    %v1970 = vadd.f32 0.0, %v1969
    %v1971 = vpop.f32.mrf.mxu0
    %v1972 = vadd.f32 0.0, %v1971
    %v1973 = vpop.f32.mrf.mxu0
    %v1974 = vadd.f32 0.0, %v1973
    %1975 = vdwg.mxu0
    %v1976 = vpack.c.bf16 %v1942, %v1938
    %v1977 = vpack.c.bf16 %v1944, %v1940
    %v1978 = vpack.c.bf16 %v1952, %v1948
    %v1979 = vpack.c.bf16 %v1954, %v1950
    %v1980 = vpack.c.bf16 %v1962, %v1958
    %v1981 = vpack.c.bf16 %v1964, %v1960
    %v1982 = vpack.c.bf16 %v1972, %v1968
    %v1983 = vpack.c.bf16 %v1974, %v1970
    %s1984 = scalar_lea.vmem %s3, 288
    %v1985 = vld [vmem:[%s1984] sm:$0xf]
    %v1986 = vld [vmem:[%s1984 + $0x4] sm:$0xf]
    %v1987 = vld [vmem:[%s1984 + $0x8] sm:$0xf]
    %v1988 = vld [vmem:[%s1984 + $0xc] sm:$0xf]
    %v1989 = vld [vmem:[%s1984 + $0x10] sm:$0xf]
    %v1990 = vld [vmem:[%s1984 + $0x14] sm:$0xf]
    %v1991 = vld [vmem:[%s1984 + $0x18] sm:$0xf]
    %v1992 = vld [vmem:[%s1984 + $0x1c] sm:$0xf]
    %s1993 = scalar_lea.vmem %s3, 320
    %v1994 = vld [vmem:[%s1993] sm:$0xf]
    %v1995 = vld [vmem:[%s1993 + $0x4] sm:$0xf]
    %v1996 = vld [vmem:[%s1993 + $0x8] sm:$0xf]
    %v1997 = vld [vmem:[%s1993 + $0xc] sm:$0xf]
    %v1998 = vld [vmem:[%s1993 + $0x10] sm:$0xf]
    %v1999 = vld [vmem:[%s1993 + $0x14] sm:$0xf]
    %v2000 = vld [vmem:[%s1993 + $0x18] sm:$0xf]
    %v2001 = vld [vmem:[%s1993 + $0x1c] sm:$0xf]
    %v2010 = vunpack.c.l.b16 %v1994
    %v2011 = vunpack.c.l.b16 %v1995
    %v2012 = vunpack.c.l.b16 %v1996
    %v2013 = vunpack.c.l.b16 %v1997
    %v2014 = vunpack.c.l.b16 %v1998
    %v2015 = vunpack.c.l.b16 %v1999
    %v2016 = vunpack.c.l.b16 %v2000
    %v2017 = vunpack.c.l.b16 %v2001
    %v2018 = vpack.c.b16 %v2011, %v2010
    %v2019 = vpack.c.b16 %v2013, %v2012
    %v2020 = vpack.c.b16 %v2015, %v2014
    %v2021 = vpack.c.b16 %v2017, %v2016
    %2026 = vrot.lane.b32.xlu0 %v1976, 64
    %v2027 = vpop.permute.xlu0 %2026
    %2028 = vrot.lane.b32.xlu0 %v1978, 64
    %v2029 = vpop.permute.xlu0 %2028
    %2030 = vrot.lane.b32.xlu0 %v1980, 64
    %v2031 = vpop.permute.xlu0 %2030
    %2032 = vrot.lane.b32.xlu0 %v1982, 64
    %v2033 = vpop.permute.xlu0 %2032
    %v2039 = vsel %vm242, %v2018, 0
    %v2042 = vsel %vm242, %v2019, 0
    %v2045 = vsel %vm242, %v2020, 0
    %v2048 = vsel %vm242, %v2021, 0
    %2050 = vmatprep.subr.bf16.mxu0 0
    %2051 = vmatpush1.bf16.msra.mxu0 0
    %2052 = vmatprep.subr.bf16.mxu0 0
    %2053 = vmatpush1.bf16.msra.mxu0 0
    %2054 = vmatprep.subr.bf16.mxu0 0
    %2055 = vmatpush1.bf16.msra.mxu0 0
    %2056 = vmatprep.subr.bf16.mxu0 0
    %2057 = vmatpush1.bf16.msra.mxu0 0
    %2058 = vmatprep.subr.bf16.mxu0 0
    %2059 = vmatpush1.bf16.msra.mxu0 %v2033
    %2060 = vmatprep.subr.bf16.mxu0 0
    %2061 = vmatpush1.bf16.msra.mxu0 %v2031
    %2062 = vmatprep.subr.bf16.mxu0 0
    %2063 = vmatpush1.bf16.msra.mxu0 %v2029
    %2064 = vmatprep.subr.bf16.mxu0 0
    %2065 = vmatpush1.bf16.msra.mxu0 %v2027
    %2066 = vmatprep.subr.bf16.mxu0 0
    %2067 = vmatpush2.bf16.msra.mxu0 0
    %2068 = vmatprep.subr.bf16.mxu0 0
    %2069 = vmatpush2.bf16.msra.mxu0 0
    %2070 = vmatprep.subr.bf16.mxu0 0
    %2071 = vmatpush2.bf16.msra.mxu0 0
    %2072 = vmatprep.subr.bf16.mxu0 0
    %2073 = vmatpush2.bf16.msra.mxu0 0
    %2074 = vmatprep.subr.bf16.mxu0 0
    %2075 = vmatpush2.bf16.msra.mxu0 0
    %2076 = vmatprep.subr.bf16.mxu0 0
    %2077 = vmatpush2.bf16.msra.mxu0 0
    %2078 = vmatprep.subr.bf16.mxu0 0
    %2079 = vmatpush2.bf16.msra.mxu0 0
    %2080 = vmatprep.subr.bf16.mxu0 0
    %2081 = vmatpush2.bf16.msra.mxu0 0
    %2082 = vmatprep.mubr.bf16.mxu0 0
    %2083 = vmatmul.mubr.bf16.gmra.mxu0 %v2039
    %v2084 = vpop.f32.mrf.mxu0
    %v2085 = vadd.f32 0.0, %v2084
    %v2086 = vpop.f32.mrf.mxu0
    %v2087 = vpop.f32.mrf.mxu0
    %v2088 = vadd.f32 0.0, %v2087
    %v2089 = vpop.f32.mrf.mxu0
    %2090 = vmatprep.mubr.bf16.mxu0 0
    %2091 = vmatmul.mubr.bf16.gmra.mxu0 %v2042
    %v2092 = vpop.f32.mrf.mxu0
    %v2093 = vadd.f32 0.0, %v2092
    %v2094 = vpop.f32.mrf.mxu0
    %v2095 = vpop.f32.mrf.mxu0
    %v2096 = vadd.f32 0.0, %v2095
    %v2097 = vpop.f32.mrf.mxu0
    %2098 = vmatprep.mubr.bf16.mxu0 0
    %2099 = vmatmul.mubr.bf16.gmra.mxu0 %v2045
    %v2100 = vpop.f32.mrf.mxu0
    %v2101 = vadd.f32 0.0, %v2100
    %v2102 = vpop.f32.mrf.mxu0
    %v2103 = vpop.f32.mrf.mxu0
    %v2104 = vadd.f32 0.0, %v2103
    %v2105 = vpop.f32.mrf.mxu0
    %2106 = vmatprep.mubr.bf16.mxu0 0
    %2107 = vmatmul.mubr.bf16.gmra.mxu0 %v2048
    %v2108 = vpop.f32.mrf.mxu0
    %v2109 = vadd.f32 0.0, %v2108
    %v2110 = vpop.f32.mrf.mxu0
    %v2111 = vpop.f32.mrf.mxu0
    %v2112 = vadd.f32 0.0, %v2111
    %v2113 = vpop.f32.mrf.mxu0
    %2114 = vdwg.mxu0
    %v2123 = vunpack.c.l.b16 %v1985
    %v2124 = vunpack.c.l.b16 %v1986
    %v2125 = vunpack.c.l.b16 %v1987
    %v2126 = vunpack.c.l.b16 %v1988
    %v2127 = vunpack.c.l.b16 %v1989
    %v2128 = vunpack.c.l.b16 %v1990
    %v2129 = vunpack.c.l.b16 %v1991
    %v2130 = vunpack.c.l.b16 %v1992
    %v2131 = vpack.c.b16 %v2124, %v2123
    %v2132 = vpack.c.b16 %v2126, %v2125
    %v2133 = vpack.c.b16 %v2128, %v2127
    %v2134 = vpack.c.b16 %v2130, %v2129
    %v2136 = vsel %vm242, %v2131, 0
    %v2139 = vsel %vm242, %v2132, 0
    %v2142 = vsel %vm242, %v2133, 0
    %v2145 = vsel %vm242, %v2134, 0
    %2147 = vmatprep.subr.bf16.mxu0 0
    %2148 = vmatpush1.bf16.msra.mxu0 0
    %2149 = vmatprep.subr.bf16.mxu0 0
    %2150 = vmatpush1.bf16.msra.mxu0 0
    %2151 = vmatprep.subr.bf16.mxu0 0
    %2152 = vmatpush1.bf16.msra.mxu0 0
    %2153 = vmatprep.subr.bf16.mxu0 0
    %2154 = vmatpush1.bf16.msra.mxu0 0
    %2155 = vmatprep.subr.bf16.mxu0 0
    %2156 = vmatpush1.bf16.msra.mxu0 %v1982
    %2157 = vmatprep.subr.bf16.mxu0 0
    %2158 = vmatpush1.bf16.msra.mxu0 %v1980
    %2159 = vmatprep.subr.bf16.mxu0 0
    %2160 = vmatpush1.bf16.msra.mxu0 %v1978
    %2161 = vmatprep.subr.bf16.mxu0 0
    %2162 = vmatpush1.bf16.msra.mxu0 %v1976
    %2163 = vmatprep.subr.bf16.mxu0 0
    %2164 = vmatpush2.bf16.msra.mxu0 0
    %2165 = vmatprep.subr.bf16.mxu0 0
    %2166 = vmatpush2.bf16.msra.mxu0 0
    %2167 = vmatprep.subr.bf16.mxu0 0
    %2168 = vmatpush2.bf16.msra.mxu0 0
    %2169 = vmatprep.subr.bf16.mxu0 0
    %2170 = vmatpush2.bf16.msra.mxu0 0
    %2171 = vmatprep.subr.bf16.mxu0 0
    %2172 = vmatpush2.bf16.msra.mxu0 0
    %2173 = vmatprep.subr.bf16.mxu0 0
    %2174 = vmatpush2.bf16.msra.mxu0 0
    %2175 = vmatprep.subr.bf16.mxu0 0
    %2176 = vmatpush2.bf16.msra.mxu0 0
    %2177 = vmatprep.subr.bf16.mxu0 0
    %2178 = vmatpush2.bf16.msra.mxu0 0
    %2179 = vmatprep.mubr.bf16.mxu0 0
    %2180 = vmatmul.mubr.bf16.gmra.mxu0 %v2136
    %v2181 = vpop.f32.mrf.mxu0
    %v2182 = vadd.f32 %v2085, %v2181
    %v2183 = vpop.f32.mrf.mxu0
    %v2184 = vpop.f32.mrf.mxu0
    %v2185 = vadd.f32 %v2088, %v2184
    %v2186 = vpop.f32.mrf.mxu0
    %2187 = vmatprep.mubr.bf16.mxu0 0
    %2188 = vmatmul.mubr.bf16.gmra.mxu0 %v2139
    %v2189 = vpop.f32.mrf.mxu0
    %v2190 = vadd.f32 %v2093, %v2189
    %v2191 = vpop.f32.mrf.mxu0
    %v2192 = vpop.f32.mrf.mxu0
    %v2193 = vadd.f32 %v2096, %v2192
    %v2194 = vpop.f32.mrf.mxu0
    %2195 = vmatprep.mubr.bf16.mxu0 0
    %2196 = vmatmul.mubr.bf16.gmra.mxu0 %v2142
    %v2197 = vpop.f32.mrf.mxu0
    %v2198 = vadd.f32 %v2101, %v2197
    %v2199 = vpop.f32.mrf.mxu0
    %v2200 = vpop.f32.mrf.mxu0
    %v2201 = vadd.f32 %v2104, %v2200
    %v2202 = vpop.f32.mrf.mxu0
    %2203 = vmatprep.mubr.bf16.mxu0 0
    %2204 = vmatmul.mubr.bf16.gmra.mxu0 %v2145
    %v2205 = vpop.f32.mrf.mxu0
    %v2206 = vadd.f32 %v2109, %v2205
    %v2207 = vpop.f32.mrf.mxu0
    %v2208 = vpop.f32.mrf.mxu0
    %v2209 = vadd.f32 %v2112, %v2208
    %v2210 = vpop.f32.mrf.mxu0
    %2211 = vdwg.mxu0
    %s2212 = scalar_lea.vmem %s3, 352
    %v2213 = vld [vmem:[%s2212] sm:$0xf]
    %v2214 = vld [vmem:[%s2212 + $0x4] sm:$0xf]
    %v2215 = vld [vmem:[%s2212 + $0x8] sm:$0xf]
    %v2216 = vld [vmem:[%s2212 + $0xc] sm:$0xf]
    %v2217 = vld [vmem:[%s2212 + $0x10] sm:$0xf]
    %v2218 = vld [vmem:[%s2212 + $0x14] sm:$0xf]
    %v2219 = vld [vmem:[%s2212 + $0x18] sm:$0xf]
    %v2220 = vld [vmem:[%s2212 + $0x1c] sm:$0xf]
    %v2229 = vunpack.c.l.b16 %v2213
    %v2230 = vunpack.c.l.b16 %v2214
    %v2231 = vunpack.c.l.b16 %v2215
    %v2232 = vunpack.c.l.b16 %v2216
    %v2233 = vunpack.c.l.b16 %v2217
    %v2234 = vunpack.c.l.b16 %v2218
    %v2235 = vunpack.c.l.b16 %v2219
    %v2236 = vunpack.c.l.b16 %v2220
    %v2237 = vpack.c.b16 %v2230, %v2229
    %v2238 = vpack.c.b16 %v2232, %v2231
    %v2239 = vpack.c.b16 %v2234, %v2233
    %v2240 = vpack.c.b16 %v2236, %v2235
    %v2242 = vsel %vm242, %v2237, 0
    %v2245 = vsel %vm242, %v2238, 0
    %v2248 = vsel %vm242, %v2239, 0
    %v2251 = vsel %vm242, %v2240, 0
    %2253 = vmatprep.subr.bf16.mxu0 0
    %2254 = vmatpush1.bf16.msra.mxu0 0
    %2255 = vmatprep.subr.bf16.mxu0 0
    %2256 = vmatpush1.bf16.msra.mxu0 0
    %2257 = vmatprep.subr.bf16.mxu0 0
    %2258 = vmatpush1.bf16.msra.mxu0 0
    %2259 = vmatprep.subr.bf16.mxu0 0
    %2260 = vmatpush1.bf16.msra.mxu0 0
    %2261 = vmatprep.subr.bf16.mxu0 0
    %2262 = vmatpush1.bf16.msra.mxu0 %v1983
    %2263 = vmatprep.subr.bf16.mxu0 0
    %2264 = vmatpush1.bf16.msra.mxu0 %v1981
    %2265 = vmatprep.subr.bf16.mxu0 0
    %2266 = vmatpush1.bf16.msra.mxu0 %v1979
    %2267 = vmatprep.subr.bf16.mxu0 0
    %2268 = vmatpush1.bf16.msra.mxu0 %v1977
    %2269 = vmatprep.subr.bf16.mxu0 0
    %2270 = vmatpush2.bf16.msra.mxu0 0
    %2271 = vmatprep.subr.bf16.mxu0 0
    %2272 = vmatpush2.bf16.msra.mxu0 0
    %2273 = vmatprep.subr.bf16.mxu0 0
    %2274 = vmatpush2.bf16.msra.mxu0 0
    %2275 = vmatprep.subr.bf16.mxu0 0
    %2276 = vmatpush2.bf16.msra.mxu0 0
    %2277 = vmatprep.subr.bf16.mxu0 0
    %2278 = vmatpush2.bf16.msra.mxu0 0
    %2279 = vmatprep.subr.bf16.mxu0 0
    %2280 = vmatpush2.bf16.msra.mxu0 0
    %2281 = vmatprep.subr.bf16.mxu0 0
    %2282 = vmatpush2.bf16.msra.mxu0 0
    %2283 = vmatprep.subr.bf16.mxu0 0
    %2284 = vmatpush2.bf16.msra.mxu0 0
    %2285 = vmatprep.mubr.bf16.mxu0 0
    %2286 = vmatmul.mubr.bf16.gmra.mxu0 %v2242
    %v2287 = vpop.f32.mrf.mxu0
    %v2288 = vadd.f32 0.0, %v2287
    %v2289 = vpop.f32.mrf.mxu0
    %v2290 = vpop.f32.mrf.mxu0
    %v2291 = vadd.f32 0.0, %v2290
    %v2292 = vpop.f32.mrf.mxu0
    %2293 = vmatprep.mubr.bf16.mxu0 0
    %2294 = vmatmul.mubr.bf16.gmra.mxu0 %v2245
    %v2295 = vpop.f32.mrf.mxu0
    %v2296 = vadd.f32 0.0, %v2295
    %v2297 = vpop.f32.mrf.mxu0
    %v2298 = vpop.f32.mrf.mxu0
    %v2299 = vadd.f32 0.0, %v2298
    %v2300 = vpop.f32.mrf.mxu0
    %2301 = vmatprep.mubr.bf16.mxu0 0
    %2302 = vmatmul.mubr.bf16.gmra.mxu0 %v2248
    %v2303 = vpop.f32.mrf.mxu0
    %v2304 = vadd.f32 0.0, %v2303
    %v2305 = vpop.f32.mrf.mxu0
    %v2306 = vpop.f32.mrf.mxu0
    %v2307 = vadd.f32 0.0, %v2306
    %v2308 = vpop.f32.mrf.mxu0
    %2309 = vmatprep.mubr.bf16.mxu0 0
    %2310 = vmatmul.mubr.bf16.gmra.mxu0 %v2251
    %v2311 = vpop.f32.mrf.mxu0
    %v2312 = vadd.f32 0.0, %v2311
    %v2313 = vpop.f32.mrf.mxu0
    %v2314 = vpop.f32.mrf.mxu0
    %v2315 = vadd.f32 0.0, %v2314
    %v2316 = vpop.f32.mrf.mxu0
    %2317 = vdwg.mxu0
    %v2318 = vadd.f32 %v2182, %v2288
    %v2319 = vadd.f32 %v2185, %v2291
    %v2320 = vadd.f32 %v2190, %v2296
    %v2321 = vadd.f32 %v2193, %v2299
    %v2322 = vadd.f32 %v2198, %v2304
    %v2323 = vadd.f32 %v2201, %v2307
    %v2324 = vadd.f32 %v2206, %v2312
    %v2325 = vadd.f32 %v2209, %v2315
    %s2326 = scalar_lea.vmem [#allocation6], 12
    %v2327 = vld [vmem:[%s2326] sm:$0x7]
    %v2328 = vlaneseq
    %v2329 = vshrl.u32 %v2328, 7
    %v2330 = vsub.s32 0, %v2329
    %v2331 = vrot.slane %v2327, %v2330
    %v2332 = vadd.f32 %v2318, %v2331
    %v2333 = vadd.f32 %v2319, %v2331
    %v2334 = vadd.f32 %v2320, %v2331
    %v2335 = vadd.f32 %v2321, %v2331
    %v2336 = vadd.f32 %v2322, %v2331
    %v2337 = vadd.f32 %v2323, %v2331
    %v2338 = vadd.f32 %v2324, %v2331
    %v2339 = vadd.f32 %v2325, %v2331
    %vm2340 = vcmp.gt.f32.partialorder %v2332, 0.0
    %vm2341 = vcmp.gt.f32.partialorder %v2333, 0.0
    %vm2342 = vcmp.gt.f32.partialorder %v2334, 0.0
    %vm2343 = vcmp.gt.f32.partialorder %v2335, 0.0
    %vm2344 = vcmp.gt.f32.partialorder %v2336, 0.0
    %vm2345 = vcmp.gt.f32.partialorder %v2337, 0.0
    %vm2346 = vcmp.gt.f32.partialorder %v2338, 0.0
    %vm2347 = vcmp.gt.f32.partialorder %v2339, 0.0
    %v2348 = vmul.f32 %v2332, 0.2
    %v2349 = vmul.f32 %v2333, 0.2
    %v2350 = vmul.f32 %v2334, 0.2
    %v2351 = vmul.f32 %v2335, 0.2
    %v2352 = vmul.f32 %v2336, 0.2
    %v2353 = vmul.f32 %v2337, 0.2
    %v2354 = vmul.f32 %v2338, 0.2
    %v2355 = vmul.f32 %v2339, 0.2
    %v2356 = vsel %vm2340, %v2332, %v2348
    %v2357 = vsel %vm2341, %v2333, %v2349
    %v2358 = vsel %vm2342, %v2334, %v2350
    %v2359 = vsel %vm2343, %v2335, %v2351
    %v2360 = vsel %vm2344, %v2336, %v2352
    %v2361 = vsel %vm2345, %v2337, %v2353
    %v2362 = vsel %vm2346, %v2338, %v2354
    %v2363 = vsel %vm2347, %v2339, %v2355
    %v2364 = vlaneseq
    %v2365 = vshrl.u32 %v2364, 7
    %v2366 = vsub.s32 1, %v2365
    %v2367 = vrot.slane %v2327, %v2366
    %v2368 = vmul.f32 %v2356, %v2367
    %v2369 = vmul.f32 %v2357, %v2367
    %v2370 = vmul.f32 %v2358, %v2367
    %v2371 = vmul.f32 %v2359, %v2367
    %v2372 = vmul.f32 %v2360, %v2367
    %v2373 = vmul.f32 %v2361, %v2367
    %v2374 = vmul.f32 %v2362, %v2367
    %v2375 = vmul.f32 %v2363, %v2367
    %v2376 = vlaneseq
    %v2377 = vshrl.u32 %v2376, 7
    %v2378 = vsub.s32 2, %v2377
    %v2379 = vrot.slane %v2327, %v2378
    %v2380 = vadd.f32 %v2368, %v2379
    %v2381 = vadd.f32 %v2369, %v2379
    %v2382 = vadd.f32 %v2370, %v2379
    %v2383 = vadd.f32 %v2371, %v2379
    %v2384 = vadd.f32 %v2372, %v2379
    %v2385 = vadd.f32 %v2373, %v2379
    %v2386 = vadd.f32 %v2374, %v2379
    %v2387 = vadd.f32 %v2375, %v2379
    %v2388 = vpack.c.bf16 %v2381, %v2380
    %v2389 = vpack.c.bf16 %v2383, %v2382
    %v2390 = vpack.c.bf16 %v2385, %v2384
    %v2391 = vpack.c.bf16 %v2387, %v2386
    %s2392 = scalar_lea.vmem [#allocation3], 256
    %v2393 = vld [vmem:[%s2392] sm:$0xff]
    %v2394 = vld [vmem:[%s2392 + $0x8] sm:$0xff]
    %v2395 = vld [vmem:[%s2392 + $0x10] sm:$0xff]
    %v2396 = vld [vmem:[%s2392 + $0x18] sm:$0xff]
    %v2397 = vld [vmem:[%s2392 + $0x20] sm:$0xff]
    %v2398 = vld [vmem:[%s2392 + $0x28] sm:$0xff]
    %v2399 = vld [vmem:[%s2392 + $0x30] sm:$0xff]
    %v2400 = vld [vmem:[%s2392 + $0x38] sm:$0xff]
    %v2409 = vunpack.c.l.b16 %v2393
    %v2410 = vunpack.c.h.b16 %v2393
    %v2411 = vunpack.c.l.b16 %v2394
    %v2412 = vunpack.c.h.b16 %v2394
    %v2413 = vunpack.c.l.b16 %v2395
    %v2414 = vunpack.c.h.b16 %v2395
    %v2415 = vunpack.c.l.b16 %v2396
    %v2416 = vunpack.c.h.b16 %v2396
    %v2417 = vunpack.c.l.b16 %v2397
    %v2418 = vunpack.c.h.b16 %v2397
    %v2419 = vunpack.c.l.b16 %v2398
    %v2420 = vunpack.c.h.b16 %v2398
    %v2421 = vunpack.c.l.b16 %v2399
    %v2422 = vunpack.c.h.b16 %v2399
    %v2423 = vunpack.c.l.b16 %v2400
    %v2424 = vunpack.c.h.b16 %v2400
    %v2425 = vpack.c.b16 %v2411, %v2409
    %v2426 = vpack.c.b16 %v2412, %v2410
    %v2427 = vpack.c.b16 %v2415, %v2413
    %v2428 = vpack.c.b16 %v2416, %v2414
    %v2429 = vpack.c.b16 %v2419, %v2417
    %v2430 = vpack.c.b16 %v2420, %v2418
    %v2431 = vpack.c.b16 %v2423, %v2421
    %v2432 = vpack.c.b16 %v2424, %v2422
    %v2442 = vsel %vm242, %v2388, 0
    %v2445 = vsel %vm242, %v2389, 0
    %v2448 = vsel %vm242, %v2390, 0
    %v2451 = vsel %vm242, %v2391, 0
    %2453 = vmatprep.subr.bf16.mxu0 0
    %2454 = vmatpush1.bf16.msra.mxu0 0
    %2455 = vmatprep.subr.bf16.mxu0 0
    %2456 = vmatpush1.bf16.msra.mxu0 0
    %2457 = vmatprep.subr.bf16.mxu0 0
    %2458 = vmatpush1.bf16.msra.mxu0 0
    %2459 = vmatprep.subr.bf16.mxu0 0
    %2460 = vmatpush1.bf16.msra.mxu0 0
    %2461 = vmatprep.subr.bf16.mxu0 %v2432
    %2462 = vmatpush1.bf16.msra.mxu0 %v2431
    %2463 = vmatprep.subr.bf16.mxu0 %v2430
    %2464 = vmatpush1.bf16.msra.mxu0 %v2429
    %2465 = vmatprep.subr.bf16.mxu0 %v2428
    %2466 = vmatpush1.bf16.msra.mxu0 %v2427
    %2467 = vmatprep.subr.bf16.mxu0 %v2426
    %2468 = vmatpush1.bf16.msra.mxu0 %v2425
    %2469 = vmatprep.subr.bf16.mxu0 0
    %2470 = vmatpush2.bf16.msra.mxu0 0
    %2471 = vmatprep.subr.bf16.mxu0 0
    %2472 = vmatpush2.bf16.msra.mxu0 0
    %2473 = vmatprep.subr.bf16.mxu0 0
    %2474 = vmatpush2.bf16.msra.mxu0 0
    %2475 = vmatprep.subr.bf16.mxu0 0
    %2476 = vmatpush2.bf16.msra.mxu0 0
    %2477 = vmatprep.subr.bf16.mxu0 0
    %2478 = vmatpush2.bf16.msra.mxu0 0
    %2479 = vmatprep.subr.bf16.mxu0 0
    %2480 = vmatpush2.bf16.msra.mxu0 0
    %2481 = vmatprep.subr.bf16.mxu0 0
    %2482 = vmatpush2.bf16.msra.mxu0 0
    %2483 = vmatprep.subr.bf16.mxu0 0
    %2484 = vmatpush2.bf16.msra.mxu0 0
    %2485 = vmatprep.mubr.bf16.mxu0 0
    %2486 = vmatmul.mubr.bf16.gmra.mxu0 %v2442
    %v2487 = vpop.f32.mrf.mxu0
    %v2488 = vadd.f32 0.0, %v2487
    %v2489 = vpop.f32.mrf.mxu0
    %v2490 = vadd.f32 0.0, %v2489
    %v2491 = vpop.f32.mrf.mxu0
    %v2492 = vadd.f32 0.0, %v2491
    %v2493 = vpop.f32.mrf.mxu0
    %v2494 = vadd.f32 0.0, %v2493
    %2495 = vmatprep.mubr.bf16.mxu0 0
    %2496 = vmatmul.mubr.bf16.gmra.mxu0 %v2445
    %v2497 = vpop.f32.mrf.mxu0
    %v2498 = vadd.f32 0.0, %v2497
    %v2499 = vpop.f32.mrf.mxu0
    %v2500 = vadd.f32 0.0, %v2499
    %v2501 = vpop.f32.mrf.mxu0
    %v2502 = vadd.f32 0.0, %v2501
    %v2503 = vpop.f32.mrf.mxu0
    %v2504 = vadd.f32 0.0, %v2503
    %2505 = vmatprep.mubr.bf16.mxu0 0
    %2506 = vmatmul.mubr.bf16.gmra.mxu0 %v2448
    %v2507 = vpop.f32.mrf.mxu0
    %v2508 = vadd.f32 0.0, %v2507
    %v2509 = vpop.f32.mrf.mxu0
    %v2510 = vadd.f32 0.0, %v2509
    %v2511 = vpop.f32.mrf.mxu0
    %v2512 = vadd.f32 0.0, %v2511
    %v2513 = vpop.f32.mrf.mxu0
    %v2514 = vadd.f32 0.0, %v2513
    %2515 = vmatprep.mubr.bf16.mxu0 0
    %2516 = vmatmul.mubr.bf16.gmra.mxu0 %v2451
    %v2517 = vpop.f32.mrf.mxu0
    %v2518 = vadd.f32 0.0, %v2517
    %v2519 = vpop.f32.mrf.mxu0
    %v2520 = vadd.f32 0.0, %v2519
    %v2521 = vpop.f32.mrf.mxu0
    %v2522 = vadd.f32 0.0, %v2521
    %v2523 = vpop.f32.mrf.mxu0
    %v2524 = vadd.f32 0.0, %v2523
    %2525 = vdwg.mxu0
    %v2526 = vpack.c.bf16 %v2492, %v2488
    %v2527 = vpack.c.bf16 %v2494, %v2490
    %v2528 = vpack.c.bf16 %v2502, %v2498
    %v2529 = vpack.c.bf16 %v2504, %v2500
    %v2530 = vpack.c.bf16 %v2512, %v2508
    %v2531 = vpack.c.bf16 %v2514, %v2510
    %v2532 = vpack.c.bf16 %v2522, %v2518
    %v2533 = vpack.c.bf16 %v2524, %v2520
    %s2534 = scalar_lea.vmem %s3, 384
    %v2535 = vld [vmem:[%s2534] sm:$0xf]
    %v2536 = vld [vmem:[%s2534 + $0x4] sm:$0xf]
    %v2537 = vld [vmem:[%s2534 + $0x8] sm:$0xf]
    %v2538 = vld [vmem:[%s2534 + $0xc] sm:$0xf]
    %v2539 = vld [vmem:[%s2534 + $0x10] sm:$0xf]
    %v2540 = vld [vmem:[%s2534 + $0x14] sm:$0xf]
    %v2541 = vld [vmem:[%s2534 + $0x18] sm:$0xf]
    %v2542 = vld [vmem:[%s2534 + $0x1c] sm:$0xf]
    %s2543 = scalar_lea.vmem %s3, 416
    %v2544 = vld [vmem:[%s2543] sm:$0xf]
    %v2545 = vld [vmem:[%s2543 + $0x4] sm:$0xf]
    %v2546 = vld [vmem:[%s2543 + $0x8] sm:$0xf]
    %v2547 = vld [vmem:[%s2543 + $0xc] sm:$0xf]
    %v2548 = vld [vmem:[%s2543 + $0x10] sm:$0xf]
    %v2549 = vld [vmem:[%s2543 + $0x14] sm:$0xf]
    %v2550 = vld [vmem:[%s2543 + $0x18] sm:$0xf]
    %v2551 = vld [vmem:[%s2543 + $0x1c] sm:$0xf]
    %v2560 = vunpack.c.l.b16 %v2544
    %v2561 = vunpack.c.l.b16 %v2545
    %v2562 = vunpack.c.l.b16 %v2546
    %v2563 = vunpack.c.l.b16 %v2547
    %v2564 = vunpack.c.l.b16 %v2548
    %v2565 = vunpack.c.l.b16 %v2549
    %v2566 = vunpack.c.l.b16 %v2550
    %v2567 = vunpack.c.l.b16 %v2551
    %v2568 = vpack.c.b16 %v2561, %v2560
    %v2569 = vpack.c.b16 %v2563, %v2562
    %v2570 = vpack.c.b16 %v2565, %v2564
    %v2571 = vpack.c.b16 %v2567, %v2566
    %2576 = vrot.lane.b32.xlu0 %v2526, 64
    %v2577 = vpop.permute.xlu0 %2576
    %2578 = vrot.lane.b32.xlu0 %v2528, 64
    %v2579 = vpop.permute.xlu0 %2578
    %2580 = vrot.lane.b32.xlu0 %v2530, 64
    %v2581 = vpop.permute.xlu0 %2580
    %2582 = vrot.lane.b32.xlu0 %v2532, 64
    %v2583 = vpop.permute.xlu0 %2582
    %v2589 = vsel %vm242, %v2568, 0
    %v2592 = vsel %vm242, %v2569, 0
    %v2595 = vsel %vm242, %v2570, 0
    %v2598 = vsel %vm242, %v2571, 0
    %2600 = vmatprep.subr.bf16.mxu0 0
    %2601 = vmatpush1.bf16.msra.mxu0 0
    %2602 = vmatprep.subr.bf16.mxu0 0
    %2603 = vmatpush1.bf16.msra.mxu0 0
    %2604 = vmatprep.subr.bf16.mxu0 0
    %2605 = vmatpush1.bf16.msra.mxu0 0
    %2606 = vmatprep.subr.bf16.mxu0 0
    %2607 = vmatpush1.bf16.msra.mxu0 0
    %2608 = vmatprep.subr.bf16.mxu0 0
    %2609 = vmatpush1.bf16.msra.mxu0 %v2583
    %2610 = vmatprep.subr.bf16.mxu0 0
    %2611 = vmatpush1.bf16.msra.mxu0 %v2581
    %2612 = vmatprep.subr.bf16.mxu0 0
    %2613 = vmatpush1.bf16.msra.mxu0 %v2579
    %2614 = vmatprep.subr.bf16.mxu0 0
    %2615 = vmatpush1.bf16.msra.mxu0 %v2577
    %2616 = vmatprep.subr.bf16.mxu0 0
    %2617 = vmatpush2.bf16.msra.mxu0 0
    %2618 = vmatprep.subr.bf16.mxu0 0
    %2619 = vmatpush2.bf16.msra.mxu0 0
    %2620 = vmatprep.subr.bf16.mxu0 0
    %2621 = vmatpush2.bf16.msra.mxu0 0
    %2622 = vmatprep.subr.bf16.mxu0 0
    %2623 = vmatpush2.bf16.msra.mxu0 0
    %2624 = vmatprep.subr.bf16.mxu0 0
    %2625 = vmatpush2.bf16.msra.mxu0 0
    %2626 = vmatprep.subr.bf16.mxu0 0
    %2627 = vmatpush2.bf16.msra.mxu0 0
    %2628 = vmatprep.subr.bf16.mxu0 0
    %2629 = vmatpush2.bf16.msra.mxu0 0
    %2630 = vmatprep.subr.bf16.mxu0 0
    %2631 = vmatpush2.bf16.msra.mxu0 0
    %2632 = vmatprep.mubr.bf16.mxu0 0
    %2633 = vmatmul.mubr.bf16.gmra.mxu0 %v2589
    %v2634 = vpop.f32.mrf.mxu0
    %v2635 = vadd.f32 0.0, %v2634
    %v2636 = vpop.f32.mrf.mxu0
    %v2637 = vpop.f32.mrf.mxu0
    %v2638 = vadd.f32 0.0, %v2637
    %v2639 = vpop.f32.mrf.mxu0
    %2640 = vmatprep.mubr.bf16.mxu0 0
    %2641 = vmatmul.mubr.bf16.gmra.mxu0 %v2592
    %v2642 = vpop.f32.mrf.mxu0
    %v2643 = vadd.f32 0.0, %v2642
    %v2644 = vpop.f32.mrf.mxu0
    %v2645 = vpop.f32.mrf.mxu0
    %v2646 = vadd.f32 0.0, %v2645
    %v2647 = vpop.f32.mrf.mxu0
    %2648 = vmatprep.mubr.bf16.mxu0 0
    %2649 = vmatmul.mubr.bf16.gmra.mxu0 %v2595
    %v2650 = vpop.f32.mrf.mxu0
    %v2651 = vadd.f32 0.0, %v2650
    %v2652 = vpop.f32.mrf.mxu0
    %v2653 = vpop.f32.mrf.mxu0
    %v2654 = vadd.f32 0.0, %v2653
    %v2655 = vpop.f32.mrf.mxu0
    %2656 = vmatprep.mubr.bf16.mxu0 0
    %2657 = vmatmul.mubr.bf16.gmra.mxu0 %v2598
    %v2658 = vpop.f32.mrf.mxu0
    %v2659 = vadd.f32 0.0, %v2658
    %v2660 = vpop.f32.mrf.mxu0
    %v2661 = vpop.f32.mrf.mxu0
    %v2662 = vadd.f32 0.0, %v2661
    %v2663 = vpop.f32.mrf.mxu0
    %2664 = vdwg.mxu0
    %v2673 = vunpack.c.l.b16 %v2535
    %v2674 = vunpack.c.l.b16 %v2536
    %v2675 = vunpack.c.l.b16 %v2537
    %v2676 = vunpack.c.l.b16 %v2538
    %v2677 = vunpack.c.l.b16 %v2539
    %v2678 = vunpack.c.l.b16 %v2540
    %v2679 = vunpack.c.l.b16 %v2541
    %v2680 = vunpack.c.l.b16 %v2542
    %v2681 = vpack.c.b16 %v2674, %v2673
    %v2682 = vpack.c.b16 %v2676, %v2675
    %v2683 = vpack.c.b16 %v2678, %v2677
    %v2684 = vpack.c.b16 %v2680, %v2679
    %v2686 = vsel %vm242, %v2681, 0
    %v2689 = vsel %vm242, %v2682, 0
    %v2692 = vsel %vm242, %v2683, 0
    %v2695 = vsel %vm242, %v2684, 0
    %2697 = vmatprep.subr.bf16.mxu0 0
    %2698 = vmatpush1.bf16.msra.mxu0 0
    %2699 = vmatprep.subr.bf16.mxu0 0
    %2700 = vmatpush1.bf16.msra.mxu0 0
    %2701 = vmatprep.subr.bf16.mxu0 0
    %2702 = vmatpush1.bf16.msra.mxu0 0
    %2703 = vmatprep.subr.bf16.mxu0 0
    %2704 = vmatpush1.bf16.msra.mxu0 0
    %2705 = vmatprep.subr.bf16.mxu0 0
    %2706 = vmatpush1.bf16.msra.mxu0 %v2532
    %2707 = vmatprep.subr.bf16.mxu0 0
    %2708 = vmatpush1.bf16.msra.mxu0 %v2530
    %2709 = vmatprep.subr.bf16.mxu0 0
    %2710 = vmatpush1.bf16.msra.mxu0 %v2528
    %2711 = vmatprep.subr.bf16.mxu0 0
    %2712 = vmatpush1.bf16.msra.mxu0 %v2526
    %2713 = vmatprep.subr.bf16.mxu0 0
    %2714 = vmatpush2.bf16.msra.mxu0 0
    %2715 = vmatprep.subr.bf16.mxu0 0
    %2716 = vmatpush2.bf16.msra.mxu0 0
    %2717 = vmatprep.subr.bf16.mxu0 0
    %2718 = vmatpush2.bf16.msra.mxu0 0
    %2719 = vmatprep.subr.bf16.mxu0 0
    %2720 = vmatpush2.bf16.msra.mxu0 0
    %2721 = vmatprep.subr.bf16.mxu0 0
    %2722 = vmatpush2.bf16.msra.mxu0 0
    %2723 = vmatprep.subr.bf16.mxu0 0
    %2724 = vmatpush2.bf16.msra.mxu0 0
    %2725 = vmatprep.subr.bf16.mxu0 0
    %2726 = vmatpush2.bf16.msra.mxu0 0
    %2727 = vmatprep.subr.bf16.mxu0 0
    %2728 = vmatpush2.bf16.msra.mxu0 0
    %2729 = vmatprep.mubr.bf16.mxu0 0
    %2730 = vmatmul.mubr.bf16.gmra.mxu0 %v2686
    %v2731 = vpop.f32.mrf.mxu0
    %v2732 = vadd.f32 %v2635, %v2731
    %v2733 = vpop.f32.mrf.mxu0
    %v2734 = vpop.f32.mrf.mxu0
    %v2735 = vadd.f32 %v2638, %v2734
    %v2736 = vpop.f32.mrf.mxu0
    %2737 = vmatprep.mubr.bf16.mxu0 0
    %2738 = vmatmul.mubr.bf16.gmra.mxu0 %v2689
    %v2739 = vpop.f32.mrf.mxu0
    %v2740 = vadd.f32 %v2643, %v2739
    %v2741 = vpop.f32.mrf.mxu0
    %v2742 = vpop.f32.mrf.mxu0
    %v2743 = vadd.f32 %v2646, %v2742
    %v2744 = vpop.f32.mrf.mxu0
    %2745 = vmatprep.mubr.bf16.mxu0 0
    %2746 = vmatmul.mubr.bf16.gmra.mxu0 %v2692
    %v2747 = vpop.f32.mrf.mxu0
    %v2748 = vadd.f32 %v2651, %v2747
    %v2749 = vpop.f32.mrf.mxu0
    %v2750 = vpop.f32.mrf.mxu0
    %v2751 = vadd.f32 %v2654, %v2750
    %v2752 = vpop.f32.mrf.mxu0
    %2753 = vmatprep.mubr.bf16.mxu0 0
    %2754 = vmatmul.mubr.bf16.gmra.mxu0 %v2695
    %v2755 = vpop.f32.mrf.mxu0
    %v2756 = vadd.f32 %v2659, %v2755
    %v2757 = vpop.f32.mrf.mxu0
    %v2758 = vpop.f32.mrf.mxu0
    %v2759 = vadd.f32 %v2662, %v2758
    %v2760 = vpop.f32.mrf.mxu0
    %2761 = vdwg.mxu0
    %s2762 = scalar_lea.vmem %s3, 448
    %v2763 = vld [vmem:[%s2762] sm:$0xf]
    %v2764 = vld [vmem:[%s2762 + $0x4] sm:$0xf]
    %v2765 = vld [vmem:[%s2762 + $0x8] sm:$0xf]
    %v2766 = vld [vmem:[%s2762 + $0xc] sm:$0xf]
    %v2767 = vld [vmem:[%s2762 + $0x10] sm:$0xf]
    %v2768 = vld [vmem:[%s2762 + $0x14] sm:$0xf]
    %v2769 = vld [vmem:[%s2762 + $0x18] sm:$0xf]
    %v2770 = vld [vmem:[%s2762 + $0x1c] sm:$0xf]
    %v2779 = vunpack.c.l.b16 %v2763
    %v2780 = vunpack.c.l.b16 %v2764
    %v2781 = vunpack.c.l.b16 %v2765
    %v2782 = vunpack.c.l.b16 %v2766
    %v2783 = vunpack.c.l.b16 %v2767
    %v2784 = vunpack.c.l.b16 %v2768
    %v2785 = vunpack.c.l.b16 %v2769
    %v2786 = vunpack.c.l.b16 %v2770
    %v2787 = vpack.c.b16 %v2780, %v2779
    %v2788 = vpack.c.b16 %v2782, %v2781
    %v2789 = vpack.c.b16 %v2784, %v2783
    %v2790 = vpack.c.b16 %v2786, %v2785
    %v2792 = vsel %vm242, %v2787, 0
    %v2795 = vsel %vm242, %v2788, 0
    %v2798 = vsel %vm242, %v2789, 0
    %v2801 = vsel %vm242, %v2790, 0
    %2803 = vmatprep.subr.bf16.mxu0 0
    %2804 = vmatpush1.bf16.msra.mxu0 0
    %2805 = vmatprep.subr.bf16.mxu0 0
    %2806 = vmatpush1.bf16.msra.mxu0 0
    %2807 = vmatprep.subr.bf16.mxu0 0
    %2808 = vmatpush1.bf16.msra.mxu0 0
    %2809 = vmatprep.subr.bf16.mxu0 0
    %2810 = vmatpush1.bf16.msra.mxu0 0
    %2811 = vmatprep.subr.bf16.mxu0 0
    %2812 = vmatpush1.bf16.msra.mxu0 %v2533
    %2813 = vmatprep.subr.bf16.mxu0 0
    %2814 = vmatpush1.bf16.msra.mxu0 %v2531
    %2815 = vmatprep.subr.bf16.mxu0 0
    %2816 = vmatpush1.bf16.msra.mxu0 %v2529
    %2817 = vmatprep.subr.bf16.mxu0 0
    %2818 = vmatpush1.bf16.msra.mxu0 %v2527
    %2819 = vmatprep.subr.bf16.mxu0 0
    %2820 = vmatpush2.bf16.msra.mxu0 0
    %2821 = vmatprep.subr.bf16.mxu0 0
    %2822 = vmatpush2.bf16.msra.mxu0 0
    %2823 = vmatprep.subr.bf16.mxu0 0
    %2824 = vmatpush2.bf16.msra.mxu0 0
    %2825 = vmatprep.subr.bf16.mxu0 0
    %2826 = vmatpush2.bf16.msra.mxu0 0
    %2827 = vmatprep.subr.bf16.mxu0 0
    %2828 = vmatpush2.bf16.msra.mxu0 0
    %2829 = vmatprep.subr.bf16.mxu0 0
    %2830 = vmatpush2.bf16.msra.mxu0 0
    %2831 = vmatprep.subr.bf16.mxu0 0
    %2832 = vmatpush2.bf16.msra.mxu0 0
    %2833 = vmatprep.subr.bf16.mxu0 0
    %2834 = vmatpush2.bf16.msra.mxu0 0
    %2835 = vmatprep.mubr.bf16.mxu0 0
    %2836 = vmatmul.mubr.bf16.gmra.mxu0 %v2792
    %v2837 = vpop.f32.mrf.mxu0
    %v2838 = vadd.f32 0.0, %v2837
    %v2839 = vpop.f32.mrf.mxu0
    %v2840 = vpop.f32.mrf.mxu0
    %v2841 = vadd.f32 0.0, %v2840
    %v2842 = vpop.f32.mrf.mxu0
    %2843 = vmatprep.mubr.bf16.mxu0 0
    %2844 = vmatmul.mubr.bf16.gmra.mxu0 %v2795
    %v2845 = vpop.f32.mrf.mxu0
    %v2846 = vadd.f32 0.0, %v2845
    %v2847 = vpop.f32.mrf.mxu0
    %v2848 = vpop.f32.mrf.mxu0
    %v2849 = vadd.f32 0.0, %v2848
    %v2850 = vpop.f32.mrf.mxu0
    %2851 = vmatprep.mubr.bf16.mxu0 0
    %2852 = vmatmul.mubr.bf16.gmra.mxu0 %v2798
    %v2853 = vpop.f32.mrf.mxu0
    %v2854 = vadd.f32 0.0, %v2853
    %v2855 = vpop.f32.mrf.mxu0
    %v2856 = vpop.f32.mrf.mxu0
    %v2857 = vadd.f32 0.0, %v2856
    %v2858 = vpop.f32.mrf.mxu0
    %2859 = vmatprep.mubr.bf16.mxu0 0
    %2860 = vmatmul.mubr.bf16.gmra.mxu0 %v2801
    %v2861 = vpop.f32.mrf.mxu0
    %v2862 = vadd.f32 0.0, %v2861
    %v2863 = vpop.f32.mrf.mxu0
    %v2864 = vpop.f32.mrf.mxu0
    %v2865 = vadd.f32 0.0, %v2864
    %v2866 = vpop.f32.mrf.mxu0
    %2867 = vdwg.mxu0
    %v2868 = vadd.f32 %v2732, %v2838
    %v2869 = vadd.f32 %v2735, %v2841
    %v2870 = vadd.f32 %v2740, %v2846
    %v2871 = vadd.f32 %v2743, %v2849
    %v2872 = vadd.f32 %v2748, %v2854
    %v2873 = vadd.f32 %v2751, %v2857
    %v2874 = vadd.f32 %v2756, %v2862
    %v2875 = vadd.f32 %v2759, %v2865
    %s2876 = scalar_lea.vmem [#allocation6], 16
    %v2877 = vld [vmem:[%s2876] sm:$0x7]
    %v2878 = vlaneseq
    %v2879 = vshrl.u32 %v2878, 7
    %v2880 = vsub.s32 0, %v2879
    %v2881 = vrot.slane %v2877, %v2880
    %v2882 = vadd.f32 %v2868, %v2881
    %v2883 = vadd.f32 %v2869, %v2881
    %v2884 = vadd.f32 %v2870, %v2881
    %v2885 = vadd.f32 %v2871, %v2881
    %v2886 = vadd.f32 %v2872, %v2881
    %v2887 = vadd.f32 %v2873, %v2881
    %v2888 = vadd.f32 %v2874, %v2881
    %v2889 = vadd.f32 %v2875, %v2881
    %vm2890 = vcmp.gt.f32.partialorder %v2882, 0.0
    %vm2891 = vcmp.gt.f32.partialorder %v2883, 0.0
    %vm2892 = vcmp.gt.f32.partialorder %v2884, 0.0
    %vm2893 = vcmp.gt.f32.partialorder %v2885, 0.0
    %vm2894 = vcmp.gt.f32.partialorder %v2886, 0.0
    %vm2895 = vcmp.gt.f32.partialorder %v2887, 0.0
    %vm2896 = vcmp.gt.f32.partialorder %v2888, 0.0
    %vm2897 = vcmp.gt.f32.partialorder %v2889, 0.0
    %v2898 = vmul.f32 %v2882, 0.2
    %v2899 = vmul.f32 %v2883, 0.2
    %v2900 = vmul.f32 %v2884, 0.2
    %v2901 = vmul.f32 %v2885, 0.2
    %v2902 = vmul.f32 %v2886, 0.2
    %v2903 = vmul.f32 %v2887, 0.2
    %v2904 = vmul.f32 %v2888, 0.2
    %v2905 = vmul.f32 %v2889, 0.2
    %v2906 = vsel %vm2890, %v2882, %v2898
    %v2907 = vsel %vm2891, %v2883, %v2899
    %v2908 = vsel %vm2892, %v2884, %v2900
    %v2909 = vsel %vm2893, %v2885, %v2901
    %v2910 = vsel %vm2894, %v2886, %v2902
    %v2911 = vsel %vm2895, %v2887, %v2903
    %v2912 = vsel %vm2896, %v2888, %v2904
    %v2913 = vsel %vm2897, %v2889, %v2905
    %v2914 = vlaneseq
    %v2915 = vshrl.u32 %v2914, 7
    %v2916 = vsub.s32 1, %v2915
    %v2917 = vrot.slane %v2877, %v2916
    %v2918 = vmul.f32 %v2906, %v2917
    %v2919 = vmul.f32 %v2907, %v2917
    %v2920 = vmul.f32 %v2908, %v2917
    %v2921 = vmul.f32 %v2909, %v2917
    %v2922 = vmul.f32 %v2910, %v2917
    %v2923 = vmul.f32 %v2911, %v2917
    %v2924 = vmul.f32 %v2912, %v2917
    %v2925 = vmul.f32 %v2913, %v2917
    %v2926 = vlaneseq
    %v2927 = vshrl.u32 %v2926, 7
    %v2928 = vsub.s32 2, %v2927
    %v2929 = vrot.slane %v2877, %v2928
    %v2930 = vadd.f32 %v2918, %v2929
    %v2931 = vadd.f32 %v2919, %v2929
    %v2932 = vadd.f32 %v2920, %v2929
    %v2933 = vadd.f32 %v2921, %v2929
    %v2934 = vadd.f32 %v2922, %v2929
    %v2935 = vadd.f32 %v2923, %v2929
    %v2936 = vadd.f32 %v2924, %v2929
    %v2937 = vadd.f32 %v2925, %v2929
    %v2938 = vpack.c.bf16 %v2931, %v2930
    %v2939 = vpack.c.bf16 %v2933, %v2932
    %v2940 = vpack.c.bf16 %v2935, %v2934
    %v2941 = vpack.c.bf16 %v2937, %v2936
    %v2942 = vld [vmem:[#allocation8] sm:$0xff]
    %v2943 = vld [vmem:[#allocation8 + $0x8] sm:$0xff]
    %v2944 = vld [vmem:[#allocation8 + $0x10] sm:$0xff]
    %v2945 = vld [vmem:[#allocation8 + $0x18] sm:$0xff]
    %v2946 = vld [vmem:[#allocation8 + $0x20] sm:$0xff]
    %v2947 = vld [vmem:[#allocation8 + $0x28] sm:$0xff]
    %v2948 = vld [vmem:[#allocation8 + $0x30] sm:$0xff]
    %v2949 = vld [vmem:[#allocation8 + $0x38] sm:$0xff]
    %v2958 = vunpack.c.l.b16 %v2942
    %v2959 = vunpack.c.h.b16 %v2942
    %v2960 = vunpack.c.l.b16 %v2943
    %v2961 = vunpack.c.h.b16 %v2943
    %v2962 = vunpack.c.l.b16 %v2944
    %v2963 = vunpack.c.h.b16 %v2944
    %v2964 = vunpack.c.l.b16 %v2945
    %v2965 = vunpack.c.h.b16 %v2945
    %v2966 = vunpack.c.l.b16 %v2946
    %v2967 = vunpack.c.h.b16 %v2946
    %v2968 = vunpack.c.l.b16 %v2947
    %v2969 = vunpack.c.h.b16 %v2947
    %v2970 = vunpack.c.l.b16 %v2948
    %v2971 = vunpack.c.h.b16 %v2948
    %v2972 = vunpack.c.l.b16 %v2949
    %v2973 = vunpack.c.h.b16 %v2949
    %v2974 = vpack.c.b16 %v2960, %v2958
    %v2975 = vpack.c.b16 %v2961, %v2959
    %v2976 = vpack.c.b16 %v2964, %v2962
    %v2977 = vpack.c.b16 %v2965, %v2963
    %v2978 = vpack.c.b16 %v2968, %v2966
    %v2979 = vpack.c.b16 %v2969, %v2967
    %v2980 = vpack.c.b16 %v2972, %v2970
    %v2981 = vpack.c.b16 %v2973, %v2971
    %v2991 = vsel %vm242, %v2938, 0
    %v2994 = vsel %vm242, %v2939, 0
    %v2997 = vsel %vm242, %v2940, 0
    %v3000 = vsel %vm242, %v2941, 0
    %3002 = vmatprep.subr.bf16.mxu0 0
    %3003 = vmatpush1.bf16.msra.mxu0 0
    %3004 = vmatprep.subr.bf16.mxu0 0
    %3005 = vmatpush1.bf16.msra.mxu0 0
    %3006 = vmatprep.subr.bf16.mxu0 0
    %3007 = vmatpush1.bf16.msra.mxu0 0
    %3008 = vmatprep.subr.bf16.mxu0 0
    %3009 = vmatpush1.bf16.msra.mxu0 0
    %3010 = vmatprep.subr.bf16.mxu0 %v2981
    %3011 = vmatpush1.bf16.msra.mxu0 %v2980
    %3012 = vmatprep.subr.bf16.mxu0 %v2979
    %3013 = vmatpush1.bf16.msra.mxu0 %v2978
    %3014 = vmatprep.subr.bf16.mxu0 %v2977
    %3015 = vmatpush1.bf16.msra.mxu0 %v2976
    %3016 = vmatprep.subr.bf16.mxu0 %v2975
    %3017 = vmatpush1.bf16.msra.mxu0 %v2974
    %3018 = vmatprep.subr.bf16.mxu0 0
    %3019 = vmatpush2.bf16.msra.mxu0 0
    %3020 = vmatprep.subr.bf16.mxu0 0
    %3021 = vmatpush2.bf16.msra.mxu0 0
    %3022 = vmatprep.subr.bf16.mxu0 0
    %3023 = vmatpush2.bf16.msra.mxu0 0
    %3024 = vmatprep.subr.bf16.mxu0 0
    %3025 = vmatpush2.bf16.msra.mxu0 0
    %3026 = vmatprep.subr.bf16.mxu0 0
    %3027 = vmatpush2.bf16.msra.mxu0 0
    %3028 = vmatprep.subr.bf16.mxu0 0
    %3029 = vmatpush2.bf16.msra.mxu0 0
    %3030 = vmatprep.subr.bf16.mxu0 0
    %3031 = vmatpush2.bf16.msra.mxu0 0
    %3032 = vmatprep.subr.bf16.mxu0 0
    %3033 = vmatpush2.bf16.msra.mxu0 0
    %3034 = vmatprep.mubr.bf16.mxu0 0
    %3035 = vmatmul.mubr.bf16.gmra.mxu0 %v2991
    %v3036 = vpop.f32.mrf.mxu0
    %v3037 = vadd.f32 0.0, %v3036
    %v3038 = vpop.f32.mrf.mxu0
    %v3039 = vadd.f32 0.0, %v3038
    %v3040 = vpop.f32.mrf.mxu0
    %v3041 = vadd.f32 0.0, %v3040
    %v3042 = vpop.f32.mrf.mxu0
    %v3043 = vadd.f32 0.0, %v3042
    %3044 = vmatprep.mubr.bf16.mxu0 0
    %3045 = vmatmul.mubr.bf16.gmra.mxu0 %v2994
    %v3046 = vpop.f32.mrf.mxu0
    %v3047 = vadd.f32 0.0, %v3046
    %v3048 = vpop.f32.mrf.mxu0
    %v3049 = vadd.f32 0.0, %v3048
    %v3050 = vpop.f32.mrf.mxu0
    %v3051 = vadd.f32 0.0, %v3050
    %v3052 = vpop.f32.mrf.mxu0
    %v3053 = vadd.f32 0.0, %v3052
    %3054 = vmatprep.mubr.bf16.mxu0 0
    %3055 = vmatmul.mubr.bf16.gmra.mxu0 %v2997
    %v3056 = vpop.f32.mrf.mxu0
    %v3057 = vadd.f32 0.0, %v3056
    %v3058 = vpop.f32.mrf.mxu0
    %v3059 = vadd.f32 0.0, %v3058
    %v3060 = vpop.f32.mrf.mxu0
    %v3061 = vadd.f32 0.0, %v3060
    %v3062 = vpop.f32.mrf.mxu0
    %v3063 = vadd.f32 0.0, %v3062
    %3064 = vmatprep.mubr.bf16.mxu0 0
    %3065 = vmatmul.mubr.bf16.gmra.mxu0 %v3000
    %v3066 = vpop.f32.mrf.mxu0
    %v3067 = vadd.f32 0.0, %v3066
    %v3068 = vpop.f32.mrf.mxu0
    %v3069 = vadd.f32 0.0, %v3068
    %v3070 = vpop.f32.mrf.mxu0
    %v3071 = vadd.f32 0.0, %v3070
    %v3072 = vpop.f32.mrf.mxu0
    %v3073 = vadd.f32 0.0, %v3072
    %3074 = vdwg.mxu0
    %v3075 = vpack.c.bf16 %v3041, %v3037
    %v3076 = vpack.c.bf16 %v3043, %v3039
    %v3077 = vpack.c.bf16 %v3051, %v3047
    %v3078 = vpack.c.bf16 %v3053, %v3049
    %v3079 = vpack.c.bf16 %v3061, %v3057
    %v3080 = vpack.c.bf16 %v3063, %v3059
    %v3081 = vpack.c.bf16 %v3071, %v3067
    %v3082 = vpack.c.bf16 %v3073, %v3069
    %v3083 = vld [vmem:[#allocation11] sm:$0xf]
    %v3084 = vld [vmem:[#allocation11 + $0x4] sm:$0xf]
    %v3085 = vld [vmem:[#allocation11 + $0x8] sm:$0xf]
    %v3086 = vld [vmem:[#allocation11 + $0xc] sm:$0xf]
    %v3087 = vld [vmem:[#allocation11 + $0x10] sm:$0xf]
    %v3088 = vld [vmem:[#allocation11 + $0x14] sm:$0xf]
    %v3089 = vld [vmem:[#allocation11 + $0x18] sm:$0xf]
    %v3090 = vld [vmem:[#allocation11 + $0x1c] sm:$0xf]
    %s3091 = scalar_lea.vmem [#allocation11], 32
    %v3092 = vld [vmem:[%s3091] sm:$0xf]
    %v3093 = vld [vmem:[%s3091 + $0x4] sm:$0xf]
    %v3094 = vld [vmem:[%s3091 + $0x8] sm:$0xf]
    %v3095 = vld [vmem:[%s3091 + $0xc] sm:$0xf]
    %v3096 = vld [vmem:[%s3091 + $0x10] sm:$0xf]
    %v3097 = vld [vmem:[%s3091 + $0x14] sm:$0xf]
    %v3098 = vld [vmem:[%s3091 + $0x18] sm:$0xf]
    %v3099 = vld [vmem:[%s3091 + $0x1c] sm:$0xf]
    %v3108 = vunpack.c.l.b16 %v3092
    %v3109 = vunpack.c.l.b16 %v3093
    %v3110 = vunpack.c.l.b16 %v3094
    %v3111 = vunpack.c.l.b16 %v3095
    %v3112 = vunpack.c.l.b16 %v3096
    %v3113 = vunpack.c.l.b16 %v3097
    %v3114 = vunpack.c.l.b16 %v3098
    %v3115 = vunpack.c.l.b16 %v3099
    %v3116 = vpack.c.b16 %v3109, %v3108
    %v3117 = vpack.c.b16 %v3111, %v3110
    %v3118 = vpack.c.b16 %v3113, %v3112
    %v3119 = vpack.c.b16 %v3115, %v3114
    %3124 = vrot.lane.b32.xlu0 %v3075, 64
    %v3125 = vpop.permute.xlu0 %3124
    %3126 = vrot.lane.b32.xlu0 %v3077, 64
    %v3127 = vpop.permute.xlu0 %3126
    %3128 = vrot.lane.b32.xlu0 %v3079, 64
    %v3129 = vpop.permute.xlu0 %3128
    %3130 = vrot.lane.b32.xlu0 %v3081, 64
    %v3131 = vpop.permute.xlu0 %3130
    %v3137 = vsel %vm242, %v3116, 0
    %v3140 = vsel %vm242, %v3117, 0
    %v3143 = vsel %vm242, %v3118, 0
    %v3146 = vsel %vm242, %v3119, 0
    %3148 = vmatprep.subr.bf16.mxu0 0
    %3149 = vmatpush1.bf16.msra.mxu0 0
    %3150 = vmatprep.subr.bf16.mxu0 0
    %3151 = vmatpush1.bf16.msra.mxu0 0
    %3152 = vmatprep.subr.bf16.mxu0 0
    %3153 = vmatpush1.bf16.msra.mxu0 0
    %3154 = vmatprep.subr.bf16.mxu0 0
    %3155 = vmatpush1.bf16.msra.mxu0 0
    %3156 = vmatprep.subr.bf16.mxu0 0
    %3157 = vmatpush1.bf16.msra.mxu0 %v3131
    %3158 = vmatprep.subr.bf16.mxu0 0
    %3159 = vmatpush1.bf16.msra.mxu0 %v3129
    %3160 = vmatprep.subr.bf16.mxu0 0
    %3161 = vmatpush1.bf16.msra.mxu0 %v3127
    %3162 = vmatprep.subr.bf16.mxu0 0
    %3163 = vmatpush1.bf16.msra.mxu0 %v3125
    %3164 = vmatprep.subr.bf16.mxu0 0
    %3165 = vmatpush2.bf16.msra.mxu0 0
    %3166 = vmatprep.subr.bf16.mxu0 0
    %3167 = vmatpush2.bf16.msra.mxu0 0
    %3168 = vmatprep.subr.bf16.mxu0 0
    %3169 = vmatpush2.bf16.msra.mxu0 0
    %3170 = vmatprep.subr.bf16.mxu0 0
    %3171 = vmatpush2.bf16.msra.mxu0 0
    %3172 = vmatprep.subr.bf16.mxu0 0
    %3173 = vmatpush2.bf16.msra.mxu0 0
    %3174 = vmatprep.subr.bf16.mxu0 0
    %3175 = vmatpush2.bf16.msra.mxu0 0
    %3176 = vmatprep.subr.bf16.mxu0 0
    %3177 = vmatpush2.bf16.msra.mxu0 0
    %3178 = vmatprep.subr.bf16.mxu0 0
    %3179 = vmatpush2.bf16.msra.mxu0 0
    %3180 = vmatprep.mubr.bf16.mxu0 0
    %3181 = vmatmul.mubr.bf16.gmra.mxu0 %v3137
    %v3182 = vpop.f32.mrf.mxu0
    %v3183 = vadd.f32 0.0, %v3182
    %v3184 = vpop.f32.mrf.mxu0
    %v3185 = vpop.f32.mrf.mxu0
    %v3186 = vadd.f32 0.0, %v3185
    %v3187 = vpop.f32.mrf.mxu0
    %3188 = vmatprep.mubr.bf16.mxu0 0
    %3189 = vmatmul.mubr.bf16.gmra.mxu0 %v3140
    %v3190 = vpop.f32.mrf.mxu0
    %v3191 = vadd.f32 0.0, %v3190
    %v3192 = vpop.f32.mrf.mxu0
    %v3193 = vpop.f32.mrf.mxu0
    %v3194 = vadd.f32 0.0, %v3193
    %v3195 = vpop.f32.mrf.mxu0
    %3196 = vmatprep.mubr.bf16.mxu0 0
    %3197 = vmatmul.mubr.bf16.gmra.mxu0 %v3143
    %v3198 = vpop.f32.mrf.mxu0
    %v3199 = vadd.f32 0.0, %v3198
    %v3200 = vpop.f32.mrf.mxu0
    %v3201 = vpop.f32.mrf.mxu0
    %v3202 = vadd.f32 0.0, %v3201
    %v3203 = vpop.f32.mrf.mxu0
    %3204 = vmatprep.mubr.bf16.mxu0 0
    %3205 = vmatmul.mubr.bf16.gmra.mxu0 %v3146
    %v3206 = vpop.f32.mrf.mxu0
    %v3207 = vadd.f32 0.0, %v3206
    %v3208 = vpop.f32.mrf.mxu0
    %v3209 = vpop.f32.mrf.mxu0
    %v3210 = vadd.f32 0.0, %v3209
    %v3211 = vpop.f32.mrf.mxu0
    %3212 = vdwg.mxu0
    %v3221 = vunpack.c.l.b16 %v3083
    %v3222 = vunpack.c.l.b16 %v3084
    %v3223 = vunpack.c.l.b16 %v3085
    %v3224 = vunpack.c.l.b16 %v3086
    %v3225 = vunpack.c.l.b16 %v3087
    %v3226 = vunpack.c.l.b16 %v3088
    %v3227 = vunpack.c.l.b16 %v3089
    %v3228 = vunpack.c.l.b16 %v3090
    %v3229 = vpack.c.b16 %v3222, %v3221
    %v3230 = vpack.c.b16 %v3224, %v3223
    %v3231 = vpack.c.b16 %v3226, %v3225
    %v3232 = vpack.c.b16 %v3228, %v3227
    %v3234 = vsel %vm242, %v3229, 0
    %v3237 = vsel %vm242, %v3230, 0
    %v3240 = vsel %vm242, %v3231, 0
    %v3243 = vsel %vm242, %v3232, 0
    %3245 = vmatprep.subr.bf16.mxu0 0
    %3246 = vmatpush1.bf16.msra.mxu0 0
    %3247 = vmatprep.subr.bf16.mxu0 0
    %3248 = vmatpush1.bf16.msra.mxu0 0
    %3249 = vmatprep.subr.bf16.mxu0 0
    %3250 = vmatpush1.bf16.msra.mxu0 0
    %3251 = vmatprep.subr.bf16.mxu0 0
    %3252 = vmatpush1.bf16.msra.mxu0 0
    %3253 = vmatprep.subr.bf16.mxu0 0
    %3254 = vmatpush1.bf16.msra.mxu0 %v3081
    %3255 = vmatprep.subr.bf16.mxu0 0
    %3256 = vmatpush1.bf16.msra.mxu0 %v3079
    %3257 = vmatprep.subr.bf16.mxu0 0
    %3258 = vmatpush1.bf16.msra.mxu0 %v3077
    %3259 = vmatprep.subr.bf16.mxu0 0
    %3260 = vmatpush1.bf16.msra.mxu0 %v3075
    %3261 = vmatprep.subr.bf16.mxu0 0
    %3262 = vmatpush2.bf16.msra.mxu0 0
    %3263 = vmatprep.subr.bf16.mxu0 0
    %3264 = vmatpush2.bf16.msra.mxu0 0
    %3265 = vmatprep.subr.bf16.mxu0 0
    %3266 = vmatpush2.bf16.msra.mxu0 0
    %3267 = vmatprep.subr.bf16.mxu0 0
    %3268 = vmatpush2.bf16.msra.mxu0 0
    %3269 = vmatprep.subr.bf16.mxu0 0
    %3270 = vmatpush2.bf16.msra.mxu0 0
    %3271 = vmatprep.subr.bf16.mxu0 0
    %3272 = vmatpush2.bf16.msra.mxu0 0
    %3273 = vmatprep.subr.bf16.mxu0 0
    %3274 = vmatpush2.bf16.msra.mxu0 0
    %3275 = vmatprep.subr.bf16.mxu0 0
    %3276 = vmatpush2.bf16.msra.mxu0 0
    %3277 = vmatprep.mubr.bf16.mxu0 0
    %3278 = vmatmul.mubr.bf16.gmra.mxu0 %v3234
    %v3279 = vpop.f32.mrf.mxu0
    %v3280 = vadd.f32 %v3183, %v3279
    %v3281 = vpop.f32.mrf.mxu0
    %v3282 = vpop.f32.mrf.mxu0
    %v3283 = vadd.f32 %v3186, %v3282
    %v3284 = vpop.f32.mrf.mxu0
    %3285 = vmatprep.mubr.bf16.mxu0 0
    %3286 = vmatmul.mubr.bf16.gmra.mxu0 %v3237
    %v3287 = vpop.f32.mrf.mxu0
    %v3288 = vadd.f32 %v3191, %v3287
    %v3289 = vpop.f32.mrf.mxu0
    %v3290 = vpop.f32.mrf.mxu0
    %v3291 = vadd.f32 %v3194, %v3290
    %v3292 = vpop.f32.mrf.mxu0
    %3293 = vmatprep.mubr.bf16.mxu0 0
    %3294 = vmatmul.mubr.bf16.gmra.mxu0 %v3240
    %v3295 = vpop.f32.mrf.mxu0
    %v3296 = vadd.f32 %v3199, %v3295
    %v3297 = vpop.f32.mrf.mxu0
    %v3298 = vpop.f32.mrf.mxu0
    %v3299 = vadd.f32 %v3202, %v3298
    %v3300 = vpop.f32.mrf.mxu0
    %3301 = vmatprep.mubr.bf16.mxu0 0
    %3302 = vmatmul.mubr.bf16.gmra.mxu0 %v3243
    %v3303 = vpop.f32.mrf.mxu0
    %v3304 = vadd.f32 %v3207, %v3303
    %v3305 = vpop.f32.mrf.mxu0
    %v3306 = vpop.f32.mrf.mxu0
    %v3307 = vadd.f32 %v3210, %v3306
    %v3308 = vpop.f32.mrf.mxu0
    %3309 = vdwg.mxu0
    %s3310 = scalar_lea.vmem [#allocation11], 64
    %v3311 = vld [vmem:[%s3310] sm:$0xf]
    %v3312 = vld [vmem:[%s3310 + $0x4] sm:$0xf]
    %v3313 = vld [vmem:[%s3310 + $0x8] sm:$0xf]
    %v3314 = vld [vmem:[%s3310 + $0xc] sm:$0xf]
    %v3315 = vld [vmem:[%s3310 + $0x10] sm:$0xf]
    %v3316 = vld [vmem:[%s3310 + $0x14] sm:$0xf]
    %v3317 = vld [vmem:[%s3310 + $0x18] sm:$0xf]
    %v3318 = vld [vmem:[%s3310 + $0x1c] sm:$0xf]
    %v3327 = vunpack.c.l.b16 %v3311
    %v3328 = vunpack.c.l.b16 %v3312
    %v3329 = vunpack.c.l.b16 %v3313
    %v3330 = vunpack.c.l.b16 %v3314
    %v3331 = vunpack.c.l.b16 %v3315
    %v3332 = vunpack.c.l.b16 %v3316
    %v3333 = vunpack.c.l.b16 %v3317
    %v3334 = vunpack.c.l.b16 %v3318
    %v3335 = vpack.c.b16 %v3328, %v3327
    %v3336 = vpack.c.b16 %v3330, %v3329
    %v3337 = vpack.c.b16 %v3332, %v3331
    %v3338 = vpack.c.b16 %v3334, %v3333
    %v3340 = vsel %vm242, %v3335, 0
    %v3343 = vsel %vm242, %v3336, 0
    %v3346 = vsel %vm242, %v3337, 0
    %v3349 = vsel %vm242, %v3338, 0
    %3351 = vmatprep.subr.bf16.mxu0 0
    %3352 = vmatpush1.bf16.msra.mxu0 0
    %3353 = vmatprep.subr.bf16.mxu0 0
    %3354 = vmatpush1.bf16.msra.mxu0 0
    %3355 = vmatprep.subr.bf16.mxu0 0
    %3356 = vmatpush1.bf16.msra.mxu0 0
    %3357 = vmatprep.subr.bf16.mxu0 0
    %3358 = vmatpush1.bf16.msra.mxu0 0
    %3359 = vmatprep.subr.bf16.mxu0 0
    %3360 = vmatpush1.bf16.msra.mxu0 %v3082
    %3361 = vmatprep.subr.bf16.mxu0 0
    %3362 = vmatpush1.bf16.msra.mxu0 %v3080
    %3363 = vmatprep.subr.bf16.mxu0 0
    %3364 = vmatpush1.bf16.msra.mxu0 %v3078
    %3365 = vmatprep.subr.bf16.mxu0 0
    %3366 = vmatpush1.bf16.msra.mxu0 %v3076
    %3367 = vmatprep.subr.bf16.mxu0 0
    %3368 = vmatpush2.bf16.msra.mxu0 0
    %3369 = vmatprep.subr.bf16.mxu0 0
    %3370 = vmatpush2.bf16.msra.mxu0 0
    %3371 = vmatprep.subr.bf16.mxu0 0
    %3372 = vmatpush2.bf16.msra.mxu0 0
    %3373 = vmatprep.subr.bf16.mxu0 0
    %3374 = vmatpush2.bf16.msra.mxu0 0
    %3375 = vmatprep.subr.bf16.mxu0 0
    %3376 = vmatpush2.bf16.msra.mxu0 0
    %3377 = vmatprep.subr.bf16.mxu0 0
    %3378 = vmatpush2.bf16.msra.mxu0 0
    %3379 = vmatprep.subr.bf16.mxu0 0
    %3380 = vmatpush2.bf16.msra.mxu0 0
    %3381 = vmatprep.subr.bf16.mxu0 0
    %3382 = vmatpush2.bf16.msra.mxu0 0
    %3383 = vmatprep.mubr.bf16.mxu0 0
    %3384 = vmatmul.mubr.bf16.gmra.mxu0 %v3340
    %v3385 = vpop.f32.mrf.mxu0
    %v3386 = vadd.f32 0.0, %v3385
    %v3387 = vpop.f32.mrf.mxu0
    %v3388 = vpop.f32.mrf.mxu0
    %v3389 = vadd.f32 0.0, %v3388
    %v3390 = vpop.f32.mrf.mxu0
    %3391 = vmatprep.mubr.bf16.mxu0 0
    %3392 = vmatmul.mubr.bf16.gmra.mxu0 %v3343
    %v3393 = vpop.f32.mrf.mxu0
    %v3394 = vadd.f32 0.0, %v3393
    %v3395 = vpop.f32.mrf.mxu0
    %v3396 = vpop.f32.mrf.mxu0
    %v3397 = vadd.f32 0.0, %v3396
    %v3398 = vpop.f32.mrf.mxu0
    %3399 = vmatprep.mubr.bf16.mxu0 0
    %3400 = vmatmul.mubr.bf16.gmra.mxu0 %v3346
    %v3401 = vpop.f32.mrf.mxu0
    %v3402 = vadd.f32 0.0, %v3401
    %v3403 = vpop.f32.mrf.mxu0
    %v3404 = vpop.f32.mrf.mxu0
    %v3405 = vadd.f32 0.0, %v3404
    %v3406 = vpop.f32.mrf.mxu0
    %3407 = vmatprep.mubr.bf16.mxu0 0
    %3408 = vmatmul.mubr.bf16.gmra.mxu0 %v3349
    %v3409 = vpop.f32.mrf.mxu0
    %v3410 = vadd.f32 0.0, %v3409
    %v3411 = vpop.f32.mrf.mxu0
    %v3412 = vpop.f32.mrf.mxu0
    %v3413 = vadd.f32 0.0, %v3412
    %v3414 = vpop.f32.mrf.mxu0
    %3415 = vdwg.mxu0
    %v3416 = vadd.f32 %v3280, %v3386
    %v3417 = vadd.f32 %v3283, %v3389
    %v3418 = vadd.f32 %v3288, %v3394
    %v3419 = vadd.f32 %v3291, %v3397
    %v3420 = vadd.f32 %v3296, %v3402
    %v3421 = vadd.f32 %v3299, %v3405
    %v3422 = vadd.f32 %v3304, %v3410
    %v3423 = vadd.f32 %v3307, %v3413
    %s3424 = scalar_lea.vmem [#allocation11], 96
    %v3425 = vld [vmem:[%s3424] sm:$0xf]
    %v3426 = vld [vmem:[%s3424 + $0x4] sm:$0xf]
    %v3427 = vld [vmem:[%s3424 + $0x8] sm:$0xf]
    %v3428 = vld [vmem:[%s3424 + $0xc] sm:$0xf]
    %v3429 = vld [vmem:[%s3424 + $0x10] sm:$0xf]
    %v3430 = vld [vmem:[%s3424 + $0x14] sm:$0xf]
    %v3431 = vld [vmem:[%s3424 + $0x18] sm:$0xf]
    %v3432 = vld [vmem:[%s3424 + $0x1c] sm:$0xf]
    %v3441 = vunpack.c.l.b16 %v3425
    %v3442 = vunpack.c.l.b16 %v3426
    %v3443 = vunpack.c.l.b16 %v3427
    %v3444 = vunpack.c.l.b16 %v3428
    %v3445 = vunpack.c.l.b16 %v3429
    %v3446 = vunpack.c.l.b16 %v3430
    %v3447 = vunpack.c.l.b16 %v3431
    %v3448 = vunpack.c.l.b16 %v3432
    %v3449 = vpack.c.b16 %v3442, %v3441
    %v3450 = vpack.c.b16 %v3444, %v3443
    %v3451 = vpack.c.b16 %v3446, %v3445
    %v3452 = vpack.c.b16 %v3448, %v3447
    %3457 = vrot.lane.b32.xlu0 %v3076, 64
    %v3458 = vpop.permute.xlu0 %3457
    %3459 = vrot.lane.b32.xlu0 %v3078, 64
    %v3460 = vpop.permute.xlu0 %3459
    %3461 = vrot.lane.b32.xlu0 %v3080, 64
    %v3462 = vpop.permute.xlu0 %3461
    %3463 = vrot.lane.b32.xlu0 %v3082, 64
    %v3464 = vpop.permute.xlu0 %3463
    %v3470 = vsel %vm242, %v3449, 0
    %v3473 = vsel %vm242, %v3450, 0
    %v3476 = vsel %vm242, %v3451, 0
    %v3479 = vsel %vm242, %v3452, 0
    %3481 = vmatprep.subr.bf16.mxu0 0
    %3482 = vmatpush1.bf16.msra.mxu0 0
    %3483 = vmatprep.subr.bf16.mxu0 0
    %3484 = vmatpush1.bf16.msra.mxu0 0
    %3485 = vmatprep.subr.bf16.mxu0 0
    %3486 = vmatpush1.bf16.msra.mxu0 0
    %3487 = vmatprep.subr.bf16.mxu0 0
    %3488 = vmatpush1.bf16.msra.mxu0 0
    %3489 = vmatprep.subr.bf16.mxu0 0
    %3490 = vmatpush1.bf16.msra.mxu0 %v3464
    %3491 = vmatprep.subr.bf16.mxu0 0
    %3492 = vmatpush1.bf16.msra.mxu0 %v3462
    %3493 = vmatprep.subr.bf16.mxu0 0
    %3494 = vmatpush1.bf16.msra.mxu0 %v3460
    %3495 = vmatprep.subr.bf16.mxu0 0
    %3496 = vmatpush1.bf16.msra.mxu0 %v3458
    %3497 = vmatprep.subr.bf16.mxu0 0
    %3498 = vmatpush2.bf16.msra.mxu0 0
    %3499 = vmatprep.subr.bf16.mxu0 0
    %3500 = vmatpush2.bf16.msra.mxu0 0
    %3501 = vmatprep.subr.bf16.mxu0 0
    %3502 = vmatpush2.bf16.msra.mxu0 0
    %3503 = vmatprep.subr.bf16.mxu0 0
    %3504 = vmatpush2.bf16.msra.mxu0 0
    %3505 = vmatprep.subr.bf16.mxu0 0
    %3506 = vmatpush2.bf16.msra.mxu0 0
    %3507 = vmatprep.subr.bf16.mxu0 0
    %3508 = vmatpush2.bf16.msra.mxu0 0
    %3509 = vmatprep.subr.bf16.mxu0 0
    %3510 = vmatpush2.bf16.msra.mxu0 0
    %3511 = vmatprep.subr.bf16.mxu0 0
    %3512 = vmatpush2.bf16.msra.mxu0 0
    %3513 = vmatprep.mubr.bf16.mxu0 0
    %3514 = vmatmul.mubr.bf16.gmra.mxu0 %v3470
    %v3515 = vpop.f32.mrf.mxu0
    %v3516 = vadd.f32 0.0, %v3515
    %v3517 = vpop.f32.mrf.mxu0
    %v3518 = vpop.f32.mrf.mxu0
    %v3519 = vadd.f32 0.0, %v3518
    %v3520 = vpop.f32.mrf.mxu0
    %3521 = vmatprep.mubr.bf16.mxu0 0
    %3522 = vmatmul.mubr.bf16.gmra.mxu0 %v3473
    %v3523 = vpop.f32.mrf.mxu0
    %v3524 = vadd.f32 0.0, %v3523
    %v3525 = vpop.f32.mrf.mxu0
    %v3526 = vpop.f32.mrf.mxu0
    %v3527 = vadd.f32 0.0, %v3526
    %v3528 = vpop.f32.mrf.mxu0
    %3529 = vmatprep.mubr.bf16.mxu0 0
    %3530 = vmatmul.mubr.bf16.gmra.mxu0 %v3476
    %v3531 = vpop.f32.mrf.mxu0
    %v3532 = vadd.f32 0.0, %v3531
    %v3533 = vpop.f32.mrf.mxu0
    %v3534 = vpop.f32.mrf.mxu0
    %v3535 = vadd.f32 0.0, %v3534
    %v3536 = vpop.f32.mrf.mxu0
    %3537 = vmatprep.mubr.bf16.mxu0 0
    %3538 = vmatmul.mubr.bf16.gmra.mxu0 %v3479
    %v3539 = vpop.f32.mrf.mxu0
    %v3540 = vadd.f32 0.0, %v3539
    %v3541 = vpop.f32.mrf.mxu0
    %v3542 = vpop.f32.mrf.mxu0
    %v3543 = vadd.f32 0.0, %v3542
    %v3544 = vpop.f32.mrf.mxu0
    %3545 = vdwg.mxu0
    %v3546 = vadd.f32 %v3416, %v3516
    %v3547 = vadd.f32 %v3417, %v3519
    %v3548 = vadd.f32 %v3418, %v3524
    %v3549 = vadd.f32 %v3419, %v3527
    %v3550 = vadd.f32 %v3420, %v3532
    %v3551 = vadd.f32 %v3421, %v3535
    %v3552 = vadd.f32 %v3422, %v3540
    %v3553 = vadd.f32 %v3423, %v3543
    %v3554 = vld [vmem:[#allocation9] sm:$0x7]
    %v3555 = vlaneseq
    %v3556 = vshrl.u32 %v3555, 7
    %v3557 = vsub.s32 0, %v3556
    %v3558 = vrot.slane %v3554, %v3557
    %v3559 = vadd.f32 %v3546, %v3558
    %v3560 = vadd.f32 %v3547, %v3558
    %v3561 = vadd.f32 %v3548, %v3558
    %v3562 = vadd.f32 %v3549, %v3558
    %v3563 = vadd.f32 %v3550, %v3558
    %v3564 = vadd.f32 %v3551, %v3558
    %v3565 = vadd.f32 %v3552, %v3558
    %v3566 = vadd.f32 %v3553, %v3558
    %vm3567 = vcmp.gt.f32.partialorder %v3559, 0.0
    %vm3568 = vcmp.gt.f32.partialorder %v3560, 0.0
    %vm3569 = vcmp.gt.f32.partialorder %v3561, 0.0
    %vm3570 = vcmp.gt.f32.partialorder %v3562, 0.0
    %vm3571 = vcmp.gt.f32.partialorder %v3563, 0.0
    %vm3572 = vcmp.gt.f32.partialorder %v3564, 0.0
    %vm3573 = vcmp.gt.f32.partialorder %v3565, 0.0
    %vm3574 = vcmp.gt.f32.partialorder %v3566, 0.0
    %v3575 = vmul.f32 %v3559, 0.2
    %v3576 = vmul.f32 %v3560, 0.2
    %v3577 = vmul.f32 %v3561, 0.2
    %v3578 = vmul.f32 %v3562, 0.2
    %v3579 = vmul.f32 %v3563, 0.2
    %v3580 = vmul.f32 %v3564, 0.2
    %v3581 = vmul.f32 %v3565, 0.2
    %v3582 = vmul.f32 %v3566, 0.2
    %v3583 = vsel %vm3567, %v3559, %v3575
    %v3584 = vsel %vm3568, %v3560, %v3576
    %v3585 = vsel %vm3569, %v3561, %v3577
    %v3586 = vsel %vm3570, %v3562, %v3578
    %v3587 = vsel %vm3571, %v3563, %v3579
    %v3588 = vsel %vm3572, %v3564, %v3580
    %v3589 = vsel %vm3573, %v3565, %v3581
    %v3590 = vsel %vm3574, %v3566, %v3582
    %v3591 = vlaneseq
    %v3592 = vshrl.u32 %v3591, 7
    %v3593 = vsub.s32 1, %v3592
    %v3594 = vrot.slane %v3554, %v3593
    %v3595 = vmul.f32 %v3583, %v3594
    %v3596 = vmul.f32 %v3584, %v3594
    %v3597 = vmul.f32 %v3585, %v3594
    %v3598 = vmul.f32 %v3586, %v3594
    %v3599 = vmul.f32 %v3587, %v3594
    %v3600 = vmul.f32 %v3588, %v3594
    %v3601 = vmul.f32 %v3589, %v3594
    %v3602 = vmul.f32 %v3590, %v3594
    %v3603 = vlaneseq
    %v3604 = vshrl.u32 %v3603, 7
    %v3605 = vsub.s32 2, %v3604
    %v3606 = vrot.slane %v3554, %v3605
    %v3607 = vadd.f32 %v3595, %v3606
    %v3608 = vadd.f32 %v3596, %v3606
    %v3609 = vadd.f32 %v3597, %v3606
    %v3610 = vadd.f32 %v3598, %v3606
    %v3611 = vadd.f32 %v3599, %v3606
    %v3612 = vadd.f32 %v3600, %v3606
    %v3613 = vadd.f32 %v3601, %v3606
    %v3614 = vadd.f32 %v3602, %v3606
    %v3615 = vadd.f32 %v3607, %v2380
    %v3616 = vadd.f32 %v3608, %v2381
    %v3617 = vadd.f32 %v3609, %v2382
    %v3618 = vadd.f32 %v3610, %v2383
    %v3619 = vadd.f32 %v3611, %v2384
    %v3620 = vadd.f32 %v3612, %v2385
    %v3621 = vadd.f32 %v3613, %v2386
    %v3622 = vadd.f32 %v3614, %v2387
    %v3623 = vpack.c.bf16 %v3616, %v3615
    %v3624 = vpack.c.bf16 %v3618, %v3617
    %v3625 = vpack.c.bf16 %v3620, %v3619
    %v3626 = vpack.c.bf16 %v3622, %v3621
    %s3627 = scalar_lea.vmem [#allocation8], 64
    %v3628 = vld [vmem:[%s3627] sm:$0xff]
    %v3629 = vld [vmem:[%s3627 + $0x8] sm:$0xff]
    %v3630 = vld [vmem:[%s3627 + $0x10] sm:$0xff]
    %v3631 = vld [vmem:[%s3627 + $0x18] sm:$0xff]
    %v3632 = vld [vmem:[%s3627 + $0x20] sm:$0xff]
    %v3633 = vld [vmem:[%s3627 + $0x28] sm:$0xff]
    %v3634 = vld [vmem:[%s3627 + $0x30] sm:$0xff]
    %v3635 = vld [vmem:[%s3627 + $0x38] sm:$0xff]
    %v3644 = vunpack.c.l.b16 %v3628
    %v3645 = vunpack.c.h.b16 %v3628
    %v3646 = vunpack.c.l.b16 %v3629
    %v3647 = vunpack.c.h.b16 %v3629
    %v3648 = vunpack.c.l.b16 %v3630
    %v3649 = vunpack.c.h.b16 %v3630
    %v3650 = vunpack.c.l.b16 %v3631
    %v3651 = vunpack.c.h.b16 %v3631
    %v3652 = vunpack.c.l.b16 %v3632
    %v3653 = vunpack.c.h.b16 %v3632
    %v3654 = vunpack.c.l.b16 %v3633
    %v3655 = vunpack.c.h.b16 %v3633
    %v3656 = vunpack.c.l.b16 %v3634
    %v3657 = vunpack.c.h.b16 %v3634
    %v3658 = vunpack.c.l.b16 %v3635
    %v3659 = vunpack.c.h.b16 %v3635
    %v3660 = vpack.c.b16 %v3646, %v3644
    %v3661 = vpack.c.b16 %v3647, %v3645
    %v3662 = vpack.c.b16 %v3650, %v3648
    %v3663 = vpack.c.b16 %v3651, %v3649
    %v3664 = vpack.c.b16 %v3654, %v3652
    %v3665 = vpack.c.b16 %v3655, %v3653
    %v3666 = vpack.c.b16 %v3658, %v3656
    %v3667 = vpack.c.b16 %v3659, %v3657
    %v3677 = vsel %vm242, %v3623, 0
    %v3680 = vsel %vm242, %v3624, 0
    %v3683 = vsel %vm242, %v3625, 0
    %v3686 = vsel %vm242, %v3626, 0
    %3688 = vmatprep.subr.bf16.mxu0 0
    %3689 = vmatpush1.bf16.msra.mxu0 0
    %3690 = vmatprep.subr.bf16.mxu0 0
    %3691 = vmatpush1.bf16.msra.mxu0 0
    %3692 = vmatprep.subr.bf16.mxu0 0
    %3693 = vmatpush1.bf16.msra.mxu0 0
    %3694 = vmatprep.subr.bf16.mxu0 0
    %3695 = vmatpush1.bf16.msra.mxu0 0
    %3696 = vmatprep.subr.bf16.mxu0 %v3667
    %3697 = vmatpush1.bf16.msra.mxu0 %v3666
    %3698 = vmatprep.subr.bf16.mxu0 %v3665
    %3699 = vmatpush1.bf16.msra.mxu0 %v3664
    %3700 = vmatprep.subr.bf16.mxu0 %v3663
    %3701 = vmatpush1.bf16.msra.mxu0 %v3662
    %3702 = vmatprep.subr.bf16.mxu0 %v3661
    %3703 = vmatpush1.bf16.msra.mxu0 %v3660
    %3704 = vmatprep.subr.bf16.mxu0 0
    %3705 = vmatpush2.bf16.msra.mxu0 0
    %3706 = vmatprep.subr.bf16.mxu0 0
    %3707 = vmatpush2.bf16.msra.mxu0 0
    %3708 = vmatprep.subr.bf16.mxu0 0
    %3709 = vmatpush2.bf16.msra.mxu0 0
    %3710 = vmatprep.subr.bf16.mxu0 0
    %3711 = vmatpush2.bf16.msra.mxu0 0
    %3712 = vmatprep.subr.bf16.mxu0 0
    %3713 = vmatpush2.bf16.msra.mxu0 0
    %3714 = vmatprep.subr.bf16.mxu0 0
    %3715 = vmatpush2.bf16.msra.mxu0 0
    %3716 = vmatprep.subr.bf16.mxu0 0
    %3717 = vmatpush2.bf16.msra.mxu0 0
    %3718 = vmatprep.subr.bf16.mxu0 0
    %3719 = vmatpush2.bf16.msra.mxu0 0
    %3720 = vmatprep.mubr.bf16.mxu0 0
    %3721 = vmatmul.mubr.bf16.gmra.mxu0 %v3677
    %v3722 = vpop.f32.mrf.mxu0
    %v3723 = vadd.f32 0.0, %v3722
    %v3724 = vpop.f32.mrf.mxu0
    %v3725 = vadd.f32 0.0, %v3724
    %v3726 = vpop.f32.mrf.mxu0
    %v3727 = vadd.f32 0.0, %v3726
    %v3728 = vpop.f32.mrf.mxu0
    %v3729 = vadd.f32 0.0, %v3728
    %3730 = vmatprep.mubr.bf16.mxu0 0
    %3731 = vmatmul.mubr.bf16.gmra.mxu0 %v3680
    %v3732 = vpop.f32.mrf.mxu0
    %v3733 = vadd.f32 0.0, %v3732
    %v3734 = vpop.f32.mrf.mxu0
    %v3735 = vadd.f32 0.0, %v3734
    %v3736 = vpop.f32.mrf.mxu0
    %v3737 = vadd.f32 0.0, %v3736
    %v3738 = vpop.f32.mrf.mxu0
    %v3739 = vadd.f32 0.0, %v3738
    %3740 = vmatprep.mubr.bf16.mxu0 0
    %3741 = vmatmul.mubr.bf16.gmra.mxu0 %v3683
    %v3742 = vpop.f32.mrf.mxu0
    %v3743 = vadd.f32 0.0, %v3742
    %v3744 = vpop.f32.mrf.mxu0
    %v3745 = vadd.f32 0.0, %v3744
    %v3746 = vpop.f32.mrf.mxu0
    %v3747 = vadd.f32 0.0, %v3746
    %v3748 = vpop.f32.mrf.mxu0
    %v3749 = vadd.f32 0.0, %v3748
    %3750 = vmatprep.mubr.bf16.mxu0 0
    %3751 = vmatmul.mubr.bf16.gmra.mxu0 %v3686
    %v3752 = vpop.f32.mrf.mxu0
    %v3753 = vadd.f32 0.0, %v3752
    %v3754 = vpop.f32.mrf.mxu0
    %v3755 = vadd.f32 0.0, %v3754
    %v3756 = vpop.f32.mrf.mxu0
    %v3757 = vadd.f32 0.0, %v3756
    %v3758 = vpop.f32.mrf.mxu0
    %v3759 = vadd.f32 0.0, %v3758
    %3760 = vdwg.mxu0
    %v3761 = vpack.c.bf16 %v3727, %v3723
    %v3762 = vpack.c.bf16 %v3729, %v3725
    %v3763 = vpack.c.bf16 %v3737, %v3733
    %v3764 = vpack.c.bf16 %v3739, %v3735
    %v3765 = vpack.c.bf16 %v3747, %v3743
    %v3766 = vpack.c.bf16 %v3749, %v3745
    %v3767 = vpack.c.bf16 %v3757, %v3753
    %v3768 = vpack.c.bf16 %v3759, %v3755
    %s3769 = scalar_lea.vmem [#allocation11], 128
    %v3770 = vld [vmem:[%s3769] sm:$0xf]
    %v3771 = vld [vmem:[%s3769 + $0x4] sm:$0xf]
    %v3772 = vld [vmem:[%s3769 + $0x8] sm:$0xf]
    %v3773 = vld [vmem:[%s3769 + $0xc] sm:$0xf]
    %v3774 = vld [vmem:[%s3769 + $0x10] sm:$0xf]
    %v3775 = vld [vmem:[%s3769 + $0x14] sm:$0xf]
    %v3776 = vld [vmem:[%s3769 + $0x18] sm:$0xf]
    %v3777 = vld [vmem:[%s3769 + $0x1c] sm:$0xf]
    %s3778 = scalar_lea.vmem [#allocation11], 160
    %v3779 = vld [vmem:[%s3778] sm:$0xf]
    %v3780 = vld [vmem:[%s3778 + $0x4] sm:$0xf]
    %v3781 = vld [vmem:[%s3778 + $0x8] sm:$0xf]
    %v3782 = vld [vmem:[%s3778 + $0xc] sm:$0xf]
    %v3783 = vld [vmem:[%s3778 + $0x10] sm:$0xf]
    %v3784 = vld [vmem:[%s3778 + $0x14] sm:$0xf]
    %v3785 = vld [vmem:[%s3778 + $0x18] sm:$0xf]
    %v3786 = vld [vmem:[%s3778 + $0x1c] sm:$0xf]
    %v3795 = vunpack.c.l.b16 %v3779
    %v3796 = vunpack.c.l.b16 %v3780
    %v3797 = vunpack.c.l.b16 %v3781
    %v3798 = vunpack.c.l.b16 %v3782
    %v3799 = vunpack.c.l.b16 %v3783
    %v3800 = vunpack.c.l.b16 %v3784
    %v3801 = vunpack.c.l.b16 %v3785
    %v3802 = vunpack.c.l.b16 %v3786
    %v3803 = vpack.c.b16 %v3796, %v3795
    %v3804 = vpack.c.b16 %v3798, %v3797
    %v3805 = vpack.c.b16 %v3800, %v3799
    %v3806 = vpack.c.b16 %v3802, %v3801
    %3811 = vrot.lane.b32.xlu0 %v3761, 64
    %v3812 = vpop.permute.xlu0 %3811
    %3813 = vrot.lane.b32.xlu0 %v3763, 64
    %v3814 = vpop.permute.xlu0 %3813
    %3815 = vrot.lane.b32.xlu0 %v3765, 64
    %v3816 = vpop.permute.xlu0 %3815
    %3817 = vrot.lane.b32.xlu0 %v3767, 64
    %v3818 = vpop.permute.xlu0 %3817
    %v3824 = vsel %vm242, %v3803, 0
    %v3827 = vsel %vm242, %v3804, 0
    %v3830 = vsel %vm242, %v3805, 0
    %v3833 = vsel %vm242, %v3806, 0
    %3835 = vmatprep.subr.bf16.mxu0 0
    %3836 = vmatpush1.bf16.msra.mxu0 0
    %3837 = vmatprep.subr.bf16.mxu0 0
    %3838 = vmatpush1.bf16.msra.mxu0 0
    %3839 = vmatprep.subr.bf16.mxu0 0
    %3840 = vmatpush1.bf16.msra.mxu0 0
    %3841 = vmatprep.subr.bf16.mxu0 0
    %3842 = vmatpush1.bf16.msra.mxu0 0
    %3843 = vmatprep.subr.bf16.mxu0 0
    %3844 = vmatpush1.bf16.msra.mxu0 %v3818
    %3845 = vmatprep.subr.bf16.mxu0 0
    %3846 = vmatpush1.bf16.msra.mxu0 %v3816
    %3847 = vmatprep.subr.bf16.mxu0 0
    %3848 = vmatpush1.bf16.msra.mxu0 %v3814
    %3849 = vmatprep.subr.bf16.mxu0 0
    %3850 = vmatpush1.bf16.msra.mxu0 %v3812
    %3851 = vmatprep.subr.bf16.mxu0 0
    %3852 = vmatpush2.bf16.msra.mxu0 0
    %3853 = vmatprep.subr.bf16.mxu0 0
    %3854 = vmatpush2.bf16.msra.mxu0 0
    %3855 = vmatprep.subr.bf16.mxu0 0
    %3856 = vmatpush2.bf16.msra.mxu0 0
    %3857 = vmatprep.subr.bf16.mxu0 0
    %3858 = vmatpush2.bf16.msra.mxu0 0
    %3859 = vmatprep.subr.bf16.mxu0 0
    %3860 = vmatpush2.bf16.msra.mxu0 0
    %3861 = vmatprep.subr.bf16.mxu0 0
    %3862 = vmatpush2.bf16.msra.mxu0 0
    %3863 = vmatprep.subr.bf16.mxu0 0
    %3864 = vmatpush2.bf16.msra.mxu0 0
    %3865 = vmatprep.subr.bf16.mxu0 0
    %3866 = vmatpush2.bf16.msra.mxu0 0
    %3867 = vmatprep.mubr.bf16.mxu0 0
    %3868 = vmatmul.mubr.bf16.gmra.mxu0 %v3824
    %v3869 = vpop.f32.mrf.mxu0
    %v3870 = vadd.f32 0.0, %v3869
    %v3871 = vpop.f32.mrf.mxu0
    %v3872 = vpop.f32.mrf.mxu0
    %v3873 = vadd.f32 0.0, %v3872
    %v3874 = vpop.f32.mrf.mxu0
    %3875 = vmatprep.mubr.bf16.mxu0 0
    %3876 = vmatmul.mubr.bf16.gmra.mxu0 %v3827
    %v3877 = vpop.f32.mrf.mxu0
    %v3878 = vadd.f32 0.0, %v3877
    %v3879 = vpop.f32.mrf.mxu0
    %v3880 = vpop.f32.mrf.mxu0
    %v3881 = vadd.f32 0.0, %v3880
    %v3882 = vpop.f32.mrf.mxu0
    %3883 = vmatprep.mubr.bf16.mxu0 0
    %3884 = vmatmul.mubr.bf16.gmra.mxu0 %v3830
    %v3885 = vpop.f32.mrf.mxu0
    %v3886 = vadd.f32 0.0, %v3885
    %v3887 = vpop.f32.mrf.mxu0
    %v3888 = vpop.f32.mrf.mxu0
    %v3889 = vadd.f32 0.0, %v3888
    %v3890 = vpop.f32.mrf.mxu0
    %3891 = vmatprep.mubr.bf16.mxu0 0
    %3892 = vmatmul.mubr.bf16.gmra.mxu0 %v3833
    %v3893 = vpop.f32.mrf.mxu0
    %v3894 = vadd.f32 0.0, %v3893
    %v3895 = vpop.f32.mrf.mxu0
    %v3896 = vpop.f32.mrf.mxu0
    %v3897 = vadd.f32 0.0, %v3896
    %v3898 = vpop.f32.mrf.mxu0
    %3899 = vdwg.mxu0
    %v3908 = vunpack.c.l.b16 %v3770
    %v3909 = vunpack.c.l.b16 %v3771
    %v3910 = vunpack.c.l.b16 %v3772
    %v3911 = vunpack.c.l.b16 %v3773
    %v3912 = vunpack.c.l.b16 %v3774
    %v3913 = vunpack.c.l.b16 %v3775
    %v3914 = vunpack.c.l.b16 %v3776
    %v3915 = vunpack.c.l.b16 %v3777
    %v3916 = vpack.c.b16 %v3909, %v3908
    %v3917 = vpack.c.b16 %v3911, %v3910
    %v3918 = vpack.c.b16 %v3913, %v3912
    %v3919 = vpack.c.b16 %v3915, %v3914
    %v3921 = vsel %vm242, %v3916, 0
    %v3924 = vsel %vm242, %v3917, 0
    %v3927 = vsel %vm242, %v3918, 0
    %v3930 = vsel %vm242, %v3919, 0
    %3932 = vmatprep.subr.bf16.mxu0 0
    %3933 = vmatpush1.bf16.msra.mxu0 0
    %3934 = vmatprep.subr.bf16.mxu0 0
    %3935 = vmatpush1.bf16.msra.mxu0 0
    %3936 = vmatprep.subr.bf16.mxu0 0
    %3937 = vmatpush1.bf16.msra.mxu0 0
    %3938 = vmatprep.subr.bf16.mxu0 0
    %3939 = vmatpush1.bf16.msra.mxu0 0
    %3940 = vmatprep.subr.bf16.mxu0 0
    %3941 = vmatpush1.bf16.msra.mxu0 %v3767
    %3942 = vmatprep.subr.bf16.mxu0 0
    %3943 = vmatpush1.bf16.msra.mxu0 %v3765
    %3944 = vmatprep.subr.bf16.mxu0 0
    %3945 = vmatpush1.bf16.msra.mxu0 %v3763
    %3946 = vmatprep.subr.bf16.mxu0 0
    %3947 = vmatpush1.bf16.msra.mxu0 %v3761
    %3948 = vmatprep.subr.bf16.mxu0 0
    %3949 = vmatpush2.bf16.msra.mxu0 0
    %3950 = vmatprep.subr.bf16.mxu0 0
    %3951 = vmatpush2.bf16.msra.mxu0 0
    %3952 = vmatprep.subr.bf16.mxu0 0
    %3953 = vmatpush2.bf16.msra.mxu0 0
    %3954 = vmatprep.subr.bf16.mxu0 0
    %3955 = vmatpush2.bf16.msra.mxu0 0
    %3956 = vmatprep.subr.bf16.mxu0 0
    %3957 = vmatpush2.bf16.msra.mxu0 0
    %3958 = vmatprep.subr.bf16.mxu0 0
    %3959 = vmatpush2.bf16.msra.mxu0 0
    %3960 = vmatprep.subr.bf16.mxu0 0
    %3961 = vmatpush2.bf16.msra.mxu0 0
    %3962 = vmatprep.subr.bf16.mxu0 0
    %3963 = vmatpush2.bf16.msra.mxu0 0
    %3964 = vmatprep.mubr.bf16.mxu0 0
    %3965 = vmatmul.mubr.bf16.gmra.mxu0 %v3921
    %v3966 = vpop.f32.mrf.mxu0
    %v3967 = vadd.f32 %v3870, %v3966
    %v3968 = vpop.f32.mrf.mxu0
    %v3969 = vpop.f32.mrf.mxu0
    %v3970 = vadd.f32 %v3873, %v3969
    %v3971 = vpop.f32.mrf.mxu0
    %3972 = vmatprep.mubr.bf16.mxu0 0
    %3973 = vmatmul.mubr.bf16.gmra.mxu0 %v3924
    %v3974 = vpop.f32.mrf.mxu0
    %v3975 = vadd.f32 %v3878, %v3974
    %v3976 = vpop.f32.mrf.mxu0
    %v3977 = vpop.f32.mrf.mxu0
    %v3978 = vadd.f32 %v3881, %v3977
    %v3979 = vpop.f32.mrf.mxu0
    %3980 = vmatprep.mubr.bf16.mxu0 0
    %3981 = vmatmul.mubr.bf16.gmra.mxu0 %v3927
    %v3982 = vpop.f32.mrf.mxu0
    %v3983 = vadd.f32 %v3886, %v3982
    %v3984 = vpop.f32.mrf.mxu0
    %v3985 = vpop.f32.mrf.mxu0
    %v3986 = vadd.f32 %v3889, %v3985
    %v3987 = vpop.f32.mrf.mxu0
    %3988 = vmatprep.mubr.bf16.mxu0 0
    %3989 = vmatmul.mubr.bf16.gmra.mxu0 %v3930
    %v3990 = vpop.f32.mrf.mxu0
    %v3991 = vadd.f32 %v3894, %v3990
    %v3992 = vpop.f32.mrf.mxu0
    %v3993 = vpop.f32.mrf.mxu0
    %v3994 = vadd.f32 %v3897, %v3993
    %v3995 = vpop.f32.mrf.mxu0
    %3996 = vdwg.mxu0
    %s3997 = scalar_lea.vmem [#allocation11], 192
    %v3998 = vld [vmem:[%s3997] sm:$0xf]
    %v3999 = vld [vmem:[%s3997 + $0x4] sm:$0xf]
    %v4000 = vld [vmem:[%s3997 + $0x8] sm:$0xf]
    %v4001 = vld [vmem:[%s3997 + $0xc] sm:$0xf]
    %v4002 = vld [vmem:[%s3997 + $0x10] sm:$0xf]
    %v4003 = vld [vmem:[%s3997 + $0x14] sm:$0xf]
    %v4004 = vld [vmem:[%s3997 + $0x18] sm:$0xf]
    %v4005 = vld [vmem:[%s3997 + $0x1c] sm:$0xf]
    %v4014 = vunpack.c.l.b16 %v3998
    %v4015 = vunpack.c.l.b16 %v3999
    %v4016 = vunpack.c.l.b16 %v4000
    %v4017 = vunpack.c.l.b16 %v4001
    %v4018 = vunpack.c.l.b16 %v4002
    %v4019 = vunpack.c.l.b16 %v4003
    %v4020 = vunpack.c.l.b16 %v4004
    %v4021 = vunpack.c.l.b16 %v4005
    %v4022 = vpack.c.b16 %v4015, %v4014
    %v4023 = vpack.c.b16 %v4017, %v4016
    %v4024 = vpack.c.b16 %v4019, %v4018
    %v4025 = vpack.c.b16 %v4021, %v4020
    %v4027 = vsel %vm242, %v4022, 0
    %v4030 = vsel %vm242, %v4023, 0
    %v4033 = vsel %vm242, %v4024, 0
    %v4036 = vsel %vm242, %v4025, 0
    %4038 = vmatprep.subr.bf16.mxu0 0
    %4039 = vmatpush1.bf16.msra.mxu0 0
    %4040 = vmatprep.subr.bf16.mxu0 0
    %4041 = vmatpush1.bf16.msra.mxu0 0
    %4042 = vmatprep.subr.bf16.mxu0 0
    %4043 = vmatpush1.bf16.msra.mxu0 0
    %4044 = vmatprep.subr.bf16.mxu0 0
    %4045 = vmatpush1.bf16.msra.mxu0 0
    %4046 = vmatprep.subr.bf16.mxu0 0
    %4047 = vmatpush1.bf16.msra.mxu0 %v3768
    %4048 = vmatprep.subr.bf16.mxu0 0
    %4049 = vmatpush1.bf16.msra.mxu0 %v3766
    %4050 = vmatprep.subr.bf16.mxu0 0
    %4051 = vmatpush1.bf16.msra.mxu0 %v3764
    %4052 = vmatprep.subr.bf16.mxu0 0
    %4053 = vmatpush1.bf16.msra.mxu0 %v3762
    %4054 = vmatprep.subr.bf16.mxu0 0
    %4055 = vmatpush2.bf16.msra.mxu0 0
    %4056 = vmatprep.subr.bf16.mxu0 0
    %4057 = vmatpush2.bf16.msra.mxu0 0
    %4058 = vmatprep.subr.bf16.mxu0 0
    %4059 = vmatpush2.bf16.msra.mxu0 0
    %4060 = vmatprep.subr.bf16.mxu0 0
    %4061 = vmatpush2.bf16.msra.mxu0 0
    %4062 = vmatprep.subr.bf16.mxu0 0
    %4063 = vmatpush2.bf16.msra.mxu0 0
    %4064 = vmatprep.subr.bf16.mxu0 0
    %4065 = vmatpush2.bf16.msra.mxu0 0
    %4066 = vmatprep.subr.bf16.mxu0 0
    %4067 = vmatpush2.bf16.msra.mxu0 0
    %4068 = vmatprep.subr.bf16.mxu0 0
    %4069 = vmatpush2.bf16.msra.mxu0 0
    %4070 = vmatprep.mubr.bf16.mxu0 0
    %4071 = vmatmul.mubr.bf16.gmra.mxu0 %v4027
    %v4072 = vpop.f32.mrf.mxu0
    %v4073 = vadd.f32 0.0, %v4072
    %v4074 = vpop.f32.mrf.mxu0
    %v4075 = vpop.f32.mrf.mxu0
    %v4076 = vadd.f32 0.0, %v4075
    %v4077 = vpop.f32.mrf.mxu0
    %4078 = vmatprep.mubr.bf16.mxu0 0
    %4079 = vmatmul.mubr.bf16.gmra.mxu0 %v4030
    %v4080 = vpop.f32.mrf.mxu0
    %v4081 = vadd.f32 0.0, %v4080
    %v4082 = vpop.f32.mrf.mxu0
    %v4083 = vpop.f32.mrf.mxu0
    %v4084 = vadd.f32 0.0, %v4083
    %v4085 = vpop.f32.mrf.mxu0
    %4086 = vmatprep.mubr.bf16.mxu0 0
    %4087 = vmatmul.mubr.bf16.gmra.mxu0 %v4033
    %v4088 = vpop.f32.mrf.mxu0
    %v4089 = vadd.f32 0.0, %v4088
    %v4090 = vpop.f32.mrf.mxu0
    %v4091 = vpop.f32.mrf.mxu0
    %v4092 = vadd.f32 0.0, %v4091
    %v4093 = vpop.f32.mrf.mxu0
    %4094 = vmatprep.mubr.bf16.mxu0 0
    %4095 = vmatmul.mubr.bf16.gmra.mxu0 %v4036
    %v4096 = vpop.f32.mrf.mxu0
    %v4097 = vadd.f32 0.0, %v4096
    %v4098 = vpop.f32.mrf.mxu0
    %v4099 = vpop.f32.mrf.mxu0
    %v4100 = vadd.f32 0.0, %v4099
    %v4101 = vpop.f32.mrf.mxu0
    %4102 = vdwg.mxu0
    %v4103 = vadd.f32 %v3967, %v4073
    %v4104 = vadd.f32 %v3970, %v4076
    %v4105 = vadd.f32 %v3975, %v4081
    %v4106 = vadd.f32 %v3978, %v4084
    %v4107 = vadd.f32 %v3983, %v4089
    %v4108 = vadd.f32 %v3986, %v4092
    %v4109 = vadd.f32 %v3991, %v4097
    %v4110 = vadd.f32 %v3994, %v4100
    %s4111 = scalar_lea.vmem [#allocation11], 224
    %v4112 = vld [vmem:[%s4111] sm:$0xf]
    %v4113 = vld [vmem:[%s4111 + $0x4] sm:$0xf]
    %v4114 = vld [vmem:[%s4111 + $0x8] sm:$0xf]
    %v4115 = vld [vmem:[%s4111 + $0xc] sm:$0xf]
    %v4116 = vld [vmem:[%s4111 + $0x10] sm:$0xf]
    %v4117 = vld [vmem:[%s4111 + $0x14] sm:$0xf]
    %v4118 = vld [vmem:[%s4111 + $0x18] sm:$0xf]
    %v4119 = vld [vmem:[%s4111 + $0x1c] sm:$0xf]
    %v4128 = vunpack.c.l.b16 %v4112
    %v4129 = vunpack.c.l.b16 %v4113
    %v4130 = vunpack.c.l.b16 %v4114
    %v4131 = vunpack.c.l.b16 %v4115
    %v4132 = vunpack.c.l.b16 %v4116
    %v4133 = vunpack.c.l.b16 %v4117
    %v4134 = vunpack.c.l.b16 %v4118
    %v4135 = vunpack.c.l.b16 %v4119
    %v4136 = vpack.c.b16 %v4129, %v4128
    %v4137 = vpack.c.b16 %v4131, %v4130
    %v4138 = vpack.c.b16 %v4133, %v4132
    %v4139 = vpack.c.b16 %v4135, %v4134
    %4144 = vrot.lane.b32.xlu0 %v3762, 64
    %v4145 = vpop.permute.xlu0 %4144
    %4146 = vrot.lane.b32.xlu0 %v3764, 64
    %v4147 = vpop.permute.xlu0 %4146
    %4148 = vrot.lane.b32.xlu0 %v3766, 64
    %v4149 = vpop.permute.xlu0 %4148
    %4150 = vrot.lane.b32.xlu0 %v3768, 64
    %v4151 = vpop.permute.xlu0 %4150
    %v4157 = vsel %vm242, %v4136, 0
    %v4160 = vsel %vm242, %v4137, 0
    %v4163 = vsel %vm242, %v4138, 0
    %v4166 = vsel %vm242, %v4139, 0
    %4168 = vmatprep.subr.bf16.mxu0 0
    %4169 = vmatpush1.bf16.msra.mxu0 0
    %4170 = vmatprep.subr.bf16.mxu0 0
    %4171 = vmatpush1.bf16.msra.mxu0 0
    %4172 = vmatprep.subr.bf16.mxu0 0
    %4173 = vmatpush1.bf16.msra.mxu0 0
    %4174 = vmatprep.subr.bf16.mxu0 0
    %4175 = vmatpush1.bf16.msra.mxu0 0
    %4176 = vmatprep.subr.bf16.mxu0 0
    %4177 = vmatpush1.bf16.msra.mxu0 %v4151
    %4178 = vmatprep.subr.bf16.mxu0 0
    %4179 = vmatpush1.bf16.msra.mxu0 %v4149
    %4180 = vmatprep.subr.bf16.mxu0 0
    %4181 = vmatpush1.bf16.msra.mxu0 %v4147
    %4182 = vmatprep.subr.bf16.mxu0 0
    %4183 = vmatpush1.bf16.msra.mxu0 %v4145
    %4184 = vmatprep.subr.bf16.mxu0 0
    %4185 = vmatpush2.bf16.msra.mxu0 0
    %4186 = vmatprep.subr.bf16.mxu0 0
    %4187 = vmatpush2.bf16.msra.mxu0 0
    %4188 = vmatprep.subr.bf16.mxu0 0
    %4189 = vmatpush2.bf16.msra.mxu0 0
    %4190 = vmatprep.subr.bf16.mxu0 0
    %4191 = vmatpush2.bf16.msra.mxu0 0
    %4192 = vmatprep.subr.bf16.mxu0 0
    %4193 = vmatpush2.bf16.msra.mxu0 0
    %4194 = vmatprep.subr.bf16.mxu0 0
    %4195 = vmatpush2.bf16.msra.mxu0 0
    %4196 = vmatprep.subr.bf16.mxu0 0
    %4197 = vmatpush2.bf16.msra.mxu0 0
    %4198 = vmatprep.subr.bf16.mxu0 0
    %4199 = vmatpush2.bf16.msra.mxu0 0
    %4200 = vmatprep.mubr.bf16.mxu0 0
    %4201 = vmatmul.mubr.bf16.gmra.mxu0 %v4157
    %v4202 = vpop.f32.mrf.mxu0
    %v4203 = vadd.f32 0.0, %v4202
    %v4204 = vpop.f32.mrf.mxu0
    %v4205 = vpop.f32.mrf.mxu0
    %v4206 = vadd.f32 0.0, %v4205
    %v4207 = vpop.f32.mrf.mxu0
    %4208 = vmatprep.mubr.bf16.mxu0 0
    %4209 = vmatmul.mubr.bf16.gmra.mxu0 %v4160
    %v4210 = vpop.f32.mrf.mxu0
    %v4211 = vadd.f32 0.0, %v4210
    %v4212 = vpop.f32.mrf.mxu0
    %v4213 = vpop.f32.mrf.mxu0
    %v4214 = vadd.f32 0.0, %v4213
    %v4215 = vpop.f32.mrf.mxu0
    %4216 = vmatprep.mubr.bf16.mxu0 0
    %4217 = vmatmul.mubr.bf16.gmra.mxu0 %v4163
    %v4218 = vpop.f32.mrf.mxu0
    %v4219 = vadd.f32 0.0, %v4218
    %v4220 = vpop.f32.mrf.mxu0
    %v4221 = vpop.f32.mrf.mxu0
    %v4222 = vadd.f32 0.0, %v4221
    %v4223 = vpop.f32.mrf.mxu0
    %4224 = vmatprep.mubr.bf16.mxu0 0
    %4225 = vmatmul.mubr.bf16.gmra.mxu0 %v4166
    %v4226 = vpop.f32.mrf.mxu0
    %v4227 = vadd.f32 0.0, %v4226
    %v4228 = vpop.f32.mrf.mxu0
    %v4229 = vpop.f32.mrf.mxu0
    %v4230 = vadd.f32 0.0, %v4229
    %v4231 = vpop.f32.mrf.mxu0
    %4232 = vdwg.mxu0
    %v4233 = vadd.f32 %v4103, %v4203
    %v4234 = vadd.f32 %v4104, %v4206
    %v4235 = vadd.f32 %v4105, %v4211
    %v4236 = vadd.f32 %v4106, %v4214
    %v4237 = vadd.f32 %v4107, %v4219
    %v4238 = vadd.f32 %v4108, %v4222
    %v4239 = vadd.f32 %v4109, %v4227
    %v4240 = vadd.f32 %v4110, %v4230
    %s4241 = scalar_lea.vmem [#allocation9], 4
    %v4242 = vld [vmem:[%s4241] sm:$0x7]
    %v4243 = vlaneseq
    %v4244 = vshrl.u32 %v4243, 7
    %v4245 = vsub.s32 0, %v4244
    %v4246 = vrot.slane %v4242, %v4245
    %v4247 = vadd.f32 %v4233, %v4246
    %v4248 = vadd.f32 %v4234, %v4246
    %v4249 = vadd.f32 %v4235, %v4246
    %v4250 = vadd.f32 %v4236, %v4246
    %v4251 = vadd.f32 %v4237, %v4246
    %v4252 = vadd.f32 %v4238, %v4246
    %v4253 = vadd.f32 %v4239, %v4246
    %v4254 = vadd.f32 %v4240, %v4246
    %vm4255 = vcmp.gt.f32.partialorder %v4247, 0.0
    %vm4256 = vcmp.gt.f32.partialorder %v4248, 0.0
    %vm4257 = vcmp.gt.f32.partialorder %v4249, 0.0
    %vm4258 = vcmp.gt.f32.partialorder %v4250, 0.0
    %vm4259 = vcmp.gt.f32.partialorder %v4251, 0.0
    %vm4260 = vcmp.gt.f32.partialorder %v4252, 0.0
    %vm4261 = vcmp.gt.f32.partialorder %v4253, 0.0
    %vm4262 = vcmp.gt.f32.partialorder %v4254, 0.0
    %v4263 = vmul.f32 %v4247, 0.2
    %v4264 = vmul.f32 %v4248, 0.2
    %v4265 = vmul.f32 %v4249, 0.2
    %v4266 = vmul.f32 %v4250, 0.2
    %v4267 = vmul.f32 %v4251, 0.2
    %v4268 = vmul.f32 %v4252, 0.2
    %v4269 = vmul.f32 %v4253, 0.2
    %v4270 = vmul.f32 %v4254, 0.2
    %v4271 = vsel %vm4255, %v4247, %v4263
    %v4272 = vsel %vm4256, %v4248, %v4264
    %v4273 = vsel %vm4257, %v4249, %v4265
    %v4274 = vsel %vm4258, %v4250, %v4266
    %v4275 = vsel %vm4259, %v4251, %v4267
    %v4276 = vsel %vm4260, %v4252, %v4268
    %v4277 = vsel %vm4261, %v4253, %v4269
    %v4278 = vsel %vm4262, %v4254, %v4270
    %v4279 = vlaneseq
    %v4280 = vshrl.u32 %v4279, 7
    %v4281 = vsub.s32 1, %v4280
    %v4282 = vrot.slane %v4242, %v4281
    %v4283 = vmul.f32 %v4271, %v4282
    %v4284 = vmul.f32 %v4272, %v4282
    %v4285 = vmul.f32 %v4273, %v4282
    %v4286 = vmul.f32 %v4274, %v4282
    %v4287 = vmul.f32 %v4275, %v4282
    %v4288 = vmul.f32 %v4276, %v4282
    %v4289 = vmul.f32 %v4277, %v4282
    %v4290 = vmul.f32 %v4278, %v4282
    %v4291 = vlaneseq
    %v4292 = vshrl.u32 %v4291, 7
    %v4293 = vsub.s32 2, %v4292
    %v4294 = vrot.slane %v4242, %v4293
    %v4295 = vadd.f32 %v4283, %v4294
    %v4296 = vadd.f32 %v4284, %v4294
    %v4297 = vadd.f32 %v4285, %v4294
    %v4298 = vadd.f32 %v4286, %v4294
    %v4299 = vadd.f32 %v4287, %v4294
    %v4300 = vadd.f32 %v4288, %v4294
    %v4301 = vadd.f32 %v4289, %v4294
    %v4302 = vadd.f32 %v4290, %v4294
    %v4303 = vadd.f32 %v4295, %v1830
    %v4304 = vadd.f32 %v4296, %v1831
    %v4305 = vadd.f32 %v4297, %v1832
    %v4306 = vadd.f32 %v4298, %v1833
    %v4307 = vadd.f32 %v4299, %v1834
    %v4308 = vadd.f32 %v4300, %v1835
    %v4309 = vadd.f32 %v4301, %v1836
    %v4310 = vadd.f32 %v4302, %v1837
    %v4311 = vpack.c.bf16 %v4304, %v4303
    %v4312 = vpack.c.bf16 %v4306, %v4305
    %v4313 = vpack.c.bf16 %v4308, %v4307
    %v4314 = vpack.c.bf16 %v4310, %v4309
    %s4315 = scalar_lea.vmem [#allocation8], 128
    %v4316 = vld [vmem:[%s4315] sm:$0xff]
    %v4317 = vld [vmem:[%s4315 + $0x8] sm:$0xff]
    %v4318 = vld [vmem:[%s4315 + $0x10] sm:$0xff]
    %v4319 = vld [vmem:[%s4315 + $0x18] sm:$0xff]
    %v4320 = vld [vmem:[%s4315 + $0x20] sm:$0xff]
    %v4321 = vld [vmem:[%s4315 + $0x28] sm:$0xff]
    %v4322 = vld [vmem:[%s4315 + $0x30] sm:$0xff]
    %v4323 = vld [vmem:[%s4315 + $0x38] sm:$0xff]
    %v4332 = vunpack.c.l.b16 %v4316
    %v4333 = vunpack.c.h.b16 %v4316
    %v4334 = vunpack.c.l.b16 %v4317
    %v4335 = vunpack.c.h.b16 %v4317
    %v4336 = vunpack.c.l.b16 %v4318
    %v4337 = vunpack.c.h.b16 %v4318
    %v4338 = vunpack.c.l.b16 %v4319
    %v4339 = vunpack.c.h.b16 %v4319
    %v4340 = vunpack.c.l.b16 %v4320
    %v4341 = vunpack.c.h.b16 %v4320
    %v4342 = vunpack.c.l.b16 %v4321
    %v4343 = vunpack.c.h.b16 %v4321
    %v4344 = vunpack.c.l.b16 %v4322
    %v4345 = vunpack.c.h.b16 %v4322
    %v4346 = vunpack.c.l.b16 %v4323
    %v4347 = vunpack.c.h.b16 %v4323
    %v4348 = vpack.c.b16 %v4334, %v4332
    %v4349 = vpack.c.b16 %v4335, %v4333
    %v4350 = vpack.c.b16 %v4338, %v4336
    %v4351 = vpack.c.b16 %v4339, %v4337
    %v4352 = vpack.c.b16 %v4342, %v4340
    %v4353 = vpack.c.b16 %v4343, %v4341
    %v4354 = vpack.c.b16 %v4346, %v4344
    %v4355 = vpack.c.b16 %v4347, %v4345
    %v4365 = vsel %vm242, %v4311, 0
    %v4368 = vsel %vm242, %v4312, 0
    %v4371 = vsel %vm242, %v4313, 0
    %v4374 = vsel %vm242, %v4314, 0
    %4376 = vmatprep.subr.bf16.mxu0 0
    %4377 = vmatpush1.bf16.msra.mxu0 0
    %4378 = vmatprep.subr.bf16.mxu0 0
    %4379 = vmatpush1.bf16.msra.mxu0 0
    %4380 = vmatprep.subr.bf16.mxu0 0
    %4381 = vmatpush1.bf16.msra.mxu0 0
    %4382 = vmatprep.subr.bf16.mxu0 0
    %4383 = vmatpush1.bf16.msra.mxu0 0
    %4384 = vmatprep.subr.bf16.mxu0 %v4355
    %4385 = vmatpush1.bf16.msra.mxu0 %v4354
    %4386 = vmatprep.subr.bf16.mxu0 %v4353
    %4387 = vmatpush1.bf16.msra.mxu0 %v4352
    %4388 = vmatprep.subr.bf16.mxu0 %v4351
    %4389 = vmatpush1.bf16.msra.mxu0 %v4350
    %4390 = vmatprep.subr.bf16.mxu0 %v4349
    %4391 = vmatpush1.bf16.msra.mxu0 %v4348
    %4392 = vmatprep.subr.bf16.mxu0 0
    %4393 = vmatpush2.bf16.msra.mxu0 0
    %4394 = vmatprep.subr.bf16.mxu0 0
    %4395 = vmatpush2.bf16.msra.mxu0 0
    %4396 = vmatprep.subr.bf16.mxu0 0
    %4397 = vmatpush2.bf16.msra.mxu0 0
    %4398 = vmatprep.subr.bf16.mxu0 0
    %4399 = vmatpush2.bf16.msra.mxu0 0
    %4400 = vmatprep.subr.bf16.mxu0 0
    %4401 = vmatpush2.bf16.msra.mxu0 0
    %4402 = vmatprep.subr.bf16.mxu0 0
    %4403 = vmatpush2.bf16.msra.mxu0 0
    %4404 = vmatprep.subr.bf16.mxu0 0
    %4405 = vmatpush2.bf16.msra.mxu0 0
    %4406 = vmatprep.subr.bf16.mxu0 0
    %4407 = vmatpush2.bf16.msra.mxu0 0
    %4408 = vmatprep.mubr.bf16.mxu0 0
    %4409 = vmatmul.mubr.bf16.gmra.mxu0 %v4365
    %v4410 = vpop.f32.mrf.mxu0
    %v4411 = vadd.f32 0.0, %v4410
    %v4412 = vpop.f32.mrf.mxu0
    %v4413 = vadd.f32 0.0, %v4412
    %v4414 = vpop.f32.mrf.mxu0
    %v4415 = vadd.f32 0.0, %v4414
    %v4416 = vpop.f32.mrf.mxu0
    %v4417 = vadd.f32 0.0, %v4416
    %4418 = vmatprep.mubr.bf16.mxu0 0
    %4419 = vmatmul.mubr.bf16.gmra.mxu0 %v4368
    %v4420 = vpop.f32.mrf.mxu0
    %v4421 = vadd.f32 0.0, %v4420
    %v4422 = vpop.f32.mrf.mxu0
    %v4423 = vadd.f32 0.0, %v4422
    %v4424 = vpop.f32.mrf.mxu0
    %v4425 = vadd.f32 0.0, %v4424
    %v4426 = vpop.f32.mrf.mxu0
    %v4427 = vadd.f32 0.0, %v4426
    %4428 = vmatprep.mubr.bf16.mxu0 0
    %4429 = vmatmul.mubr.bf16.gmra.mxu0 %v4371
    %v4430 = vpop.f32.mrf.mxu0
    %v4431 = vadd.f32 0.0, %v4430
    %v4432 = vpop.f32.mrf.mxu0
    %v4433 = vadd.f32 0.0, %v4432
    %v4434 = vpop.f32.mrf.mxu0
    %v4435 = vadd.f32 0.0, %v4434
    %v4436 = vpop.f32.mrf.mxu0
    %v4437 = vadd.f32 0.0, %v4436
    %4438 = vmatprep.mubr.bf16.mxu0 0
    %4439 = vmatmul.mubr.bf16.gmra.mxu0 %v4374
    %v4440 = vpop.f32.mrf.mxu0
    %v4441 = vadd.f32 0.0, %v4440
    %v4442 = vpop.f32.mrf.mxu0
    %v4443 = vadd.f32 0.0, %v4442
    %v4444 = vpop.f32.mrf.mxu0
    %v4445 = vadd.f32 0.0, %v4444
    %v4446 = vpop.f32.mrf.mxu0
    %v4447 = vadd.f32 0.0, %v4446
    %4448 = vdwg.mxu0
    %v4449 = vpack.c.bf16 %v4415, %v4411
    %v4450 = vpack.c.bf16 %v4417, %v4413
    %v4451 = vpack.c.bf16 %v4425, %v4421
    %v4452 = vpack.c.bf16 %v4427, %v4423
    %v4453 = vpack.c.bf16 %v4435, %v4431
    %v4454 = vpack.c.bf16 %v4437, %v4433
    %v4455 = vpack.c.bf16 %v4445, %v4441
    %v4456 = vpack.c.bf16 %v4447, %v4443
    %s4457 = scalar_lea.vmem [#allocation11], 256
    %v4458 = vld [vmem:[%s4457] sm:$0xf]
    %v4459 = vld [vmem:[%s4457 + $0x4] sm:$0xf]
    %v4460 = vld [vmem:[%s4457 + $0x8] sm:$0xf]
    %v4461 = vld [vmem:[%s4457 + $0xc] sm:$0xf]
    %v4462 = vld [vmem:[%s4457 + $0x10] sm:$0xf]
    %v4463 = vld [vmem:[%s4457 + $0x14] sm:$0xf]
    %v4464 = vld [vmem:[%s4457 + $0x18] sm:$0xf]
    %v4465 = vld [vmem:[%s4457 + $0x1c] sm:$0xf]
    %s4466 = scalar_lea.vmem [#allocation11], 288
    %v4467 = vld [vmem:[%s4466] sm:$0xf]
    %v4468 = vld [vmem:[%s4466 + $0x4] sm:$0xf]
    %v4469 = vld [vmem:[%s4466 + $0x8] sm:$0xf]
    %v4470 = vld [vmem:[%s4466 + $0xc] sm:$0xf]
    %v4471 = vld [vmem:[%s4466 + $0x10] sm:$0xf]
    %v4472 = vld [vmem:[%s4466 + $0x14] sm:$0xf]
    %v4473 = vld [vmem:[%s4466 + $0x18] sm:$0xf]
    %v4474 = vld [vmem:[%s4466 + $0x1c] sm:$0xf]
    %v4483 = vunpack.c.l.b16 %v4467
    %v4484 = vunpack.c.l.b16 %v4468
    %v4485 = vunpack.c.l.b16 %v4469
    %v4486 = vunpack.c.l.b16 %v4470
    %v4487 = vunpack.c.l.b16 %v4471
    %v4488 = vunpack.c.l.b16 %v4472
    %v4489 = vunpack.c.l.b16 %v4473
    %v4490 = vunpack.c.l.b16 %v4474
    %v4491 = vpack.c.b16 %v4484, %v4483
    %v4492 = vpack.c.b16 %v4486, %v4485
    %v4493 = vpack.c.b16 %v4488, %v4487
    %v4494 = vpack.c.b16 %v4490, %v4489
    %4499 = vrot.lane.b32.xlu0 %v4449, 64
    %v4500 = vpop.permute.xlu0 %4499
    %4501 = vrot.lane.b32.xlu0 %v4451, 64
    %v4502 = vpop.permute.xlu0 %4501
    %4503 = vrot.lane.b32.xlu0 %v4453, 64
    %v4504 = vpop.permute.xlu0 %4503
    %4505 = vrot.lane.b32.xlu0 %v4455, 64
    %v4506 = vpop.permute.xlu0 %4505
    %v4512 = vsel %vm242, %v4491, 0
    %v4515 = vsel %vm242, %v4492, 0
    %v4518 = vsel %vm242, %v4493, 0
    %v4521 = vsel %vm242, %v4494, 0
    %4523 = vmatprep.subr.bf16.mxu0 0
    %4524 = vmatpush1.bf16.msra.mxu0 0
    %4525 = vmatprep.subr.bf16.mxu0 0
    %4526 = vmatpush1.bf16.msra.mxu0 0
    %4527 = vmatprep.subr.bf16.mxu0 0
    %4528 = vmatpush1.bf16.msra.mxu0 0
    %4529 = vmatprep.subr.bf16.mxu0 0
    %4530 = vmatpush1.bf16.msra.mxu0 0
    %4531 = vmatprep.subr.bf16.mxu0 0
    %4532 = vmatpush1.bf16.msra.mxu0 %v4506
    %4533 = vmatprep.subr.bf16.mxu0 0
    %4534 = vmatpush1.bf16.msra.mxu0 %v4504
    %4535 = vmatprep.subr.bf16.mxu0 0
    %4536 = vmatpush1.bf16.msra.mxu0 %v4502
    %4537 = vmatprep.subr.bf16.mxu0 0
    %4538 = vmatpush1.bf16.msra.mxu0 %v4500
    %4539 = vmatprep.subr.bf16.mxu0 0
    %4540 = vmatpush2.bf16.msra.mxu0 0
    %4541 = vmatprep.subr.bf16.mxu0 0
    %4542 = vmatpush2.bf16.msra.mxu0 0
    %4543 = vmatprep.subr.bf16.mxu0 0
    %4544 = vmatpush2.bf16.msra.mxu0 0
    %4545 = vmatprep.subr.bf16.mxu0 0
    %4546 = vmatpush2.bf16.msra.mxu0 0
    %4547 = vmatprep.subr.bf16.mxu0 0
    %4548 = vmatpush2.bf16.msra.mxu0 0
    %4549 = vmatprep.subr.bf16.mxu0 0
    %4550 = vmatpush2.bf16.msra.mxu0 0
    %4551 = vmatprep.subr.bf16.mxu0 0
    %4552 = vmatpush2.bf16.msra.mxu0 0
    %4553 = vmatprep.subr.bf16.mxu0 0
    %4554 = vmatpush2.bf16.msra.mxu0 0
    %4555 = vmatprep.mubr.bf16.mxu0 0
    %4556 = vmatmul.mubr.bf16.gmra.mxu0 %v4512
    %v4557 = vpop.f32.mrf.mxu0
    %v4558 = vadd.f32 0.0, %v4557
    %v4559 = vpop.f32.mrf.mxu0
    %v4560 = vpop.f32.mrf.mxu0
    %v4561 = vadd.f32 0.0, %v4560
    %v4562 = vpop.f32.mrf.mxu0
    %4563 = vmatprep.mubr.bf16.mxu0 0
    %4564 = vmatmul.mubr.bf16.gmra.mxu0 %v4515
    %v4565 = vpop.f32.mrf.mxu0
    %v4566 = vadd.f32 0.0, %v4565
    %v4567 = vpop.f32.mrf.mxu0
    %v4568 = vpop.f32.mrf.mxu0
    %v4569 = vadd.f32 0.0, %v4568
    %v4570 = vpop.f32.mrf.mxu0
    %4571 = vmatprep.mubr.bf16.mxu0 0
    %4572 = vmatmul.mubr.bf16.gmra.mxu0 %v4518
    %v4573 = vpop.f32.mrf.mxu0
    %v4574 = vadd.f32 0.0, %v4573
    %v4575 = vpop.f32.mrf.mxu0
    %v4576 = vpop.f32.mrf.mxu0
    %v4577 = vadd.f32 0.0, %v4576
    %v4578 = vpop.f32.mrf.mxu0
    %4579 = vmatprep.mubr.bf16.mxu0 0
    %4580 = vmatmul.mubr.bf16.gmra.mxu0 %v4521
    %v4581 = vpop.f32.mrf.mxu0
    %v4582 = vadd.f32 0.0, %v4581
    %v4583 = vpop.f32.mrf.mxu0
    %v4584 = vpop.f32.mrf.mxu0
    %v4585 = vadd.f32 0.0, %v4584
    %v4586 = vpop.f32.mrf.mxu0
    %4587 = vdwg.mxu0
    %v4596 = vunpack.c.l.b16 %v4458
    %v4597 = vunpack.c.l.b16 %v4459
    %v4598 = vunpack.c.l.b16 %v4460
    %v4599 = vunpack.c.l.b16 %v4461
    %v4600 = vunpack.c.l.b16 %v4462
    %v4601 = vunpack.c.l.b16 %v4463
    %v4602 = vunpack.c.l.b16 %v4464
    %v4603 = vunpack.c.l.b16 %v4465
    %v4604 = vpack.c.b16 %v4597, %v4596
    %v4605 = vpack.c.b16 %v4599, %v4598
    %v4606 = vpack.c.b16 %v4601, %v4600
    %v4607 = vpack.c.b16 %v4603, %v4602
    %v4609 = vsel %vm242, %v4604, 0
    %v4612 = vsel %vm242, %v4605, 0
    %v4615 = vsel %vm242, %v4606, 0
    %v4618 = vsel %vm242, %v4607, 0
    %4620 = vmatprep.subr.bf16.mxu0 0
    %4621 = vmatpush1.bf16.msra.mxu0 0
    %4622 = vmatprep.subr.bf16.mxu0 0
    %4623 = vmatpush1.bf16.msra.mxu0 0
    %4624 = vmatprep.subr.bf16.mxu0 0
    %4625 = vmatpush1.bf16.msra.mxu0 0
    %4626 = vmatprep.subr.bf16.mxu0 0
    %4627 = vmatpush1.bf16.msra.mxu0 0
    %4628 = vmatprep.subr.bf16.mxu0 0
    %4629 = vmatpush1.bf16.msra.mxu0 %v4455
    %4630 = vmatprep.subr.bf16.mxu0 0
    %4631 = vmatpush1.bf16.msra.mxu0 %v4453
    %4632 = vmatprep.subr.bf16.mxu0 0
    %4633 = vmatpush1.bf16.msra.mxu0 %v4451
    %4634 = vmatprep.subr.bf16.mxu0 0
    %4635 = vmatpush1.bf16.msra.mxu0 %v4449
    %4636 = vmatprep.subr.bf16.mxu0 0
    %4637 = vmatpush2.bf16.msra.mxu0 0
    %4638 = vmatprep.subr.bf16.mxu0 0
    %4639 = vmatpush2.bf16.msra.mxu0 0
    %4640 = vmatprep.subr.bf16.mxu0 0
    %4641 = vmatpush2.bf16.msra.mxu0 0
    %4642 = vmatprep.subr.bf16.mxu0 0
    %4643 = vmatpush2.bf16.msra.mxu0 0
    %4644 = vmatprep.subr.bf16.mxu0 0
    %4645 = vmatpush2.bf16.msra.mxu0 0
    %4646 = vmatprep.subr.bf16.mxu0 0
    %4647 = vmatpush2.bf16.msra.mxu0 0
    %4648 = vmatprep.subr.bf16.mxu0 0
    %4649 = vmatpush2.bf16.msra.mxu0 0
    %4650 = vmatprep.subr.bf16.mxu0 0
    %4651 = vmatpush2.bf16.msra.mxu0 0
    %4652 = vmatprep.mubr.bf16.mxu0 0
    %4653 = vmatmul.mubr.bf16.gmra.mxu0 %v4609
    %v4654 = vpop.f32.mrf.mxu0
    %v4655 = vadd.f32 %v4558, %v4654
    %v4656 = vpop.f32.mrf.mxu0
    %v4657 = vpop.f32.mrf.mxu0
    %v4658 = vadd.f32 %v4561, %v4657
    %v4659 = vpop.f32.mrf.mxu0
    %4660 = vmatprep.mubr.bf16.mxu0 0
    %4661 = vmatmul.mubr.bf16.gmra.mxu0 %v4612
    %v4662 = vpop.f32.mrf.mxu0
    %v4663 = vadd.f32 %v4566, %v4662
    %v4664 = vpop.f32.mrf.mxu0
    %v4665 = vpop.f32.mrf.mxu0
    %v4666 = vadd.f32 %v4569, %v4665
    %v4667 = vpop.f32.mrf.mxu0
    %4668 = vmatprep.mubr.bf16.mxu0 0
    %4669 = vmatmul.mubr.bf16.gmra.mxu0 %v4615
    %v4670 = vpop.f32.mrf.mxu0
    %v4671 = vadd.f32 %v4574, %v4670
    %v4672 = vpop.f32.mrf.mxu0
    %v4673 = vpop.f32.mrf.mxu0
    %v4674 = vadd.f32 %v4577, %v4673
    %v4675 = vpop.f32.mrf.mxu0
    %4676 = vmatprep.mubr.bf16.mxu0 0
    %4677 = vmatmul.mubr.bf16.gmra.mxu0 %v4618
    %v4678 = vpop.f32.mrf.mxu0
    %v4679 = vadd.f32 %v4582, %v4678
    %v4680 = vpop.f32.mrf.mxu0
    %v4681 = vpop.f32.mrf.mxu0
    %v4682 = vadd.f32 %v4585, %v4681
    %v4683 = vpop.f32.mrf.mxu0
    %4684 = vdwg.mxu0
    %s4685 = scalar_lea.vmem [#allocation11], 320
    %v4686 = vld [vmem:[%s4685] sm:$0xf]
    %v4687 = vld [vmem:[%s4685 + $0x4] sm:$0xf]
    %v4688 = vld [vmem:[%s4685 + $0x8] sm:$0xf]
    %v4689 = vld [vmem:[%s4685 + $0xc] sm:$0xf]
    %v4690 = vld [vmem:[%s4685 + $0x10] sm:$0xf]
    %v4691 = vld [vmem:[%s4685 + $0x14] sm:$0xf]
    %v4692 = vld [vmem:[%s4685 + $0x18] sm:$0xf]
    %v4693 = vld [vmem:[%s4685 + $0x1c] sm:$0xf]
    %v4702 = vunpack.c.l.b16 %v4686
    %v4703 = vunpack.c.l.b16 %v4687
    %v4704 = vunpack.c.l.b16 %v4688
    %v4705 = vunpack.c.l.b16 %v4689
    %v4706 = vunpack.c.l.b16 %v4690
    %v4707 = vunpack.c.l.b16 %v4691
    %v4708 = vunpack.c.l.b16 %v4692
    %v4709 = vunpack.c.l.b16 %v4693
    %v4710 = vpack.c.b16 %v4703, %v4702
    %v4711 = vpack.c.b16 %v4705, %v4704
    %v4712 = vpack.c.b16 %v4707, %v4706
    %v4713 = vpack.c.b16 %v4709, %v4708
    %v4715 = vsel %vm242, %v4710, 0
    %v4718 = vsel %vm242, %v4711, 0
    %v4721 = vsel %vm242, %v4712, 0
    %v4724 = vsel %vm242, %v4713, 0
    %4726 = vmatprep.subr.bf16.mxu0 0
    %4727 = vmatpush1.bf16.msra.mxu0 0
    %4728 = vmatprep.subr.bf16.mxu0 0
    %4729 = vmatpush1.bf16.msra.mxu0 0
    %4730 = vmatprep.subr.bf16.mxu0 0
    %4731 = vmatpush1.bf16.msra.mxu0 0
    %4732 = vmatprep.subr.bf16.mxu0 0
    %4733 = vmatpush1.bf16.msra.mxu0 0
    %4734 = vmatprep.subr.bf16.mxu0 0
    %4735 = vmatpush1.bf16.msra.mxu0 %v4456
    %4736 = vmatprep.subr.bf16.mxu0 0
    %4737 = vmatpush1.bf16.msra.mxu0 %v4454
    %4738 = vmatprep.subr.bf16.mxu0 0
    %4739 = vmatpush1.bf16.msra.mxu0 %v4452
    %4740 = vmatprep.subr.bf16.mxu0 0
    %4741 = vmatpush1.bf16.msra.mxu0 %v4450
    %4742 = vmatprep.subr.bf16.mxu0 0
    %4743 = vmatpush2.bf16.msra.mxu0 0
    %4744 = vmatprep.subr.bf16.mxu0 0
    %4745 = vmatpush2.bf16.msra.mxu0 0
    %4746 = vmatprep.subr.bf16.mxu0 0
    %4747 = vmatpush2.bf16.msra.mxu0 0
    %4748 = vmatprep.subr.bf16.mxu0 0
    %4749 = vmatpush2.bf16.msra.mxu0 0
    %4750 = vmatprep.subr.bf16.mxu0 0
    %4751 = vmatpush2.bf16.msra.mxu0 0
    %4752 = vmatprep.subr.bf16.mxu0 0
    %4753 = vmatpush2.bf16.msra.mxu0 0
    %4754 = vmatprep.subr.bf16.mxu0 0
    %4755 = vmatpush2.bf16.msra.mxu0 0
    %4756 = vmatprep.subr.bf16.mxu0 0
    %4757 = vmatpush2.bf16.msra.mxu0 0
    %4758 = vmatprep.mubr.bf16.mxu0 0
    %4759 = vmatmul.mubr.bf16.gmra.mxu0 %v4715
    %v4760 = vpop.f32.mrf.mxu0
    %v4761 = vadd.f32 0.0, %v4760
    %v4762 = vpop.f32.mrf.mxu0
    %v4763 = vpop.f32.mrf.mxu0
    %v4764 = vadd.f32 0.0, %v4763
    %v4765 = vpop.f32.mrf.mxu0
    %4766 = vmatprep.mubr.bf16.mxu0 0
    %4767 = vmatmul.mubr.bf16.gmra.mxu0 %v4718
    %v4768 = vpop.f32.mrf.mxu0
    %v4769 = vadd.f32 0.0, %v4768
    %v4770 = vpop.f32.mrf.mxu0
    %v4771 = vpop.f32.mrf.mxu0
    %v4772 = vadd.f32 0.0, %v4771
    %v4773 = vpop.f32.mrf.mxu0
    %4774 = vmatprep.mubr.bf16.mxu0 0
    %4775 = vmatmul.mubr.bf16.gmra.mxu0 %v4721
    %v4776 = vpop.f32.mrf.mxu0
    %v4777 = vadd.f32 0.0, %v4776
    %v4778 = vpop.f32.mrf.mxu0
    %v4779 = vpop.f32.mrf.mxu0
    %v4780 = vadd.f32 0.0, %v4779
    %v4781 = vpop.f32.mrf.mxu0
    %4782 = vmatprep.mubr.bf16.mxu0 0
    %4783 = vmatmul.mubr.bf16.gmra.mxu0 %v4724
    %v4784 = vpop.f32.mrf.mxu0
    %v4785 = vadd.f32 0.0, %v4784
    %v4786 = vpop.f32.mrf.mxu0
    %v4787 = vpop.f32.mrf.mxu0
    %v4788 = vadd.f32 0.0, %v4787
    %v4789 = vpop.f32.mrf.mxu0
    %4790 = vdwg.mxu0
    %v4791 = vadd.f32 %v4655, %v4761
    %v4792 = vadd.f32 %v4658, %v4764
    %v4793 = vadd.f32 %v4663, %v4769
    %v4794 = vadd.f32 %v4666, %v4772
    %v4795 = vadd.f32 %v4671, %v4777
    %v4796 = vadd.f32 %v4674, %v4780
    %v4797 = vadd.f32 %v4679, %v4785
    %v4798 = vadd.f32 %v4682, %v4788
    %s4799 = scalar_lea.vmem [#allocation11], 352
    %v4800 = vld [vmem:[%s4799] sm:$0xf]
    %v4801 = vld [vmem:[%s4799 + $0x4] sm:$0xf]
    %v4802 = vld [vmem:[%s4799 + $0x8] sm:$0xf]
    %v4803 = vld [vmem:[%s4799 + $0xc] sm:$0xf]
    %v4804 = vld [vmem:[%s4799 + $0x10] sm:$0xf]
    %v4805 = vld [vmem:[%s4799 + $0x14] sm:$0xf]
    %v4806 = vld [vmem:[%s4799 + $0x18] sm:$0xf]
    %v4807 = vld [vmem:[%s4799 + $0x1c] sm:$0xf]
    %v4816 = vunpack.c.l.b16 %v4800
    %v4817 = vunpack.c.l.b16 %v4801
    %v4818 = vunpack.c.l.b16 %v4802
    %v4819 = vunpack.c.l.b16 %v4803
    %v4820 = vunpack.c.l.b16 %v4804
    %v4821 = vunpack.c.l.b16 %v4805
    %v4822 = vunpack.c.l.b16 %v4806
    %v4823 = vunpack.c.l.b16 %v4807
    %v4824 = vpack.c.b16 %v4817, %v4816
    %v4825 = vpack.c.b16 %v4819, %v4818
    %v4826 = vpack.c.b16 %v4821, %v4820
    %v4827 = vpack.c.b16 %v4823, %v4822
    %4832 = vrot.lane.b32.xlu0 %v4450, 64
    %v4833 = vpop.permute.xlu0 %4832
    %4834 = vrot.lane.b32.xlu0 %v4452, 64
    %v4835 = vpop.permute.xlu0 %4834
    %4836 = vrot.lane.b32.xlu0 %v4454, 64
    %v4837 = vpop.permute.xlu0 %4836
    %4838 = vrot.lane.b32.xlu0 %v4456, 64
    %v4839 = vpop.permute.xlu0 %4838
    %v4845 = vsel %vm242, %v4824, 0
    %v4848 = vsel %vm242, %v4825, 0
    %v4851 = vsel %vm242, %v4826, 0
    %v4854 = vsel %vm242, %v4827, 0
    %4856 = vmatprep.subr.bf16.mxu0 0
    %4857 = vmatpush1.bf16.msra.mxu0 0
    %4858 = vmatprep.subr.bf16.mxu0 0
    %4859 = vmatpush1.bf16.msra.mxu0 0
    %4860 = vmatprep.subr.bf16.mxu0 0
    %4861 = vmatpush1.bf16.msra.mxu0 0
    %4862 = vmatprep.subr.bf16.mxu0 0
    %4863 = vmatpush1.bf16.msra.mxu0 0
    %4864 = vmatprep.subr.bf16.mxu0 0
    %4865 = vmatpush1.bf16.msra.mxu0 %v4839
    %4866 = vmatprep.subr.bf16.mxu0 0
    %4867 = vmatpush1.bf16.msra.mxu0 %v4837
    %4868 = vmatprep.subr.bf16.mxu0 0
    %4869 = vmatpush1.bf16.msra.mxu0 %v4835
    %4870 = vmatprep.subr.bf16.mxu0 0
    %4871 = vmatpush1.bf16.msra.mxu0 %v4833
    %4872 = vmatprep.subr.bf16.mxu0 0
    %4873 = vmatpush2.bf16.msra.mxu0 0
    %4874 = vmatprep.subr.bf16.mxu0 0
    %4875 = vmatpush2.bf16.msra.mxu0 0
    %4876 = vmatprep.subr.bf16.mxu0 0
    %4877 = vmatpush2.bf16.msra.mxu0 0
    %4878 = vmatprep.subr.bf16.mxu0 0
    %4879 = vmatpush2.bf16.msra.mxu0 0
    %4880 = vmatprep.subr.bf16.mxu0 0
    %4881 = vmatpush2.bf16.msra.mxu0 0
    %4882 = vmatprep.subr.bf16.mxu0 0
    %4883 = vmatpush2.bf16.msra.mxu0 0
    %4884 = vmatprep.subr.bf16.mxu0 0
    %4885 = vmatpush2.bf16.msra.mxu0 0
    %4886 = vmatprep.subr.bf16.mxu0 0
    %4887 = vmatpush2.bf16.msra.mxu0 0
    %4888 = vmatprep.mubr.bf16.mxu0 0
    %4889 = vmatmul.mubr.bf16.gmra.mxu0 %v4845
    %v4890 = vpop.f32.mrf.mxu0
    %v4891 = vadd.f32 0.0, %v4890
    %v4892 = vpop.f32.mrf.mxu0
    %v4893 = vpop.f32.mrf.mxu0
    %v4894 = vadd.f32 0.0, %v4893
    %v4895 = vpop.f32.mrf.mxu0
    %4896 = vmatprep.mubr.bf16.mxu0 0
    %4897 = vmatmul.mubr.bf16.gmra.mxu0 %v4848
    %v4898 = vpop.f32.mrf.mxu0
    %v4899 = vadd.f32 0.0, %v4898
    %v4900 = vpop.f32.mrf.mxu0
    %v4901 = vpop.f32.mrf.mxu0
    %v4902 = vadd.f32 0.0, %v4901
    %v4903 = vpop.f32.mrf.mxu0
    %4904 = vmatprep.mubr.bf16.mxu0 0
    %4905 = vmatmul.mubr.bf16.gmra.mxu0 %v4851
    %v4906 = vpop.f32.mrf.mxu0
    %v4907 = vadd.f32 0.0, %v4906
    %v4908 = vpop.f32.mrf.mxu0
    %v4909 = vpop.f32.mrf.mxu0
    %v4910 = vadd.f32 0.0, %v4909
    %v4911 = vpop.f32.mrf.mxu0
    %4912 = vmatprep.mubr.bf16.mxu0 0
    %4913 = vmatmul.mubr.bf16.gmra.mxu0 %v4854
    %v4914 = vpop.f32.mrf.mxu0
    %v4915 = vadd.f32 0.0, %v4914
    %v4916 = vpop.f32.mrf.mxu0
    %v4917 = vpop.f32.mrf.mxu0
    %v4918 = vadd.f32 0.0, %v4917
    %v4919 = vpop.f32.mrf.mxu0
    %4920 = vdwg.mxu0
    %v4921 = vadd.f32 %v4791, %v4891
    %v4922 = vadd.f32 %v4792, %v4894
    %v4923 = vadd.f32 %v4793, %v4899
    %v4924 = vadd.f32 %v4794, %v4902
    %v4925 = vadd.f32 %v4795, %v4907
    %v4926 = vadd.f32 %v4796, %v4910
    %v4927 = vadd.f32 %v4797, %v4915
    %v4928 = vadd.f32 %v4798, %v4918
    %s4929 = scalar_lea.vmem [#allocation9], 8
    %v4930 = vld [vmem:[%s4929] sm:$0x7]
    %v4931 = vlaneseq
    %v4932 = vshrl.u32 %v4931, 7
    %v4933 = vsub.s32 0, %v4932
    %v4934 = vrot.slane %v4930, %v4933
    %v4935 = vadd.f32 %v4921, %v4934
    %v4936 = vadd.f32 %v4922, %v4934
    %v4937 = vadd.f32 %v4923, %v4934
    %v4938 = vadd.f32 %v4924, %v4934
    %v4939 = vadd.f32 %v4925, %v4934
    %v4940 = vadd.f32 %v4926, %v4934
    %v4941 = vadd.f32 %v4927, %v4934
    %v4942 = vadd.f32 %v4928, %v4934
    %vm4943 = vcmp.gt.f32.partialorder %v4935, 0.0
    %vm4944 = vcmp.gt.f32.partialorder %v4936, 0.0
    %vm4945 = vcmp.gt.f32.partialorder %v4937, 0.0
    %vm4946 = vcmp.gt.f32.partialorder %v4938, 0.0
    %vm4947 = vcmp.gt.f32.partialorder %v4939, 0.0
    %vm4948 = vcmp.gt.f32.partialorder %v4940, 0.0
    %vm4949 = vcmp.gt.f32.partialorder %v4941, 0.0
    %vm4950 = vcmp.gt.f32.partialorder %v4942, 0.0
    %v4951 = vmul.f32 %v4935, 0.2
    %v4952 = vmul.f32 %v4936, 0.2
    %v4953 = vmul.f32 %v4937, 0.2
    %v4954 = vmul.f32 %v4938, 0.2
    %v4955 = vmul.f32 %v4939, 0.2
    %v4956 = vmul.f32 %v4940, 0.2
    %v4957 = vmul.f32 %v4941, 0.2
    %v4958 = vmul.f32 %v4942, 0.2
    %v4959 = vsel %vm4943, %v4935, %v4951
    %v4960 = vsel %vm4944, %v4936, %v4952
    %v4961 = vsel %vm4945, %v4937, %v4953
    %v4962 = vsel %vm4946, %v4938, %v4954
    %v4963 = vsel %vm4947, %v4939, %v4955
    %v4964 = vsel %vm4948, %v4940, %v4956
    %v4965 = vsel %vm4949, %v4941, %v4957
    %v4966 = vsel %vm4950, %v4942, %v4958
    %v4967 = vlaneseq
    %v4968 = vshrl.u32 %v4967, 7
    %v4969 = vsub.s32 1, %v4968
    %v4970 = vrot.slane %v4930, %v4969
    %v4971 = vmul.f32 %v4959, %v4970
    %v4972 = vmul.f32 %v4960, %v4970
    %v4973 = vmul.f32 %v4961, %v4970
    %v4974 = vmul.f32 %v4962, %v4970
    %v4975 = vmul.f32 %v4963, %v4970
    %v4976 = vmul.f32 %v4964, %v4970
    %v4977 = vmul.f32 %v4965, %v4970
    %v4978 = vmul.f32 %v4966, %v4970
    %v4979 = vlaneseq
    %v4980 = vshrl.u32 %v4979, 7
    %v4981 = vsub.s32 2, %v4980
    %v4982 = vrot.slane %v4930, %v4981
    %v4983 = vadd.f32 %v4971, %v4982
    %v4984 = vadd.f32 %v4972, %v4982
    %v4985 = vadd.f32 %v4973, %v4982
    %v4986 = vadd.f32 %v4974, %v4982
    %v4987 = vadd.f32 %v4975, %v4982
    %v4988 = vadd.f32 %v4976, %v4982
    %v4989 = vadd.f32 %v4977, %v4982
    %v4990 = vadd.f32 %v4978, %v4982
    %v4991 = vadd.f32 %v4983, %v1280
    %v4992 = vadd.f32 %v4984, %v1281
    %v4993 = vadd.f32 %v4985, %v1282
    %v4994 = vadd.f32 %v4986, %v1283
    %v4995 = vadd.f32 %v4987, %v1284
    %v4996 = vadd.f32 %v4988, %v1285
    %v4997 = vadd.f32 %v4989, %v1286
    %v4998 = vadd.f32 %v4990, %v1287
    %v4999 = vpack.c.bf16 %v4992, %v4991
    %v5000 = vpack.c.bf16 %v4994, %v4993
    %v5001 = vpack.c.bf16 %v4996, %v4995
    %v5002 = vpack.c.bf16 %v4998, %v4997
    %s5003 = scalar_lea.vmem [#allocation8], 192
    %v5004 = vld [vmem:[%s5003] sm:$0xff]
    %v5005 = vld [vmem:[%s5003 + $0x8] sm:$0xff]
    %v5006 = vld [vmem:[%s5003 + $0x10] sm:$0xff]
    %v5007 = vld [vmem:[%s5003 + $0x18] sm:$0xff]
    %v5008 = vld [vmem:[%s5003 + $0x20] sm:$0xff]
    %v5009 = vld [vmem:[%s5003 + $0x28] sm:$0xff]
    %v5010 = vld [vmem:[%s5003 + $0x30] sm:$0xff]
    %v5011 = vld [vmem:[%s5003 + $0x38] sm:$0xff]
    %v5020 = vunpack.c.l.b16 %v5004
    %v5021 = vunpack.c.h.b16 %v5004
    %v5022 = vunpack.c.l.b16 %v5005
    %v5023 = vunpack.c.h.b16 %v5005
    %v5024 = vunpack.c.l.b16 %v5006
    %v5025 = vunpack.c.h.b16 %v5006
    %v5026 = vunpack.c.l.b16 %v5007
    %v5027 = vunpack.c.h.b16 %v5007
    %v5028 = vunpack.c.l.b16 %v5008
    %v5029 = vunpack.c.h.b16 %v5008
    %v5030 = vunpack.c.l.b16 %v5009
    %v5031 = vunpack.c.h.b16 %v5009
    %v5032 = vunpack.c.l.b16 %v5010
    %v5033 = vunpack.c.h.b16 %v5010
    %v5034 = vunpack.c.l.b16 %v5011
    %v5035 = vunpack.c.h.b16 %v5011
    %v5036 = vpack.c.b16 %v5022, %v5020
    %v5037 = vpack.c.b16 %v5023, %v5021
    %v5038 = vpack.c.b16 %v5026, %v5024
    %v5039 = vpack.c.b16 %v5027, %v5025
    %v5040 = vpack.c.b16 %v5030, %v5028
    %v5041 = vpack.c.b16 %v5031, %v5029
    %v5042 = vpack.c.b16 %v5034, %v5032
    %v5043 = vpack.c.b16 %v5035, %v5033
    %v5053 = vsel %vm242, %v4999, 0
    %v5056 = vsel %vm242, %v5000, 0
    %v5059 = vsel %vm242, %v5001, 0
    %v5062 = vsel %vm242, %v5002, 0
    %5064 = vmatprep.subr.bf16.mxu0 0
    %5065 = vmatpush1.bf16.msra.mxu0 0
    %5066 = vmatprep.subr.bf16.mxu0 0
    %5067 = vmatpush1.bf16.msra.mxu0 0
    %5068 = vmatprep.subr.bf16.mxu0 0
    %5069 = vmatpush1.bf16.msra.mxu0 0
    %5070 = vmatprep.subr.bf16.mxu0 0
    %5071 = vmatpush1.bf16.msra.mxu0 0
    %5072 = vmatprep.subr.bf16.mxu0 %v5043
    %5073 = vmatpush1.bf16.msra.mxu0 %v5042
    %5074 = vmatprep.subr.bf16.mxu0 %v5041
    %5075 = vmatpush1.bf16.msra.mxu0 %v5040
    %5076 = vmatprep.subr.bf16.mxu0 %v5039
    %5077 = vmatpush1.bf16.msra.mxu0 %v5038
    %5078 = vmatprep.subr.bf16.mxu0 %v5037
    %5079 = vmatpush1.bf16.msra.mxu0 %v5036
    %5080 = vmatprep.subr.bf16.mxu0 0
    %5081 = vmatpush2.bf16.msra.mxu0 0
    %5082 = vmatprep.subr.bf16.mxu0 0
    %5083 = vmatpush2.bf16.msra.mxu0 0
    %5084 = vmatprep.subr.bf16.mxu0 0
    %5085 = vmatpush2.bf16.msra.mxu0 0
    %5086 = vmatprep.subr.bf16.mxu0 0
    %5087 = vmatpush2.bf16.msra.mxu0 0
    %5088 = vmatprep.subr.bf16.mxu0 0
    %5089 = vmatpush2.bf16.msra.mxu0 0
    %5090 = vmatprep.subr.bf16.mxu0 0
    %5091 = vmatpush2.bf16.msra.mxu0 0
    %5092 = vmatprep.subr.bf16.mxu0 0
    %5093 = vmatpush2.bf16.msra.mxu0 0
    %5094 = vmatprep.subr.bf16.mxu0 0
    %5095 = vmatpush2.bf16.msra.mxu0 0
    %5096 = vmatprep.mubr.bf16.mxu0 0
    %5097 = vmatmul.mubr.bf16.gmra.mxu0 %v5053
    %v5098 = vpop.f32.mrf.mxu0
    %v5099 = vadd.f32 0.0, %v5098
    %v5100 = vpop.f32.mrf.mxu0
    %v5101 = vadd.f32 0.0, %v5100
    %v5102 = vpop.f32.mrf.mxu0
    %v5103 = vadd.f32 0.0, %v5102
    %v5104 = vpop.f32.mrf.mxu0
    %v5105 = vadd.f32 0.0, %v5104
    %5106 = vmatprep.mubr.bf16.mxu0 0
    %5107 = vmatmul.mubr.bf16.gmra.mxu0 %v5056
    %v5108 = vpop.f32.mrf.mxu0
    %v5109 = vadd.f32 0.0, %v5108
    %v5110 = vpop.f32.mrf.mxu0
    %v5111 = vadd.f32 0.0, %v5110
    %v5112 = vpop.f32.mrf.mxu0
    %v5113 = vadd.f32 0.0, %v5112
    %v5114 = vpop.f32.mrf.mxu0
    %v5115 = vadd.f32 0.0, %v5114
    %5116 = vmatprep.mubr.bf16.mxu0 0
    %5117 = vmatmul.mubr.bf16.gmra.mxu0 %v5059
    %v5118 = vpop.f32.mrf.mxu0
    %v5119 = vadd.f32 0.0, %v5118
    %v5120 = vpop.f32.mrf.mxu0
    %v5121 = vadd.f32 0.0, %v5120
    %v5122 = vpop.f32.mrf.mxu0
    %v5123 = vadd.f32 0.0, %v5122
    %v5124 = vpop.f32.mrf.mxu0
    %v5125 = vadd.f32 0.0, %v5124
    %5126 = vmatprep.mubr.bf16.mxu0 0
    %5127 = vmatmul.mubr.bf16.gmra.mxu0 %v5062
    %v5128 = vpop.f32.mrf.mxu0
    %v5129 = vadd.f32 0.0, %v5128
    %v5130 = vpop.f32.mrf.mxu0
    %v5131 = vadd.f32 0.0, %v5130
    %v5132 = vpop.f32.mrf.mxu0
    %v5133 = vadd.f32 0.0, %v5132
    %v5134 = vpop.f32.mrf.mxu0
    %v5135 = vadd.f32 0.0, %v5134
    %5136 = vdwg.mxu0
    %v5137 = vpack.c.bf16 %v5103, %v5099
    %v5138 = vpack.c.bf16 %v5105, %v5101
    %v5139 = vpack.c.bf16 %v5113, %v5109
    %v5140 = vpack.c.bf16 %v5115, %v5111
    %v5141 = vpack.c.bf16 %v5123, %v5119
    %v5142 = vpack.c.bf16 %v5125, %v5121
    %v5143 = vpack.c.bf16 %v5133, %v5129
    %v5144 = vpack.c.bf16 %v5135, %v5131
    %s5145 = scalar_lea.vmem [#allocation11], 384
    %v5146 = vld [vmem:[%s5145] sm:$0xf]
    %v5147 = vld [vmem:[%s5145 + $0x4] sm:$0xf]
    %v5148 = vld [vmem:[%s5145 + $0x8] sm:$0xf]
    %v5149 = vld [vmem:[%s5145 + $0xc] sm:$0xf]
    %v5150 = vld [vmem:[%s5145 + $0x10] sm:$0xf]
    %v5151 = vld [vmem:[%s5145 + $0x14] sm:$0xf]
    %v5152 = vld [vmem:[%s5145 + $0x18] sm:$0xf]
    %v5153 = vld [vmem:[%s5145 + $0x1c] sm:$0xf]
    %s5154 = scalar_lea.vmem [#allocation11], 416
    %v5155 = vld [vmem:[%s5154] sm:$0xf]
    %v5156 = vld [vmem:[%s5154 + $0x4] sm:$0xf]
    %v5157 = vld [vmem:[%s5154 + $0x8] sm:$0xf]
    %v5158 = vld [vmem:[%s5154 + $0xc] sm:$0xf]
    %v5159 = vld [vmem:[%s5154 + $0x10] sm:$0xf]
    %v5160 = vld [vmem:[%s5154 + $0x14] sm:$0xf]
    %v5161 = vld [vmem:[%s5154 + $0x18] sm:$0xf]
    %v5162 = vld [vmem:[%s5154 + $0x1c] sm:$0xf]
    %v5171 = vunpack.c.l.b16 %v5155
    %v5172 = vunpack.c.l.b16 %v5156
    %v5173 = vunpack.c.l.b16 %v5157
    %v5174 = vunpack.c.l.b16 %v5158
    %v5175 = vunpack.c.l.b16 %v5159
    %v5176 = vunpack.c.l.b16 %v5160
    %v5177 = vunpack.c.l.b16 %v5161
    %v5178 = vunpack.c.l.b16 %v5162
    %v5179 = vpack.c.b16 %v5172, %v5171
    %v5180 = vpack.c.b16 %v5174, %v5173
    %v5181 = vpack.c.b16 %v5176, %v5175
    %v5182 = vpack.c.b16 %v5178, %v5177
    %5187 = vrot.lane.b32.xlu0 %v5137, 64
    %v5188 = vpop.permute.xlu0 %5187
    %5189 = vrot.lane.b32.xlu0 %v5139, 64
    %v5190 = vpop.permute.xlu0 %5189
    %5191 = vrot.lane.b32.xlu0 %v5141, 64
    %v5192 = vpop.permute.xlu0 %5191
    %5193 = vrot.lane.b32.xlu0 %v5143, 64
    %v5194 = vpop.permute.xlu0 %5193
    %v5200 = vsel %vm242, %v5179, 0
    %v5203 = vsel %vm242, %v5180, 0
    %v5206 = vsel %vm242, %v5181, 0
    %v5209 = vsel %vm242, %v5182, 0
    %5211 = vmatprep.subr.bf16.mxu0 0
    %5212 = vmatpush1.bf16.msra.mxu0 0
    %5213 = vmatprep.subr.bf16.mxu0 0
    %5214 = vmatpush1.bf16.msra.mxu0 0
    %5215 = vmatprep.subr.bf16.mxu0 0
    %5216 = vmatpush1.bf16.msra.mxu0 0
    %5217 = vmatprep.subr.bf16.mxu0 0
    %5218 = vmatpush1.bf16.msra.mxu0 0
    %5219 = vmatprep.subr.bf16.mxu0 0
    %5220 = vmatpush1.bf16.msra.mxu0 %v5194
    %5221 = vmatprep.subr.bf16.mxu0 0
    %5222 = vmatpush1.bf16.msra.mxu0 %v5192
    %5223 = vmatprep.subr.bf16.mxu0 0
    %5224 = vmatpush1.bf16.msra.mxu0 %v5190
    %5225 = vmatprep.subr.bf16.mxu0 0
    %5226 = vmatpush1.bf16.msra.mxu0 %v5188
    %5227 = vmatprep.subr.bf16.mxu0 0
    %5228 = vmatpush2.bf16.msra.mxu0 0
    %5229 = vmatprep.subr.bf16.mxu0 0
    %5230 = vmatpush2.bf16.msra.mxu0 0
    %5231 = vmatprep.subr.bf16.mxu0 0
    %5232 = vmatpush2.bf16.msra.mxu0 0
    %5233 = vmatprep.subr.bf16.mxu0 0
    %5234 = vmatpush2.bf16.msra.mxu0 0
    %5235 = vmatprep.subr.bf16.mxu0 0
    %5236 = vmatpush2.bf16.msra.mxu0 0
    %5237 = vmatprep.subr.bf16.mxu0 0
    %5238 = vmatpush2.bf16.msra.mxu0 0
    %5239 = vmatprep.subr.bf16.mxu0 0
    %5240 = vmatpush2.bf16.msra.mxu0 0
    %5241 = vmatprep.subr.bf16.mxu0 0
    %5242 = vmatpush2.bf16.msra.mxu0 0
    %5243 = vmatprep.mubr.bf16.mxu0 0
    %5244 = vmatmul.mubr.bf16.gmra.mxu0 %v5200
    %v5245 = vpop.f32.mrf.mxu0
    %v5246 = vadd.f32 0.0, %v5245
    %v5247 = vpop.f32.mrf.mxu0
    %v5248 = vpop.f32.mrf.mxu0
    %v5249 = vadd.f32 0.0, %v5248
    %v5250 = vpop.f32.mrf.mxu0
    %5251 = vmatprep.mubr.bf16.mxu0 0
    %5252 = vmatmul.mubr.bf16.gmra.mxu0 %v5203
    %v5253 = vpop.f32.mrf.mxu0
    %v5254 = vadd.f32 0.0, %v5253
    %v5255 = vpop.f32.mrf.mxu0
    %v5256 = vpop.f32.mrf.mxu0
    %v5257 = vadd.f32 0.0, %v5256
    %v5258 = vpop.f32.mrf.mxu0
    %5259 = vmatprep.mubr.bf16.mxu0 0
    %5260 = vmatmul.mubr.bf16.gmra.mxu0 %v5206
    %v5261 = vpop.f32.mrf.mxu0
    %v5262 = vadd.f32 0.0, %v5261
    %v5263 = vpop.f32.mrf.mxu0
    %v5264 = vpop.f32.mrf.mxu0
    %v5265 = vadd.f32 0.0, %v5264
    %v5266 = vpop.f32.mrf.mxu0
    %5267 = vmatprep.mubr.bf16.mxu0 0
    %5268 = vmatmul.mubr.bf16.gmra.mxu0 %v5209
    %v5269 = vpop.f32.mrf.mxu0
    %v5270 = vadd.f32 0.0, %v5269
    %v5271 = vpop.f32.mrf.mxu0
    %v5272 = vpop.f32.mrf.mxu0
    %v5273 = vadd.f32 0.0, %v5272
    %v5274 = vpop.f32.mrf.mxu0
    %5275 = vdwg.mxu0
    %v5284 = vunpack.c.l.b16 %v5146
    %v5285 = vunpack.c.l.b16 %v5147
    %v5286 = vunpack.c.l.b16 %v5148
    %v5287 = vunpack.c.l.b16 %v5149
    %v5288 = vunpack.c.l.b16 %v5150
    %v5289 = vunpack.c.l.b16 %v5151
    %v5290 = vunpack.c.l.b16 %v5152
    %v5291 = vunpack.c.l.b16 %v5153
    %v5292 = vpack.c.b16 %v5285, %v5284
    %v5293 = vpack.c.b16 %v5287, %v5286
    %v5294 = vpack.c.b16 %v5289, %v5288
    %v5295 = vpack.c.b16 %v5291, %v5290
    %v5297 = vsel %vm242, %v5292, 0
    %v5300 = vsel %vm242, %v5293, 0
    %v5303 = vsel %vm242, %v5294, 0
    %v5306 = vsel %vm242, %v5295, 0
    %5308 = vmatprep.subr.bf16.mxu0 0
    %5309 = vmatpush1.bf16.msra.mxu0 0
    %5310 = vmatprep.subr.bf16.mxu0 0
    %5311 = vmatpush1.bf16.msra.mxu0 0
    %5312 = vmatprep.subr.bf16.mxu0 0
    %5313 = vmatpush1.bf16.msra.mxu0 0
    %5314 = vmatprep.subr.bf16.mxu0 0
    %5315 = vmatpush1.bf16.msra.mxu0 0
    %5316 = vmatprep.subr.bf16.mxu0 0
    %5317 = vmatpush1.bf16.msra.mxu0 %v5143
    %5318 = vmatprep.subr.bf16.mxu0 0
    %5319 = vmatpush1.bf16.msra.mxu0 %v5141
    %5320 = vmatprep.subr.bf16.mxu0 0
    %5321 = vmatpush1.bf16.msra.mxu0 %v5139
    %5322 = vmatprep.subr.bf16.mxu0 0
    %5323 = vmatpush1.bf16.msra.mxu0 %v5137
    %5324 = vmatprep.subr.bf16.mxu0 0
    %5325 = vmatpush2.bf16.msra.mxu0 0
    %5326 = vmatprep.subr.bf16.mxu0 0
    %5327 = vmatpush2.bf16.msra.mxu0 0
    %5328 = vmatprep.subr.bf16.mxu0 0
    %5329 = vmatpush2.bf16.msra.mxu0 0
    %5330 = vmatprep.subr.bf16.mxu0 0
    %5331 = vmatpush2.bf16.msra.mxu0 0
    %5332 = vmatprep.subr.bf16.mxu0 0
    %5333 = vmatpush2.bf16.msra.mxu0 0
    %5334 = vmatprep.subr.bf16.mxu0 0
    %5335 = vmatpush2.bf16.msra.mxu0 0
    %5336 = vmatprep.subr.bf16.mxu0 0
    %5337 = vmatpush2.bf16.msra.mxu0 0
    %5338 = vmatprep.subr.bf16.mxu0 0
    %5339 = vmatpush2.bf16.msra.mxu0 0
    %5340 = vmatprep.mubr.bf16.mxu0 0
    %5341 = vmatmul.mubr.bf16.gmra.mxu0 %v5297
    %v5342 = vpop.f32.mrf.mxu0
    %v5343 = vadd.f32 %v5246, %v5342
    %v5344 = vpop.f32.mrf.mxu0
    %v5345 = vpop.f32.mrf.mxu0
    %v5346 = vadd.f32 %v5249, %v5345
    %v5347 = vpop.f32.mrf.mxu0
    %5348 = vmatprep.mubr.bf16.mxu0 0
    %5349 = vmatmul.mubr.bf16.gmra.mxu0 %v5300
    %v5350 = vpop.f32.mrf.mxu0
    %v5351 = vadd.f32 %v5254, %v5350
    %v5352 = vpop.f32.mrf.mxu0
    %v5353 = vpop.f32.mrf.mxu0
    %v5354 = vadd.f32 %v5257, %v5353
    %v5355 = vpop.f32.mrf.mxu0
    %5356 = vmatprep.mubr.bf16.mxu0 0
    %5357 = vmatmul.mubr.bf16.gmra.mxu0 %v5303
    %v5358 = vpop.f32.mrf.mxu0
    %v5359 = vadd.f32 %v5262, %v5358
    %v5360 = vpop.f32.mrf.mxu0
    %v5361 = vpop.f32.mrf.mxu0
    %v5362 = vadd.f32 %v5265, %v5361
    %v5363 = vpop.f32.mrf.mxu0
    %5364 = vmatprep.mubr.bf16.mxu0 0
    %5365 = vmatmul.mubr.bf16.gmra.mxu0 %v5306
    %v5366 = vpop.f32.mrf.mxu0
    %v5367 = vadd.f32 %v5270, %v5366
    %v5368 = vpop.f32.mrf.mxu0
    %v5369 = vpop.f32.mrf.mxu0
    %v5370 = vadd.f32 %v5273, %v5369
    %v5371 = vpop.f32.mrf.mxu0
    %5372 = vdwg.mxu0
    %s5373 = scalar_lea.vmem [#allocation11], 448
    %v5374 = vld [vmem:[%s5373] sm:$0xf]
    %v5375 = vld [vmem:[%s5373 + $0x4] sm:$0xf]
    %v5376 = vld [vmem:[%s5373 + $0x8] sm:$0xf]
    %v5377 = vld [vmem:[%s5373 + $0xc] sm:$0xf]
    %v5378 = vld [vmem:[%s5373 + $0x10] sm:$0xf]
    %v5379 = vld [vmem:[%s5373 + $0x14] sm:$0xf]
    %v5380 = vld [vmem:[%s5373 + $0x18] sm:$0xf]
    %v5381 = vld [vmem:[%s5373 + $0x1c] sm:$0xf]
    %v5390 = vunpack.c.l.b16 %v5374
    %v5391 = vunpack.c.l.b16 %v5375
    %v5392 = vunpack.c.l.b16 %v5376
    %v5393 = vunpack.c.l.b16 %v5377
    %v5394 = vunpack.c.l.b16 %v5378
    %v5395 = vunpack.c.l.b16 %v5379
    %v5396 = vunpack.c.l.b16 %v5380
    %v5397 = vunpack.c.l.b16 %v5381
    %v5398 = vpack.c.b16 %v5391, %v5390
    %v5399 = vpack.c.b16 %v5393, %v5392
    %v5400 = vpack.c.b16 %v5395, %v5394
    %v5401 = vpack.c.b16 %v5397, %v5396
    %v5403 = vsel %vm242, %v5398, 0
    %v5406 = vsel %vm242, %v5399, 0
    %v5409 = vsel %vm242, %v5400, 0
    %v5412 = vsel %vm242, %v5401, 0
    %5414 = vmatprep.subr.bf16.mxu0 0
    %5415 = vmatpush1.bf16.msra.mxu0 0
    %5416 = vmatprep.subr.bf16.mxu0 0
    %5417 = vmatpush1.bf16.msra.mxu0 0
    %5418 = vmatprep.subr.bf16.mxu0 0
    %5419 = vmatpush1.bf16.msra.mxu0 0
    %5420 = vmatprep.subr.bf16.mxu0 0
    %5421 = vmatpush1.bf16.msra.mxu0 0
    %5422 = vmatprep.subr.bf16.mxu0 0
    %5423 = vmatpush1.bf16.msra.mxu0 %v5144
    %5424 = vmatprep.subr.bf16.mxu0 0
    %5425 = vmatpush1.bf16.msra.mxu0 %v5142
    %5426 = vmatprep.subr.bf16.mxu0 0
    %5427 = vmatpush1.bf16.msra.mxu0 %v5140
    %5428 = vmatprep.subr.bf16.mxu0 0
    %5429 = vmatpush1.bf16.msra.mxu0 %v5138
    %5430 = vmatprep.subr.bf16.mxu0 0
    %5431 = vmatpush2.bf16.msra.mxu0 0
    %5432 = vmatprep.subr.bf16.mxu0 0
    %5433 = vmatpush2.bf16.msra.mxu0 0
    %5434 = vmatprep.subr.bf16.mxu0 0
    %5435 = vmatpush2.bf16.msra.mxu0 0
    %5436 = vmatprep.subr.bf16.mxu0 0
    %5437 = vmatpush2.bf16.msra.mxu0 0
    %5438 = vmatprep.subr.bf16.mxu0 0
    %5439 = vmatpush2.bf16.msra.mxu0 0
    %5440 = vmatprep.subr.bf16.mxu0 0
    %5441 = vmatpush2.bf16.msra.mxu0 0
    %5442 = vmatprep.subr.bf16.mxu0 0
    %5443 = vmatpush2.bf16.msra.mxu0 0
    %5444 = vmatprep.subr.bf16.mxu0 0
    %5445 = vmatpush2.bf16.msra.mxu0 0
    %5446 = vmatprep.mubr.bf16.mxu0 0
    %5447 = vmatmul.mubr.bf16.gmra.mxu0 %v5403
    %v5448 = vpop.f32.mrf.mxu0
    %v5449 = vadd.f32 0.0, %v5448
    %v5450 = vpop.f32.mrf.mxu0
    %v5451 = vpop.f32.mrf.mxu0
    %v5452 = vadd.f32 0.0, %v5451
    %v5453 = vpop.f32.mrf.mxu0
    %5454 = vmatprep.mubr.bf16.mxu0 0
    %5455 = vmatmul.mubr.bf16.gmra.mxu0 %v5406
    %v5456 = vpop.f32.mrf.mxu0
    %v5457 = vadd.f32 0.0, %v5456
    %v5458 = vpop.f32.mrf.mxu0
    %v5459 = vpop.f32.mrf.mxu0
    %v5460 = vadd.f32 0.0, %v5459
    %v5461 = vpop.f32.mrf.mxu0
    %5462 = vmatprep.mubr.bf16.mxu0 0
    %5463 = vmatmul.mubr.bf16.gmra.mxu0 %v5409
    %v5464 = vpop.f32.mrf.mxu0
    %v5465 = vadd.f32 0.0, %v5464
    %v5466 = vpop.f32.mrf.mxu0
    %v5467 = vpop.f32.mrf.mxu0
    %v5468 = vadd.f32 0.0, %v5467
    %v5469 = vpop.f32.mrf.mxu0
    %5470 = vmatprep.mubr.bf16.mxu0 0
    %5471 = vmatmul.mubr.bf16.gmra.mxu0 %v5412
    %v5472 = vpop.f32.mrf.mxu0
    %v5473 = vadd.f32 0.0, %v5472
    %v5474 = vpop.f32.mrf.mxu0
    %v5475 = vpop.f32.mrf.mxu0
    %v5476 = vadd.f32 0.0, %v5475
    %v5477 = vpop.f32.mrf.mxu0
    %5478 = vdwg.mxu0
    %v5479 = vadd.f32 %v5343, %v5449
    %v5480 = vadd.f32 %v5346, %v5452
    %v5481 = vadd.f32 %v5351, %v5457
    %v5482 = vadd.f32 %v5354, %v5460
    %v5483 = vadd.f32 %v5359, %v5465
    %v5484 = vadd.f32 %v5362, %v5468
    %v5485 = vadd.f32 %v5367, %v5473
    %v5486 = vadd.f32 %v5370, %v5476
    %s5487 = scalar_lea.vmem [#allocation11], 480
    %v5488 = vld [vmem:[%s5487] sm:$0xf]
    %v5489 = vld [vmem:[%s5487 + $0x4] sm:$0xf]
    %v5490 = vld [vmem:[%s5487 + $0x8] sm:$0xf]
    %v5491 = vld [vmem:[%s5487 + $0xc] sm:$0xf]
    %v5492 = vld [vmem:[%s5487 + $0x10] sm:$0xf]
    %v5493 = vld [vmem:[%s5487 + $0x14] sm:$0xf]
    %v5494 = vld [vmem:[%s5487 + $0x18] sm:$0xf]
    %v5495 = vld [vmem:[%s5487 + $0x1c] sm:$0xf]
    %v5504 = vunpack.c.l.b16 %v5488
    %v5505 = vunpack.c.l.b16 %v5489
    %v5506 = vunpack.c.l.b16 %v5490
    %v5507 = vunpack.c.l.b16 %v5491
    %v5508 = vunpack.c.l.b16 %v5492
    %v5509 = vunpack.c.l.b16 %v5493
    %v5510 = vunpack.c.l.b16 %v5494
    %v5511 = vunpack.c.l.b16 %v5495
    %v5512 = vpack.c.b16 %v5505, %v5504
    %v5513 = vpack.c.b16 %v5507, %v5506
    %v5514 = vpack.c.b16 %v5509, %v5508
    %v5515 = vpack.c.b16 %v5511, %v5510
    %5520 = vrot.lane.b32.xlu0 %v5138, 64
    %v5521 = vpop.permute.xlu0 %5520
    %5522 = vrot.lane.b32.xlu0 %v5140, 64
    %v5523 = vpop.permute.xlu0 %5522
    %5524 = vrot.lane.b32.xlu0 %v5142, 64
    %v5525 = vpop.permute.xlu0 %5524
    %5526 = vrot.lane.b32.xlu0 %v5144, 64
    %v5527 = vpop.permute.xlu0 %5526
    %v5533 = vsel %vm242, %v5512, 0
    %v5536 = vsel %vm242, %v5513, 0
    %v5539 = vsel %vm242, %v5514, 0
    %v5542 = vsel %vm242, %v5515, 0
    %5544 = vmatprep.subr.bf16.mxu0 0
    %5545 = vmatpush1.bf16.msra.mxu0 0
    %5546 = vmatprep.subr.bf16.mxu0 0
    %5547 = vmatpush1.bf16.msra.mxu0 0
    %5548 = vmatprep.subr.bf16.mxu0 0
    %5549 = vmatpush1.bf16.msra.mxu0 0
    %5550 = vmatprep.subr.bf16.mxu0 0
    %5551 = vmatpush1.bf16.msra.mxu0 0
    %5552 = vmatprep.subr.bf16.mxu0 0
    %5553 = vmatpush1.bf16.msra.mxu0 %v5527
    %5554 = vmatprep.subr.bf16.mxu0 0
    %5555 = vmatpush1.bf16.msra.mxu0 %v5525
    %5556 = vmatprep.subr.bf16.mxu0 0
    %5557 = vmatpush1.bf16.msra.mxu0 %v5523
    %5558 = vmatprep.subr.bf16.mxu0 0
    %5559 = vmatpush1.bf16.msra.mxu0 %v5521
    %5560 = vmatprep.subr.bf16.mxu0 0
    %5561 = vmatpush2.bf16.msra.mxu0 0
    %5562 = vmatprep.subr.bf16.mxu0 0
    %5563 = vmatpush2.bf16.msra.mxu0 0
    %5564 = vmatprep.subr.bf16.mxu0 0
    %5565 = vmatpush2.bf16.msra.mxu0 0
    %5566 = vmatprep.subr.bf16.mxu0 0
    %5567 = vmatpush2.bf16.msra.mxu0 0
    %5568 = vmatprep.subr.bf16.mxu0 0
    %5569 = vmatpush2.bf16.msra.mxu0 0
    %5570 = vmatprep.subr.bf16.mxu0 0
    %5571 = vmatpush2.bf16.msra.mxu0 0
    %5572 = vmatprep.subr.bf16.mxu0 0
    %5573 = vmatpush2.bf16.msra.mxu0 0
    %5574 = vmatprep.subr.bf16.mxu0 0
    %5575 = vmatpush2.bf16.msra.mxu0 0
    %5576 = vmatprep.mubr.bf16.mxu0 0
    %5577 = vmatmul.mubr.bf16.gmra.mxu0 %v5533
    %v5578 = vpop.f32.mrf.mxu0
    %v5579 = vadd.f32 0.0, %v5578
    %v5580 = vpop.f32.mrf.mxu0
    %v5581 = vpop.f32.mrf.mxu0
    %v5582 = vadd.f32 0.0, %v5581
    %v5583 = vpop.f32.mrf.mxu0
    %5584 = vmatprep.mubr.bf16.mxu0 0
    %5585 = vmatmul.mubr.bf16.gmra.mxu0 %v5536
    %v5586 = vpop.f32.mrf.mxu0
    %v5587 = vadd.f32 0.0, %v5586
    %v5588 = vpop.f32.mrf.mxu0
    %v5589 = vpop.f32.mrf.mxu0
    %v5590 = vadd.f32 0.0, %v5589
    %v5591 = vpop.f32.mrf.mxu0
    %5592 = vmatprep.mubr.bf16.mxu0 0
    %5593 = vmatmul.mubr.bf16.gmra.mxu0 %v5539
    %v5594 = vpop.f32.mrf.mxu0
    %v5595 = vadd.f32 0.0, %v5594
    %v5596 = vpop.f32.mrf.mxu0
    %v5597 = vpop.f32.mrf.mxu0
    %v5598 = vadd.f32 0.0, %v5597
    %v5599 = vpop.f32.mrf.mxu0
    %5600 = vmatprep.mubr.bf16.mxu0 0
    %5601 = vmatmul.mubr.bf16.gmra.mxu0 %v5542
    %v5602 = vpop.f32.mrf.mxu0
    %v5603 = vadd.f32 0.0, %v5602
    %v5604 = vpop.f32.mrf.mxu0
    %v5605 = vpop.f32.mrf.mxu0
    %v5606 = vadd.f32 0.0, %v5605
    %v5607 = vpop.f32.mrf.mxu0
    %5608 = vdwg.mxu0
    %v5609 = vadd.f32 %v5479, %v5579
    %v5610 = vadd.f32 %v5480, %v5582
    %v5611 = vadd.f32 %v5481, %v5587
    %v5612 = vadd.f32 %v5482, %v5590
    %v5613 = vadd.f32 %v5483, %v5595
    %v5614 = vadd.f32 %v5484, %v5598
    %v5615 = vadd.f32 %v5485, %v5603
    %v5616 = vadd.f32 %v5486, %v5606
    %s5617 = scalar_lea.vmem [#allocation9], 12
    %v5618 = vld [vmem:[%s5617] sm:$0x7]
    %v5619 = vlaneseq
    %v5620 = vshrl.u32 %v5619, 7
    %v5621 = vsub.s32 0, %v5620
    %v5622 = vrot.slane %v5618, %v5621
    %v5623 = vadd.f32 %v5609, %v5622
    %v5624 = vadd.f32 %v5610, %v5622
    %v5625 = vadd.f32 %v5611, %v5622
    %v5626 = vadd.f32 %v5612, %v5622
    %v5627 = vadd.f32 %v5613, %v5622
    %v5628 = vadd.f32 %v5614, %v5622
    %v5629 = vadd.f32 %v5615, %v5622
    %v5630 = vadd.f32 %v5616, %v5622
    %vm5631 = vcmp.gt.f32.partialorder %v5623, 0.0
    %vm5632 = vcmp.gt.f32.partialorder %v5624, 0.0
    %vm5633 = vcmp.gt.f32.partialorder %v5625, 0.0
    %vm5634 = vcmp.gt.f32.partialorder %v5626, 0.0
    %vm5635 = vcmp.gt.f32.partialorder %v5627, 0.0
    %vm5636 = vcmp.gt.f32.partialorder %v5628, 0.0
    %vm5637 = vcmp.gt.f32.partialorder %v5629, 0.0
    %vm5638 = vcmp.gt.f32.partialorder %v5630, 0.0
    %v5639 = vmul.f32 %v5623, 0.2
    %v5640 = vmul.f32 %v5624, 0.2
    %v5641 = vmul.f32 %v5625, 0.2
    %v5642 = vmul.f32 %v5626, 0.2
    %v5643 = vmul.f32 %v5627, 0.2
    %v5644 = vmul.f32 %v5628, 0.2
    %v5645 = vmul.f32 %v5629, 0.2
    %v5646 = vmul.f32 %v5630, 0.2
    %v5647 = vsel %vm5631, %v5623, %v5639
    %v5648 = vsel %vm5632, %v5624, %v5640
    %v5649 = vsel %vm5633, %v5625, %v5641
    %v5650 = vsel %vm5634, %v5626, %v5642
    %v5651 = vsel %vm5635, %v5627, %v5643
    %v5652 = vsel %vm5636, %v5628, %v5644
    %v5653 = vsel %vm5637, %v5629, %v5645
    %v5654 = vsel %vm5638, %v5630, %v5646
    %v5655 = vlaneseq
    %v5656 = vshrl.u32 %v5655, 7
    %v5657 = vsub.s32 1, %v5656
    %v5658 = vrot.slane %v5618, %v5657
    %v5659 = vmul.f32 %v5647, %v5658
    %v5660 = vmul.f32 %v5648, %v5658
    %v5661 = vmul.f32 %v5649, %v5658
    %v5662 = vmul.f32 %v5650, %v5658
    %v5663 = vmul.f32 %v5651, %v5658
    %v5664 = vmul.f32 %v5652, %v5658
    %v5665 = vmul.f32 %v5653, %v5658
    %v5666 = vmul.f32 %v5654, %v5658
    %v5667 = vlaneseq
    %v5668 = vshrl.u32 %v5667, 7
    %v5669 = vsub.s32 2, %v5668
    %v5670 = vrot.slane %v5618, %v5669
    %v5671 = vadd.f32 %v5659, %v5670
    %v5672 = vadd.f32 %v5660, %v5670
    %v5673 = vadd.f32 %v5661, %v5670
    %v5674 = vadd.f32 %v5662, %v5670
    %v5675 = vadd.f32 %v5663, %v5670
    %v5676 = vadd.f32 %v5664, %v5670
    %v5677 = vadd.f32 %v5665, %v5670
    %v5678 = vadd.f32 %v5666, %v5670
    %v5679 = vadd.f32 %v5671, %v730
    %v5680 = vadd.f32 %v5672, %v731
    %v5681 = vadd.f32 %v5673, %v732
    %v5682 = vadd.f32 %v5674, %v733
    %v5683 = vadd.f32 %v5675, %v734
    %v5684 = vadd.f32 %v5676, %v735
    %v5685 = vadd.f32 %v5677, %v736
    %v5686 = vadd.f32 %v5678, %v737
    %v5687 = vpack.c.bf16 %v5680, %v5679
    %v5688 = vpack.c.bf16 %v5682, %v5681
    %v5689 = vpack.c.bf16 %v5684, %v5683
    %v5690 = vpack.c.bf16 %v5686, %v5685
    %s5691 = scalar_lea.vmem [#allocation8], 256
    %v5692 = vld [vmem:[%s5691] sm:$0xff]
    %v5693 = vld [vmem:[%s5691 + $0x8] sm:$0xff]
    %v5694 = vld [vmem:[%s5691 + $0x10] sm:$0xff]
    %v5695 = vld [vmem:[%s5691 + $0x18] sm:$0xff]
    %v5696 = vld [vmem:[%s5691 + $0x20] sm:$0xff]
    %v5697 = vld [vmem:[%s5691 + $0x28] sm:$0xff]
    %v5698 = vld [vmem:[%s5691 + $0x30] sm:$0xff]
    %v5699 = vld [vmem:[%s5691 + $0x38] sm:$0xff]
    %v5708 = vunpack.c.l.b16 %v5692
    %v5709 = vunpack.c.h.b16 %v5692
    %v5710 = vunpack.c.l.b16 %v5693
    %v5711 = vunpack.c.h.b16 %v5693
    %v5712 = vunpack.c.l.b16 %v5694
    %v5713 = vunpack.c.h.b16 %v5694
    %v5714 = vunpack.c.l.b16 %v5695
    %v5715 = vunpack.c.h.b16 %v5695
    %v5716 = vunpack.c.l.b16 %v5696
    %v5717 = vunpack.c.h.b16 %v5696
    %v5718 = vunpack.c.l.b16 %v5697
    %v5719 = vunpack.c.h.b16 %v5697
    %v5720 = vunpack.c.l.b16 %v5698
    %v5721 = vunpack.c.h.b16 %v5698
    %v5722 = vunpack.c.l.b16 %v5699
    %v5723 = vunpack.c.h.b16 %v5699
    %v5724 = vpack.c.b16 %v5710, %v5708
    %v5725 = vpack.c.b16 %v5711, %v5709
    %v5726 = vpack.c.b16 %v5714, %v5712
    %v5727 = vpack.c.b16 %v5715, %v5713
    %v5728 = vpack.c.b16 %v5718, %v5716
    %v5729 = vpack.c.b16 %v5719, %v5717
    %v5730 = vpack.c.b16 %v5722, %v5720
    %v5731 = vpack.c.b16 %v5723, %v5721
    %v5741 = vsel %vm242, %v5687, 0
    %v5744 = vsel %vm242, %v5688, 0
    %v5747 = vsel %vm242, %v5689, 0
    %v5750 = vsel %vm242, %v5690, 0
    %5752 = vmatprep.subr.bf16.mxu0 0
    %5753 = vmatpush1.bf16.msra.mxu0 0
    %5754 = vmatprep.subr.bf16.mxu0 0
    %5755 = vmatpush1.bf16.msra.mxu0 0
    %5756 = vmatprep.subr.bf16.mxu0 0
    %5757 = vmatpush1.bf16.msra.mxu0 0
    %5758 = vmatprep.subr.bf16.mxu0 0
    %5759 = vmatpush1.bf16.msra.mxu0 0
    %5760 = vmatprep.subr.bf16.mxu0 %v5731
    %5761 = vmatpush1.bf16.msra.mxu0 %v5730
    %5762 = vmatprep.subr.bf16.mxu0 %v5729
    %5763 = vmatpush1.bf16.msra.mxu0 %v5728
    %5764 = vmatprep.subr.bf16.mxu0 %v5727
    %5765 = vmatpush1.bf16.msra.mxu0 %v5726
    %5766 = vmatprep.subr.bf16.mxu0 %v5725
    %5767 = vmatpush1.bf16.msra.mxu0 %v5724
    %5768 = vmatprep.subr.bf16.mxu0 0
    %5769 = vmatpush2.bf16.msra.mxu0 0
    %5770 = vmatprep.subr.bf16.mxu0 0
    %5771 = vmatpush2.bf16.msra.mxu0 0
    %5772 = vmatprep.subr.bf16.mxu0 0
    %5773 = vmatpush2.bf16.msra.mxu0 0
    %5774 = vmatprep.subr.bf16.mxu0 0
    %5775 = vmatpush2.bf16.msra.mxu0 0
    %5776 = vmatprep.subr.bf16.mxu0 0
    %5777 = vmatpush2.bf16.msra.mxu0 0
    %5778 = vmatprep.subr.bf16.mxu0 0
    %5779 = vmatpush2.bf16.msra.mxu0 0
    %5780 = vmatprep.subr.bf16.mxu0 0
    %5781 = vmatpush2.bf16.msra.mxu0 0
    %5782 = vmatprep.subr.bf16.mxu0 0
    %5783 = vmatpush2.bf16.msra.mxu0 0
    %5784 = vmatprep.mubr.bf16.mxu0 0
    %5785 = vmatmul.mubr.bf16.gmra.mxu0 %v5741
    %v5786 = vpop.f32.mrf.mxu0
    %v5787 = vadd.f32 0.0, %v5786
    %v5788 = vpop.f32.mrf.mxu0
    %v5789 = vadd.f32 0.0, %v5788
    %v5790 = vpop.f32.mrf.mxu0
    %v5791 = vadd.f32 0.0, %v5790
    %v5792 = vpop.f32.mrf.mxu0
    %v5793 = vadd.f32 0.0, %v5792
    %5794 = vmatprep.mubr.bf16.mxu0 0
    %5795 = vmatmul.mubr.bf16.gmra.mxu0 %v5744
    %v5796 = vpop.f32.mrf.mxu0
    %v5797 = vadd.f32 0.0, %v5796
    %v5798 = vpop.f32.mrf.mxu0
    %v5799 = vadd.f32 0.0, %v5798
    %v5800 = vpop.f32.mrf.mxu0
    %v5801 = vadd.f32 0.0, %v5800
    %v5802 = vpop.f32.mrf.mxu0
    %v5803 = vadd.f32 0.0, %v5802
    %5804 = vmatprep.mubr.bf16.mxu0 0
    %5805 = vmatmul.mubr.bf16.gmra.mxu0 %v5747
    %v5806 = vpop.f32.mrf.mxu0
    %v5807 = vadd.f32 0.0, %v5806
    %v5808 = vpop.f32.mrf.mxu0
    %v5809 = vadd.f32 0.0, %v5808
    %v5810 = vpop.f32.mrf.mxu0
    %v5811 = vadd.f32 0.0, %v5810
    %v5812 = vpop.f32.mrf.mxu0
    %v5813 = vadd.f32 0.0, %v5812
    %5814 = vmatprep.mubr.bf16.mxu0 0
    %5815 = vmatmul.mubr.bf16.gmra.mxu0 %v5750
    %v5816 = vpop.f32.mrf.mxu0
    %v5817 = vadd.f32 0.0, %v5816
    %v5818 = vpop.f32.mrf.mxu0
    %v5819 = vadd.f32 0.0, %v5818
    %v5820 = vpop.f32.mrf.mxu0
    %v5821 = vadd.f32 0.0, %v5820
    %v5822 = vpop.f32.mrf.mxu0
    %v5823 = vadd.f32 0.0, %v5822
    %5824 = vdwg.mxu0
    %v5825 = vpack.c.bf16 %v5791, %v5787
    %v5826 = vpack.c.bf16 %v5793, %v5789
    %v5827 = vpack.c.bf16 %v5801, %v5797
    %v5828 = vpack.c.bf16 %v5803, %v5799
    %v5829 = vpack.c.bf16 %v5811, %v5807
    %v5830 = vpack.c.bf16 %v5813, %v5809
    %v5831 = vpack.c.bf16 %v5821, %v5817
    %v5832 = vpack.c.bf16 %v5823, %v5819
    %s5833 = scalar_lea.vmem [#allocation11], 512
    %v5834 = vld [vmem:[%s5833] sm:$0xf]
    %v5835 = vld [vmem:[%s5833 + $0x4] sm:$0xf]
    %v5836 = vld [vmem:[%s5833 + $0x8] sm:$0xf]
    %v5837 = vld [vmem:[%s5833 + $0xc] sm:$0xf]
    %v5838 = vld [vmem:[%s5833 + $0x10] sm:$0xf]
    %v5839 = vld [vmem:[%s5833 + $0x14] sm:$0xf]
    %v5840 = vld [vmem:[%s5833 + $0x18] sm:$0xf]
    %v5841 = vld [vmem:[%s5833 + $0x1c] sm:$0xf]
    %s5842 = scalar_lea.vmem [#allocation11], 544
    %v5843 = vld [vmem:[%s5842] sm:$0xf]
    %v5844 = vld [vmem:[%s5842 + $0x4] sm:$0xf]
    %v5845 = vld [vmem:[%s5842 + $0x8] sm:$0xf]
    %v5846 = vld [vmem:[%s5842 + $0xc] sm:$0xf]
    %v5847 = vld [vmem:[%s5842 + $0x10] sm:$0xf]
    %v5848 = vld [vmem:[%s5842 + $0x14] sm:$0xf]
    %v5849 = vld [vmem:[%s5842 + $0x18] sm:$0xf]
    %v5850 = vld [vmem:[%s5842 + $0x1c] sm:$0xf]
    %v5859 = vunpack.c.l.b16 %v5843
    %v5860 = vunpack.c.l.b16 %v5844
    %v5861 = vunpack.c.l.b16 %v5845
    %v5862 = vunpack.c.l.b16 %v5846
    %v5863 = vunpack.c.l.b16 %v5847
    %v5864 = vunpack.c.l.b16 %v5848
    %v5865 = vunpack.c.l.b16 %v5849
    %v5866 = vunpack.c.l.b16 %v5850
    %v5867 = vpack.c.b16 %v5860, %v5859
    %v5868 = vpack.c.b16 %v5862, %v5861
    %v5869 = vpack.c.b16 %v5864, %v5863
    %v5870 = vpack.c.b16 %v5866, %v5865
    %5875 = vrot.lane.b32.xlu0 %v5825, 64
    %v5876 = vpop.permute.xlu0 %5875
    %5877 = vrot.lane.b32.xlu0 %v5827, 64
    %v5878 = vpop.permute.xlu0 %5877
    %5879 = vrot.lane.b32.xlu0 %v5829, 64
    %v5880 = vpop.permute.xlu0 %5879
    %5881 = vrot.lane.b32.xlu0 %v5831, 64
    %v5882 = vpop.permute.xlu0 %5881
    %v5888 = vsel %vm242, %v5867, 0
    %v5891 = vsel %vm242, %v5868, 0
    %v5894 = vsel %vm242, %v5869, 0
    %v5897 = vsel %vm242, %v5870, 0
    %5899 = vmatprep.subr.bf16.mxu0 0
    %5900 = vmatpush1.bf16.msra.mxu0 0
    %5901 = vmatprep.subr.bf16.mxu0 0
    %5902 = vmatpush1.bf16.msra.mxu0 0
    %5903 = vmatprep.subr.bf16.mxu0 0
    %5904 = vmatpush1.bf16.msra.mxu0 0
    %5905 = vmatprep.subr.bf16.mxu0 0
    %5906 = vmatpush1.bf16.msra.mxu0 0
    %5907 = vmatprep.subr.bf16.mxu0 0
    %5908 = vmatpush1.bf16.msra.mxu0 %v5882
    %5909 = vmatprep.subr.bf16.mxu0 0
    %5910 = vmatpush1.bf16.msra.mxu0 %v5880
    %5911 = vmatprep.subr.bf16.mxu0 0
    %5912 = vmatpush1.bf16.msra.mxu0 %v5878
    %5913 = vmatprep.subr.bf16.mxu0 0
    %5914 = vmatpush1.bf16.msra.mxu0 %v5876
    %5915 = vmatprep.subr.bf16.mxu0 0
    %5916 = vmatpush2.bf16.msra.mxu0 0
    %5917 = vmatprep.subr.bf16.mxu0 0
    %5918 = vmatpush2.bf16.msra.mxu0 0
    %5919 = vmatprep.subr.bf16.mxu0 0
    %5920 = vmatpush2.bf16.msra.mxu0 0
    %5921 = vmatprep.subr.bf16.mxu0 0
    %5922 = vmatpush2.bf16.msra.mxu0 0
    %5923 = vmatprep.subr.bf16.mxu0 0
    %5924 = vmatpush2.bf16.msra.mxu0 0
    %5925 = vmatprep.subr.bf16.mxu0 0
    %5926 = vmatpush2.bf16.msra.mxu0 0
    %5927 = vmatprep.subr.bf16.mxu0 0
    %5928 = vmatpush2.bf16.msra.mxu0 0
    %5929 = vmatprep.subr.bf16.mxu0 0
    %5930 = vmatpush2.bf16.msra.mxu0 0
    %5931 = vmatprep.mubr.bf16.mxu0 0
    %5932 = vmatmul.mubr.bf16.gmra.mxu0 %v5888
    %v5933 = vpop.f32.mrf.mxu0
    %v5934 = vadd.f32 0.0, %v5933
    %v5935 = vpop.f32.mrf.mxu0
    %v5936 = vpop.f32.mrf.mxu0
    %v5937 = vadd.f32 0.0, %v5936
    %v5938 = vpop.f32.mrf.mxu0
    %5939 = vmatprep.mubr.bf16.mxu0 0
    %5940 = vmatmul.mubr.bf16.gmra.mxu0 %v5891
    %v5941 = vpop.f32.mrf.mxu0
    %v5942 = vadd.f32 0.0, %v5941
    %v5943 = vpop.f32.mrf.mxu0
    %v5944 = vpop.f32.mrf.mxu0
    %v5945 = vadd.f32 0.0, %v5944
    %v5946 = vpop.f32.mrf.mxu0
    %5947 = vmatprep.mubr.bf16.mxu0 0
    %5948 = vmatmul.mubr.bf16.gmra.mxu0 %v5894
    %v5949 = vpop.f32.mrf.mxu0
    %v5950 = vadd.f32 0.0, %v5949
    %v5951 = vpop.f32.mrf.mxu0
    %v5952 = vpop.f32.mrf.mxu0
    %v5953 = vadd.f32 0.0, %v5952
    %v5954 = vpop.f32.mrf.mxu0
    %5955 = vmatprep.mubr.bf16.mxu0 0
    %5956 = vmatmul.mubr.bf16.gmra.mxu0 %v5897
    %v5957 = vpop.f32.mrf.mxu0
    %v5958 = vadd.f32 0.0, %v5957
    %v5959 = vpop.f32.mrf.mxu0
    %v5960 = vpop.f32.mrf.mxu0
    %v5961 = vadd.f32 0.0, %v5960
    %v5962 = vpop.f32.mrf.mxu0
    %5963 = vdwg.mxu0
    %v5972 = vunpack.c.l.b16 %v5834
    %v5973 = vunpack.c.l.b16 %v5835
    %v5974 = vunpack.c.l.b16 %v5836
    %v5975 = vunpack.c.l.b16 %v5837
    %v5976 = vunpack.c.l.b16 %v5838
    %v5977 = vunpack.c.l.b16 %v5839
    %v5978 = vunpack.c.l.b16 %v5840
    %v5979 = vunpack.c.l.b16 %v5841
    %v5980 = vpack.c.b16 %v5973, %v5972
    %v5981 = vpack.c.b16 %v5975, %v5974
    %v5982 = vpack.c.b16 %v5977, %v5976
    %v5983 = vpack.c.b16 %v5979, %v5978
    %v5985 = vsel %vm242, %v5980, 0
    %v5988 = vsel %vm242, %v5981, 0
    %v5991 = vsel %vm242, %v5982, 0
    %v5994 = vsel %vm242, %v5983, 0
    %5996 = vmatprep.subr.bf16.mxu0 0
    %5997 = vmatpush1.bf16.msra.mxu0 0
    %5998 = vmatprep.subr.bf16.mxu0 0
    %5999 = vmatpush1.bf16.msra.mxu0 0
    %6000 = vmatprep.subr.bf16.mxu0 0
    %6001 = vmatpush1.bf16.msra.mxu0 0
    %6002 = vmatprep.subr.bf16.mxu0 0
    %6003 = vmatpush1.bf16.msra.mxu0 0
    %6004 = vmatprep.subr.bf16.mxu0 0
    %6005 = vmatpush1.bf16.msra.mxu0 %v5831
    %6006 = vmatprep.subr.bf16.mxu0 0
    %6007 = vmatpush1.bf16.msra.mxu0 %v5829
    %6008 = vmatprep.subr.bf16.mxu0 0
    %6009 = vmatpush1.bf16.msra.mxu0 %v5827
    %6010 = vmatprep.subr.bf16.mxu0 0
    %6011 = vmatpush1.bf16.msra.mxu0 %v5825
    %6012 = vmatprep.subr.bf16.mxu0 0
    %6013 = vmatpush2.bf16.msra.mxu0 0
    %6014 = vmatprep.subr.bf16.mxu0 0
    %6015 = vmatpush2.bf16.msra.mxu0 0
    %6016 = vmatprep.subr.bf16.mxu0 0
    %6017 = vmatpush2.bf16.msra.mxu0 0
    %6018 = vmatprep.subr.bf16.mxu0 0
    %6019 = vmatpush2.bf16.msra.mxu0 0
    %6020 = vmatprep.subr.bf16.mxu0 0
    %6021 = vmatpush2.bf16.msra.mxu0 0
    %6022 = vmatprep.subr.bf16.mxu0 0
    %6023 = vmatpush2.bf16.msra.mxu0 0
    %6024 = vmatprep.subr.bf16.mxu0 0
    %6025 = vmatpush2.bf16.msra.mxu0 0
    %6026 = vmatprep.subr.bf16.mxu0 0
    %6027 = vmatpush2.bf16.msra.mxu0 0
    %6028 = vmatprep.mubr.bf16.mxu0 0
    %6029 = vmatmul.mubr.bf16.gmra.mxu0 %v5985
    %v6030 = vpop.f32.mrf.mxu0
    %v6031 = vadd.f32 %v5934, %v6030
    %v6032 = vpop.f32.mrf.mxu0
    %v6033 = vpop.f32.mrf.mxu0
    %v6034 = vadd.f32 %v5937, %v6033
    %v6035 = vpop.f32.mrf.mxu0
    %6036 = vmatprep.mubr.bf16.mxu0 0
    %6037 = vmatmul.mubr.bf16.gmra.mxu0 %v5988
    %v6038 = vpop.f32.mrf.mxu0
    %v6039 = vadd.f32 %v5942, %v6038
    %v6040 = vpop.f32.mrf.mxu0
    %v6041 = vpop.f32.mrf.mxu0
    %v6042 = vadd.f32 %v5945, %v6041
    %v6043 = vpop.f32.mrf.mxu0
    %6044 = vmatprep.mubr.bf16.mxu0 0
    %6045 = vmatmul.mubr.bf16.gmra.mxu0 %v5991
    %v6046 = vpop.f32.mrf.mxu0
    %v6047 = vadd.f32 %v5950, %v6046
    %v6048 = vpop.f32.mrf.mxu0
    %v6049 = vpop.f32.mrf.mxu0
    %v6050 = vadd.f32 %v5953, %v6049
    %v6051 = vpop.f32.mrf.mxu0
    %6052 = vmatprep.mubr.bf16.mxu0 0
    %6053 = vmatmul.mubr.bf16.gmra.mxu0 %v5994
    %v6054 = vpop.f32.mrf.mxu0
    %v6055 = vadd.f32 %v5958, %v6054
    %v6056 = vpop.f32.mrf.mxu0
    %v6057 = vpop.f32.mrf.mxu0
    %v6058 = vadd.f32 %v5961, %v6057
    %v6059 = vpop.f32.mrf.mxu0
    %6060 = vdwg.mxu0
    %s6061 = scalar_lea.vmem [#allocation11], 576
    %v6062 = vld [vmem:[%s6061] sm:$0xf]
    %v6063 = vld [vmem:[%s6061 + $0x4] sm:$0xf]
    %v6064 = vld [vmem:[%s6061 + $0x8] sm:$0xf]
    %v6065 = vld [vmem:[%s6061 + $0xc] sm:$0xf]
    %v6066 = vld [vmem:[%s6061 + $0x10] sm:$0xf]
    %v6067 = vld [vmem:[%s6061 + $0x14] sm:$0xf]
    %v6068 = vld [vmem:[%s6061 + $0x18] sm:$0xf]
    %v6069 = vld [vmem:[%s6061 + $0x1c] sm:$0xf]
    %v6078 = vunpack.c.l.b16 %v6062
    %v6079 = vunpack.c.l.b16 %v6063
    %v6080 = vunpack.c.l.b16 %v6064
    %v6081 = vunpack.c.l.b16 %v6065
    %v6082 = vunpack.c.l.b16 %v6066
    %v6083 = vunpack.c.l.b16 %v6067
    %v6084 = vunpack.c.l.b16 %v6068
    %v6085 = vunpack.c.l.b16 %v6069
    %v6086 = vpack.c.b16 %v6079, %v6078
    %v6087 = vpack.c.b16 %v6081, %v6080
    %v6088 = vpack.c.b16 %v6083, %v6082
    %v6089 = vpack.c.b16 %v6085, %v6084
    %v6091 = vsel %vm242, %v6086, 0
    %v6094 = vsel %vm242, %v6087, 0
    %v6097 = vsel %vm242, %v6088, 0
    %v6100 = vsel %vm242, %v6089, 0
    %6102 = vmatprep.subr.bf16.mxu0 0
    %6103 = vmatpush1.bf16.msra.mxu0 0
    %6104 = vmatprep.subr.bf16.mxu0 0
    %6105 = vmatpush1.bf16.msra.mxu0 0
    %6106 = vmatprep.subr.bf16.mxu0 0
    %6107 = vmatpush1.bf16.msra.mxu0 0
    %6108 = vmatprep.subr.bf16.mxu0 0
    %6109 = vmatpush1.bf16.msra.mxu0 0
    %6110 = vmatprep.subr.bf16.mxu0 0
    %6111 = vmatpush1.bf16.msra.mxu0 %v5832
    %6112 = vmatprep.subr.bf16.mxu0 0
    %6113 = vmatpush1.bf16.msra.mxu0 %v5830
    %6114 = vmatprep.subr.bf16.mxu0 0
    %6115 = vmatpush1.bf16.msra.mxu0 %v5828
    %6116 = vmatprep.subr.bf16.mxu0 0
    %6117 = vmatpush1.bf16.msra.mxu0 %v5826
    %6118 = vmatprep.subr.bf16.mxu0 0
    %6119 = vmatpush2.bf16.msra.mxu0 0
    %6120 = vmatprep.subr.bf16.mxu0 0
    %6121 = vmatpush2.bf16.msra.mxu0 0
    %6122 = vmatprep.subr.bf16.mxu0 0
    %6123 = vmatpush2.bf16.msra.mxu0 0
    %6124 = vmatprep.subr.bf16.mxu0 0
    %6125 = vmatpush2.bf16.msra.mxu0 0
    %6126 = vmatprep.subr.bf16.mxu0 0
    %6127 = vmatpush2.bf16.msra.mxu0 0
    %6128 = vmatprep.subr.bf16.mxu0 0
    %6129 = vmatpush2.bf16.msra.mxu0 0
    %6130 = vmatprep.subr.bf16.mxu0 0
    %6131 = vmatpush2.bf16.msra.mxu0 0
    %6132 = vmatprep.subr.bf16.mxu0 0
    %6133 = vmatpush2.bf16.msra.mxu0 0
    %6134 = vmatprep.mubr.bf16.mxu0 0
    %6135 = vmatmul.mubr.bf16.gmra.mxu0 %v6091
    %v6136 = vpop.f32.mrf.mxu0
    %v6137 = vadd.f32 0.0, %v6136
    %v6138 = vpop.f32.mrf.mxu0
    %v6139 = vpop.f32.mrf.mxu0
    %v6140 = vadd.f32 0.0, %v6139
    %v6141 = vpop.f32.mrf.mxu0
    %6142 = vmatprep.mubr.bf16.mxu0 0
    %6143 = vmatmul.mubr.bf16.gmra.mxu0 %v6094
    %v6144 = vpop.f32.mrf.mxu0
    %v6145 = vadd.f32 0.0, %v6144
    %v6146 = vpop.f32.mrf.mxu0
    %v6147 = vpop.f32.mrf.mxu0
    %v6148 = vadd.f32 0.0, %v6147
    %v6149 = vpop.f32.mrf.mxu0
    %6150 = vmatprep.mubr.bf16.mxu0 0
    %6151 = vmatmul.mubr.bf16.gmra.mxu0 %v6097
    %v6152 = vpop.f32.mrf.mxu0
    %v6153 = vadd.f32 0.0, %v6152
    %v6154 = vpop.f32.mrf.mxu0
    %v6155 = vpop.f32.mrf.mxu0
    %v6156 = vadd.f32 0.0, %v6155
    %v6157 = vpop.f32.mrf.mxu0
    %6158 = vmatprep.mubr.bf16.mxu0 0
    %6159 = vmatmul.mubr.bf16.gmra.mxu0 %v6100
    %v6160 = vpop.f32.mrf.mxu0
    %v6161 = vadd.f32 0.0, %v6160
    %v6162 = vpop.f32.mrf.mxu0
    %v6163 = vpop.f32.mrf.mxu0
    %v6164 = vadd.f32 0.0, %v6163
    %v6165 = vpop.f32.mrf.mxu0
    %6166 = vdwg.mxu0
    %v6167 = vadd.f32 %v6031, %v6137
    %v6168 = vadd.f32 %v6034, %v6140
    %v6169 = vadd.f32 %v6039, %v6145
    %v6170 = vadd.f32 %v6042, %v6148
    %v6171 = vadd.f32 %v6047, %v6153
    %v6172 = vadd.f32 %v6050, %v6156
    %v6173 = vadd.f32 %v6055, %v6161
    %v6174 = vadd.f32 %v6058, %v6164
    %s6175 = scalar_lea.vmem [#allocation11], 608
    %v6176 = vld [vmem:[%s6175] sm:$0xf]
    %v6177 = vld [vmem:[%s6175 + $0x4] sm:$0xf]
    %v6178 = vld [vmem:[%s6175 + $0x8] sm:$0xf]
    %v6179 = vld [vmem:[%s6175 + $0xc] sm:$0xf]
    %v6180 = vld [vmem:[%s6175 + $0x10] sm:$0xf]
    %v6181 = vld [vmem:[%s6175 + $0x14] sm:$0xf]
    %v6182 = vld [vmem:[%s6175 + $0x18] sm:$0xf]
    %v6183 = vld [vmem:[%s6175 + $0x1c] sm:$0xf]
    %v6192 = vunpack.c.l.b16 %v6176
    %v6193 = vunpack.c.l.b16 %v6177
    %v6194 = vunpack.c.l.b16 %v6178
    %v6195 = vunpack.c.l.b16 %v6179
    %v6196 = vunpack.c.l.b16 %v6180
    %v6197 = vunpack.c.l.b16 %v6181
    %v6198 = vunpack.c.l.b16 %v6182
    %v6199 = vunpack.c.l.b16 %v6183
    %v6200 = vpack.c.b16 %v6193, %v6192
    %v6201 = vpack.c.b16 %v6195, %v6194
    %v6202 = vpack.c.b16 %v6197, %v6196
    %v6203 = vpack.c.b16 %v6199, %v6198
    %6208 = vrot.lane.b32.xlu0 %v5826, 64
    %v6209 = vpop.permute.xlu0 %6208
    %6210 = vrot.lane.b32.xlu0 %v5828, 64
    %v6211 = vpop.permute.xlu0 %6210
    %6212 = vrot.lane.b32.xlu0 %v5830, 64
    %v6213 = vpop.permute.xlu0 %6212
    %6214 = vrot.lane.b32.xlu0 %v5832, 64
    %v6215 = vpop.permute.xlu0 %6214
    %v6221 = vsel %vm242, %v6200, 0
    %v6224 = vsel %vm242, %v6201, 0
    %v6227 = vsel %vm242, %v6202, 0
    %v6230 = vsel %vm242, %v6203, 0
    %6232 = vmatprep.subr.bf16.mxu0 0
    %6233 = vmatpush1.bf16.msra.mxu0 0
    %6234 = vmatprep.subr.bf16.mxu0 0
    %6235 = vmatpush1.bf16.msra.mxu0 0
    %6236 = vmatprep.subr.bf16.mxu0 0
    %6237 = vmatpush1.bf16.msra.mxu0 0
    %6238 = vmatprep.subr.bf16.mxu0 0
    %6239 = vmatpush1.bf16.msra.mxu0 0
    %6240 = vmatprep.subr.bf16.mxu0 0
    %6241 = vmatpush1.bf16.msra.mxu0 %v6215
    %6242 = vmatprep.subr.bf16.mxu0 0
    %6243 = vmatpush1.bf16.msra.mxu0 %v6213
    %6244 = vmatprep.subr.bf16.mxu0 0
    %6245 = vmatpush1.bf16.msra.mxu0 %v6211
    %6246 = vmatprep.subr.bf16.mxu0 0
    %6247 = vmatpush1.bf16.msra.mxu0 %v6209
    %6248 = vmatprep.subr.bf16.mxu0 0
    %6249 = vmatpush2.bf16.msra.mxu0 0
    %6250 = vmatprep.subr.bf16.mxu0 0
    %6251 = vmatpush2.bf16.msra.mxu0 0
    %6252 = vmatprep.subr.bf16.mxu0 0
    %6253 = vmatpush2.bf16.msra.mxu0 0
    %6254 = vmatprep.subr.bf16.mxu0 0
    %6255 = vmatpush2.bf16.msra.mxu0 0
    %6256 = vmatprep.subr.bf16.mxu0 0
    %6257 = vmatpush2.bf16.msra.mxu0 0
    %6258 = vmatprep.subr.bf16.mxu0 0
    %6259 = vmatpush2.bf16.msra.mxu0 0
    %6260 = vmatprep.subr.bf16.mxu0 0
    %6261 = vmatpush2.bf16.msra.mxu0 0
    %6262 = vmatprep.subr.bf16.mxu0 0
    %6263 = vmatpush2.bf16.msra.mxu0 0
    %6264 = vmatprep.mubr.bf16.mxu0 0
    %6265 = vmatmul.mubr.bf16.gmra.mxu0 %v6221
    %v6266 = vpop.f32.mrf.mxu0
    %v6267 = vadd.f32 0.0, %v6266
    %v6268 = vpop.f32.mrf.mxu0
    %v6269 = vpop.f32.mrf.mxu0
    %v6270 = vadd.f32 0.0, %v6269
    %v6271 = vpop.f32.mrf.mxu0
    %6272 = vmatprep.mubr.bf16.mxu0 0
    %6273 = vmatmul.mubr.bf16.gmra.mxu0 %v6224
    %v6274 = vpop.f32.mrf.mxu0
    %v6275 = vadd.f32 0.0, %v6274
    %v6276 = vpop.f32.mrf.mxu0
    %v6277 = vpop.f32.mrf.mxu0
    %v6278 = vadd.f32 0.0, %v6277
    %v6279 = vpop.f32.mrf.mxu0
    %6280 = vmatprep.mubr.bf16.mxu0 0
    %6281 = vmatmul.mubr.bf16.gmra.mxu0 %v6227
    %v6282 = vpop.f32.mrf.mxu0
    %v6283 = vadd.f32 0.0, %v6282
    %v6284 = vpop.f32.mrf.mxu0
    %v6285 = vpop.f32.mrf.mxu0
    %v6286 = vadd.f32 0.0, %v6285
    %v6287 = vpop.f32.mrf.mxu0
    %6288 = vmatprep.mubr.bf16.mxu0 0
    %6289 = vmatmul.mubr.bf16.gmra.mxu0 %v6230
    %v6290 = vpop.f32.mrf.mxu0
    %v6291 = vadd.f32 0.0, %v6290
    %v6292 = vpop.f32.mrf.mxu0
    %v6293 = vpop.f32.mrf.mxu0
    %v6294 = vadd.f32 0.0, %v6293
    %v6295 = vpop.f32.mrf.mxu0
    %6296 = vdwg.mxu0
    %v6297 = vadd.f32 %v6167, %v6267
    %v6298 = vadd.f32 %v6168, %v6270
    %v6299 = vadd.f32 %v6169, %v6275
    %v6300 = vadd.f32 %v6170, %v6278
    %v6301 = vadd.f32 %v6171, %v6283
    %v6302 = vadd.f32 %v6172, %v6286
    %v6303 = vadd.f32 %v6173, %v6291
    %v6304 = vadd.f32 %v6174, %v6294
    %s6305 = scalar_lea.vmem [#allocation9], 16
    %v6306 = vld [vmem:[%s6305] sm:$0x7]
    %v6307 = vlaneseq
    %v6308 = vshrl.u32 %v6307, 7
    %v6309 = vsub.s32 0, %v6308
    %v6310 = vrot.slane %v6306, %v6309
    %v6311 = vadd.f32 %v6297, %v6310
    %v6312 = vadd.f32 %v6298, %v6310
    %v6313 = vadd.f32 %v6299, %v6310
    %v6314 = vadd.f32 %v6300, %v6310
    %v6315 = vadd.f32 %v6301, %v6310
    %v6316 = vadd.f32 %v6302, %v6310
    %v6317 = vadd.f32 %v6303, %v6310
    %v6318 = vadd.f32 %v6304, %v6310
    %vm6319 = vcmp.gt.f32.partialorder %v6311, 0.0
    %vm6320 = vcmp.gt.f32.partialorder %v6312, 0.0
    %vm6321 = vcmp.gt.f32.partialorder %v6313, 0.0
    %vm6322 = vcmp.gt.f32.partialorder %v6314, 0.0
    %vm6323 = vcmp.gt.f32.partialorder %v6315, 0.0
    %vm6324 = vcmp.gt.f32.partialorder %v6316, 0.0
    %vm6325 = vcmp.gt.f32.partialorder %v6317, 0.0
    %vm6326 = vcmp.gt.f32.partialorder %v6318, 0.0
    %v6327 = vmul.f32 %v6311, 0.2
    %v6328 = vmul.f32 %v6312, 0.2
    %v6329 = vmul.f32 %v6313, 0.2
    %v6330 = vmul.f32 %v6314, 0.2
    %v6331 = vmul.f32 %v6315, 0.2
    %v6332 = vmul.f32 %v6316, 0.2
    %v6333 = vmul.f32 %v6317, 0.2
    %v6334 = vmul.f32 %v6318, 0.2
    %v6335 = vsel %vm6319, %v6311, %v6327
    %v6336 = vsel %vm6320, %v6312, %v6328
    %v6337 = vsel %vm6321, %v6313, %v6329
    %v6338 = vsel %vm6322, %v6314, %v6330
    %v6339 = vsel %vm6323, %v6315, %v6331
    %v6340 = vsel %vm6324, %v6316, %v6332
    %v6341 = vsel %vm6325, %v6317, %v6333
    %v6342 = vsel %vm6326, %v6318, %v6334
    %v6343 = vlaneseq
    %v6344 = vshrl.u32 %v6343, 7
    %v6345 = vsub.s32 1, %v6344
    %v6346 = vrot.slane %v6306, %v6345
    %v6347 = vmul.f32 %v6335, %v6346
    %v6348 = vmul.f32 %v6336, %v6346
    %v6349 = vmul.f32 %v6337, %v6346
    %v6350 = vmul.f32 %v6338, %v6346
    %v6351 = vmul.f32 %v6339, %v6346
    %v6352 = vmul.f32 %v6340, %v6346
    %v6353 = vmul.f32 %v6341, %v6346
    %v6354 = vmul.f32 %v6342, %v6346
    %v6355 = vlaneseq
    %v6356 = vshrl.u32 %v6355, 7
    %v6357 = vsub.s32 2, %v6356
    %v6358 = vrot.slane %v6306, %v6357
    %v6359 = vadd.f32 %v6347, %v6358
    %v6360 = vadd.f32 %v6348, %v6358
    %v6361 = vadd.f32 %v6349, %v6358
    %v6362 = vadd.f32 %v6350, %v6358
    %v6363 = vadd.f32 %v6351, %v6358
    %v6364 = vadd.f32 %v6352, %v6358
    %v6365 = vadd.f32 %v6353, %v6358
    %v6366 = vadd.f32 %v6354, %v6358
    %v6367 = vpack.c.bf16 %v6360, %v6359
    %v6368 = vpack.c.bf16 %v6362, %v6361
    %v6369 = vpack.c.bf16 %v6364, %v6363
    %v6370 = vpack.c.bf16 %v6366, %v6365
    %v6371 = vld [vmem:[#allocation12] sm:$0xff]
    %v6372 = vld [vmem:[#allocation12 + $0x8] sm:$0xff]
    %v6373 = vld [vmem:[#allocation12 + $0x10] sm:$0xff]
    %v6374 = vld [vmem:[#allocation12 + $0x18] sm:$0xff]
    %v6375 = vld [vmem:[#allocation12 + $0x20] sm:$0xff]
    %v6376 = vld [vmem:[#allocation12 + $0x28] sm:$0xff]
    %v6377 = vld [vmem:[#allocation12 + $0x30] sm:$0xff]
    %v6378 = vld [vmem:[#allocation12 + $0x38] sm:$0xff]
    %v6379 = vld [vmem:[%s8] sm:$0x3]
    %v6381 = vlaneseq
    %v6382 = vshrl.u32 %v6381, 7
    %v6383 = vsub.s32 0, %v6382
    %v6384 = vrot.slane %v6379, %v6383
    %v6385 = vlaneseq
    %v6386 = vshrl.u32 %v6385, 7
    %v6387 = vsub.s32 1, %v6386
    %v6388 = vrot.slane %v6379, %v6387
    %v6399 = vunpack.c.l.b16 %v6371
    %v6400 = vunpack.c.h.b16 %v6371
    %v6401 = vunpack.c.l.b16 %v6372
    %v6402 = vunpack.c.h.b16 %v6372
    %v6403 = vunpack.c.l.b16 %v6373
    %v6404 = vunpack.c.h.b16 %v6373
    %v6405 = vunpack.c.l.b16 %v6374
    %v6406 = vunpack.c.h.b16 %v6374
    %v6407 = vunpack.c.l.b16 %v6375
    %v6408 = vunpack.c.h.b16 %v6375
    %v6409 = vunpack.c.l.b16 %v6376
    %v6410 = vunpack.c.h.b16 %v6376
    %v6411 = vunpack.c.l.b16 %v6377
    %v6412 = vunpack.c.h.b16 %v6377
    %v6413 = vunpack.c.l.b16 %v6378
    %v6414 = vunpack.c.h.b16 %v6378
    %v6415 = vpack.c.b16 %v6401, %v6399
    %v6416 = vpack.c.b16 %v6402, %v6400
    %v6417 = vpack.c.b16 %v6405, %v6403
    %v6418 = vpack.c.b16 %v6406, %v6404
    %v6419 = vpack.c.b16 %v6409, %v6407
    %v6420 = vpack.c.b16 %v6410, %v6408
    %v6421 = vpack.c.b16 %v6413, %v6411
    %v6422 = vpack.c.b16 %v6414, %v6412
    %v6432 = vsel %vm242, %v6367, 0
    %v6435 = vsel %vm242, %v6368, 0
    %v6438 = vsel %vm242, %v6369, 0
    %v6441 = vsel %vm242, %v6370, 0
    %6443 = vmatprep.subr.bf16.mxu0 0
    %6444 = vmatpush1.bf16.msra.mxu0 0
    %6445 = vmatprep.subr.bf16.mxu0 0
    %6446 = vmatpush1.bf16.msra.mxu0 0
    %6447 = vmatprep.subr.bf16.mxu0 0
    %6448 = vmatpush1.bf16.msra.mxu0 0
    %6449 = vmatprep.subr.bf16.mxu0 0
    %6450 = vmatpush1.bf16.msra.mxu0 0
    %6451 = vmatprep.subr.bf16.mxu0 %v6422
    %6452 = vmatpush1.bf16.msra.mxu0 %v6421
    %6453 = vmatprep.subr.bf16.mxu0 %v6420
    %6454 = vmatpush1.bf16.msra.mxu0 %v6419
    %6455 = vmatprep.subr.bf16.mxu0 %v6418
    %6456 = vmatpush1.bf16.msra.mxu0 %v6417
    %6457 = vmatprep.subr.bf16.mxu0 %v6416
    %6458 = vmatpush1.bf16.msra.mxu0 %v6415
    %6459 = vmatprep.subr.bf16.mxu0 0
    %6460 = vmatpush2.bf16.msra.mxu0 0
    %6461 = vmatprep.subr.bf16.mxu0 0
    %6462 = vmatpush2.bf16.msra.mxu0 0
    %6463 = vmatprep.subr.bf16.mxu0 0
    %6464 = vmatpush2.bf16.msra.mxu0 0
    %6465 = vmatprep.subr.bf16.mxu0 0
    %6466 = vmatpush2.bf16.msra.mxu0 0
    %6467 = vmatprep.subr.bf16.mxu0 0
    %6468 = vmatpush2.bf16.msra.mxu0 0
    %6469 = vmatprep.subr.bf16.mxu0 0
    %6470 = vmatpush2.bf16.msra.mxu0 0
    %6471 = vmatprep.subr.bf16.mxu0 0
    %6472 = vmatpush2.bf16.msra.mxu0 0
    %6473 = vmatprep.subr.bf16.mxu0 0
    %6474 = vmatpush2.bf16.msra.mxu0 0
    %6475 = vmatprep.mubr.bf16.mxu0 0
    %6476 = vmatmul.mubr.bf16.gmra.mxu0 %v6432
    %v6477 = vpop.f32.mrf.mxu0
    %v6478 = vadd.f32 %v6384, %v6477
    %v6479 = vpop.f32.mrf.mxu0
    %v6480 = vadd.f32 %v6388, %v6479
    %v6481 = vpop.f32.mrf.mxu0
    %v6482 = vadd.f32 %v6384, %v6481
    %v6483 = vpop.f32.mrf.mxu0
    %v6484 = vadd.f32 %v6388, %v6483
    %6485 = vmatprep.mubr.bf16.mxu0 0
    %6486 = vmatmul.mubr.bf16.gmra.mxu0 %v6435
    %v6487 = vpop.f32.mrf.mxu0
    %v6488 = vadd.f32 %v6384, %v6487
    %v6489 = vpop.f32.mrf.mxu0
    %v6490 = vadd.f32 %v6388, %v6489
    %v6491 = vpop.f32.mrf.mxu0
    %v6492 = vadd.f32 %v6384, %v6491
    %v6493 = vpop.f32.mrf.mxu0
    %v6494 = vadd.f32 %v6388, %v6493
    %6495 = vmatprep.mubr.bf16.mxu0 0
    %6496 = vmatmul.mubr.bf16.gmra.mxu0 %v6438
    %v6497 = vpop.f32.mrf.mxu0
    %v6498 = vadd.f32 %v6384, %v6497
    %v6499 = vpop.f32.mrf.mxu0
    %v6500 = vadd.f32 %v6388, %v6499
    %v6501 = vpop.f32.mrf.mxu0
    %v6502 = vadd.f32 %v6384, %v6501
    %v6503 = vpop.f32.mrf.mxu0
    %v6504 = vadd.f32 %v6388, %v6503
    %6505 = vmatprep.mubr.bf16.mxu0 0
    %6506 = vmatmul.mubr.bf16.gmra.mxu0 %v6441
    %v6507 = vpop.f32.mrf.mxu0
    %v6508 = vadd.f32 %v6384, %v6507
    %v6509 = vpop.f32.mrf.mxu0
    %v6510 = vadd.f32 %v6388, %v6509
    %v6511 = vpop.f32.mrf.mxu0
    %v6512 = vadd.f32 %v6384, %v6511
    %v6513 = vpop.f32.mrf.mxu0
    %v6514 = vadd.f32 %v6388, %v6513
    %6515 = vdwg.mxu0
    %6516 = vst [vmem:[#allocation18] sm:$0xff] %v6478
    %6517 = vst [vmem:[#allocation18 + $0x8] sm:$0xff] %v6480
    %6518 = vst [vmem:[#allocation18 + $0x10] sm:$0xff] %v6482
    %6519 = vst [vmem:[#allocation18 + $0x18] sm:$0xff] %v6484
    %6520 = vst [vmem:[#allocation18 + $0x20] sm:$0xff] %v6488
    %6521 = vst [vmem:[#allocation18 + $0x28] sm:$0xff] %v6490
    %6522 = vst [vmem:[#allocation18 + $0x30] sm:$0xff] %v6492
    %6523 = vst [vmem:[#allocation18 + $0x38] sm:$0xff] %v6494
    %s6524 = scalar_lea.vmem [#allocation18], 64
    %6525 = vst [vmem:[%s6524] sm:$0xff] %v6498
    %6526 = vst [vmem:[%s6524 + $0x8] sm:$0xff] %v6500
    %6527 = vst [vmem:[%s6524 + $0x10] sm:$0xff] %v6502
    %6528 = vst [vmem:[%s6524 + $0x18] sm:$0xff] %v6504
    %6529 = vst [vmem:[%s6524 + $0x20] sm:$0xff] %v6508
    %6530 = vst [vmem:[%s6524 + $0x28] sm:$0xff] %v6510
    %6531 = vst [vmem:[%s6524 + $0x30] sm:$0xff] %v6512
    %6532 = vst [vmem:[%s6524 + $0x38] sm:$0xff] %v6514
    %v6533 = vld [vmem:[#allocation14] sm:$0x3]
    %v6535 = vsel %vm242, %v6533, 0
    %6537 = vmatprep.subr.mxu0 0.0
    %6538 = vmatpush1.msra.mxu0 0.0
    %6539 = vmatprep.subr.mxu0 0.0
    %6540 = vmatpush1.msra.mxu0 0.0
    %6541 = vmatprep.subr.mxu0 0.0
    %6542 = vmatpush1.msra.mxu0 0.0
    %6543 = vmatprep.subr.mxu0 0.0
    %6544 = vmatpush1.msra.mxu0 0.0
    %6545 = vmatprep.subr.mxu0 0.0
    %6546 = vmatpush1.msra.mxu0 0.0
    %6547 = vmatprep.subr.mxu0 0.0
    %6548 = vmatpush1.msra.mxu0 0.0
    %6549 = vmatprep.subr.mxu0 0.0
    %6550 = vmatpush1.msra.mxu0 0.0
    %6551 = vmatprep.subr.mxu0 0.0
    %6552 = vmatpush1.msra.mxu0 0.0
    %6553 = vmatprep.subr.mxu0 %v6514
    %6554 = vmatpush1.msra.mxu0 %v6512
    %6555 = vmatprep.subr.mxu0 %v6510
    %6556 = vmatpush1.msra.mxu0 %v6508
    %6557 = vmatprep.subr.mxu0 %v6504
    %6558 = vmatpush1.msra.mxu0 %v6502
    %6559 = vmatprep.subr.mxu0 %v6500
    %6560 = vmatpush1.msra.mxu0 %v6498
    %6561 = vmatprep.subr.mxu0 %v6494
    %6562 = vmatpush1.msra.mxu0 %v6492
    %6563 = vmatprep.subr.mxu0 %v6490
    %6564 = vmatpush1.msra.mxu0 %v6488
    %6565 = vmatprep.subr.mxu0 %v6484
    %6566 = vmatpush1.msra.mxu0 %v6482
    %6567 = vmatprep.subr.mxu0 %v6480
    %6568 = vmatpush1.msra.mxu0 %v6478
    %6569 = vmatprep.subr.mxu0 0.0
    %6570 = vmatpush2.msra.mxu0 0.0
    %6571 = vmatprep.subr.mxu0 0.0
    %6572 = vmatpush2.msra.mxu0 0.0
    %6573 = vmatprep.subr.mxu0 0.0
    %6574 = vmatpush2.msra.mxu0 0.0
    %6575 = vmatprep.subr.mxu0 0.0
    %6576 = vmatpush2.msra.mxu0 0.0
    %6577 = vmatprep.subr.mxu0 0.0
    %6578 = vmatpush2.msra.mxu0 0.0
    %6579 = vmatprep.subr.mxu0 0.0
    %6580 = vmatpush2.msra.mxu0 0.0
    %6581 = vmatprep.subr.mxu0 0.0
    %6582 = vmatpush2.msra.mxu0 0.0
    %6583 = vmatprep.subr.mxu0 0.0
    %6584 = vmatpush2.msra.mxu0 0.0
    %6585 = vmatprep.subr.mxu0 0.0
    %6586 = vmatpush2.msra.mxu0 0.0
    %6587 = vmatprep.subr.mxu0 0.0
    %6588 = vmatpush2.msra.mxu0 0.0
    %6589 = vmatprep.subr.mxu0 0.0
    %6590 = vmatpush2.msra.mxu0 0.0
    %6591 = vmatprep.subr.mxu0 0.0
    %6592 = vmatpush2.msra.mxu0 0.0
    %6593 = vmatprep.subr.mxu0 0.0
    %6594 = vmatpush2.msra.mxu0 0.0
    %6595 = vmatprep.subr.mxu0 0.0
    %6596 = vmatpush2.msra.mxu0 0.0
    %6597 = vmatprep.subr.mxu0 0.0
    %6598 = vmatpush2.msra.mxu0 0.0
    %6599 = vmatprep.subr.mxu0 0.0
    %6600 = vmatpush2.msra.mxu0 0.0
    %6601 = vmatprep.mubr.f32.mxu0 0.0
    %6602 = vmatmul.mubr.f32.gmra.mxu0 %v6535
    %v6603 = vpop.f32.mrf.mxu0
    %v6604 = vadd.f32 0.0, %v6603
    %v6605 = vpop.f32.mrf.mxu0
    %v6606 = vadd.f32 0.0, %v6605
    %6607 = vdwg.mxu0
    %v6608 = vpack.c.bf16 %v6604, %v6604
    %v6609 = vpack.c.bf16 %v6606, %v6606
    %v6610 = vld [vmem:[#allocation15] sm:$0xf]
    %v6611 = vld [vmem:[#allocation15 + $0x4] sm:$0xf]
    %v6612 = vld [vmem:[#allocation15 + $0x8] sm:$0xf]
    %v6613 = vld [vmem:[#allocation15 + $0xc] sm:$0xf]
    %v6614 = vld [vmem:[#allocation15 + $0x10] sm:$0xf]
    %v6615 = vld [vmem:[#allocation15 + $0x14] sm:$0xf]
    %v6616 = vld [vmem:[#allocation15 + $0x18] sm:$0xf]
    %v6617 = vld [vmem:[#allocation15 + $0x1c] sm:$0xf]
    %v6618 = vld [vmem:[#allocation15 + $0x20] sm:$0xf]
    %v6619 = vld [vmem:[#allocation15 + $0x24] sm:$0xf]
    %v6620 = vld [vmem:[#allocation15 + $0x28] sm:$0xf]
    %v6621 = vld [vmem:[#allocation15 + $0x2c] sm:$0xf]
    %v6622 = vld [vmem:[#allocation15 + $0x30] sm:$0xf]
    %v6623 = vld [vmem:[#allocation15 + $0x34] sm:$0xf]
    %v6624 = vld [vmem:[#allocation15 + $0x38] sm:$0xf]
    %v6625 = vld [vmem:[#allocation15 + $0x3c] sm:$0xf]
    %v6626 = vld [vmem:[#allocation15 + $0x40] sm:$0xf]
    %v6627 = vld [vmem:[#allocation15 + $0x44] sm:$0xf]
    %v6628 = vld [vmem:[#allocation15 + $0x48] sm:$0xf]
    %v6629 = vld [vmem:[#allocation15 + $0x4c] sm:$0xf]
    %v6630 = vld [vmem:[#allocation15 + $0x50] sm:$0xf]
    %v6631 = vld [vmem:[#allocation15 + $0x54] sm:$0xf]
    %v6632 = vld [vmem:[#allocation15 + $0x58] sm:$0xf]
    %v6633 = vld [vmem:[#allocation15 + $0x5c] sm:$0xf]
    %v6634 = vld [vmem:[#allocation15 + $0x60] sm:$0xf]
    %v6635 = vld [vmem:[#allocation15 + $0x64] sm:$0xf]
    %v6636 = vld [vmem:[#allocation15 + $0x68] sm:$0xf]
    %v6637 = vld [vmem:[#allocation15 + $0x6c] sm:$0xf]
    %v6638 = vld [vmem:[#allocation15 + $0x70] sm:$0xf]
    %v6639 = vld [vmem:[#allocation15 + $0x74] sm:$0xf]
    %v6640 = vld [vmem:[#allocation15 + $0x78] sm:$0xf]
    %v6641 = vld [vmem:[#allocation15 + $0x7c] sm:$0xf]
    %v6642 = vld [vmem:[%s11] sm:$0x1]
    %v6644 = vlaneseq
    %v6645 = vshrl.u32 %v6644, 7
    %v6646 = vsub.s32 0, %v6645
    %v6647 = vrot.slane %v6642, %v6646
    %v6681 = vunpack.c.l.b16 %v6610
    %v6682 = vunpack.c.l.b16 %v6611
    %v6683 = vunpack.c.l.b16 %v6612
    %v6684 = vunpack.c.l.b16 %v6613
    %v6685 = vunpack.c.l.b16 %v6614
    %v6686 = vunpack.c.l.b16 %v6615
    %v6687 = vunpack.c.l.b16 %v6616
    %v6688 = vunpack.c.l.b16 %v6617
    %v6689 = vunpack.c.l.b16 %v6618
    %v6690 = vunpack.c.l.b16 %v6619
    %v6691 = vunpack.c.l.b16 %v6620
    %v6692 = vunpack.c.l.b16 %v6621
    %v6693 = vunpack.c.l.b16 %v6622
    %v6694 = vunpack.c.l.b16 %v6623
    %v6695 = vunpack.c.l.b16 %v6624
    %v6696 = vunpack.c.l.b16 %v6625
    %v6697 = vunpack.c.l.b16 %v6626
    %v6698 = vunpack.c.l.b16 %v6627
    %v6699 = vunpack.c.l.b16 %v6628
    %v6700 = vunpack.c.l.b16 %v6629
    %v6701 = vunpack.c.l.b16 %v6630
    %v6702 = vunpack.c.l.b16 %v6631
    %v6703 = vunpack.c.l.b16 %v6632
    %v6704 = vunpack.c.l.b16 %v6633
    %v6705 = vunpack.c.l.b16 %v6634
    %v6706 = vunpack.c.l.b16 %v6635
    %v6707 = vunpack.c.l.b16 %v6636
    %v6708 = vunpack.c.l.b16 %v6637
    %v6709 = vunpack.c.l.b16 %v6638
    %v6710 = vunpack.c.l.b16 %v6639
    %v6711 = vunpack.c.l.b16 %v6640
    %v6712 = vunpack.c.l.b16 %v6641
    %v6713 = vpack.c.b16 %v6682, %v6681
    %v6714 = vpack.c.b16 %v6684, %v6683
    %v6715 = vpack.c.b16 %v6686, %v6685
    %v6716 = vpack.c.b16 %v6688, %v6687
    %v6717 = vpack.c.b16 %v6690, %v6689
    %v6718 = vpack.c.b16 %v6692, %v6691
    %v6719 = vpack.c.b16 %v6694, %v6693
    %v6720 = vpack.c.b16 %v6696, %v6695
    %v6721 = vpack.c.b16 %v6698, %v6697
    %v6722 = vpack.c.b16 %v6700, %v6699
    %v6723 = vpack.c.b16 %v6702, %v6701
    %v6724 = vpack.c.b16 %v6704, %v6703
    %v6725 = vpack.c.b16 %v6706, %v6705
    %v6726 = vpack.c.b16 %v6708, %v6707
    %v6727 = vpack.c.b16 %v6710, %v6709
    %v6728 = vpack.c.b16 %v6712, %v6711
    %6745 = vmatprep.subr.bf16.mxu0 0
    %6746 = vmatpush1.bf16.msra.mxu0 %v6720
    %6747 = vmatprep.subr.bf16.mxu0 0
    %6748 = vmatpush1.bf16.msra.mxu0 %v6719
    %6749 = vmatprep.subr.bf16.mxu0 0
    %6750 = vmatpush1.bf16.msra.mxu0 %v6718
    %6751 = vmatprep.subr.bf16.mxu0 0
    %6752 = vmatpush1.bf16.msra.mxu0 %v6717
    %6753 = vmatprep.subr.bf16.mxu0 0
    %6754 = vmatpush1.bf16.msra.mxu0 %v6716
    %6755 = vmatprep.subr.bf16.mxu0 0
    %6756 = vmatpush1.bf16.msra.mxu0 %v6715
    %6757 = vmatprep.subr.bf16.mxu0 0
    %6758 = vmatpush1.bf16.msra.mxu0 %v6714
    %6759 = vmatprep.subr.bf16.mxu0 0
    %6760 = vmatpush1.bf16.msra.mxu0 %v6713
    %6761 = vmatprep.subr.bf16.mxu0 0
    %6762 = vmatpush2.bf16.msra.mxu0 %v6728
    %6763 = vmatprep.subr.bf16.mxu0 0
    %6764 = vmatpush2.bf16.msra.mxu0 %v6727
    %6765 = vmatprep.subr.bf16.mxu0 0
    %6766 = vmatpush2.bf16.msra.mxu0 %v6726
    %6767 = vmatprep.subr.bf16.mxu0 0
    %6768 = vmatpush2.bf16.msra.mxu0 %v6725
    %6769 = vmatprep.subr.bf16.mxu0 0
    %6770 = vmatpush2.bf16.msra.mxu0 %v6724
    %6771 = vmatprep.subr.bf16.mxu0 0
    %6772 = vmatpush2.bf16.msra.mxu0 %v6723
    %6773 = vmatprep.subr.bf16.mxu0 0
    %6774 = vmatpush2.bf16.msra.mxu0 %v6722
    %6775 = vmatprep.subr.bf16.mxu0 0
    %6776 = vmatpush2.bf16.msra.mxu0 %v6721
    %6777 = vmatprep.mubr.bf16.mxu0 %v6609
    %6778 = vmatmul.mubr.bf16.gmra.mxu0 %v6608
    %v6779 = vpop.f32.mrf.mxu0
    %v6780 = vadd.f32 %v6647, %v6779
    %v6781 = vpop.f32.mrf.mxu0
    %v6782 = vpop.f32.mrf.mxu0
    %v6783 = vpop.f32.mrf.mxu0
    %6784 = vdwg.mxu0
    %v6785 = vld [vmem:[%s12] sm:$0x3]
    %6787 = vrot.lane.b32.xlu0 %v6780, 112
    %v6788 = vpop.permute.xlu0 %6787
    %v6790 = vmul.f32 %v6785, %v6788
    %v6791 = vadd.f32 %v6780, %v6790
    %vm6792 = vcmask 123904
    %6793 = vst.msk [vmem:[#allocation19] sm:$0x3] %vm6792, %v6791
    %6794 = vrot.lane.b32.xlu0 %v6780, 96
    %v6795 = vpop.permute.xlu0 %6794
    %6797 = vst.msk [vmem:[#allocation21] sm:$0x3] %vm6792, %v6795
    %v6799 = vunpack.c.l.s4 1966171168
    %v6800 = vunpack.c.0.s8 %v6799
    %v6801 = vlaneseq
    %v6802 = vshrl.u32 %v6801, 7
    %v6803 = vsub.s32 %v6800, %v6802
    %v6804 = vrot.slane %v6780, %v6803
    %v6805 = vcombine.high %v6804, %v6804
    %v6807 = vunpack.c.l.s4 1966171168
    %v6808 = vunpack.c.0.s8 %v6807
    %v6809 = vlaneseq
    %v6810 = vshrl.u32 %v6809, 7
    %v6811 = vsub.s32 %v6808, %v6810
    %v6812 = vrot.slane %v6804, %v6811
    %v6814 = vunpack.c.l.s4 1966171168
    %v6815 = vunpack.c.0.s8 %v6814
    %v6816 = vlaneseq
    %v6817 = vshrl.u32 %v6816, 7
    %v6818 = vsub.s32 %v6815, %v6817
    %v6819 = vrot.slane %v6805, %v6818
    %v6820 = vld [vmem:[%s13] sm:$0xf]
    %v6821 = vld [vmem:[%s13 + $0x4] sm:$0xf]
    %v6822 = vlaneseq
    %v6823 = vshrl.u32 %v6822, 7
    %v6824 = vsub.s32 0, %v6823
    %v6825 = vrot.slane %v6812, %v6824
    %v6826 = vlaneseq
    %v6827 = vshrl.u32 %v6826, 7
    %v6828 = vsub.s32 0, %v6827
    %v6829 = vrot.slane %v6819, %v6828
    %6834 = vrot.lane.b32.xlu0 %v6820, 48
    %v6835 = vpop.permute.xlu0 %6834
    %6836 = vrot.lane.b32.xlu0 %v6821, 48
    %v6837 = vpop.permute.xlu0 %6836
    %v6840 = vadd.f32 %v6825, %v6835
    %v6841 = vadd.f32 %v6829, %v6837
    %6844 = vrot.lane.b32.xlu0 %v6840, 80
    %v6845 = vpop.permute.xlu0 %6844
    %6846 = vrot.lane.b32.xlu0 %v6841, 80
    %v6847 = vpop.permute.xlu0 %6846
    %vm6850 = vcmask 519168
    %6851 = vst.msk [vmem:[#allocation22] sm:$0xf] %vm6850, %v6845
    %6852 = vst.msk [vmem:[#allocation22 + $0x4] sm:$0xf] %vm6850, %v6847
    %v6853 = vld [vmem:[#allocation17] sm:$0x1]
    %v6855 = vlaneseq
    %v6856 = vshrl.u32 %v6855, 7
    %v6857 = vsub.s32 0, %v6856
    %v6858 = vrot.slane %v6853, %v6857
    %6859 = vrot.lane.b32.xlu0 %v6858, 48
    %v6860 = vpop.permute.xlu0 %6859
    %v6862 = vmul.f32 %v6840, %v6860
    %v6863 = vmul.f32 %v6841, %v6860
    %6866 = vrot.lane.b32.xlu0 %v6862, 80
    %v6867 = vpop.permute.xlu0 %6866
    %6868 = vrot.lane.b32.xlu0 %v6863, 80
    %v6869 = vpop.permute.xlu0 %6868
    %v6872 = vsel %vm6850, %v6867, 0.0
    %6873 = vadd.xlane.f32.xlu0 %v6872
    %v6874 = vpop.xlane.xlu0 %6873
    %v6875 = vsel %vm6850, %v6869, 0.0
    %6876 = vadd.xlane.f32.xlu0 %v6875
    %v6877 = vpop.xlane.xlu0 %6876
    %v6878 = vld [vmem:[#allocation2] sm:$0x1]
    %v6880 = vlaneseq
    %v6881 = vshrl.u32 %v6880, 7
    %v6882 = vsub.s32 0, %v6881
    %v6883 = vrot.slane %v6878, %v6882
    %v6885 = vadd.f32 %v6874, %v6883
    %v6886 = vadd.f32 %v6877, %v6883
    %vm6887 = vcmask 3072
    %6888 = vst.msk [vmem:[%s20] sm:$0xf] %vm6887, %v6885
    %6889 = vst.msk [vmem:[%s20 + $0x4] sm:$0xf] %vm6887, %v6886
    // Predicated region
    $region102: #{model_forward.1} parent=1 // pred_check
      _
    $region103: #{model_forward.1} parent=1 // pred_check_branch
      %6891 = sbr.rel (0) target = $region105
    $region104: #{model_forward.1} parent=1 // pred_region
      %s6893 = ssub.s32 2048, 2048
      %6894 = vsyncadd [#allocation5], %s6893
      %s6895 = sshll.u32 [#allocation18], 4
      %s6896 = int_to_ptr.vmem [resolvable:$true] %s6895
      %6901 = dma.vmem_to_hbm [thread:$0]  %s6896, 2048, %s16, [#allocation5], 256, 256, 16
    $region105: #{model_forward.1} parent=1 // pred_fallthru
      _
    // Predicated region
    $region106: #{model_forward.1} parent=1 // pred_check
      _
    $region107: #{model_forward.1} parent=1 // pred_check_branch
      %6903 = sbr.rel (0) target = $region109
    $region108: #{model_forward.1} parent=1 // pred_region
      %s6905 = ssub.s32 32, 32
      %6906 = vsyncadd [#allocation20], %s6905
      %s6908 = sshll.u32 [#allocation19], 4
      %s6909 = int_to_ptr.vmem [resolvable:$true] %s6908
      %6911 = dma.vmem_to_hbm [thread:$0]  %s6909, 32, %s17, [#allocation20]
    $region109: #{model_forward.1} parent=1 // pred_fallthru
      _
    // Predicated region
    $region110: #{model_forward.1} parent=1 // pred_check
      _
    $region111: #{model_forward.1} parent=1 // pred_check_branch
      %6913 = sbr.rel (0) target = $region113
    $region112: #{model_forward.1} parent=1 // pred_region
      %s6915 = ssub.s32 32, 32
      %6916 = vsyncadd [#allocation20], %s6915
      %s6918 = sshll.u32 [#allocation21], 4
      %s6919 = int_to_ptr.vmem [resolvable:$true] %s6918
      %6921 = dma.vmem_to_hbm [thread:$0]  %s6919, 32, %s18, [#allocation20]
    $region113: #{model_forward.1} parent=1 // pred_fallthru
      _
    // Predicated region
    $region114: #{model_forward.1} parent=1 // pred_check
      _
    $region115: #{model_forward.1} parent=1 // pred_check_branch
      %6923 = sbr.rel (0) target = $region117
    $region116: #{model_forward.1} parent=1 // pred_region
      %s6925 = ssub.s32 128, 128
      %6926 = vsyncadd [#allocation23], %s6925
      %s6927 = sshll.u32 [#allocation22], 4
      %s6928 = int_to_ptr.vmem [resolvable:$true] %s6927
      %6933 = dma.vmem_to_hbm [thread:$0]  %s6928, 128, %s19, [#allocation23], 64, 64, 4
    $region117: #{model_forward.1} parent=1 // pred_fallthru
      _
    // Predicated region
    $region118: #{model_forward.1} parent=1 // pred_check
      _
    $region119: #{model_forward.1} parent=1 // pred_check_branch
      %6935 = sbr.rel (0) target = $region121
    $region120: #{model_forward.1} parent=1 // pred_region
      _
    $region121: #{model_forward.1} parent=1 // pred_fallthru
      _
    // Predicated region
    $region122: #{model_forward.1} parent=1 // pred_check
      _
    $region123: #{model_forward.1} parent=1 // pred_check_branch
      %6937 = sbr.rel (0) target = $region125
    $region124: #{model_forward.1} parent=1 // pred_region
      %6938 = dma.done [#allocation5], 2048
    $region125: #{model_forward.1} parent=1 // pred_fallthru
      _
    // Predicated region
    $region126: #{model_forward.1} parent=1 // pred_check
      _
    $region127: #{model_forward.1} parent=1 // pred_check_branch
      %6940 = sbr.rel (0) target = $region129
    $region128: #{model_forward.1} parent=1 // pred_region
      %6941 = dma.done [#allocation20], 32
    $region129: #{model_forward.1} parent=1 // pred_fallthru
      _
    // Predicated region
    $region130: #{model_forward.1} parent=1 // pred_check
      _
    $region131: #{model_forward.1} parent=1 // pred_check_branch
      %6943 = sbr.rel (0) target = $region133
    $region132: #{model_forward.1} parent=1 // pred_region
      %6944 = dma.done [#allocation20], 32
    $region133: #{model_forward.1} parent=1 // pred_fallthru
      _
    // Predicated region
    $region134: #{model_forward.1} parent=1 // pred_check
      _
    $region135: #{model_forward.1} parent=1 // pred_check_branch
      %6946 = sbr.rel (0) target = $region137
    $region136: #{model_forward.1} parent=1 // pred_region
      %6947 = dma.done [#allocation23], 128
    $region137: #{model_forward.1} parent=1 // pred_fallthru
      _
    // Predicated region
    $region138: #{model_forward.1} parent=1 // pred_check
      _
    $region139: #{model_forward.1} parent=1 // pred_check_branch
      %6949 = sbr.rel (0) target = $region141
    $region140: #{model_forward.1} parent=1 // pred_region
      _
    $region141: #{model_forward.1} parent=1 // pred_fallthru
      _
    %6950 = vsyncpa [#allocation4], 1
    %6951 = vsyncpa [#allocation7], 1
    %6952 = vsyncpa [#allocation10], 1
    %6953 = vsyncpa [#allocation13], 1
    %6954 = vsyncpa [#allocation16], 1
    %6955 = vsyncpa [#allocation5], 1
    %6956 = vsyncpa [#allocation20], 1
    %6957 = vsyncpa [#allocation23], 1

</llo_original>
